<compile_context>
chip_gen: v7x
topology: tpu7x:2x2x1
jax: 0.10.0
libtpu: 0.0.40
codegen_flags: <defaults>
</compile_context>

<pallas_src>
import jax
import jax.numpy as jnp
from jax import lax
from jax.experimental import pallas as pl
from jax.experimental.pallas import tpu as pltpu


# ---------------------------------------------------------------------------
# Fused kernel factory (n_layer/T/B/H/out_dim are static shape parameters).
# ---------------------------------------------------------------------------
def _make_fused_kernel(n_layer, T, B, H):
    def kernel(*args):
        # --- unpack refs ---------------------------------------------------
        x_ref = args[0]                                    # (B, T, D_in)
        pos = 1
        layer_refs = []
        for _ in range(n_layer):
            layer_refs.append((args[pos], args[pos + 1], args[pos + 2]))
            pos += 3                                       # wih (4,D,H), whh (4,H,H), b (4,1,H)
        w1_refs = args[pos:pos + n_layer]                  # n_layer x (H, 128)
        pos += n_layer
        b1_ref, w2_ref, b2_ref, w3_ref, b3_ref = args[pos:pos + 5]
        pos += 5
        o_ref = args[pos]                                  # (B, out_dim)

        # --- hoist all loop-invariant loads / broadcasts ---------------------
        layer_w = []
        for wih_ref, whh_ref, b_ref in layer_refs:
            wih = [wih_ref[g] for g in range(4)]                       # (D_in, H) each
            whh = [whh_ref[g] for g in range(4)]                       # (H, H) each
            bias = [jnp.broadcast_to(b_ref[g], (B, H)) for g in range(4)]
            layer_w.append((wih, whh, bias))

        h = [jnp.zeros((B, H), jnp.float32) for _ in range(n_layer)]
        c = [jnp.zeros((B, H), jnp.float32) for _ in range(n_layer)]

        # --- fully unrolled time loop; all layers advance per step ----------
        # (layer l at time t only needs layer l-1's output at time t, so the
        #  intermediate sequence never needs to exist)
        for t in range(T):
            inp = x_ref[:, t, :]                                       # (B, D_in), static slice
            for l in range(n_layer):
                wih, whh, bias = layer_w[l]
                pre = [jnp.dot(inp, wih[k], preferred_element_type=jnp.float32)
                       + jnp.dot(h[l], whh[k], preferred_element_type=jnp.float32)
                       + bias[k]
                       for k in range(4)]                              # gate-aligned (B, H)
                i_g = jax.nn.sigmoid(pre[0])
                f_g = jax.nn.sigmoid(pre[1])
                g_g = jnp.tanh(pre[2])
                o_g = jax.nn.sigmoid(pre[3])
                c[l] = f_g * c[l] + i_g * g_g
                h[l] = o_g * jnp.tanh(c[l])
                inp = h[l]

        # --- MLP head: flat(h_n) @ W1 realized as per-layer row slabs -------
        lin = b1_ref[...]                                              # (1, 128) broadcasts
        for l in range(n_layer):
            lin = lin + jnp.dot(h[l], w1_refs[l][...],
                                preferred_element_type=jnp.float32)
        lin = jnp.maximum(lin, 0.0)
        lin = jnp.maximum(jnp.dot(lin, w2_ref[...],
                                  preferred_element_type=jnp.float32) + b2_ref[...], 0.0)
        o_ref[...] = (jnp.dot(lin, w3_ref[...],
                              preferred_element_type=jnp.float32)
                      + b3_ref[...]).astype(o_ref.dtype)

    return kernel


# ---------------------------------------------------------------------------
# Forward wrapper: one pallas_call, everything resident in VMEM.
# ---------------------------------------------------------------------------
@jax.jit
def deep_lstm_forward(x_btd, kparams):
    B, T, _D = x_btd.shape
    n_layer = len(kparams["layers"])
    H = kparams["layers"][0]["whh"].shape[-1]
    out_dim = kparams["b3"].shape[-1]

    args = [x_btd.astype(jnp.float32)]
    for lp in kparams["layers"]:
        args += [lp["wih"], lp["whh"], lp["bias"]]
    args += list(kparams["w1_slabs"])
    args += [kparams["b1"], kparams["w2"], kparams["b2"], kparams["w3"], kparams["b3"]]

    vmem_spec = pl.BlockSpec(memory_space=pltpu.MemorySpace.VMEM)
    return pl.pallas_call(
        _make_fused_kernel(n_layer, T, B, H),
        out_shape=jax.ShapeDtypeStruct((B, out_dim), jnp.float32),
        in_specs=[vmem_spec] * len(args),
        out_specs=vmem_spec,
    )(*args)


# ---------------------------------------------------------------------------
# Parameter init (PyTorch-layout) + conversion to kernel-friendly layout.
# ---------------------------------------------------------------------------
def init_params(key, var_dim, dim_h, n_layer):
    params = {"lstm": []}
    k_lstm, k1, k2, k3 = jax.random.split(key, 4)
    bound_h = 1.0 / (dim_h ** 0.5)
    ks = jax.random.split(k_lstm, n_layer * 4)
    for l in range(n_layer):
        d_in = var_dim if l == 0 else dim_h
        kwi, kwh, kbi, kbh = ks[4 * l: 4 * l + 4]
        params["lstm"].append({
            "w_ih": jax.random.uniform(kwi, (4 * dim_h, d_in), jnp.float32, -bound_h, bound_h),
            "w_hh": jax.random.uniform(kwh, (4 * dim_h, dim_h), jnp.float32, -bound_h, bound_h),
            "b_ih": jax.random.uniform(kbi, (4 * dim_h,), jnp.float32, -bound_h, bound_h),
            "b_hh": jax.random.uniform(kbh, (4 * dim_h,), jnp.float32, -bound_h, bound_h),
        })

    def linear(k, fan_out, fan_in):
        ka, kb = jax.random.split(k)
        bound = 1.0 / (fan_in ** 0.5)
        w = jax.random.uniform(ka, (fan_out, fan_in), jnp.float32, -bound, bound)
        b = jax.random.uniform(kb, (fan_out,), jnp.float32, -bound, bound)
        return w, b

    in_feat = dim_h * n_layer
    params["w1"], params["b1"] = linear(k1, 128, in_feat)
    params["w2"], params["b2"] = linear(k2, 64, 128)
    params["w3"], params["b3"] = linear(k3, 14, 64)
    return params


def prepare_kernel_params(raw):
    """PyTorch layout -> gate-split / row-split kernel layout."""
    H = raw["lstm"][0]["w_hh"].shape[1]
    n_layer = len(raw["lstm"])
    layers = []
    for lp in raw["lstm"]:
        bias = lp["b_ih"] + lp["b_hh"]
        wih_g = jnp.stack([lp["w_ih"][g * H:(g + 1) * H, :].T for g in range(4)], 0)  # (4, D_in, H)
        whh_g = jnp.stack([lp["w_hh"][g * H:(g + 1) * H, :].T for g in range(4)], 0)  # (4, H, H)
        b_g = jnp.stack([bias[g * H:(g + 1) * H][None, :] for g in range(4)], 0)      # (4, 1, H)
        layers.append({"wih": wih_g, "whh": whh_g, "bias": b_g})
    w1_t = raw["w1"].T                                                                # (n_layer*H, 128)
    w1_slabs = tuple(w1_t[l * H:(l + 1) * H, :] for l in range(n_layer))              # per-layer (H, 128)
    return {
        "layers": layers,
        "w1_slabs": w1_slabs,
        "b1": raw["b1"][None, :],
        "w2": raw["w2"].T,
        "b2": raw["b2"][None, :],
        "w3": raw["w3"].T,
        "b3": raw["b3"][None, :],
    }


# ---------------------------------------------------------------------------
# Pure-JAX reference (PyTorch-layout params) for correctness verification.
# ---------------------------------------------------------------------------
def deep_lstm_reference(x_btd, raw):
    x = jnp.transpose(x_btd, (1, 0, 2)).astype(jnp.float32)   # (T, B, D)
    B = x.shape[1]
    h_finals = []
    seq = x
    for layer in raw["lstm"]:
        H = layer["w_hh"].shape[1]
        w_ih_t = layer["w_ih"].T
        w_hh_t = layer["w_hh"].T
        bias = (layer["b_ih"] + layer["b_hh"])[None, :]

        def step(carry, x_t, w_ih_t=w_ih_t, w_hh_t=w_hh_t, bias=bias, H=H):
            h, c = carry
            gates = x_t @ w_ih_t + h @ w_hh_t + bias
            i = jax.nn.sigmoid(gates[:, 0 * H:1 * H])
            f = jax.nn.sigmoid(gates[:, 1 * H:2 * H])
            g = jnp.tanh(gates[:, 2 * H:3 * H])
            o = jax.nn.sigmoid(gates[:, 3 * H:4 * H])
            c_new = f * c + i * g
            h_new = o * jnp.tanh(c_new)
            return (h_new, c_new), h_new

        init = (jnp.zeros((B, H), jnp.float32), jnp.zeros((B, H), jnp.float32))
        (h_n, _), seq = lax.scan(step, init, seq)
        h_finals.append(h_n)
    flat = jnp.transpose(jnp.stack(h_finals, 0), (1, 0, 2)).reshape(B, -1)
    h1 = jnp.maximum(flat @ raw["w1"].T + raw["b1"], 0.0)
    h2 = jnp.maximum(h1 @ raw["w2"].T + raw["b2"], 0.0)
    return h2 @ raw["w3"].T + raw["b3"]


if __name__ == "__main__":
    # TODO(synk): self.bn (BatchNorm2d) is never used in the PyTorch forward,
    # so it is intentionally not implemented.
    var_dim, dim_h, n_layer, batch_size, seq_len = 4, 32, 2, 2, 8

    key = jax.random.PRNGKey(0)
    k_param, k_x = jax.random.split(key)
    raw_params = init_params(k_param, var_dim, dim_h, n_layer)
    kparams = prepare_kernel_params(raw_params)
    x = jax.random.normal(k_x, (batch_size, seq_len, var_dim), jnp.float32)

    logits = deep_lstm_forward(x, kparams)
    jax.block_until_ready(logits)

    ref = deep_lstm_reference(x, raw_params)
    assert logits.shape == (batch_size, 14)
    assert jnp.allclose(logits, ref, atol=1e-4, rtol=1e-4), \
        float(jnp.max(jnp.abs(logits - ref)))

    print("KERNEL_OK")
</pallas_src>

<mosaic_0001>
module attributes {stable_mosaic.version = 11 : i64} {
  func.func @kernel(%arg0: memref<2x8x4xf32, #tpu.memory_space<vmem>>, %arg1: memref<4x4x32xf32, #tpu.memory_space<vmem>>, %arg2: memref<4x32x32xf32, #tpu.memory_space<vmem>>, %arg3: memref<4x1x32xf32, #tpu.memory_space<vmem>>, %arg4: memref<4x32x32xf32, #tpu.memory_space<vmem>>, %arg5: memref<4x32x32xf32, #tpu.memory_space<vmem>>, %arg6: memref<4x1x32xf32, #tpu.memory_space<vmem>>, %arg7: memref<32x128xf32, #tpu.memory_space<vmem>>, %arg8: memref<32x128xf32, #tpu.memory_space<vmem>>, %arg9: memref<1x128xf32, #tpu.memory_space<vmem>>, %arg10: memref<128x64xf32, #tpu.memory_space<vmem>>, %arg11: memref<1x64xf32, #tpu.memory_space<vmem>>, %arg12: memref<64x14xf32, #tpu.memory_space<vmem>>, %arg13: memref<1x14xf32, #tpu.memory_space<vmem>>, %arg14: memref<2x14xf32, #tpu.memory_space<vmem>>) attributes {dimension_semantics = [], scalar_prefetch = 0 : i64, scratch_operands = 0 : i64, tpu.core_type = #tpu.core_type<tc>} {
    %c0 = arith.constant 0 : index
    %c0_0 = arith.constant 0 : index
    %c0_1 = arith.constant 0 : index
    %0 = vector.load %arg1[%c0, %c0_0, %c0_1] : memref<4x4x32xf32, #tpu.memory_space<vmem>>, vector<1x4x32xf32>
    %1 = vector.shape_cast %0 : vector<1x4x32xf32> to vector<4x32xf32>
    %c1 = arith.constant 1 : index
    %c0_2 = arith.constant 0 : index
    %c0_3 = arith.constant 0 : index
    %2 = vector.load %arg1[%c1, %c0_2, %c0_3] : memref<4x4x32xf32, #tpu.memory_space<vmem>>, vector<1x4x32xf32>
    %3 = vector.shape_cast %2 : vector<1x4x32xf32> to vector<4x32xf32>
    %c2 = arith.constant 2 : index
    %c0_4 = arith.constant 0 : index
    %c0_5 = arith.constant 0 : index
    %4 = vector.load %arg1[%c2, %c0_4, %c0_5] : memref<4x4x32xf32, #tpu.memory_space<vmem>>, vector<1x4x32xf32>
    %5 = vector.shape_cast %4 : vector<1x4x32xf32> to vector<4x32xf32>
    %c3 = arith.constant 3 : index
    %c0_6 = arith.constant 0 : index
    %c0_7 = arith.constant 0 : index
    %6 = vector.load %arg1[%c3, %c0_6, %c0_7] : memref<4x4x32xf32, #tpu.memory_space<vmem>>, vector<1x4x32xf32>
    %7 = vector.shape_cast %6 : vector<1x4x32xf32> to vector<4x32xf32>
    %c0_8 = arith.constant 0 : index
    %c0_9 = arith.constant 0 : index
    %c0_10 = arith.constant 0 : index
    %8 = vector.load %arg2[%c0_8, %c0_9, %c0_10] : memref<4x32x32xf32, #tpu.memory_space<vmem>>, vector<1x32x32xf32>
    %9 = vector.shape_cast %8 : vector<1x32x32xf32> to vector<32x32xf32>
    %c1_11 = arith.constant 1 : index
    %c0_12 = arith.constant 0 : index
    %c0_13 = arith.constant 0 : index
    %10 = vector.load %arg2[%c1_11, %c0_12, %c0_13] : memref<4x32x32xf32, #tpu.memory_space<vmem>>, vector<1x32x32xf32>
    %11 = vector.shape_cast %10 : vector<1x32x32xf32> to vector<32x32xf32>
    %c2_14 = arith.constant 2 : index
    %c0_15 = arith.constant 0 : index
    %c0_16 = arith.constant 0 : index
    %12 = vector.load %arg2[%c2_14, %c0_15, %c0_16] : memref<4x32x32xf32, #tpu.memory_space<vmem>>, vector<1x32x32xf32>
    %13 = vector.shape_cast %12 : vector<1x32x32xf32> to vector<32x32xf32>
    %c3_17 = arith.constant 3 : index
    %c0_18 = arith.constant 0 : index
    %c0_19 = arith.constant 0 : index
    %14 = vector.load %arg2[%c3_17, %c0_18, %c0_19] : memref<4x32x32xf32, #tpu.memory_space<vmem>>, vector<1x32x32xf32>
    %15 = vector.shape_cast %14 : vector<1x32x32xf32> to vector<32x32xf32>
    %c0_20 = arith.constant 0 : index
    %c0_21 = arith.constant 0 : index
    %c0_22 = arith.constant 0 : index
    %16 = vector.load %arg3[%c0_20, %c0_21, %c0_22] : memref<4x1x32xf32, #tpu.memory_space<vmem>>, vector<1x1x32xf32>
    %17 = vector.shape_cast %16 : vector<1x1x32xf32> to vector<1x32xf32>
    %18 = vector.shape_cast %17 : vector<1x32xf32> to vector<1x32xf32>
    %19 = vector.broadcast %18 : vector<1x32xf32> to vector<2x32xf32>
    %c1_23 = arith.constant 1 : index
    %c0_24 = arith.constant 0 : index
    %c0_25 = arith.constant 0 : index
    %20 = vector.load %arg3[%c1_23, %c0_24, %c0_25] : memref<4x1x32xf32, #tpu.memory_space<vmem>>, vector<1x1x32xf32>
    %21 = vector.shape_cast %20 : vector<1x1x32xf32> to vector<1x32xf32>
    %22 = vector.shape_cast %21 : vector<1x32xf32> to vector<1x32xf32>
    %23 = vector.broadcast %22 : vector<1x32xf32> to vector<2x32xf32>
    %c2_26 = arith.constant 2 : index
    %c0_27 = arith.constant 0 : index
    %c0_28 = arith.constant 0 : index
    %24 = vector.load %arg3[%c2_26, %c0_27, %c0_28] : memref<4x1x32xf32, #tpu.memory_space<vmem>>, vector<1x1x32xf32>
    %25 = vector.shape_cast %24 : vector<1x1x32xf32> to vector<1x32xf32>
    %26 = vector.shape_cast %25 : vector<1x32xf32> to vector<1x32xf32>
    %27 = vector.broadcast %26 : vector<1x32xf32> to vector<2x32xf32>
    %c3_29 = arith.constant 3 : index
    %c0_30 = arith.constant 0 : index
    %c0_31 = arith.constant 0 : index
    %28 = vector.load %arg3[%c3_29, %c0_30, %c0_31] : memref<4x1x32xf32, #tpu.memory_space<vmem>>, vector<1x1x32xf32>
    %29 = vector.shape_cast %28 : vector<1x1x32xf32> to vector<1x32xf32>
    %30 = vector.shape_cast %29 : vector<1x32xf32> to vector<1x32xf32>
    %31 = vector.broadcast %30 : vector<1x32xf32> to vector<2x32xf32>
    %c0_32 = arith.constant 0 : index
    %c0_33 = arith.constant 0 : index
    %c0_34 = arith.constant 0 : index
    %32 = vector.load %arg4[%c0_32, %c0_33, %c0_34] : memref<4x32x32xf32, #tpu.memory_space<vmem>>, vector<1x32x32xf32>
    %33 = vector.shape_cast %32 : vector<1x32x32xf32> to vector<32x32xf32>
    %c1_35 = arith.constant 1 : index
    %c0_36 = arith.constant 0 : index
    %c0_37 = arith.constant 0 : index
    %34 = vector.load %arg4[%c1_35, %c0_36, %c0_37] : memref<4x32x32xf32, #tpu.memory_space<vmem>>, vector<1x32x32xf32>
    %35 = vector.shape_cast %34 : vector<1x32x32xf32> to vector<32x32xf32>
    %c2_38 = arith.constant 2 : index
    %c0_39 = arith.constant 0 : index
    %c0_40 = arith.constant 0 : index
    %36 = vector.load %arg4[%c2_38, %c0_39, %c0_40] : memref<4x32x32xf32, #tpu.memory_space<vmem>>, vector<1x32x32xf32>
    %37 = vector.shape_cast %36 : vector<1x32x32xf32> to vector<32x32xf32>
    %c3_41 = arith.constant 3 : index
    %c0_42 = arith.constant 0 : index
    %c0_43 = arith.constant 0 : index
    %38 = vector.load %arg4[%c3_41, %c0_42, %c0_43] : memref<4x32x32xf32, #tpu.memory_space<vmem>>, vector<1x32x32xf32>
    %39 = vector.shape_cast %38 : vector<1x32x32xf32> to vector<32x32xf32>
    %c0_44 = arith.constant 0 : index
    %c0_45 = arith.constant 0 : index
    %c0_46 = arith.constant 0 : index
    %40 = vector.load %arg5[%c0_44, %c0_45, %c0_46] : memref<4x32x32xf32, #tpu.memory_space<vmem>>, vector<1x32x32xf32>
    %41 = vector.shape_cast %40 : vector<1x32x32xf32> to vector<32x32xf32>
    %c1_47 = arith.constant 1 : index
    %c0_48 = arith.constant 0 : index
    %c0_49 = arith.constant 0 : index
    %42 = vector.load %arg5[%c1_47, %c0_48, %c0_49] : memref<4x32x32xf32, #tpu.memory_space<vmem>>, vector<1x32x32xf32>
    %43 = vector.shape_cast %42 : vector<1x32x32xf32> to vector<32x32xf32>
    %c2_50 = arith.constant 2 : index
    %c0_51 = arith.constant 0 : index
    %c0_52 = arith.constant 0 : index
    %44 = vector.load %arg5[%c2_50, %c0_51, %c0_52] : memref<4x32x32xf32, #tpu.memory_space<vmem>>, vector<1x32x32xf32>
    %45 = vector.shape_cast %44 : vector<1x32x32xf32> to vector<32x32xf32>
    %c3_53 = arith.constant 3 : index
    %c0_54 = arith.constant 0 : index
    %c0_55 = arith.constant 0 : index
    %46 = vector.load %arg5[%c3_53, %c0_54, %c0_55] : memref<4x32x32xf32, #tpu.memory_space<vmem>>, vector<1x32x32xf32>
    %47 = vector.shape_cast %46 : vector<1x32x32xf32> to vector<32x32xf32>
    %c0_56 = arith.constant 0 : index
    %c0_57 = arith.constant 0 : index
    %c0_58 = arith.constant 0 : index
    %48 = vector.load %arg6[%c0_56, %c0_57, %c0_58] : memref<4x1x32xf32, #tpu.memory_space<vmem>>, vector<1x1x32xf32>
    %49 = vector.shape_cast %48 : vector<1x1x32xf32> to vector<1x32xf32>
    %50 = vector.shape_cast %49 : vector<1x32xf32> to vector<1x32xf32>
    %51 = vector.broadcast %50 : vector<1x32xf32> to vector<2x32xf32>
    %c1_59 = arith.constant 1 : index
    %c0_60 = arith.constant 0 : index
    %c0_61 = arith.constant 0 : index
    %52 = vector.load %arg6[%c1_59, %c0_60, %c0_61] : memref<4x1x32xf32, #tpu.memory_space<vmem>>, vector<1x1x32xf32>
    %53 = vector.shape_cast %52 : vector<1x1x32xf32> to vector<1x32xf32>
    %54 = vector.shape_cast %53 : vector<1x32xf32> to vector<1x32xf32>
    %55 = vector.broadcast %54 : vector<1x32xf32> to vector<2x32xf32>
    %c2_62 = arith.constant 2 : index
    %c0_63 = arith.constant 0 : index
    %c0_64 = arith.constant 0 : index
    %56 = vector.load %arg6[%c2_62, %c0_63, %c0_64] : memref<4x1x32xf32, #tpu.memory_space<vmem>>, vector<1x1x32xf32>
    %57 = vector.shape_cast %56 : vector<1x1x32xf32> to vector<1x32xf32>
    %58 = vector.shape_cast %57 : vector<1x32xf32> to vector<1x32xf32>
    %59 = vector.broadcast %58 : vector<1x32xf32> to vector<2x32xf32>
    %c3_65 = arith.constant 3 : index
    %c0_66 = arith.constant 0 : index
    %c0_67 = arith.constant 0 : index
    %60 = vector.load %arg6[%c3_65, %c0_66, %c0_67] : memref<4x1x32xf32, #tpu.memory_space<vmem>>, vector<1x1x32xf32>
    %61 = vector.shape_cast %60 : vector<1x1x32xf32> to vector<1x32xf32>
    %62 = vector.shape_cast %61 : vector<1x32xf32> to vector<1x32xf32>
    %63 = vector.broadcast %62 : vector<1x32xf32> to vector<2x32xf32>
    %cst = arith.constant 0.000000e+00 : f32
    %64 = vector.broadcast %cst : f32 to vector<2x32xf32>
    %cst_68 = arith.constant 0.000000e+00 : f32
    %65 = vector.broadcast %cst_68 : f32 to vector<2x32xf32>
    %cst_69 = arith.constant 0.000000e+00 : f32
    %66 = vector.broadcast %cst_69 : f32 to vector<2x32xf32>
    %cst_70 = arith.constant 0.000000e+00 : f32
    %67 = vector.broadcast %cst_70 : f32 to vector<2x32xf32>
    %c0_71 = arith.constant 0 : index
    %c0_72 = arith.constant 0 : index
    %c0_73 = arith.constant 0 : index
    %68 = vector.load %arg0[%c0_71, %c0_72, %c0_73] : memref<2x8x4xf32, #tpu.memory_space<vmem>>, vector<2x1x4xf32>
    %69 = vector.shape_cast %68 : vector<2x1x4xf32> to vector<2x4xf32>
    %cst_74 = arith.constant dense<0.000000e+00> : vector<2x32xf32>
    %70 = tpu.matmul %69, %1, %cst_74 {dimension_numbers = #tpu.dot_dimension_numbers<[1], [0], [0], [1], [0, 0, 1, 1], [], []>} : vector<2x4xf32>, vector<4x32xf32>, vector<2x32xf32> -> vector<2x32xf32>
    %cst_75 = arith.constant dense<0.000000e+00> : vector<2x32xf32>
    %71 = tpu.matmul %64, %9, %cst_75 {dimension_numbers = #tpu.dot_dimension_numbers<[1], [0], [0], [1], [0, 0, 1, 1], [], []>} : vector<2x32xf32>, vector<32x32xf32>, vector<2x32xf32> -> vector<2x32xf32>
    %72 = arith.addf %70, %71 : vector<2x32xf32>
    %73 = arith.addf %72, %19 : vector<2x32xf32>
    %cst_76 = arith.constant dense<0.000000e+00> : vector<2x32xf32>
    %74 = tpu.matmul %69, %3, %cst_76 {dimension_numbers = #tpu.dot_dimension_numbers<[1], [0], [0], [1], [0, 0, 1, 1], [], []>} : vector<2x4xf32>, vector<4x32xf32>, vector<2x32xf32> -> vector<2x32xf32>
    %cst_77 = arith.constant dense<0.000000e+00> : vector<2x32xf32>
    %75 = tpu.matmul %64, %11, %cst_77 {dimension_numbers = #tpu.dot_dimension_numbers<[1], [0], [0], [1], [0, 0, 1, 1], [], []>} : vector<2x32xf32>, vector<32x32xf32>, vector<2x32xf32> -> vector<2x32xf32>
    %76 = arith.addf %74, %75 : vector<2x32xf32>
    %77 = arith.addf %76, %23 : vector<2x32xf32>
    %cst_78 = arith.constant dense<0.000000e+00> : vector<2x32xf32>
    %78 = tpu.matmul %69, %5, %cst_78 {dimension_numbers = #tpu.dot_dimension_numbers<[1], [0], [0], [1], [0, 0, 1, 1], [], []>} : vector<2x4xf32>, vector<4x32xf32>, vector<2x32xf32> -> vector<2x32xf32>
    %cst_79 = arith.constant dense<0.000000e+00> : vector<2x32xf32>
    %79 = tpu.matmul %64, %13, %cst_79 {dimension_numbers = #tpu.dot_dimension_numbers<[1], [0], [0], [1], [0, 0, 1, 1], [], []>} : vector<2x32xf32>, vector<32x32xf32>, vector<2x32xf32> -> vector<2x32xf32>
    %80 = arith.addf %78, %79 : vector<2x32xf32>
    %81 = arith.addf %80, %27 : vector<2x32xf32>
    %cst_80 = arith.constant dense<0.000000e+00> : vector<2x32xf32>
    %82 = tpu.matmul %69, %7, %cst_80 {dimension_numbers = #tpu.dot_dimension_numbers<[1], [0], [0], [1], [0, 0, 1, 1], [], []>} : vector<2x4xf32>, vector<4x32xf32>, vector<2x32xf32> -> vector<2x32xf32>
    %cst_81 = arith.constant dense<0.000000e+00> : vector<2x32xf32>
    %83 = tpu.matmul %64, %15, %cst_81 {dimension_numbers = #tpu.dot_dimension_numbers<[1], [0], [0], [1], [0, 0, 1, 1], [], []>} : vector<2x32xf32>, vector<32x32xf32>, vector<2x32xf32> -> vector<2x32xf32>
    %84 = arith.addf %82, %83 : vector<2x32xf32>
    %85 = arith.addf %84, %31 : vector<2x32xf32>
    %86 = arith.negf %73 : vector<2x32xf32>
    %87 = math.exp %86 : vector<2x32xf32>
    %cst_82 = arith.constant 1.000000e+00 : f32
    %88 = vector.broadcast %cst_82 : f32 to vector<2x32xf32>
    %89 = arith.addf %88, %87 : vector<2x32xf32>
    %90 = arith.divf %88, %89 : vector<2x32xf32>
    %91 = arith.negf %77 : vector<2x32xf32>
    %92 = math.exp %91 : vector<2x32xf32>
    %cst_83 = arith.constant 1.000000e+00 : f32
    %93 = vector.broadcast %cst_83 : f32 to vector<2x32xf32>
    %94 = arith.addf %93, %92 : vector<2x32xf32>
    %95 = arith.divf %93, %94 : vector<2x32xf32>
    %96 = math.tanh %81 : vector<2x32xf32>
    %97 = arith.negf %85 : vector<2x32xf32>
    %98 = math.exp %97 : vector<2x32xf32>
    %cst_84 = arith.constant 1.000000e+00 : f32
    %99 = vector.broadcast %cst_84 : f32 to vector<2x32xf32>
    %100 = arith.addf %99, %98 : vector<2x32xf32>
    %101 = arith.divf %99, %100 : vector<2x32xf32>
    %102 = arith.mulf %95, %66 : vector<2x32xf32>
    %103 = arith.mulf %90, %96 : vector<2x32xf32>
    %104 = arith.addf %102, %103 : vector<2x32xf32>
    %105 = math.tanh %104 : vector<2x32xf32>
    %106 = arith.mulf %101, %105 : vector<2x32xf32>
    %cst_85 = arith.constant dense<0.000000e+00> : vector<2x32xf32>
    %107 = tpu.matmul %106, %33, %cst_85 {dimension_numbers = #tpu.dot_dimension_numbers<[1], [0], [0], [1], [0, 0, 1, 1], [], []>} : vector<2x32xf32>, vector<32x32xf32>, vector<2x32xf32> -> vector<2x32xf32>
    %cst_86 = arith.constant dense<0.000000e+00> : vector<2x32xf32>
    %108 = tpu.matmul %65, %41, %cst_86 {dimension_numbers = #tpu.dot_dimension_numbers<[1], [0], [0], [1], [0, 0, 1, 1], [], []>} : vector<2x32xf32>, vector<32x32xf32>, vector<2x32xf32> -> vector<2x32xf32>
    %109 = arith.addf %107, %108 : vector<2x32xf32>
    %110 = arith.addf %109, %51 : vector<2x32xf32>
    %cst_87 = arith.constant dense<0.000000e+00> : vector<2x32xf32>
    %111 = tpu.matmul %106, %35, %cst_87 {dimension_numbers = #tpu.dot_dimension_numbers<[1], [0], [0], [1], [0, 0, 1, 1], [], []>} : vector<2x32xf32>, vector<32x32xf32>, vector<2x32xf32> -> vector<2x32xf32>
    %cst_88 = arith.constant dense<0.000000e+00> : vector<2x32xf32>
    %112 = tpu.matmul %65, %43, %cst_88 {dimension_numbers = #tpu.dot_dimension_numbers<[1], [0], [0], [1], [0, 0, 1, 1], [], []>} : vector<2x32xf32>, vector<32x32xf32>, vector<2x32xf32> -> vector<2x32xf32>
    %113 = arith.addf %111, %112 : vector<2x32xf32>
    %114 = arith.addf %113, %55 : vector<2x32xf32>
    %cst_89 = arith.constant dense<0.000000e+00> : vector<2x32xf32>
    %115 = tpu.matmul %106, %37, %cst_89 {dimension_numbers = #tpu.dot_dimension_numbers<[1], [0], [0], [1], [0, 0, 1, 1], [], []>} : vector<2x32xf32>, vector<32x32xf32>, vector<2x32xf32> -> vector<2x32xf32>
    %cst_90 = arith.constant dense<0.000000e+00> : vector<2x32xf32>
    %116 = tpu.matmul %65, %45, %cst_90 {dimension_numbers = #tpu.dot_dimension_numbers<[1], [0], [0], [1], [0, 0, 1, 1], [], []>} : vector<2x32xf32>, vector<32x32xf32>, vector<2x32xf32> -> vector<2x32xf32>
    %117 = arith.addf %115, %116 : vector<2x32xf32>
    %118 = arith.addf %117, %59 : vector<2x32xf32>
    %cst_91 = arith.constant dense<0.000000e+00> : vector<2x32xf32>
    %119 = tpu.matmul %106, %39, %cst_91 {dimension_numbers = #tpu.dot_dimension_numbers<[1], [0], [0], [1], [0, 0, 1, 1], [], []>} : vector<2x32xf32>, vector<32x32xf32>, vector<2x32xf32> -> vector<2x32xf32>
    %cst_92 = arith.constant dense<0.000000e+00> : vector<2x32xf32>
    %120 = tpu.matmul %65, %47, %cst_92 {dimension_numbers = #tpu.dot_dimension_numbers<[1], [0], [0], [1], [0, 0, 1, 1], [], []>} : vector<2x32xf32>, vector<32x32xf32>, vector<2x32xf32> -> vector<2x32xf32>
    %121 = arith.addf %119, %120 : vector<2x32xf32>
    %122 = arith.addf %121, %63 : vector<2x32xf32>
    %123 = arith.negf %110 : vector<2x32xf32>
    %124 = math.exp %123 : vector<2x32xf32>
    %cst_93 = arith.constant 1.000000e+00 : f32
    %125 = vector.broadcast %cst_93 : f32 to vector<2x32xf32>
    %126 = arith.addf %125, %124 : vector<2x32xf32>
    %127 = arith.divf %125, %126 : vector<2x32xf32>
    %128 = arith.negf %114 : vector<2x32xf32>
    %129 = math.exp %128 : vector<2x32xf32>
    %cst_94 = arith.constant 1.000000e+00 : f32
    %130 = vector.broadcast %cst_94 : f32 to vector<2x32xf32>
    %131 = arith.addf %130, %129 : vector<2x32xf32>
    %132 = arith.divf %130, %131 : vector<2x32xf32>
    %133 = math.tanh %118 : vector<2x32xf32>
    %134 = arith.negf %122 : vector<2x32xf32>
    %135 = math.exp %134 : vector<2x32xf32>
    %cst_95 = arith.constant 1.000000e+00 : f32
    %136 = vector.broadcast %cst_95 : f32 to vector<2x32xf32>
    %137 = arith.addf %136, %135 : vector<2x32xf32>
    %138 = arith.divf %136, %137 : vector<2x32xf32>
    %139 = arith.mulf %132, %67 : vector<2x32xf32>
    %140 = arith.mulf %127, %133 : vector<2x32xf32>
    %141 = arith.addf %139, %140 : vector<2x32xf32>
    %142 = math.tanh %141 : vector<2x32xf32>
    %143 = arith.mulf %138, %142 : vector<2x32xf32>
    %c0_96 = arith.constant 0 : index
    %c1_97 = arith.constant 1 : index
    %c0_98 = arith.constant 0 : index
    %144 = vector.load %arg0[%c0_96, %c1_97, %c0_98] : memref<2x8x4xf32, #tpu.memory_space<vmem>>, vector<2x1x4xf32>
    %145 = vector.shape_cast %144 : vector<2x1x4xf32> to vector<2x4xf32>
    %cst_99 = arith.constant dense<0.000000e+00> : vector<2x32xf32>
    %146 = tpu.matmul %145, %1, %cst_99 {dimension_numbers = #tpu.dot_dimension_numbers<[1], [0], [0], [1], [0, 0, 1, 1], [], []>} : vector<2x4xf32>, vector<4x32xf32>, vector<2x32xf32> -> vector<2x32xf32>
    %cst_100 = arith.constant dense<0.000000e+00> : vector<2x32xf32>
    %147 = tpu.matmul %106, %9, %cst_100 {dimension_numbers = #tpu.dot_dimension_numbers<[1], [0], [0], [1], [0, 0, 1, 1], [], []>} : vector<2x32xf32>, vector<32x32xf32>, vector<2x32xf32> -> vector<2x32xf32>
    %148 = arith.addf %146, %147 : vector<2x32xf32>
    %149 = arith.addf %148, %19 : vector<2x32xf32>
    %cst_101 = arith.constant dense<0.000000e+00> : vector<2x32xf32>
    %150 = tpu.matmul %145, %3, %cst_101 {dimension_numbers = #tpu.dot_dimension_numbers<[1], [0], [0], [1], [0, 0, 1, 1], [], []>} : vector<2x4xf32>, vector<4x32xf32>, vector<2x32xf32> -> vector<2x32xf32>
    %cst_102 = arith.constant dense<0.000000e+00> : vector<2x32xf32>
    %151 = tpu.matmul %106, %11, %cst_102 {dimension_numbers = #tpu.dot_dimension_numbers<[1], [0], [0], [1], [0, 0, 1, 1], [], []>} : vector<2x32xf32>, vector<32x32xf32>, vector<2x32xf32> -> vector<2x32xf32>
    %152 = arith.addf %150, %151 : vector<2x32xf32>
    %153 = arith.addf %152, %23 : vector<2x32xf32>
    %cst_103 = arith.constant dense<0.000000e+00> : vector<2x32xf32>
    %154 = tpu.matmul %145, %5, %cst_103 {dimension_numbers = #tpu.dot_dimension_numbers<[1], [0], [0], [1], [0, 0, 1, 1], [], []>} : vector<2x4xf32>, vector<4x32xf32>, vector<2x32xf32> -> vector<2x32xf32>
    %cst_104 = arith.constant dense<0.000000e+00> : vector<2x32xf32>
    %155 = tpu.matmul %106, %13, %cst_104 {dimension_numbers = #tpu.dot_dimension_numbers<[1], [0], [0], [1], [0, 0, 1, 1], [], []>} : vector<2x32xf32>, vector<32x32xf32>, vector<2x32xf32> -> vector<2x32xf32>
    %156 = arith.addf %154, %155 : vector<2x32xf32>
    %157 = arith.addf %156, %27 : vector<2x32xf32>
    %cst_105 = arith.constant dense<0.000000e+00> : vector<2x32xf32>
    %158 = tpu.matmul %145, %7, %cst_105 {dimension_numbers = #tpu.dot_dimension_numbers<[1], [0], [0], [1], [0, 0, 1, 1], [], []>} : vector<2x4xf32>, vector<4x32xf32>, vector<2x32xf32> -> vector<2x32xf32>
    %cst_106 = arith.constant dense<0.000000e+00> : vector<2x32xf32>
    %159 = tpu.matmul %106, %15, %cst_106 {dimension_numbers = #tpu.dot_dimension_numbers<[1], [0], [0], [1], [0, 0, 1, 1], [], []>} : vector<2x32xf32>, vector<32x32xf32>, vector<2x32xf32> -> vector<2x32xf32>
    %160 = arith.addf %158, %159 : vector<2x32xf32>
    %161 = arith.addf %160, %31 : vector<2x32xf32>
    %162 = arith.negf %149 : vector<2x32xf32>
    %163 = math.exp %162 : vector<2x32xf32>
    %cst_107 = arith.constant 1.000000e+00 : f32
    %164 = vector.broadcast %cst_107 : f32 to vector<2x32xf32>
    %165 = arith.addf %164, %163 : vector<2x32xf32>
    %166 = arith.divf %164, %165 : vector<2x32xf32>
    %167 = arith.negf %153 : vector<2x32xf32>
    %168 = math.exp %167 : vector<2x32xf32>
    %cst_108 = arith.constant 1.000000e+00 : f32
    %169 = vector.broadcast %cst_108 : f32 to vector<2x32xf32>
    %170 = arith.addf %169, %168 : vector<2x32xf32>
    %171 = arith.divf %169, %170 : vector<2x32xf32>
    %172 = math.tanh %157 : vector<2x32xf32>
    %173 = arith.negf %161 : vector<2x32xf32>
    %174 = math.exp %173 : vector<2x32xf32>
    %cst_109 = arith.constant 1.000000e+00 : f32
    %175 = vector.broadcast %cst_109 : f32 to vector<2x32xf32>
    %176 = arith.addf %175, %174 : vector<2x32xf32>
    %177 = arith.divf %175, %176 : vector<2x32xf32>
    %178 = arith.mulf %171, %104 : vector<2x32xf32>
    %179 = arith.mulf %166, %172 : vector<2x32xf32>
    %180 = arith.addf %178, %179 : vector<2x32xf32>
    %181 = math.tanh %180 : vector<2x32xf32>
    %182 = arith.mulf %177, %181 : vector<2x32xf32>
    %cst_110 = arith.constant dense<0.000000e+00> : vector<2x32xf32>
    %183 = tpu.matmul %182, %33, %cst_110 {dimension_numbers = #tpu.dot_dimension_numbers<[1], [0], [0], [1], [0, 0, 1, 1], [], []>} : vector<2x32xf32>, vector<32x32xf32>, vector<2x32xf32> -> vector<2x32xf32>
    %cst_111 = arith.constant dense<0.000000e+00> : vector<2x32xf32>
    %184 = tpu.matmul %143, %41, %cst_111 {dimension_numbers = #tpu.dot_dimension_numbers<[1], [0], [0], [1], [0, 0, 1, 1], [], []>} : vector<2x32xf32>, vector<32x32xf32>, vector<2x32xf32> -> vector<2x32xf32>
    %185 = arith.addf %183, %184 : vector<2x32xf32>
    %186 = arith.addf %185, %51 : vector<2x32xf32>
    %cst_112 = arith.constant dense<0.000000e+00> : vector<2x32xf32>
    %187 = tpu.matmul %182, %35, %cst_112 {dimension_numbers = #tpu.dot_dimension_numbers<[1], [0], [0], [1], [0, 0, 1, 1], [], []>} : vector<2x32xf32>, vector<32x32xf32>, vector<2x32xf32> -> vector<2x32xf32>
    %cst_113 = arith.constant dense<0.000000e+00> : vector<2x32xf32>
    %188 = tpu.matmul %143, %43, %cst_113 {dimension_numbers = #tpu.dot_dimension_numbers<[1], [0], [0], [1], [0, 0, 1, 1], [], []>} : vector<2x32xf32>, vector<32x32xf32>, vector<2x32xf32> -> vector<2x32xf32>
    %189 = arith.addf %187, %188 : vector<2x32xf32>
    %190 = arith.addf %189, %55 : vector<2x32xf32>
    %cst_114 = arith.constant dense<0.000000e+00> : vector<2x32xf32>
    %191 = tpu.matmul %182, %37, %cst_114 {dimension_numbers = #tpu.dot_dimension_numbers<[1], [0], [0], [1], [0, 0, 1, 1], [], []>} : vector<2x32xf32>, vector<32x32xf32>, vector<2x32xf32> -> vector<2x32xf32>
    %cst_115 = arith.constant dense<0.000000e+00> : vector<2x32xf32>
    %192 = tpu.matmul %143, %45, %cst_115 {dimension_numbers = #tpu.dot_dimension_numbers<[1], [0], [0], [1], [0, 0, 1, 1], [], []>} : vector<2x32xf32>, vector<32x32xf32>, vector<2x32xf32> -> vector<2x32xf32>
    %193 = arith.addf %191, %192 : vector<2x32xf32>
    %194 = arith.addf %193, %59 : vector<2x32xf32>
    %cst_116 = arith.constant dense<0.000000e+00> : vector<2x32xf32>
    %195 = tpu.matmul %182, %39, %cst_116 {dimension_numbers = #tpu.dot_dimension_numbers<[1], [0], [0], [1], [0, 0, 1, 1], [], []>} : vector<2x32xf32>, vector<32x32xf32>, vector<2x32xf32> -> vector<2x32xf32>
    %cst_117 = arith.constant dense<0.000000e+00> : vector<2x32xf32>
    %196 = tpu.matmul %143, %47, %cst_117 {dimension_numbers = #tpu.dot_dimension_numbers<[1], [0], [0], [1], [0, 0, 1, 1], [], []>} : vector<2x32xf32>, vector<32x32xf32>, vector<2x32xf32> -> vector<2x32xf32>
    %197 = arith.addf %195, %196 : vector<2x32xf32>
    %198 = arith.addf %197, %63 : vector<2x32xf32>
    %199 = arith.negf %186 : vector<2x32xf32>
    %200 = math.exp %199 : vector<2x32xf32>
    %cst_118 = arith.constant 1.000000e+00 : f32
    %201 = vector.broadcast %cst_118 : f32 to vector<2x32xf32>
    %202 = arith.addf %201, %200 : vector<2x32xf32>
    %203 = arith.divf %201, %202 : vector<2x32xf32>
    %204 = arith.negf %190 : vector<2x32xf32>
    %205 = math.exp %204 : vector<2x32xf32>
    %cst_119 = arith.constant 1.000000e+00 : f32
    %206 = vector.broadcast %cst_119 : f32 to vector<2x32xf32>
    %207 = arith.addf %206, %205 : vector<2x32xf32>
    %208 = arith.divf %206, %207 : vector<2x32xf32>
    %209 = math.tanh %194 : vector<2x32xf32>
    %210 = arith.negf %198 : vector<2x32xf32>
    %211 = math.exp %210 : vector<2x32xf32>
    %cst_120 = arith.constant 1.000000e+00 : f32
    %212 = vector.broadcast %cst_120 : f32 to vector<2x32xf32>
    %213 = arith.addf %212, %211 : vector<2x32xf32>
    %214 = arith.divf %212, %213 : vector<2x32xf32>
    %215 = arith.mulf %208, %141 : vector<2x32xf32>
    %216 = arith.mulf %203, %209 : vector<2x32xf32>
    %217 = arith.addf %215, %216 : vector<2x32xf32>
    %218 = math.tanh %217 : vector<2x32xf32>
    %219 = arith.mulf %214, %218 : vector<2x32xf32>
    %c0_121 = arith.constant 0 : index
    %c2_122 = arith.constant 2 : index
    %c0_123 = arith.constant 0 : index
    %220 = vector.load %arg0[%c0_121, %c2_122, %c0_123] : memref<2x8x4xf32, #tpu.memory_space<vmem>>, vector<2x1x4xf32>
    %221 = vector.shape_cast %220 : vector<2x1x4xf32> to vector<2x4xf32>
    %cst_124 = arith.constant dense<0.000000e+00> : vector<2x32xf32>
    %222 = tpu.matmul %221, %1, %cst_124 {dimension_numbers = #tpu.dot_dimension_numbers<[1], [0], [0], [1], [0, 0, 1, 1], [], []>} : vector<2x4xf32>, vector<4x32xf32>, vector<2x32xf32> -> vector<2x32xf32>
    %cst_125 = arith.constant dense<0.000000e+00> : vector<2x32xf32>
    %223 = tpu.matmul %182, %9, %cst_125 {dimension_numbers = #tpu.dot_dimension_numbers<[1], [0], [0], [1], [0, 0, 1, 1], [], []>} : vector<2x32xf32>, vector<32x32xf32>, vector<2x32xf32> -> vector<2x32xf32>
    %224 = arith.addf %222, %223 : vector<2x32xf32>
    %225 = arith.addf %224, %19 : vector<2x32xf32>
    %cst_126 = arith.constant dense<0.000000e+00> : vector<2x32xf32>
    %226 = tpu.matmul %221, %3, %cst_126 {dimension_numbers = #tpu.dot_dimension_numbers<[1], [0], [0], [1], [0, 0, 1, 1], [], []>} : vector<2x4xf32>, vector<4x32xf32>, vector<2x32xf32> -> vector<2x32xf32>
    %cst_127 = arith.constant dense<0.000000e+00> : vector<2x32xf32>
    %227 = tpu.matmul %182, %11, %cst_127 {dimension_numbers = #tpu.dot_dimension_numbers<[1], [0], [0], [1], [0, 0, 1, 1], [], []>} : vector<2x32xf32>, vector<32x32xf32>, vector<2x32xf32> -> vector<2x32xf32>
    %228 = arith.addf %226, %227 : vector<2x32xf32>
    %229 = arith.addf %228, %23 : vector<2x32xf32>
    %cst_128 = arith.constant dense<0.000000e+00> : vector<2x32xf32>
    %230 = tpu.matmul %221, %5, %cst_128 {dimension_numbers = #tpu.dot_dimension_numbers<[1], [0], [0], [1], [0, 0, 1, 1], [], []>} : vector<2x4xf32>, vector<4x32xf32>, vector<2x32xf32> -> vector<2x32xf32>
    %cst_129 = arith.constant dense<0.000000e+00> : vector<2x32xf32>
    %231 = tpu.matmul %182, %13, %cst_129 {dimension_numbers = #tpu.dot_dimension_numbers<[1], [0], [0], [1], [0, 0, 1, 1], [], []>} : vector<2x32xf32>, vector<32x32xf32>, vector<2x32xf32> -> vector<2x32xf32>
    %232 = arith.addf %230, %231 : vector<2x32xf32>
    %233 = arith.addf %232, %27 : vector<2x32xf32>
    %cst_130 = arith.constant dense<0.000000e+00> : vector<2x32xf32>
    %234 = tpu.matmul %221, %7, %cst_130 {dimension_numbers = #tpu.dot_dimension_numbers<[1], [0], [0], [1], [0, 0, 1, 1], [], []>} : vector<2x4xf32>, vector<4x32xf32>, vector<2x32xf32> -> vector<2x32xf32>
    %cst_131 = arith.constant dense<0.000000e+00> : vector<2x32xf32>
    %235 = tpu.matmul %182, %15, %cst_131 {dimension_numbers = #tpu.dot_dimension_numbers<[1], [0], [0], [1], [0, 0, 1, 1], [], []>} : vector<2x32xf32>, vector<32x32xf32>, vector<2x32xf32> -> vector<2x32xf32>
    %236 = arith.addf %234, %235 : vector<2x32xf32>
    %237 = arith.addf %236, %31 : vector<2x32xf32>
    %238 = arith.negf %225 : vector<2x32xf32>
    %239 = math.exp %238 : vector<2x32xf32>
    %cst_132 = arith.constant 1.000000e+00 : f32
    %240 = vector.broadcast %cst_132 : f32 to vector<2x32xf32>
    %241 = arith.addf %240, %239 : vector<2x32xf32>
    %242 = arith.divf %240, %241 : vector<2x32xf32>
    %243 = arith.negf %229 : vector<2x32xf32>
    %244 = math.exp %243 : vector<2x32xf32>
    %cst_133 = arith.constant 1.000000e+00 : f32
    %245 = vector.broadcast %cst_133 : f32 to vector<2x32xf32>
    %246 = arith.addf %245, %244 : vector<2x32xf32>
    %247 = arith.divf %245, %246 : vector<2x32xf32>
    %248 = math.tanh %233 : vector<2x32xf32>
    %249 = arith.negf %237 : vector<2x32xf32>
    %250 = math.exp %249 : vector<2x32xf32>
    %cst_134 = arith.constant 1.000000e+00 : f32
    %251 = vector.broadcast %cst_134 : f32 to vector<2x32xf32>
    %252 = arith.addf %251, %250 : vector<2x32xf32>
    %253 = arith.divf %251, %252 : vector<2x32xf32>
    %254 = arith.mulf %247, %180 : vector<2x32xf32>
    %255 = arith.mulf %242, %248 : vector<2x32xf32>
    %256 = arith.addf %254, %255 : vector<2x32xf32>
    %257 = math.tanh %256 : vector<2x32xf32>
    %258 = arith.mulf %253, %257 : vector<2x32xf32>
    %cst_135 = arith.constant dense<0.000000e+00> : vector<2x32xf32>
    %259 = tpu.matmul %258, %33, %cst_135 {dimension_numbers = #tpu.dot_dimension_numbers<[1], [0], [0], [1], [0, 0, 1, 1], [], []>} : vector<2x32xf32>, vector<32x32xf32>, vector<2x32xf32> -> vector<2x32xf32>
    %cst_136 = arith.constant dense<0.000000e+00> : vector<2x32xf32>
    %260 = tpu.matmul %219, %41, %cst_136 {dimension_numbers = #tpu.dot_dimension_numbers<[1], [0], [0], [1], [0, 0, 1, 1], [], []>} : vector<2x32xf32>, vector<32x32xf32>, vector<2x32xf32> -> vector<2x32xf32>
    %261 = arith.addf %259, %260 : vector<2x32xf32>
    %262 = arith.addf %261, %51 : vector<2x32xf32>
    %cst_137 = arith.constant dense<0.000000e+00> : vector<2x32xf32>
    %263 = tpu.matmul %258, %35, %cst_137 {dimension_numbers = #tpu.dot_dimension_numbers<[1], [0], [0], [1], [0, 0, 1, 1], [], []>} : vector<2x32xf32>, vector<32x32xf32>, vector<2x32xf32> -> vector<2x32xf32>
    %cst_138 = arith.constant dense<0.000000e+00> : vector<2x32xf32>
    %264 = tpu.matmul %219, %43, %cst_138 {dimension_numbers = #tpu.dot_dimension_numbers<[1], [0], [0], [1], [0, 0, 1, 1], [], []>} : vector<2x32xf32>, vector<32x32xf32>, vector<2x32xf32> -> vector<2x32xf32>
    %265 = arith.addf %263, %264 : vector<2x32xf32>
    %266 = arith.addf %265, %55 : vector<2x32xf32>
    %cst_139 = arith.constant dense<0.000000e+00> : vector<2x32xf32>
    %267 = tpu.matmul %258, %37, %cst_139 {dimension_numbers = #tpu.dot_dimension_numbers<[1], [0], [0], [1], [0, 0, 1, 1], [], []>} : vector<2x32xf32>, vector<32x32xf32>, vector<2x32xf32> -> vector<2x32xf32>
    %cst_140 = arith.constant dense<0.000000e+00> : vector<2x32xf32>
    %268 = tpu.matmul %219, %45, %cst_140 {dimension_numbers = #tpu.dot_dimension_numbers<[1], [0], [0], [1], [0, 0, 1, 1], [], []>} : vector<2x32xf32>, vector<32x32xf32>, vector<2x32xf32> -> vector<2x32xf32>
    %269 = arith.addf %267, %268 : vector<2x32xf32>
    %270 = arith.addf %269, %59 : vector<2x32xf32>
    %cst_141 = arith.constant dense<0.000000e+00> : vector<2x32xf32>
    %271 = tpu.matmul %258, %39, %cst_141 {dimension_numbers = #tpu.dot_dimension_numbers<[1], [0], [0], [1], [0, 0, 1, 1], [], []>} : vector<2x32xf32>, vector<32x32xf32>, vector<2x32xf32> -> vector<2x32xf32>
    %cst_142 = arith.constant dense<0.000000e+00> : vector<2x32xf32>
    %272 = tpu.matmul %219, %47, %cst_142 {dimension_numbers = #tpu.dot_dimension_numbers<[1], [0], [0], [1], [0, 0, 1, 1], [], []>} : vector<2x32xf32>, vector<32x32xf32>, vector<2x32xf32> -> vector<2x32xf32>
    %273 = arith.addf %271, %272 : vector<2x32xf32>
    %274 = arith.addf %273, %63 : vector<2x32xf32>
    %275 = arith.negf %262 : vector<2x32xf32>
    %276 = math.exp %275 : vector<2x32xf32>
    %cst_143 = arith.constant 1.000000e+00 : f32
    %277 = vector.broadcast %cst_143 : f32 to vector<2x32xf32>
    %278 = arith.addf %277, %276 : vector<2x32xf32>
    %279 = arith.divf %277, %278 : vector<2x32xf32>
    %280 = arith.negf %266 : vector<2x32xf32>
    %281 = math.exp %280 : vector<2x32xf32>
    %cst_144 = arith.constant 1.000000e+00 : f32
    %282 = vector.broadcast %cst_144 : f32 to vector<2x32xf32>
    %283 = arith.addf %282, %281 : vector<2x32xf32>
    %284 = arith.divf %282, %283 : vector<2x32xf32>
    %285 = math.tanh %270 : vector<2x32xf32>
    %286 = arith.negf %274 : vector<2x32xf32>
    %287 = math.exp %286 : vector<2x32xf32>
    %cst_145 = arith.constant 1.000000e+00 : f32
    %288 = vector.broadcast %cst_145 : f32 to vector<2x32xf32>
    %289 = arith.addf %288, %287 : vector<2x32xf32>
    %290 = arith.divf %288, %289 : vector<2x32xf32>
    %291 = arith.mulf %284, %217 : vector<2x32xf32>
    %292 = arith.mulf %279, %285 : vector<2x32xf32>
    %293 = arith.addf %291, %292 : vector<2x32xf32>
    %294 = math.tanh %293 : vector<2x32xf32>
    %295 = arith.mulf %290, %294 : vector<2x32xf32>
    %c0_146 = arith.constant 0 : index
    %c3_147 = arith.constant 3 : index
    %c0_148 = arith.constant 0 : index
    %296 = vector.load %arg0[%c0_146, %c3_147, %c0_148] : memref<2x8x4xf32, #tpu.memory_space<vmem>>, vector<2x1x4xf32>
    %297 = vector.shape_cast %296 : vector<2x1x4xf32> to vector<2x4xf32>
    %cst_149 = arith.constant dense<0.000000e+00> : vector<2x32xf32>
    %298 = tpu.matmul %297, %1, %cst_149 {dimension_numbers = #tpu.dot_dimension_numbers<[1], [0], [0], [1], [0, 0, 1, 1], [], []>} : vector<2x4xf32>, vector<4x32xf32>, vector<2x32xf32> -> vector<2x32xf32>
    %cst_150 = arith.constant dense<0.000000e+00> : vector<2x32xf32>
    %299 = tpu.matmul %258, %9, %cst_150 {dimension_numbers = #tpu.dot_dimension_numbers<[1], [0], [0], [1], [0, 0, 1, 1], [], []>} : vector<2x32xf32>, vector<32x32xf32>, vector<2x32xf32> -> vector<2x32xf32>
    %300 = arith.addf %298, %299 : vector<2x32xf32>
    %301 = arith.addf %300, %19 : vector<2x32xf32>
    %cst_151 = arith.constant dense<0.000000e+00> : vector<2x32xf32>
    %302 = tpu.matmul %297, %3, %cst_151 {dimension_numbers = #tpu.dot_dimension_numbers<[1], [0], [0], [1], [0, 0, 1, 1], [], []>} : vector<2x4xf32>, vector<4x32xf32>, vector<2x32xf32> -> vector<2x32xf32>
    %cst_152 = arith.constant dense<0.000000e+00> : vector<2x32xf32>
    %303 = tpu.matmul %258, %11, %cst_152 {dimension_numbers = #tpu.dot_dimension_numbers<[1], [0], [0], [1], [0, 0, 1, 1], [], []>} : vector<2x32xf32>, vector<32x32xf32>, vector<2x32xf32> -> vector<2x32xf32>
    %304 = arith.addf %302, %303 : vector<2x32xf32>
    %305 = arith.addf %304, %23 : vector<2x32xf32>
    %cst_153 = arith.constant dense<0.000000e+00> : vector<2x32xf32>
    %306 = tpu.matmul %297, %5, %cst_153 {dimension_numbers = #tpu.dot_dimension_numbers<[1], [0], [0], [1], [0, 0, 1, 1], [], []>} : vector<2x4xf32>, vector<4x32xf32>, vector<2x32xf32> -> vector<2x32xf32>
    %cst_154 = arith.constant dense<0.000000e+00> : vector<2x32xf32>
    %307 = tpu.matmul %258, %13, %cst_154 {dimension_numbers = #tpu.dot_dimension_numbers<[1], [0], [0], [1], [0, 0, 1, 1], [], []>} : vector<2x32xf32>, vector<32x32xf32>, vector<2x32xf32> -> vector<2x32xf32>
    %308 = arith.addf %306, %307 : vector<2x32xf32>
    %309 = arith.addf %308, %27 : vector<2x32xf32>
    %cst_155 = arith.constant dense<0.000000e+00> : vector<2x32xf32>
    %310 = tpu.matmul %297, %7, %cst_155 {dimension_numbers = #tpu.dot_dimension_numbers<[1], [0], [0], [1], [0, 0, 1, 1], [], []>} : vector<2x4xf32>, vector<4x32xf32>, vector<2x32xf32> -> vector<2x32xf32>
    %cst_156 = arith.constant dense<0.000000e+00> : vector<2x32xf32>
    %311 = tpu.matmul %258, %15, %cst_156 {dimension_numbers = #tpu.dot_dimension_numbers<[1], [0], [0], [1], [0, 0, 1, 1], [], []>} : vector<2x32xf32>, vector<32x32xf32>, vector<2x32xf32> -> vector<2x32xf32>
    %312 = arith.addf %310, %311 : vector<2x32xf32>
    %313 = arith.addf %312, %31 : vector<2x32xf32>
    %314 = arith.negf %301 : vector<2x32xf32>
    %315 = math.exp %314 : vector<2x32xf32>
    %cst_157 = arith.constant 1.000000e+00 : f32
    %316 = vector.broadcast %cst_157 : f32 to vector<2x32xf32>
    %317 = arith.addf %316, %315 : vector<2x32xf32>
    %318 = arith.divf %316, %317 : vector<2x32xf32>
    %319 = arith.negf %305 : vector<2x32xf32>
    %320 = math.exp %319 : vector<2x32xf32>
    %cst_158 = arith.constant 1.000000e+00 : f32
    %321 = vector.broadcast %cst_158 : f32 to vector<2x32xf32>
    %322 = arith.addf %321, %320 : vector<2x32xf32>
    %323 = arith.divf %321, %322 : vector<2x32xf32>
    %324 = math.tanh %309 : vector<2x32xf32>
    %325 = arith.negf %313 : vector<2x32xf32>
    %326 = math.exp %325 : vector<2x32xf32>
    %cst_159 = arith.constant 1.000000e+00 : f32
    %327 = vector.broadcast %cst_159 : f32 to vector<2x32xf32>
    %328 = arith.addf %327, %326 : vector<2x32xf32>
    %329 = arith.divf %327, %328 : vector<2x32xf32>
    %330 = arith.mulf %323, %256 : vector<2x32xf32>
    %331 = arith.mulf %318, %324 : vector<2x32xf32>
    %332 = arith.addf %330, %331 : vector<2x32xf32>
    %333 = math.tanh %332 : vector<2x32xf32>
    %334 = arith.mulf %329, %333 : vector<2x32xf32>
    %cst_160 = arith.constant dense<0.000000e+00> : vector<2x32xf32>
    %335 = tpu.matmul %334, %33, %cst_160 {dimension_numbers = #tpu.dot_dimension_numbers<[1], [0], [0], [1], [0, 0, 1, 1], [], []>} : vector<2x32xf32>, vector<32x32xf32>, vector<2x32xf32> -> vector<2x32xf32>
    %cst_161 = arith.constant dense<0.000000e+00> : vector<2x32xf32>
    %336 = tpu.matmul %295, %41, %cst_161 {dimension_numbers = #tpu.dot_dimension_numbers<[1], [0], [0], [1], [0, 0, 1, 1], [], []>} : vector<2x32xf32>, vector<32x32xf32>, vector<2x32xf32> -> vector<2x32xf32>
    %337 = arith.addf %335, %336 : vector<2x32xf32>
    %338 = arith.addf %337, %51 : vector<2x32xf32>
    %cst_162 = arith.constant dense<0.000000e+00> : vector<2x32xf32>
    %339 = tpu.matmul %334, %35, %cst_162 {dimension_numbers = #tpu.dot_dimension_numbers<[1], [0], [0], [1], [0, 0, 1, 1], [], []>} : vector<2x32xf32>, vector<32x32xf32>, vector<2x32xf32> -> vector<2x32xf32>
    %cst_163 = arith.constant dense<0.000000e+00> : vector<2x32xf32>
    %340 = tpu.matmul %295, %43, %cst_163 {dimension_numbers = #tpu.dot_dimension_numbers<[1], [0], [0], [1], [0, 0, 1, 1], [], []>} : vector<2x32xf32>, vector<32x32xf32>, vector<2x32xf32> -> vector<2x32xf32>
    %341 = arith.addf %339, %340 : vector<2x32xf32>
    %342 = arith.addf %341, %55 : vector<2x32xf32>
    %cst_164 = arith.constant dense<0.000000e+00> : vector<2x32xf32>
    %343 = tpu.matmul %334, %37, %cst_164 {dimension_numbers = #tpu.dot_dimension_numbers<[1], [0], [0], [1], [0, 0, 1, 1], [], []>} : vector<2x32xf32>, vector<32x32xf32>, vector<2x32xf32> -> vector<2x32xf32>
    %cst_165 = arith.constant dense<0.000000e+00> : vector<2x32xf32>
    %344 = tpu.matmul %295, %45, %cst_165 {dimension_numbers = #tpu.dot_dimension_numbers<[1], [0], [0], [1], [0, 0, 1, 1], [], []>} : vector<2x32xf32>, vector<32x32xf32>, vector<2x32xf32> -> vector<2x32xf32>
    %345 = arith.addf %343, %344 : vector<2x32xf32>
    %346 = arith.addf %345, %59 : vector<2x32xf32>
    %cst_166 = arith.constant dense<0.000000e+00> : vector<2x32xf32>
    %347 = tpu.matmul %334, %39, %cst_166 {dimension_numbers = #tpu.dot_dimension_numbers<[1], [0], [0], [1], [0, 0, 1, 1], [], []>} : vector<2x32xf32>, vector<32x32xf32>, vector<2x32xf32> -> vector<2x32xf32>
    %cst_167 = arith.constant dense<0.000000e+00> : vector<2x32xf32>
    %348 = tpu.matmul %295, %47, %cst_167 {dimension_numbers = #tpu.dot_dimension_numbers<[1], [0], [0], [1], [0, 0, 1, 1], [], []>} : vector<2x32xf32>, vector<32x32xf32>, vector<2x32xf32> -> vector<2x32xf32>
    %349 = arith.addf %347, %348 : vector<2x32xf32>
    %350 = arith.addf %349, %63 : vector<2x32xf32>
    %351 = arith.negf %338 : vector<2x32xf32>
    %352 = math.exp %351 : vector<2x32xf32>
    %cst_168 = arith.constant 1.000000e+00 : f32
    %353 = vector.broadcast %cst_168 : f32 to vector<2x32xf32>
    %354 = arith.addf %353, %352 : vector<2x32xf32>
    %355 = arith.divf %353, %354 : vector<2x32xf32>
    %356 = arith.negf %342 : vector<2x32xf32>
    %357 = math.exp %356 : vector<2x32xf32>
    %cst_169 = arith.constant 1.000000e+00 : f32
    %358 = vector.broadcast %cst_169 : f32 to vector<2x32xf32>
    %359 = arith.addf %358, %357 : vector<2x32xf32>
    %360 = arith.divf %358, %359 : vector<2x32xf32>
    %361 = math.tanh %346 : vector<2x32xf32>
    %362 = arith.negf %350 : vector<2x32xf32>
    %363 = math.exp %362 : vector<2x32xf32>
    %cst_170 = arith.constant 1.000000e+00 : f32
    %364 = vector.broadcast %cst_170 : f32 to vector<2x32xf32>
    %365 = arith.addf %364, %363 : vector<2x32xf32>
    %366 = arith.divf %364, %365 : vector<2x32xf32>
    %367 = arith.mulf %360, %293 : vector<2x32xf32>
    %368 = arith.mulf %355, %361 : vector<2x32xf32>
    %369 = arith.addf %367, %368 : vector<2x32xf32>
    %370 = math.tanh %369 : vector<2x32xf32>
    %371 = arith.mulf %366, %370 : vector<2x32xf32>
    %c0_171 = arith.constant 0 : index
    %c4 = arith.constant 4 : index
    %c0_172 = arith.constant 0 : index
    %372 = vector.load %arg0[%c0_171, %c4, %c0_172] : memref<2x8x4xf32, #tpu.memory_space<vmem>>, vector<2x1x4xf32>
    %373 = vector.shape_cast %372 : vector<2x1x4xf32> to vector<2x4xf32>
    %cst_173 = arith.constant dense<0.000000e+00> : vector<2x32xf32>
    %374 = tpu.matmul %373, %1, %cst_173 {dimension_numbers = #tpu.dot_dimension_numbers<[1], [0], [0], [1], [0, 0, 1, 1], [], []>} : vector<2x4xf32>, vector<4x32xf32>, vector<2x32xf32> -> vector<2x32xf32>
    %cst_174 = arith.constant dense<0.000000e+00> : vector<2x32xf32>
    %375 = tpu.matmul %334, %9, %cst_174 {dimension_numbers = #tpu.dot_dimension_numbers<[1], [0], [0], [1], [0, 0, 1, 1], [], []>} : vector<2x32xf32>, vector<32x32xf32>, vector<2x32xf32> -> vector<2x32xf32>
    %376 = arith.addf %374, %375 : vector<2x32xf32>
    %377 = arith.addf %376, %19 : vector<2x32xf32>
    %cst_175 = arith.constant dense<0.000000e+00> : vector<2x32xf32>
    %378 = tpu.matmul %373, %3, %cst_175 {dimension_numbers = #tpu.dot_dimension_numbers<[1], [0], [0], [1], [0, 0, 1, 1], [], []>} : vector<2x4xf32>, vector<4x32xf32>, vector<2x32xf32> -> vector<2x32xf32>
    %cst_176 = arith.constant dense<0.000000e+00> : vector<2x32xf32>
    %379 = tpu.matmul %334, %11, %cst_176 {dimension_numbers = #tpu.dot_dimension_numbers<[1], [0], [0], [1], [0, 0, 1, 1], [], []>} : vector<2x32xf32>, vector<32x32xf32>, vector<2x32xf32> -> vector<2x32xf32>
    %380 = arith.addf %378, %379 : vector<2x32xf32>
    %381 = arith.addf %380, %23 : vector<2x32xf32>
    %cst_177 = arith.constant dense<0.000000e+00> : vector<2x32xf32>
    %382 = tpu.matmul %373, %5, %cst_177 {dimension_numbers = #tpu.dot_dimension_numbers<[1], [0], [0], [1], [0, 0, 1, 1], [], []>} : vector<2x4xf32>, vector<4x32xf32>, vector<2x32xf32> -> vector<2x32xf32>
    %cst_178 = arith.constant dense<0.000000e+00> : vector<2x32xf32>
    %383 = tpu.matmul %334, %13, %cst_178 {dimension_numbers = #tpu.dot_dimension_numbers<[1], [0], [0], [1], [0, 0, 1, 1], [], []>} : vector<2x32xf32>, vector<32x32xf32>, vector<2x32xf32> -> vector<2x32xf32>
    %384 = arith.addf %382, %383 : vector<2x32xf32>
    %385 = arith.addf %384, %27 : vector<2x32xf32>
    %cst_179 = arith.constant dense<0.000000e+00> : vector<2x32xf32>
    %386 = tpu.matmul %373, %7, %cst_179 {dimension_numbers = #tpu.dot_dimension_numbers<[1], [0], [0], [1], [0, 0, 1, 1], [], []>} : vector<2x4xf32>, vector<4x32xf32>, vector<2x32xf32> -> vector<2x32xf32>
    %cst_180 = arith.constant dense<0.000000e+00> : vector<2x32xf32>
    %387 = tpu.matmul %334, %15, %cst_180 {dimension_numbers = #tpu.dot_dimension_numbers<[1], [0], [0], [1], [0, 0, 1, 1], [], []>} : vector<2x32xf32>, vector<32x32xf32>, vector<2x32xf32> -> vector<2x32xf32>
    %388 = arith.addf %386, %387 : vector<2x32xf32>
    %389 = arith.addf %388, %31 : vector<2x32xf32>
    %390 = arith.negf %377 : vector<2x32xf32>
    %391 = math.exp %390 : vector<2x32xf32>
    %cst_181 = arith.constant 1.000000e+00 : f32
    %392 = vector.broadcast %cst_181 : f32 to vector<2x32xf32>
    %393 = arith.addf %392, %391 : vector<2x32xf32>
    %394 = arith.divf %392, %393 : vector<2x32xf32>
    %395 = arith.negf %381 : vector<2x32xf32>
    %396 = math.exp %395 : vector<2x32xf32>
    %cst_182 = arith.constant 1.000000e+00 : f32
    %397 = vector.broadcast %cst_182 : f32 to vector<2x32xf32>
    %398 = arith.addf %397, %396 : vector<2x32xf32>
    %399 = arith.divf %397, %398 : vector<2x32xf32>
    %400 = math.tanh %385 : vector<2x32xf32>
    %401 = arith.negf %389 : vector<2x32xf32>
    %402 = math.exp %401 : vector<2x32xf32>
    %cst_183 = arith.constant 1.000000e+00 : f32
    %403 = vector.broadcast %cst_183 : f32 to vector<2x32xf32>
    %404 = arith.addf %403, %402 : vector<2x32xf32>
    %405 = arith.divf %403, %404 : vector<2x32xf32>
    %406 = arith.mulf %399, %332 : vector<2x32xf32>
    %407 = arith.mulf %394, %400 : vector<2x32xf32>
    %408 = arith.addf %406, %407 : vector<2x32xf32>
    %409 = math.tanh %408 : vector<2x32xf32>
    %410 = arith.mulf %405, %409 : vector<2x32xf32>
    %cst_184 = arith.constant dense<0.000000e+00> : vector<2x32xf32>
    %411 = tpu.matmul %410, %33, %cst_184 {dimension_numbers = #tpu.dot_dimension_numbers<[1], [0], [0], [1], [0, 0, 1, 1], [], []>} : vector<2x32xf32>, vector<32x32xf32>, vector<2x32xf32> -> vector<2x32xf32>
    %cst_185 = arith.constant dense<0.000000e+00> : vector<2x32xf32>
    %412 = tpu.matmul %371, %41, %cst_185 {dimension_numbers = #tpu.dot_dimension_numbers<[1], [0], [0], [1], [0, 0, 1, 1], [], []>} : vector<2x32xf32>, vector<32x32xf32>, vector<2x32xf32> -> vector<2x32xf32>
    %413 = arith.addf %411, %412 : vector<2x32xf32>
    %414 = arith.addf %413, %51 : vector<2x32xf32>
    %cst_186 = arith.constant dense<0.000000e+00> : vector<2x32xf32>
    %415 = tpu.matmul %410, %35, %cst_186 {dimension_numbers = #tpu.dot_dimension_numbers<[1], [0], [0], [1], [0, 0, 1, 1], [], []>} : vector<2x32xf32>, vector<32x32xf32>, vector<2x32xf32> -> vector<2x32xf32>
    %cst_187 = arith.constant dense<0.000000e+00> : vector<2x32xf32>
    %416 = tpu.matmul %371, %43, %cst_187 {dimension_numbers = #tpu.dot_dimension_numbers<[1], [0], [0], [1], [0, 0, 1, 1], [], []>} : vector<2x32xf32>, vector<32x32xf32>, vector<2x32xf32> -> vector<2x32xf32>
    %417 = arith.addf %415, %416 : vector<2x32xf32>
    %418 = arith.addf %417, %55 : vector<2x32xf32>
    %cst_188 = arith.constant dense<0.000000e+00> : vector<2x32xf32>
    %419 = tpu.matmul %410, %37, %cst_188 {dimension_numbers = #tpu.dot_dimension_numbers<[1], [0], [0], [1], [0, 0, 1, 1], [], []>} : vector<2x32xf32>, vector<32x32xf32>, vector<2x32xf32> -> vector<2x32xf32>
    %cst_189 = arith.constant dense<0.000000e+00> : vector<2x32xf32>
    %420 = tpu.matmul %371, %45, %cst_189 {dimension_numbers = #tpu.dot_dimension_numbers<[1], [0], [0], [1], [0, 0, 1, 1], [], []>} : vector<2x32xf32>, vector<32x32xf32>, vector<2x32xf32> -> vector<2x32xf32>
    %421 = arith.addf %419, %420 : vector<2x32xf32>
    %422 = arith.addf %421, %59 : vector<2x32xf32>
    %cst_190 = arith.constant dense<0.000000e+00> : vector<2x32xf32>
    %423 = tpu.matmul %410, %39, %cst_190 {dimension_numbers = #tpu.dot_dimension_numbers<[1], [0], [0], [1], [0, 0, 1, 1], [], []>} : vector<2x32xf32>, vector<32x32xf32>, vector<2x32xf32> -> vector<2x32xf32>
    %cst_191 = arith.constant dense<0.000000e+00> : vector<2x32xf32>
    %424 = tpu.matmul %371, %47, %cst_191 {dimension_numbers = #tpu.dot_dimension_numbers<[1], [0], [0], [1], [0, 0, 1, 1], [], []>} : vector<2x32xf32>, vector<32x32xf32>, vector<2x32xf32> -> vector<2x32xf32>
    %425 = arith.addf %423, %424 : vector<2x32xf32>
    %426 = arith.addf %425, %63 : vector<2x32xf32>
    %427 = arith.negf %414 : vector<2x32xf32>
    %428 = math.exp %427 : vector<2x32xf32>
    %cst_192 = arith.constant 1.000000e+00 : f32
    %429 = vector.broadcast %cst_192 : f32 to vector<2x32xf32>
    %430 = arith.addf %429, %428 : vector<2x32xf32>
    %431 = arith.divf %429, %430 : vector<2x32xf32>
    %432 = arith.negf %418 : vector<2x32xf32>
    %433 = math.exp %432 : vector<2x32xf32>
    %cst_193 = arith.constant 1.000000e+00 : f32
    %434 = vector.broadcast %cst_193 : f32 to vector<2x32xf32>
    %435 = arith.addf %434, %433 : vector<2x32xf32>
    %436 = arith.divf %434, %435 : vector<2x32xf32>
    %437 = math.tanh %422 : vector<2x32xf32>
    %438 = arith.negf %426 : vector<2x32xf32>
    %439 = math.exp %438 : vector<2x32xf32>
    %cst_194 = arith.constant 1.000000e+00 : f32
    %440 = vector.broadcast %cst_194 : f32 to vector<2x32xf32>
    %441 = arith.addf %440, %439 : vector<2x32xf32>
    %442 = arith.divf %440, %441 : vector<2x32xf32>
    %443 = arith.mulf %436, %369 : vector<2x32xf32>
    %444 = arith.mulf %431, %437 : vector<2x32xf32>
    %445 = arith.addf %443, %444 : vector<2x32xf32>
    %446 = math.tanh %445 : vector<2x32xf32>
    %447 = arith.mulf %442, %446 : vector<2x32xf32>
    %c0_195 = arith.constant 0 : index
    %c5 = arith.constant 5 : index
    %c0_196 = arith.constant 0 : index
    %448 = vector.load %arg0[%c0_195, %c5, %c0_196] : memref<2x8x4xf32, #tpu.memory_space<vmem>>, vector<2x1x4xf32>
    %449 = vector.shape_cast %448 : vector<2x1x4xf32> to vector<2x4xf32>
    %cst_197 = arith.constant dense<0.000000e+00> : vector<2x32xf32>
    %450 = tpu.matmul %449, %1, %cst_197 {dimension_numbers = #tpu.dot_dimension_numbers<[1], [0], [0], [1], [0, 0, 1, 1], [], []>} : vector<2x4xf32>, vector<4x32xf32>, vector<2x32xf32> -> vector<2x32xf32>
    %cst_198 = arith.constant dense<0.000000e+00> : vector<2x32xf32>
    %451 = tpu.matmul %410, %9, %cst_198 {dimension_numbers = #tpu.dot_dimension_numbers<[1], [0], [0], [1], [0, 0, 1, 1], [], []>} : vector<2x32xf32>, vector<32x32xf32>, vector<2x32xf32> -> vector<2x32xf32>
    %452 = arith.addf %450, %451 : vector<2x32xf32>
    %453 = arith.addf %452, %19 : vector<2x32xf32>
    %cst_199 = arith.constant dense<0.000000e+00> : vector<2x32xf32>
    %454 = tpu.matmul %449, %3, %cst_199 {dimension_numbers = #tpu.dot_dimension_numbers<[1], [0], [0], [1], [0, 0, 1, 1], [], []>} : vector<2x4xf32>, vector<4x32xf32>, vector<2x32xf32> -> vector<2x32xf32>
    %cst_200 = arith.constant dense<0.000000e+00> : vector<2x32xf32>
    %455 = tpu.matmul %410, %11, %cst_200 {dimension_numbers = #tpu.dot_dimension_numbers<[1], [0], [0], [1], [0, 0, 1, 1], [], []>} : vector<2x32xf32>, vector<32x32xf32>, vector<2x32xf32> -> vector<2x32xf32>
    %456 = arith.addf %454, %455 : vector<2x32xf32>
    %457 = arith.addf %456, %23 : vector<2x32xf32>
    %cst_201 = arith.constant dense<0.000000e+00> : vector<2x32xf32>
    %458 = tpu.matmul %449, %5, %cst_201 {dimension_numbers = #tpu.dot_dimension_numbers<[1], [0], [0], [1], [0, 0, 1, 1], [], []>} : vector<2x4xf32>, vector<4x32xf32>, vector<2x32xf32> -> vector<2x32xf32>
    %cst_202 = arith.constant dense<0.000000e+00> : vector<2x32xf32>
    %459 = tpu.matmul %410, %13, %cst_202 {dimension_numbers = #tpu.dot_dimension_numbers<[1], [0], [0], [1], [0, 0, 1, 1], [], []>} : vector<2x32xf32>, vector<32x32xf32>, vector<2x32xf32> -> vector<2x32xf32>
    %460 = arith.addf %458, %459 : vector<2x32xf32>
    %461 = arith.addf %460, %27 : vector<2x32xf32>
    %cst_203 = arith.constant dense<0.000000e+00> : vector<2x32xf32>
    %462 = tpu.matmul %449, %7, %cst_203 {dimension_numbers = #tpu.dot_dimension_numbers<[1], [0], [0], [1], [0, 0, 1, 1], [], []>} : vector<2x4xf32>, vector<4x32xf32>, vector<2x32xf32> -> vector<2x32xf32>
    %cst_204 = arith.constant dense<0.000000e+00> : vector<2x32xf32>
    %463 = tpu.matmul %410, %15, %cst_204 {dimension_numbers = #tpu.dot_dimension_numbers<[1], [0], [0], [1], [0, 0, 1, 1], [], []>} : vector<2x32xf32>, vector<32x32xf32>, vector<2x32xf32> -> vector<2x32xf32>
    %464 = arith.addf %462, %463 : vector<2x32xf32>
    %465 = arith.addf %464, %31 : vector<2x32xf32>
    %466 = arith.negf %453 : vector<2x32xf32>
    %467 = math.exp %466 : vector<2x32xf32>
    %cst_205 = arith.constant 1.000000e+00 : f32
    %468 = vector.broadcast %cst_205 : f32 to vector<2x32xf32>
    %469 = arith.addf %468, %467 : vector<2x32xf32>
    %470 = arith.divf %468, %469 : vector<2x32xf32>
    %471 = arith.negf %457 : vector<2x32xf32>
    %472 = math.exp %471 : vector<2x32xf32>
    %cst_206 = arith.constant 1.000000e+00 : f32
    %473 = vector.broadcast %cst_206 : f32 to vector<2x32xf32>
    %474 = arith.addf %473, %472 : vector<2x32xf32>
    %475 = arith.divf %473, %474 : vector<2x32xf32>
    %476 = math.tanh %461 : vector<2x32xf32>
    %477 = arith.negf %465 : vector<2x32xf32>
    %478 = math.exp %477 : vector<2x32xf32>
    %cst_207 = arith.constant 1.000000e+00 : f32
    %479 = vector.broadcast %cst_207 : f32 to vector<2x32xf32>
    %480 = arith.addf %479, %478 : vector<2x32xf32>
    %481 = arith.divf %479, %480 : vector<2x32xf32>
    %482 = arith.mulf %475, %408 : vector<2x32xf32>
    %483 = arith.mulf %470, %476 : vector<2x32xf32>
    %484 = arith.addf %482, %483 : vector<2x32xf32>
    %485 = math.tanh %484 : vector<2x32xf32>
    %486 = arith.mulf %481, %485 : vector<2x32xf32>
    %cst_208 = arith.constant dense<0.000000e+00> : vector<2x32xf32>
    %487 = tpu.matmul %486, %33, %cst_208 {dimension_numbers = #tpu.dot_dimension_numbers<[1], [0], [0], [1], [0, 0, 1, 1], [], []>} : vector<2x32xf32>, vector<32x32xf32>, vector<2x32xf32> -> vector<2x32xf32>
    %cst_209 = arith.constant dense<0.000000e+00> : vector<2x32xf32>
    %488 = tpu.matmul %447, %41, %cst_209 {dimension_numbers = #tpu.dot_dimension_numbers<[1], [0], [0], [1], [0, 0, 1, 1], [], []>} : vector<2x32xf32>, vector<32x32xf32>, vector<2x32xf32> -> vector<2x32xf32>
    %489 = arith.addf %487, %488 : vector<2x32xf32>
    %490 = arith.addf %489, %51 : vector<2x32xf32>
    %cst_210 = arith.constant dense<0.000000e+00> : vector<2x32xf32>
    %491 = tpu.matmul %486, %35, %cst_210 {dimension_numbers = #tpu.dot_dimension_numbers<[1], [0], [0], [1], [0, 0, 1, 1], [], []>} : vector<2x32xf32>, vector<32x32xf32>, vector<2x32xf32> -> vector<2x32xf32>
    %cst_211 = arith.constant dense<0.000000e+00> : vector<2x32xf32>
    %492 = tpu.matmul %447, %43, %cst_211 {dimension_numbers = #tpu.dot_dimension_numbers<[1], [0], [0], [1], [0, 0, 1, 1], [], []>} : vector<2x32xf32>, vector<32x32xf32>, vector<2x32xf32> -> vector<2x32xf32>
    %493 = arith.addf %491, %492 : vector<2x32xf32>
    %494 = arith.addf %493, %55 : vector<2x32xf32>
    %cst_212 = arith.constant dense<0.000000e+00> : vector<2x32xf32>
    %495 = tpu.matmul %486, %37, %cst_212 {dimension_numbers = #tpu.dot_dimension_numbers<[1], [0], [0], [1], [0, 0, 1, 1], [], []>} : vector<2x32xf32>, vector<32x32xf32>, vector<2x32xf32> -> vector<2x32xf32>
    %cst_213 = arith.constant dense<0.000000e+00> : vector<2x32xf32>
    %496 = tpu.matmul %447, %45, %cst_213 {dimension_numbers = #tpu.dot_dimension_numbers<[1], [0], [0], [1], [0, 0, 1, 1], [], []>} : vector<2x32xf32>, vector<32x32xf32>, vector<2x32xf32> -> vector<2x32xf32>
    %497 = arith.addf %495, %496 : vector<2x32xf32>
    %498 = arith.addf %497, %59 : vector<2x32xf32>
    %cst_214 = arith.constant dense<0.000000e+00> : vector<2x32xf32>
    %499 = tpu.matmul %486, %39, %cst_214 {dimension_numbers = #tpu.dot_dimension_numbers<[1], [0], [0], [1], [0, 0, 1, 1], [], []>} : vector<2x32xf32>, vector<32x32xf32>, vector<2x32xf32> -> vector<2x32xf32>
    %cst_215 = arith.constant dense<0.000000e+00> : vector<2x32xf32>
    %500 = tpu.matmul %447, %47, %cst_215 {dimension_numbers = #tpu.dot_dimension_numbers<[1], [0], [0], [1], [0, 0, 1, 1], [], []>} : vector<2x32xf32>, vector<32x32xf32>, vector<2x32xf32> -> vector<2x32xf32>
    %501 = arith.addf %499, %500 : vector<2x32xf32>
    %502 = arith.addf %501, %63 : vector<2x32xf32>
    %503 = arith.negf %490 : vector<2x32xf32>
    %504 = math.exp %503 : vector<2x32xf32>
    %cst_216 = arith.constant 1.000000e+00 : f32
    %505 = vector.broadcast %cst_216 : f32 to vector<2x32xf32>
    %506 = arith.addf %505, %504 : vector<2x32xf32>
    %507 = arith.divf %505, %506 : vector<2x32xf32>
    %508 = arith.negf %494 : vector<2x32xf32>
    %509 = math.exp %508 : vector<2x32xf32>
    %cst_217 = arith.constant 1.000000e+00 : f32
    %510 = vector.broadcast %cst_217 : f32 to vector<2x32xf32>
    %511 = arith.addf %510, %509 : vector<2x32xf32>
    %512 = arith.divf %510, %511 : vector<2x32xf32>
    %513 = math.tanh %498 : vector<2x32xf32>
    %514 = arith.negf %502 : vector<2x32xf32>
    %515 = math.exp %514 : vector<2x32xf32>
    %cst_218 = arith.constant 1.000000e+00 : f32
    %516 = vector.broadcast %cst_218 : f32 to vector<2x32xf32>
    %517 = arith.addf %516, %515 : vector<2x32xf32>
    %518 = arith.divf %516, %517 : vector<2x32xf32>
    %519 = arith.mulf %512, %445 : vector<2x32xf32>
    %520 = arith.mulf %507, %513 : vector<2x32xf32>
    %521 = arith.addf %519, %520 : vector<2x32xf32>
    %522 = math.tanh %521 : vector<2x32xf32>
    %523 = arith.mulf %518, %522 : vector<2x32xf32>
    %c0_219 = arith.constant 0 : index
    %c6 = arith.constant 6 : index
    %c0_220 = arith.constant 0 : index
    %524 = vector.load %arg0[%c0_219, %c6, %c0_220] : memref<2x8x4xf32, #tpu.memory_space<vmem>>, vector<2x1x4xf32>
    %525 = vector.shape_cast %524 : vector<2x1x4xf32> to vector<2x4xf32>
    %cst_221 = arith.constant dense<0.000000e+00> : vector<2x32xf32>
    %526 = tpu.matmul %525, %1, %cst_221 {dimension_numbers = #tpu.dot_dimension_numbers<[1], [0], [0], [1], [0, 0, 1, 1], [], []>} : vector<2x4xf32>, vector<4x32xf32>, vector<2x32xf32> -> vector<2x32xf32>
    %cst_222 = arith.constant dense<0.000000e+00> : vector<2x32xf32>
    %527 = tpu.matmul %486, %9, %cst_222 {dimension_numbers = #tpu.dot_dimension_numbers<[1], [0], [0], [1], [0, 0, 1, 1], [], []>} : vector<2x32xf32>, vector<32x32xf32>, vector<2x32xf32> -> vector<2x32xf32>
    %528 = arith.addf %526, %527 : vector<2x32xf32>
    %529 = arith.addf %528, %19 : vector<2x32xf32>
    %cst_223 = arith.constant dense<0.000000e+00> : vector<2x32xf32>
    %530 = tpu.matmul %525, %3, %cst_223 {dimension_numbers = #tpu.dot_dimension_numbers<[1], [0], [0], [1], [0, 0, 1, 1], [], []>} : vector<2x4xf32>, vector<4x32xf32>, vector<2x32xf32> -> vector<2x32xf32>
    %cst_224 = arith.constant dense<0.000000e+00> : vector<2x32xf32>
    %531 = tpu.matmul %486, %11, %cst_224 {dimension_numbers = #tpu.dot_dimension_numbers<[1], [0], [0], [1], [0, 0, 1, 1], [], []>} : vector<2x32xf32>, vector<32x32xf32>, vector<2x32xf32> -> vector<2x32xf32>
    %532 = arith.addf %530, %531 : vector<2x32xf32>
    %533 = arith.addf %532, %23 : vector<2x32xf32>
    %cst_225 = arith.constant dense<0.000000e+00> : vector<2x32xf32>
    %534 = tpu.matmul %525, %5, %cst_225 {dimension_numbers = #tpu.dot_dimension_numbers<[1], [0], [0], [1], [0, 0, 1, 1], [], []>} : vector<2x4xf32>, vector<4x32xf32>, vector<2x32xf32> -> vector<2x32xf32>
    %cst_226 = arith.constant dense<0.000000e+00> : vector<2x32xf32>
    %535 = tpu.matmul %486, %13, %cst_226 {dimension_numbers = #tpu.dot_dimension_numbers<[1], [0], [0], [1], [0, 0, 1, 1], [], []>} : vector<2x32xf32>, vector<32x32xf32>, vector<2x32xf32> -> vector<2x32xf32>
    %536 = arith.addf %534, %535 : vector<2x32xf32>
    %537 = arith.addf %536, %27 : vector<2x32xf32>
    %cst_227 = arith.constant dense<0.000000e+00> : vector<2x32xf32>
    %538 = tpu.matmul %525, %7, %cst_227 {dimension_numbers = #tpu.dot_dimension_numbers<[1], [0], [0], [1], [0, 0, 1, 1], [], []>} : vector<2x4xf32>, vector<4x32xf32>, vector<2x32xf32> -> vector<2x32xf32>
    %cst_228 = arith.constant dense<0.000000e+00> : vector<2x32xf32>
    %539 = tpu.matmul %486, %15, %cst_228 {dimension_numbers = #tpu.dot_dimension_numbers<[1], [0], [0], [1], [0, 0, 1, 1], [], []>} : vector<2x32xf32>, vector<32x32xf32>, vector<2x32xf32> -> vector<2x32xf32>
    %540 = arith.addf %538, %539 : vector<2x32xf32>
    %541 = arith.addf %540, %31 : vector<2x32xf32>
    %542 = arith.negf %529 : vector<2x32xf32>
    %543 = math.exp %542 : vector<2x32xf32>
    %cst_229 = arith.constant 1.000000e+00 : f32
    %544 = vector.broadcast %cst_229 : f32 to vector<2x32xf32>
    %545 = arith.addf %544, %543 : vector<2x32xf32>
    %546 = arith.divf %544, %545 : vector<2x32xf32>
    %547 = arith.negf %533 : vector<2x32xf32>
    %548 = math.exp %547 : vector<2x32xf32>
    %cst_230 = arith.constant 1.000000e+00 : f32
    %549 = vector.broadcast %cst_230 : f32 to vector<2x32xf32>
    %550 = arith.addf %549, %548 : vector<2x32xf32>
    %551 = arith.divf %549, %550 : vector<2x32xf32>
    %552 = math.tanh %537 : vector<2x32xf32>
    %553 = arith.negf %541 : vector<2x32xf32>
    %554 = math.exp %553 : vector<2x32xf32>
    %cst_231 = arith.constant 1.000000e+00 : f32
    %555 = vector.broadcast %cst_231 : f32 to vector<2x32xf32>
    %556 = arith.addf %555, %554 : vector<2x32xf32>
    %557 = arith.divf %555, %556 : vector<2x32xf32>
    %558 = arith.mulf %551, %484 : vector<2x32xf32>
    %559 = arith.mulf %546, %552 : vector<2x32xf32>
    %560 = arith.addf %558, %559 : vector<2x32xf32>
    %561 = math.tanh %560 : vector<2x32xf32>
    %562 = arith.mulf %557, %561 : vector<2x32xf32>
    %cst_232 = arith.constant dense<0.000000e+00> : vector<2x32xf32>
    %563 = tpu.matmul %562, %33, %cst_232 {dimension_numbers = #tpu.dot_dimension_numbers<[1], [0], [0], [1], [0, 0, 1, 1], [], []>} : vector<2x32xf32>, vector<32x32xf32>, vector<2x32xf32> -> vector<2x32xf32>
    %cst_233 = arith.constant dense<0.000000e+00> : vector<2x32xf32>
    %564 = tpu.matmul %523, %41, %cst_233 {dimension_numbers = #tpu.dot_dimension_numbers<[1], [0], [0], [1], [0, 0, 1, 1], [], []>} : vector<2x32xf32>, vector<32x32xf32>, vector<2x32xf32> -> vector<2x32xf32>
    %565 = arith.addf %563, %564 : vector<2x32xf32>
    %566 = arith.addf %565, %51 : vector<2x32xf32>
    %cst_234 = arith.constant dense<0.000000e+00> : vector<2x32xf32>
    %567 = tpu.matmul %562, %35, %cst_234 {dimension_numbers = #tpu.dot_dimension_numbers<[1], [0], [0], [1], [0, 0, 1, 1], [], []>} : vector<2x32xf32>, vector<32x32xf32>, vector<2x32xf32> -> vector<2x32xf32>
    %cst_235 = arith.constant dense<0.000000e+00> : vector<2x32xf32>
    %568 = tpu.matmul %523, %43, %cst_235 {dimension_numbers = #tpu.dot_dimension_numbers<[1], [0], [0], [1], [0, 0, 1, 1], [], []>} : vector<2x32xf32>, vector<32x32xf32>, vector<2x32xf32> -> vector<2x32xf32>
    %569 = arith.addf %567, %568 : vector<2x32xf32>
    %570 = arith.addf %569, %55 : vector<2x32xf32>
    %cst_236 = arith.constant dense<0.000000e+00> : vector<2x32xf32>
    %571 = tpu.matmul %562, %37, %cst_236 {dimension_numbers = #tpu.dot_dimension_numbers<[1], [0], [0], [1], [0, 0, 1, 1], [], []>} : vector<2x32xf32>, vector<32x32xf32>, vector<2x32xf32> -> vector<2x32xf32>
    %cst_237 = arith.constant dense<0.000000e+00> : vector<2x32xf32>
    %572 = tpu.matmul %523, %45, %cst_237 {dimension_numbers = #tpu.dot_dimension_numbers<[1], [0], [0], [1], [0, 0, 1, 1], [], []>} : vector<2x32xf32>, vector<32x32xf32>, vector<2x32xf32> -> vector<2x32xf32>
    %573 = arith.addf %571, %572 : vector<2x32xf32>
    %574 = arith.addf %573, %59 : vector<2x32xf32>
    %cst_238 = arith.constant dense<0.000000e+00> : vector<2x32xf32>
    %575 = tpu.matmul %562, %39, %cst_238 {dimension_numbers = #tpu.dot_dimension_numbers<[1], [0], [0], [1], [0, 0, 1, 1], [], []>} : vector<2x32xf32>, vector<32x32xf32>, vector<2x32xf32> -> vector<2x32xf32>
    %cst_239 = arith.constant dense<0.000000e+00> : vector<2x32xf32>
    %576 = tpu.matmul %523, %47, %cst_239 {dimension_numbers = #tpu.dot_dimension_numbers<[1], [0], [0], [1], [0, 0, 1, 1], [], []>} : vector<2x32xf32>, vector<32x32xf32>, vector<2x32xf32> -> vector<2x32xf32>
    %577 = arith.addf %575, %576 : vector<2x32xf32>
    %578 = arith.addf %577, %63 : vector<2x32xf32>
    %579 = arith.negf %566 : vector<2x32xf32>
    %580 = math.exp %579 : vector<2x32xf32>
    %cst_240 = arith.constant 1.000000e+00 : f32
    %581 = vector.broadcast %cst_240 : f32 to vector<2x32xf32>
    %582 = arith.addf %581, %580 : vector<2x32xf32>
    %583 = arith.divf %581, %582 : vector<2x32xf32>
    %584 = arith.negf %570 : vector<2x32xf32>
    %585 = math.exp %584 : vector<2x32xf32>
    %cst_241 = arith.constant 1.000000e+00 : f32
    %586 = vector.broadcast %cst_241 : f32 to vector<2x32xf32>
    %587 = arith.addf %586, %585 : vector<2x32xf32>
    %588 = arith.divf %586, %587 : vector<2x32xf32>
    %589 = math.tanh %574 : vector<2x32xf32>
    %590 = arith.negf %578 : vector<2x32xf32>
    %591 = math.exp %590 : vector<2x32xf32>
    %cst_242 = arith.constant 1.000000e+00 : f32
    %592 = vector.broadcast %cst_242 : f32 to vector<2x32xf32>
    %593 = arith.addf %592, %591 : vector<2x32xf32>
    %594 = arith.divf %592, %593 : vector<2x32xf32>
    %595 = arith.mulf %588, %521 : vector<2x32xf32>
    %596 = arith.mulf %583, %589 : vector<2x32xf32>
    %597 = arith.addf %595, %596 : vector<2x32xf32>
    %598 = math.tanh %597 : vector<2x32xf32>
    %599 = arith.mulf %594, %598 : vector<2x32xf32>
    %c0_243 = arith.constant 0 : index
    %c7 = arith.constant 7 : index
    %c0_244 = arith.constant 0 : index
    %600 = vector.load %arg0[%c0_243, %c7, %c0_244] : memref<2x8x4xf32, #tpu.memory_space<vmem>>, vector<2x1x4xf32>
    %601 = vector.shape_cast %600 : vector<2x1x4xf32> to vector<2x4xf32>
    %cst_245 = arith.constant dense<0.000000e+00> : vector<2x32xf32>
    %602 = tpu.matmul %601, %1, %cst_245 {dimension_numbers = #tpu.dot_dimension_numbers<[1], [0], [0], [1], [0, 0, 1, 1], [], []>} : vector<2x4xf32>, vector<4x32xf32>, vector<2x32xf32> -> vector<2x32xf32>
    %cst_246 = arith.constant dense<0.000000e+00> : vector<2x32xf32>
    %603 = tpu.matmul %562, %9, %cst_246 {dimension_numbers = #tpu.dot_dimension_numbers<[1], [0], [0], [1], [0, 0, 1, 1], [], []>} : vector<2x32xf32>, vector<32x32xf32>, vector<2x32xf32> -> vector<2x32xf32>
    %604 = arith.addf %602, %603 : vector<2x32xf32>
    %605 = arith.addf %604, %19 : vector<2x32xf32>
    %cst_247 = arith.constant dense<0.000000e+00> : vector<2x32xf32>
    %606 = tpu.matmul %601, %3, %cst_247 {dimension_numbers = #tpu.dot_dimension_numbers<[1], [0], [0], [1], [0, 0, 1, 1], [], []>} : vector<2x4xf32>, vector<4x32xf32>, vector<2x32xf32> -> vector<2x32xf32>
    %cst_248 = arith.constant dense<0.000000e+00> : vector<2x32xf32>
    %607 = tpu.matmul %562, %11, %cst_248 {dimension_numbers = #tpu.dot_dimension_numbers<[1], [0], [0], [1], [0, 0, 1, 1], [], []>} : vector<2x32xf32>, vector<32x32xf32>, vector<2x32xf32> -> vector<2x32xf32>
    %608 = arith.addf %606, %607 : vector<2x32xf32>
    %609 = arith.addf %608, %23 : vector<2x32xf32>
    %cst_249 = arith.constant dense<0.000000e+00> : vector<2x32xf32>
    %610 = tpu.matmul %601, %5, %cst_249 {dimension_numbers = #tpu.dot_dimension_numbers<[1], [0], [0], [1], [0, 0, 1, 1], [], []>} : vector<2x4xf32>, vector<4x32xf32>, vector<2x32xf32> -> vector<2x32xf32>
    %cst_250 = arith.constant dense<0.000000e+00> : vector<2x32xf32>
    %611 = tpu.matmul %562, %13, %cst_250 {dimension_numbers = #tpu.dot_dimension_numbers<[1], [0], [0], [1], [0, 0, 1, 1], [], []>} : vector<2x32xf32>, vector<32x32xf32>, vector<2x32xf32> -> vector<2x32xf32>
    %612 = arith.addf %610, %611 : vector<2x32xf32>
    %613 = arith.addf %612, %27 : vector<2x32xf32>
    %cst_251 = arith.constant dense<0.000000e+00> : vector<2x32xf32>
    %614 = tpu.matmul %601, %7, %cst_251 {dimension_numbers = #tpu.dot_dimension_numbers<[1], [0], [0], [1], [0, 0, 1, 1], [], []>} : vector<2x4xf32>, vector<4x32xf32>, vector<2x32xf32> -> vector<2x32xf32>
    %cst_252 = arith.constant dense<0.000000e+00> : vector<2x32xf32>
    %615 = tpu.matmul %562, %15, %cst_252 {dimension_numbers = #tpu.dot_dimension_numbers<[1], [0], [0], [1], [0, 0, 1, 1], [], []>} : vector<2x32xf32>, vector<32x32xf32>, vector<2x32xf32> -> vector<2x32xf32>
    %616 = arith.addf %614, %615 : vector<2x32xf32>
    %617 = arith.addf %616, %31 : vector<2x32xf32>
    %618 = arith.negf %605 : vector<2x32xf32>
    %619 = math.exp %618 : vector<2x32xf32>
    %cst_253 = arith.constant 1.000000e+00 : f32
    %620 = vector.broadcast %cst_253 : f32 to vector<2x32xf32>
    %621 = arith.addf %620, %619 : vector<2x32xf32>
    %622 = arith.divf %620, %621 : vector<2x32xf32>
    %623 = arith.negf %609 : vector<2x32xf32>
    %624 = math.exp %623 : vector<2x32xf32>
    %cst_254 = arith.constant 1.000000e+00 : f32
    %625 = vector.broadcast %cst_254 : f32 to vector<2x32xf32>
    %626 = arith.addf %625, %624 : vector<2x32xf32>
    %627 = arith.divf %625, %626 : vector<2x32xf32>
    %628 = math.tanh %613 : vector<2x32xf32>
    %629 = arith.negf %617 : vector<2x32xf32>
    %630 = math.exp %629 : vector<2x32xf32>
    %cst_255 = arith.constant 1.000000e+00 : f32
    %631 = vector.broadcast %cst_255 : f32 to vector<2x32xf32>
    %632 = arith.addf %631, %630 : vector<2x32xf32>
    %633 = arith.divf %631, %632 : vector<2x32xf32>
    %634 = arith.mulf %627, %560 : vector<2x32xf32>
    %635 = arith.mulf %622, %628 : vector<2x32xf32>
    %636 = arith.addf %634, %635 : vector<2x32xf32>
    %637 = math.tanh %636 : vector<2x32xf32>
    %638 = arith.mulf %633, %637 : vector<2x32xf32>
    %cst_256 = arith.constant dense<0.000000e+00> : vector<2x32xf32>
    %639 = tpu.matmul %638, %33, %cst_256 {dimension_numbers = #tpu.dot_dimension_numbers<[1], [0], [0], [1], [0, 0, 1, 1], [], []>} : vector<2x32xf32>, vector<32x32xf32>, vector<2x32xf32> -> vector<2x32xf32>
    %cst_257 = arith.constant dense<0.000000e+00> : vector<2x32xf32>
    %640 = tpu.matmul %599, %41, %cst_257 {dimension_numbers = #tpu.dot_dimension_numbers<[1], [0], [0], [1], [0, 0, 1, 1], [], []>} : vector<2x32xf32>, vector<32x32xf32>, vector<2x32xf32> -> vector<2x32xf32>
    %641 = arith.addf %639, %640 : vector<2x32xf32>
    %642 = arith.addf %641, %51 : vector<2x32xf32>
    %cst_258 = arith.constant dense<0.000000e+00> : vector<2x32xf32>
    %643 = tpu.matmul %638, %35, %cst_258 {dimension_numbers = #tpu.dot_dimension_numbers<[1], [0], [0], [1], [0, 0, 1, 1], [], []>} : vector<2x32xf32>, vector<32x32xf32>, vector<2x32xf32> -> vector<2x32xf32>
    %cst_259 = arith.constant dense<0.000000e+00> : vector<2x32xf32>
    %644 = tpu.matmul %599, %43, %cst_259 {dimension_numbers = #tpu.dot_dimension_numbers<[1], [0], [0], [1], [0, 0, 1, 1], [], []>} : vector<2x32xf32>, vector<32x32xf32>, vector<2x32xf32> -> vector<2x32xf32>
    %645 = arith.addf %643, %644 : vector<2x32xf32>
    %646 = arith.addf %645, %55 : vector<2x32xf32>
    %cst_260 = arith.constant dense<0.000000e+00> : vector<2x32xf32>
    %647 = tpu.matmul %638, %37, %cst_260 {dimension_numbers = #tpu.dot_dimension_numbers<[1], [0], [0], [1], [0, 0, 1, 1], [], []>} : vector<2x32xf32>, vector<32x32xf32>, vector<2x32xf32> -> vector<2x32xf32>
    %cst_261 = arith.constant dense<0.000000e+00> : vector<2x32xf32>
    %648 = tpu.matmul %599, %45, %cst_261 {dimension_numbers = #tpu.dot_dimension_numbers<[1], [0], [0], [1], [0, 0, 1, 1], [], []>} : vector<2x32xf32>, vector<32x32xf32>, vector<2x32xf32> -> vector<2x32xf32>
    %649 = arith.addf %647, %648 : vector<2x32xf32>
    %650 = arith.addf %649, %59 : vector<2x32xf32>
    %cst_262 = arith.constant dense<0.000000e+00> : vector<2x32xf32>
    %651 = tpu.matmul %638, %39, %cst_262 {dimension_numbers = #tpu.dot_dimension_numbers<[1], [0], [0], [1], [0, 0, 1, 1], [], []>} : vector<2x32xf32>, vector<32x32xf32>, vector<2x32xf32> -> vector<2x32xf32>
    %cst_263 = arith.constant dense<0.000000e+00> : vector<2x32xf32>
    %652 = tpu.matmul %599, %47, %cst_263 {dimension_numbers = #tpu.dot_dimension_numbers<[1], [0], [0], [1], [0, 0, 1, 1], [], []>} : vector<2x32xf32>, vector<32x32xf32>, vector<2x32xf32> -> vector<2x32xf32>
    %653 = arith.addf %651, %652 : vector<2x32xf32>
    %654 = arith.addf %653, %63 : vector<2x32xf32>
    %655 = arith.negf %642 : vector<2x32xf32>
    %656 = math.exp %655 : vector<2x32xf32>
    %cst_264 = arith.constant 1.000000e+00 : f32
    %657 = vector.broadcast %cst_264 : f32 to vector<2x32xf32>
    %658 = arith.addf %657, %656 : vector<2x32xf32>
    %659 = arith.divf %657, %658 : vector<2x32xf32>
    %660 = arith.negf %646 : vector<2x32xf32>
    %661 = math.exp %660 : vector<2x32xf32>
    %cst_265 = arith.constant 1.000000e+00 : f32
    %662 = vector.broadcast %cst_265 : f32 to vector<2x32xf32>
    %663 = arith.addf %662, %661 : vector<2x32xf32>
    %664 = arith.divf %662, %663 : vector<2x32xf32>
    %665 = math.tanh %650 : vector<2x32xf32>
    %666 = arith.negf %654 : vector<2x32xf32>
    %667 = math.exp %666 : vector<2x32xf32>
    %cst_266 = arith.constant 1.000000e+00 : f32
    %668 = vector.broadcast %cst_266 : f32 to vector<2x32xf32>
    %669 = arith.addf %668, %667 : vector<2x32xf32>
    %670 = arith.divf %668, %669 : vector<2x32xf32>
    %671 = arith.mulf %664, %597 : vector<2x32xf32>
    %672 = arith.mulf %659, %665 : vector<2x32xf32>
    %673 = arith.addf %671, %672 : vector<2x32xf32>
    %674 = math.tanh %673 : vector<2x32xf32>
    %675 = arith.mulf %670, %674 : vector<2x32xf32>
    %c0_267 = arith.constant 0 : index
    %c0_268 = arith.constant 0 : index
    %676 = vector.load %arg9[%c0_267, %c0_268] : memref<1x128xf32, #tpu.memory_space<vmem>>, vector<1x128xf32>
    %c0_269 = arith.constant 0 : index
    %c0_270 = arith.constant 0 : index
    %677 = vector.load %arg7[%c0_269, %c0_270] : memref<32x128xf32, #tpu.memory_space<vmem>>, vector<32x128xf32>
    %cst_271 = arith.constant dense<0.000000e+00> : vector<2x128xf32>
    %678 = tpu.matmul %638, %677, %cst_271 {dimension_numbers = #tpu.dot_dimension_numbers<[1], [0], [0], [1], [0, 0, 1, 1], [], []>} : vector<2x32xf32>, vector<32x128xf32>, vector<2x128xf32> -> vector<2x128xf32>
    %679 = vector.broadcast %676 : vector<1x128xf32> to vector<2x128xf32>
    %680 = arith.addf %679, %678 : vector<2x128xf32>
    %c0_272 = arith.constant 0 : index
    %c0_273 = arith.constant 0 : index
    %681 = vector.load %arg8[%c0_272, %c0_273] : memref<32x128xf32, #tpu.memory_space<vmem>>, vector<32x128xf32>
    %cst_274 = arith.constant dense<0.000000e+00> : vector<2x128xf32>
    %682 = tpu.matmul %675, %681, %cst_274 {dimension_numbers = #tpu.dot_dimension_numbers<[1], [0], [0], [1], [0, 0, 1, 1], [], []>} : vector<2x32xf32>, vector<32x128xf32>, vector<2x128xf32> -> vector<2x128xf32>
    %683 = arith.addf %680, %682 : vector<2x128xf32>
    %cst_275 = arith.constant 0.000000e+00 : f32
    %684 = vector.broadcast %cst_275 : f32 to vector<2x128xf32>
    %685 = arith.maximumf %683, %684 : vector<2x128xf32>
    %c0_276 = arith.constant 0 : index
    %c0_277 = arith.constant 0 : index
    %686 = vector.load %arg10[%c0_276, %c0_277] : memref<128x64xf32, #tpu.memory_space<vmem>>, vector<128x64xf32>
    %cst_278 = arith.constant dense<0.000000e+00> : vector<2x64xf32>
    %687 = tpu.matmul %685, %686, %cst_278 {dimension_numbers = #tpu.dot_dimension_numbers<[1], [0], [0], [1], [0, 0, 1, 1], [], []>} : vector<2x128xf32>, vector<128x64xf32>, vector<2x64xf32> -> vector<2x64xf32>
    %c0_279 = arith.constant 0 : index
    %c0_280 = arith.constant 0 : index
    %688 = vector.load %arg11[%c0_279, %c0_280] : memref<1x64xf32, #tpu.memory_space<vmem>>, vector<1x64xf32>
    %689 = vector.broadcast %688 : vector<1x64xf32> to vector<2x64xf32>
    %690 = arith.addf %687, %689 : vector<2x64xf32>
    %cst_281 = arith.constant 0.000000e+00 : f32
    %691 = vector.broadcast %cst_281 : f32 to vector<2x64xf32>
    %692 = arith.maximumf %690, %691 : vector<2x64xf32>
    %c0_282 = arith.constant 0 : index
    %c0_283 = arith.constant 0 : index
    %693 = vector.load %arg12[%c0_282, %c0_283] : memref<64x14xf32, #tpu.memory_space<vmem>>, vector<64x14xf32>
    %cst_284 = arith.constant dense<0.000000e+00> : vector<2x14xf32>
    %694 = tpu.matmul %692, %693, %cst_284 {dimension_numbers = #tpu.dot_dimension_numbers<[1], [0], [0], [1], [0, 0, 1, 1], [], []>} : vector<2x64xf32>, vector<64x14xf32>, vector<2x14xf32> -> vector<2x14xf32>
    %c0_285 = arith.constant 0 : index
    %c0_286 = arith.constant 0 : index
    %695 = vector.load %arg13[%c0_285, %c0_286] : memref<1x14xf32, #tpu.memory_space<vmem>>, vector<1x14xf32>
    %696 = vector.broadcast %695 : vector<1x14xf32> to vector<2x14xf32>
    %697 = arith.addf %694, %696 : vector<2x14xf32>
    %c0_287 = arith.constant 0 : index
    %c0_288 = arith.constant 0 : index
    %698 = vector.load %arg14[%c0_287, %c0_288] : memref<2x14xf32, #tpu.memory_space<vmem>>, vector<2x14xf32>
    tpu.vector_store %arg14[%c0_287, %c0_288], %697 {strides = array<i32>} : memref<2x14xf32, #tpu.memory_space<vmem>>, vector<2x14xf32>,
    return
  }
}

</mosaic_0001>

<llo_original>
// kernel: deep_lstm_forward.1
$region0: #{deep_lstm_forward.1}
  #allocation0 [shape = 'u32[]', space=smem, size = 0x4, offset = 0x4, fixed_abs, tag = 'smem constant byte address 0x4 - core index']
  #allocation1 [shape = 'u32[144,128]{1,0:T(1,128)}', space=vmem, size = 0x12000, scoped, tag = 'internal scratch']
  %s0 = inlined_call_operand.vmem [shape: f32[2,8,4], index: 0, kind: input, shape index: {}]
  %s1 = inlined_call_operand.hbm [shape: f32[4,4,32], index: 1, kind: input, shape index: {}]
  %s2 = inlined_call_operand.vmem [shape: f32[4,32,32], index: 2, kind: input, shape index: {}]
  %s3 = inlined_call_operand.hbm [shape: f32[4,1,32], index: 3, kind: input, shape index: {}]
  %s4 = inlined_call_operand.vmem [shape: f32[4,32,32], index: 4, kind: input, shape index: {}]
  %s5 = inlined_call_operand.hbm [shape: f32[4,32,32], index: 5, kind: input, shape index: {}]
  %s6 = inlined_call_operand.hbm [shape: f32[4,1,32], index: 6, kind: input, shape index: {}]
  %s7 = inlined_call_operand.hbm [shape: f32[32,128], index: 7, kind: input, shape index: {}]
  %s8 = inlined_call_operand.hbm [shape: f32[32,128], index: 8, kind: input, shape index: {}]
  %s9 = inlined_call_operand.vmem [shape: f32[1,128], index: 9, kind: input, shape index: {}]
  %s10 = inlined_call_operand.vmem [shape: f32[128,64], index: 10, kind: input, shape index: {}]
  %s11 = inlined_call_operand.hbm [shape: f32[1,64], index: 11, kind: input, shape index: {}]
  %s12 = inlined_call_operand.vmem [shape: f32[64,14], index: 12, kind: input, shape index: {}]
  %s13 = inlined_call_operand.hbm [shape: f32[1,14], index: 13, kind: input, shape index: {}]
  %s14 = inlined_call_operand.hbm [shape: f32[2,14], index: 14, kind: output, shape index: {}]
  %s15 = sld [smem:[#allocation0]]
  $region98: #{deep_lstm_forward.1} parent=0
    _
  %s17 = ssub.s32 1, %s15
  %s18 = scalar_select 0, %s17, %s15
  $region1: #{deep_lstm_forward.1} parent=0
    #allocation2 [shape = 'u8[8192]{0}', space=vmem, size = 0x2000, scoped, tag = 'input window, operand 1, single buffered']
    #allocation3 [shape = 's32[1]{0}', space=sflag, size = 0x4, scoped, tag = 'scoped memory for deep_lstm_forward.1']
    #allocation4 [shape = 's32[1]{0}', space=sflag, size = 0x4, scoped, tag = 'scoped memory for deep_lstm_forward.1']
    #allocation5 [shape = 'u8[2048]{0}', space=vmem, size = 0x800, scoped, tag = 'input window, operand 3, single buffered']
    #allocation6 [shape = 's32[1]{0}', space=sflag, size = 0x4, scoped, tag = 'scoped memory for deep_lstm_forward.1']
    #allocation7 [shape = 'u8[65536]{0}', space=vmem, size = 0x10000, scoped, tag = 'input window, operand 5, single buffered']
    #allocation8 [shape = 'u8[2048]{0}', space=vmem, size = 0x800, scoped, tag = 'input window, operand 6, single buffered']
    #allocation9 [shape = 's32[1]{0}', space=sflag, size = 0x4, scoped, tag = 'scoped memory for deep_lstm_forward.1']
    #allocation10 [shape = 'u8[16384]{0}', space=vmem, size = 0x4000, scoped, tag = 'input window, operand 7, single buffered']
    #allocation11 [shape = 'u8[16384]{0}', space=vmem, size = 0x4000, scoped, tag = 'input window, operand 8, single buffered']
    #allocation12 [shape = 's32[1]{0}', space=sflag, size = 0x4, scoped, tag = 'scoped memory for deep_lstm_forward.1']
    #allocation13 [shape = 'u8[512]{0}', space=vmem, size = 0x400, scoped, tag = 'input window, operand 11, single buffered']
    #allocation14 [shape = 'u8[512]{0}', space=vmem, size = 0x400, scoped, tag = 'input window, operand 13, single buffered']
    #allocation15 [shape = 's32[1]{0}', space=sflag, size = 0x4, scoped, tag = 'scoped memory for deep_lstm_forward.1']
    #allocation16 [shape = 'u8[1024]{0}', space=vmem, size = 0x400, scoped, tag = 'output window, operand 0, single buffered']
    %19 = vsyncpa [#allocation3], 0
    %20 = vsyncpa [#allocation6], 0
    %21 = vsyncpa [#allocation9], 0
    %22 = vsyncpa [#allocation12], 0
    %23 = vsyncpa [#allocation15], 0
    %24 = vsyncpa [#allocation4], 0
    // Predicated region
    $region2: #{deep_lstm_forward.1} parent=1 // pred_check
      _
    $region3: #{deep_lstm_forward.1} parent=1 // pred_check_branch
      %26 = sbr.rel (0) target = $region5
    $region4: #{deep_lstm_forward.1} parent=1 // pred_region
      _
    $region5: #{deep_lstm_forward.1} parent=1 // pred_fallthru
      _
    // Predicated region
    $region6: #{deep_lstm_forward.1} parent=1 // pred_check
      _
    $region7: #{deep_lstm_forward.1} parent=1 // pred_check_branch
      %28 = sbr.rel (0) target = $region9
    $region8: #{deep_lstm_forward.1} parent=1 // pred_region
      %s30 = ssub.s32 256, 256
      %31 = vsyncadd [#allocation3], %s30
      %s32 = sshll.u32 [#allocation2], 4
      %s33 = int_to_ptr.vmem [resolvable:$true] %s32
      %38 = dma.hbm_to_vmem [thread:$0]  %s1, 256, %s33, [#allocation3], 64, 64, 4
    $region9: #{deep_lstm_forward.1} parent=1 // pred_fallthru
      _
    // Predicated region
    $region10: #{deep_lstm_forward.1} parent=1 // pred_check
      _
    $region11: #{deep_lstm_forward.1} parent=1 // pred_check_branch
      %40 = sbr.rel (0) target = $region13
    $region12: #{deep_lstm_forward.1} parent=1 // pred_region
      _
    $region13: #{deep_lstm_forward.1} parent=1 // pred_fallthru
      _
    // Predicated region
    $region14: #{deep_lstm_forward.1} parent=1 // pred_check
      _
    $region15: #{deep_lstm_forward.1} parent=1 // pred_check_branch
      %42 = sbr.rel (0) target = $region17
    $region16: #{deep_lstm_forward.1} parent=1 // pred_region
      %s44 = ssub.s32 64, 64
      %45 = vsyncadd [#allocation6], %s44
      %s46 = sshll.u32 [#allocation5], 4
      %s47 = int_to_ptr.vmem [resolvable:$true] %s46
      %52 = dma.hbm_to_vmem [thread:$0]  %s3, 64, %s47, [#allocation6], 16, 16, 1
    $region17: #{deep_lstm_forward.1} parent=1 // pred_fallthru
      _
    // Predicated region
    $region18: #{deep_lstm_forward.1} parent=1 // pred_check
      _
    $region19: #{deep_lstm_forward.1} parent=1 // pred_check_branch
      %54 = sbr.rel (0) target = $region21
    $region20: #{deep_lstm_forward.1} parent=1 // pred_region
      _
    $region21: #{deep_lstm_forward.1} parent=1 // pred_fallthru
      _
    // Predicated region
    $region22: #{deep_lstm_forward.1} parent=1 // pred_check
      _
    $region23: #{deep_lstm_forward.1} parent=1 // pred_check_branch
      %56 = sbr.rel (0) target = $region25
    $region24: #{deep_lstm_forward.1} parent=1 // pred_region
      %s58 = ssub.s32 2048, 2048
      %59 = vsyncadd [#allocation6], %s58
      %s60 = sshll.u32 [#allocation7], 4
      %s61 = int_to_ptr.vmem [resolvable:$true] %s60
      %66 = dma.hbm_to_vmem [thread:$0]  %s5, 2048, %s61, [#allocation6], 128, 128, 8
    $region25: #{deep_lstm_forward.1} parent=1 // pred_fallthru
      _
    // Predicated region
    $region26: #{deep_lstm_forward.1} parent=1 // pred_check
      _
    $region27: #{deep_lstm_forward.1} parent=1 // pred_check_branch
      %68 = sbr.rel (0) target = $region29
    $region28: #{deep_lstm_forward.1} parent=1 // pred_region
      %s70 = ssub.s32 64, 64
      %71 = vsyncadd [#allocation9], %s70
      %s72 = sshll.u32 [#allocation8], 4
      %s73 = int_to_ptr.vmem [resolvable:$true] %s72
      %78 = dma.hbm_to_vmem [thread:$0]  %s6, 64, %s73, [#allocation9], 16, 16, 1
    $region29: #{deep_lstm_forward.1} parent=1 // pred_fallthru
      _
    // Predicated region
    $region30: #{deep_lstm_forward.1} parent=1 // pred_check
      _
    $region31: #{deep_lstm_forward.1} parent=1 // pred_check_branch
      %80 = sbr.rel (0) target = $region33
    $region32: #{deep_lstm_forward.1} parent=1 // pred_region
      %s82 = ssub.s32 512, 512
      %83 = vsyncadd [#allocation9], %s82
      %s84 = sshll.u32 [#allocation10], 4
      %s85 = int_to_ptr.vmem [resolvable:$true] %s84
      %90 = dma.hbm_to_vmem [thread:$0]  %s7, 512, %s85, [#allocation9], 128, 128, 8
    $region33: #{deep_lstm_forward.1} parent=1 // pred_fallthru
      _
    // Predicated region
    $region34: #{deep_lstm_forward.1} parent=1 // pred_check
      _
    $region35: #{deep_lstm_forward.1} parent=1 // pred_check_branch
      %92 = sbr.rel (0) target = $region37
    $region36: #{deep_lstm_forward.1} parent=1 // pred_region
      %s94 = ssub.s32 512, 512
      %95 = vsyncadd [#allocation12], %s94
      %s96 = sshll.u32 [#allocation11], 4
      %s97 = int_to_ptr.vmem [resolvable:$true] %s96
      %102 = dma.hbm_to_vmem [thread:$0]  %s8, 512, %s97, [#allocation12], 128, 128, 8
    $region37: #{deep_lstm_forward.1} parent=1 // pred_fallthru
      _
    // Predicated region
    $region38: #{deep_lstm_forward.1} parent=1 // pred_check
      _
    $region39: #{deep_lstm_forward.1} parent=1 // pred_check_branch
      %104 = sbr.rel (0) target = $region41
    $region40: #{deep_lstm_forward.1} parent=1 // pred_region
      _
    $region41: #{deep_lstm_forward.1} parent=1 // pred_fallthru
      _
    // Predicated region
    $region42: #{deep_lstm_forward.1} parent=1 // pred_check
      _
    $region43: #{deep_lstm_forward.1} parent=1 // pred_check_branch
      %106 = sbr.rel (0) target = $region45
    $region44: #{deep_lstm_forward.1} parent=1 // pred_region
      _
    $region45: #{deep_lstm_forward.1} parent=1 // pred_fallthru
      _
    // Predicated region
    $region46: #{deep_lstm_forward.1} parent=1 // pred_check
      _
    $region47: #{deep_lstm_forward.1} parent=1 // pred_check_branch
      %108 = sbr.rel (0) target = $region49
    $region48: #{deep_lstm_forward.1} parent=1 // pred_region
      %s110 = ssub.s32 16, 16
      %111 = vsyncadd [#allocation12], %s110
      %s113 = sshll.u32 [#allocation13], 4
      %s114 = int_to_ptr.vmem [resolvable:$true] %s113
      %116 = dma.hbm_to_vmem [thread:$0]  %s11, 16, %s114, [#allocation12]
    $region49: #{deep_lstm_forward.1} parent=1 // pred_fallthru
      _
    // Predicated region
    $region50: #{deep_lstm_forward.1} parent=1 // pred_check
      _
    $region51: #{deep_lstm_forward.1} parent=1 // pred_check_branch
      %118 = sbr.rel (0) target = $region53
    $region52: #{deep_lstm_forward.1} parent=1 // pred_region
      _
    $region53: #{deep_lstm_forward.1} parent=1 // pred_fallthru
      _
    // Predicated region
    $region54: #{deep_lstm_forward.1} parent=1 // pred_check
      _
    $region55: #{deep_lstm_forward.1} parent=1 // pred_check_branch
      %120 = sbr.rel (0) target = $region57
    $region56: #{deep_lstm_forward.1} parent=1 // pred_region
      %s122 = ssub.s32 16, 16
      %123 = vsyncadd [#allocation15], %s122
      %s125 = sshll.u32 [#allocation14], 4
      %s126 = int_to_ptr.vmem [resolvable:$true] %s125
      %128 = dma.hbm_to_vmem [thread:$0]  %s13, 16, %s126, [#allocation15]
    $region57: #{deep_lstm_forward.1} parent=1 // pred_fallthru
      _
    // Predicated region
    $region58: #{deep_lstm_forward.1} parent=1 // pred_check
      _
    $region59: #{deep_lstm_forward.1} parent=1 // pred_check_branch
      %130 = sbr.rel (0) target = $region61
    $region60: #{deep_lstm_forward.1} parent=1 // pred_region
      %131 = dma.done [#allocation3], 256
    $region61: #{deep_lstm_forward.1} parent=1 // pred_fallthru
      _
    // Predicated region
    $region62: #{deep_lstm_forward.1} parent=1 // pred_check
      _
    $region63: #{deep_lstm_forward.1} parent=1 // pred_check_branch
      %133 = sbr.rel (0) target = $region65
    $region64: #{deep_lstm_forward.1} parent=1 // pred_region
      %134 = dma.done [#allocation6], 64
    $region65: #{deep_lstm_forward.1} parent=1 // pred_fallthru
      _
    // Predicated region
    $region66: #{deep_lstm_forward.1} parent=1 // pred_check
      _
    $region67: #{deep_lstm_forward.1} parent=1 // pred_check_branch
      %136 = sbr.rel (0) target = $region69
    $region68: #{deep_lstm_forward.1} parent=1 // pred_region
      %137 = dma.done [#allocation6], 2048
    $region69: #{deep_lstm_forward.1} parent=1 // pred_fallthru
      _
    // Predicated region
    $region70: #{deep_lstm_forward.1} parent=1 // pred_check
      _
    $region71: #{deep_lstm_forward.1} parent=1 // pred_check_branch
      %139 = sbr.rel (0) target = $region73
    $region72: #{deep_lstm_forward.1} parent=1 // pred_region
      %140 = dma.done [#allocation9], 64
    $region73: #{deep_lstm_forward.1} parent=1 // pred_fallthru
      _
    // Predicated region
    $region74: #{deep_lstm_forward.1} parent=1 // pred_check
      _
    $region75: #{deep_lstm_forward.1} parent=1 // pred_check_branch
      %142 = sbr.rel (0) target = $region77
    $region76: #{deep_lstm_forward.1} parent=1 // pred_region
      %143 = dma.done [#allocation9], 512
    $region77: #{deep_lstm_forward.1} parent=1 // pred_fallthru
      _
    // Predicated region
    $region78: #{deep_lstm_forward.1} parent=1 // pred_check
      _
    $region79: #{deep_lstm_forward.1} parent=1 // pred_check_branch
      %145 = sbr.rel (0) target = $region81
    $region80: #{deep_lstm_forward.1} parent=1 // pred_region
      %146 = dma.done [#allocation12], 512
    $region81: #{deep_lstm_forward.1} parent=1 // pred_fallthru
      _
    // Predicated region
    $region82: #{deep_lstm_forward.1} parent=1 // pred_check
      _
    $region83: #{deep_lstm_forward.1} parent=1 // pred_check_branch
      %148 = sbr.rel (0) target = $region85
    $region84: #{deep_lstm_forward.1} parent=1 // pred_region
      %149 = dma.done [#allocation12], 16
    $region85: #{deep_lstm_forward.1} parent=1 // pred_fallthru
      _
    // Predicated region
    $region86: #{deep_lstm_forward.1} parent=1 // pred_check
      _
    $region87: #{deep_lstm_forward.1} parent=1 // pred_check_branch
      %151 = sbr.rel (0) target = $region89
    $region88: #{deep_lstm_forward.1} parent=1 // pred_region
      %152 = dma.done [#allocation15], 16
    $region89: #{deep_lstm_forward.1} parent=1 // pred_fallthru
      _
    %v153 = vld [vmem:[#allocation2] sm:$0xf]
    %s154 = scalar_lea.vmem [#allocation2], 4
    %v155 = vld [vmem:[%s154] sm:$0xf]
    %s156 = scalar_lea.vmem [#allocation2], 8
    %v157 = vld [vmem:[%s156] sm:$0xf]
    %s158 = scalar_lea.vmem [#allocation2], 12
    %v159 = vld [vmem:[%s158] sm:$0xf]
    %v160 = vld [vmem:[%s2] sm:$0xff]
    %v161 = vld [vmem:[%s2 + $0x8] sm:$0xff]
    %v162 = vld [vmem:[%s2 + $0x10] sm:$0xff]
    %v163 = vld [vmem:[%s2 + $0x18] sm:$0xff]
    %s164 = scalar_lea.vmem %s2, 32
    %v165 = vld [vmem:[%s164] sm:$0xff]
    %v166 = vld [vmem:[%s164 + $0x8] sm:$0xff]
    %v167 = vld [vmem:[%s164 + $0x10] sm:$0xff]
    %v168 = vld [vmem:[%s164 + $0x18] sm:$0xff]
    %s169 = scalar_lea.vmem %s2, 64
    %v170 = vld [vmem:[%s169] sm:$0xff]
    %v171 = vld [vmem:[%s169 + $0x8] sm:$0xff]
    %v172 = vld [vmem:[%s169 + $0x10] sm:$0xff]
    %v173 = vld [vmem:[%s169 + $0x18] sm:$0xff]
    %s174 = scalar_lea.vmem %s2, 96
    %v175 = vld [vmem:[%s174] sm:$0xff]
    %v176 = vld [vmem:[%s174 + $0x8] sm:$0xff]
    %v177 = vld [vmem:[%s174 + $0x10] sm:$0xff]
    %v178 = vld [vmem:[%s174 + $0x18] sm:$0xff]
    %v179 = vld [vmem:[#allocation5] sm:$0x1]
    %v181 = vlaneseq
    %v182 = vshrl.u32 %v181, 7
    %v183 = vsub.s32 0, %v182
    %v184 = vrot.slane %v179, %v183
    %s186 = scalar_lea.vmem [#allocation5], 1
    %v187 = vld [vmem:[%s186] sm:$0x1]
    %v189 = vlaneseq
    %v190 = vshrl.u32 %v189, 7
    %v191 = vsub.s32 0, %v190
    %v192 = vrot.slane %v187, %v191
    %s194 = scalar_lea.vmem [#allocation5], 2
    %v195 = vld [vmem:[%s194] sm:$0x1]
    %v197 = vlaneseq
    %v198 = vshrl.u32 %v197, 7
    %v199 = vsub.s32 0, %v198
    %v200 = vrot.slane %v195, %v199
    %s202 = scalar_lea.vmem [#allocation5], 3
    %v203 = vld [vmem:[%s202] sm:$0x1]
    %v205 = vlaneseq
    %v206 = vshrl.u32 %v205, 7
    %v207 = vsub.s32 0, %v206
    %v208 = vrot.slane %v203, %v207
    %v210 = vld [vmem:[%s4] sm:$0xff]
    %v211 = vld [vmem:[%s4 + $0x8] sm:$0xff]
    %v212 = vld [vmem:[%s4 + $0x10] sm:$0xff]
    %v213 = vld [vmem:[%s4 + $0x18] sm:$0xff]
    %s214 = scalar_lea.vmem %s4, 32
    %v215 = vld [vmem:[%s214] sm:$0xff]
    %v216 = vld [vmem:[%s214 + $0x8] sm:$0xff]
    %v217 = vld [vmem:[%s214 + $0x10] sm:$0xff]
    %v218 = vld [vmem:[%s214 + $0x18] sm:$0xff]
    %s219 = scalar_lea.vmem %s4, 64
    %v220 = vld [vmem:[%s219] sm:$0xff]
    %v221 = vld [vmem:[%s219 + $0x8] sm:$0xff]
    %v222 = vld [vmem:[%s219 + $0x10] sm:$0xff]
    %v223 = vld [vmem:[%s219 + $0x18] sm:$0xff]
    %s224 = scalar_lea.vmem %s4, 96
    %v225 = vld [vmem:[%s224] sm:$0xff]
    %v226 = vld [vmem:[%s224 + $0x8] sm:$0xff]
    %v227 = vld [vmem:[%s224 + $0x10] sm:$0xff]
    %v228 = vld [vmem:[%s224 + $0x18] sm:$0xff]
    %v229 = vld [vmem:[#allocation7] sm:$0xff]
    %v230 = vld [vmem:[#allocation7 + $0x8] sm:$0xff]
    %v231 = vld [vmem:[#allocation7 + $0x10] sm:$0xff]
    %v232 = vld [vmem:[#allocation7 + $0x18] sm:$0xff]
    %s233 = scalar_lea.vmem [#allocation7], 32
    %v234 = vld [vmem:[%s233] sm:$0xff]
    %v235 = vld [vmem:[%s233 + $0x8] sm:$0xff]
    %v236 = vld [vmem:[%s233 + $0x10] sm:$0xff]
    %v237 = vld [vmem:[%s233 + $0x18] sm:$0xff]
    %s238 = scalar_lea.vmem [#allocation7], 64
    %v239 = vld [vmem:[%s238] sm:$0xff]
    %v240 = vld [vmem:[%s238 + $0x8] sm:$0xff]
    %v241 = vld [vmem:[%s238 + $0x10] sm:$0xff]
    %v242 = vld [vmem:[%s238 + $0x18] sm:$0xff]
    %s243 = scalar_lea.vmem [#allocation7], 96
    %v244 = vld [vmem:[%s243] sm:$0xff]
    %v245 = vld [vmem:[%s243 + $0x8] sm:$0xff]
    %v246 = vld [vmem:[%s243 + $0x10] sm:$0xff]
    %v247 = vld [vmem:[%s243 + $0x18] sm:$0xff]
    %v248 = vld [vmem:[#allocation8] sm:$0x1]
    %v250 = vlaneseq
    %v251 = vshrl.u32 %v250, 7
    %v252 = vsub.s32 0, %v251
    %v253 = vrot.slane %v248, %v252
    %s255 = scalar_lea.vmem [#allocation8], 1
    %v256 = vld [vmem:[%s255] sm:$0x1]
    %v258 = vlaneseq
    %v259 = vshrl.u32 %v258, 7
    %v260 = vsub.s32 0, %v259
    %v261 = vrot.slane %v256, %v260
    %s263 = scalar_lea.vmem [#allocation8], 2
    %v264 = vld [vmem:[%s263] sm:$0x1]
    %v266 = vlaneseq
    %v267 = vshrl.u32 %v266, 7
    %v268 = vsub.s32 0, %v267
    %v269 = vrot.slane %v264, %v268
    %s271 = scalar_lea.vmem [#allocation8], 3
    %v272 = vld [vmem:[%s271] sm:$0x1]
    %v274 = vlaneseq
    %v275 = vshrl.u32 %v274, 7
    %v276 = vsub.s32 0, %v275
    %v277 = vrot.slane %v272, %v276
    %v279 = vld [vmem:[%s0] sm:$0x1]
    %v280 = vld [vmem:[%s0 + $0x8] sm:$0x1]
    %vm281 = vcmask 261120
    %v283 = vsel %vm281, 0.0, 0
    %285 = vmatprep.subr.mxu0 0.0
    %286 = vmatpush1.msra.mxu0 %v160
    %287 = vmatprep.subr.mxu0 0.0
    %288 = vmatpush1.msra.mxu0 %v161
    %289 = vmatprep.subr.mxu0 0.0
    %290 = vmatpush1.msra.mxu0 %v162
    %291 = vmatprep.subr.mxu0 0.0
    %292 = vmatpush1.msra.mxu0 %v163
    %293 = vmatprep.subr.mxu0 0.0
    %294 = vmatpush1.msra.mxu0 0.0
    %295 = vmatprep.subr.mxu0 0.0
    %296 = vmatpush1.msra.mxu0 0.0
    %297 = vmatprep.subr.mxu0 0.0
    %298 = vmatpush1.msra.mxu0 0.0
    %299 = vmatprep.subr.mxu0 0.0
    %300 = vmatpush1.msra.mxu0 0.0
    %301 = vmatprep.subr.mxu0 0.0
    %302 = vmatpush1.msra.mxu0 0.0
    %303 = vmatprep.subr.mxu0 0.0
    %304 = vmatpush1.msra.mxu0 0.0
    %305 = vmatprep.subr.mxu0 0.0
    %306 = vmatpush1.msra.mxu0 0.0
    %307 = vmatprep.subr.mxu0 0.0
    %308 = vmatpush1.msra.mxu0 0.0
    %309 = vmatprep.subr.mxu0 0.0
    %310 = vmatpush1.msra.mxu0 0.0
    %311 = vmatprep.subr.mxu0 0.0
    %312 = vmatpush1.msra.mxu0 0.0
    %313 = vmatprep.subr.mxu0 0.0
    %314 = vmatpush1.msra.mxu0 0.0
    %315 = vmatprep.subr.mxu0 0.0
    %316 = vmatpush1.msra.mxu0 0.0
    %317 = vmatprep.subr.mxu0 0.0
    %318 = vmatpush1.msra.mxu0 0.0
    %319 = vmatprep.subr.mxu0 0.0
    %320 = vmatpush1.msra.mxu0 0.0
    %321 = vmatprep.subr.mxu0 0.0
    %322 = vmatpush1.msra.mxu0 0.0
    %323 = vmatprep.subr.mxu0 0.0
    %324 = vmatpush1.msra.mxu0 0.0
    %325 = vmatprep.subr.mxu0 0.0
    %326 = vmatpush1.msra.mxu0 0.0
    %327 = vmatprep.subr.mxu0 0.0
    %328 = vmatpush1.msra.mxu0 0.0
    %329 = vmatprep.subr.mxu0 0.0
    %330 = vmatpush1.msra.mxu0 0.0
    %331 = vmatprep.subr.mxu0 0.0
    %332 = vmatpush1.msra.mxu0 0.0
    %333 = vmatprep.subr.mxu0 0.0
    %334 = vmatpush1.msra.mxu0 0.0
    %335 = vmatprep.subr.mxu0 0.0
    %336 = vmatpush1.msra.mxu0 0.0
    %337 = vmatprep.subr.mxu0 0.0
    %338 = vmatpush1.msra.mxu0 0.0
    %339 = vmatprep.subr.mxu0 0.0
    %340 = vmatpush1.msra.mxu0 0.0
    %341 = vmatprep.subr.mxu0 0.0
    %342 = vmatpush1.msra.mxu0 0.0
    %343 = vmatprep.subr.mxu0 0.0
    %344 = vmatpush1.msra.mxu0 0.0
    %345 = vmatprep.subr.mxu0 0.0
    %346 = vmatpush1.msra.mxu0 0.0
    %347 = vmatprep.subr.mxu0 0.0
    %348 = vmatpush1.msra.mxu0 0.0
    %349 = vmatprep.mubr.f32.mxu0 0.0
    %350 = vmatmul.mubr.f32.gmra.mrb[0].mxu0 %v283
    %v351 = vpop.f32.mrb[0].mxu0
    %v352 = vadd.f32 0.0, %v351
    %v353 = vpop.f32.mrb[0].mxu0
    %354 = vdwg.mxu0
    %v357 = vrot.slane %v280, 7
    %vm358 = vcmask 1041409
    %v359 = vsel %vm358, %v357, %v279
    %vm360 = vcmask 31744
    %v361 = vsel %vm360, %v359, 0
    %vm363 = vcmask 1043456
    %v365 = vsel %vm363, %v153, 0
    %367 = vmatprep.subr.mxu0 0.0
    %368 = vmatpush1.msra.mxu0 %v365
    %369 = vmatprep.subr.mxu0 0.0
    %370 = vmatpush1.msra.mxu0 0.0
    %371 = vmatprep.subr.mxu0 0.0
    %372 = vmatpush1.msra.mxu0 0.0
    %373 = vmatprep.subr.mxu0 0.0
    %374 = vmatpush1.msra.mxu0 0.0
    %375 = vmatprep.subr.mxu0 0.0
    %376 = vmatpush1.msra.mxu0 0.0
    %377 = vmatprep.subr.mxu0 0.0
    %378 = vmatpush1.msra.mxu0 0.0
    %379 = vmatprep.subr.mxu0 0.0
    %380 = vmatpush1.msra.mxu0 0.0
    %381 = vmatprep.subr.mxu0 0.0
    %382 = vmatpush1.msra.mxu0 0.0
    %383 = vmatprep.subr.mxu0 0.0
    %384 = vmatpush1.msra.mxu0 0.0
    %385 = vmatprep.subr.mxu0 0.0
    %386 = vmatpush1.msra.mxu0 0.0
    %387 = vmatprep.subr.mxu0 0.0
    %388 = vmatpush1.msra.mxu0 0.0
    %389 = vmatprep.subr.mxu0 0.0
    %390 = vmatpush1.msra.mxu0 0.0
    %391 = vmatprep.subr.mxu0 0.0
    %392 = vmatpush1.msra.mxu0 0.0
    %393 = vmatprep.subr.mxu0 0.0
    %394 = vmatpush1.msra.mxu0 0.0
    %395 = vmatprep.subr.mxu0 0.0
    %396 = vmatpush1.msra.mxu0 0.0
    %397 = vmatprep.subr.mxu0 0.0
    %398 = vmatpush1.msra.mxu0 0.0
    %399 = vmatprep.subr.mxu0 0.0
    %400 = vmatpush1.msra.mxu0 0.0
    %401 = vmatprep.subr.mxu0 0.0
    %402 = vmatpush1.msra.mxu0 0.0
    %403 = vmatprep.subr.mxu0 0.0
    %404 = vmatpush1.msra.mxu0 0.0
    %405 = vmatprep.subr.mxu0 0.0
    %406 = vmatpush1.msra.mxu0 0.0
    %407 = vmatprep.subr.mxu0 0.0
    %408 = vmatpush1.msra.mxu0 0.0
    %409 = vmatprep.subr.mxu0 0.0
    %410 = vmatpush1.msra.mxu0 0.0
    %411 = vmatprep.subr.mxu0 0.0
    %412 = vmatpush1.msra.mxu0 0.0
    %413 = vmatprep.subr.mxu0 0.0
    %414 = vmatpush1.msra.mxu0 0.0
    %415 = vmatprep.subr.mxu0 0.0
    %416 = vmatpush1.msra.mxu0 0.0
    %417 = vmatprep.subr.mxu0 0.0
    %418 = vmatpush1.msra.mxu0 0.0
    %419 = vmatprep.subr.mxu0 0.0
    %420 = vmatpush1.msra.mxu0 0.0
    %421 = vmatprep.subr.mxu0 0.0
    %422 = vmatpush1.msra.mxu0 0.0
    %423 = vmatprep.subr.mxu0 0.0
    %424 = vmatpush1.msra.mxu0 0.0
    %425 = vmatprep.subr.mxu0 0.0
    %426 = vmatpush1.msra.mxu0 0.0
    %427 = vmatprep.subr.mxu0 0.0
    %428 = vmatpush1.msra.mxu0 0.0
    %429 = vmatprep.subr.mxu0 0.0
    %430 = vmatpush1.msra.mxu0 0.0
    %431 = vmatprep.mubr.f32.mxu0 0.0
    %432 = vmatmul.mubr.f32.gmra.mrb[0].mxu0 %v361
    %v433 = vpop.f32.mrb[0].mxu0
    %v434 = vadd.f32 %v352, %v433
    %v435 = vpop.f32.mrb[0].mxu0
    %436 = vdwg.mxu0
    %v437 = vadd.f32 %v434, %v184
    %438 = vmatprep.subr.mxu0 0.0
    %439 = vmatpush1.msra.mxu0 %v165
    %440 = vmatprep.subr.mxu0 0.0
    %441 = vmatpush1.msra.mxu0 %v166
    %442 = vmatprep.subr.mxu0 0.0
    %443 = vmatpush1.msra.mxu0 %v167
    %444 = vmatprep.subr.mxu0 0.0
    %445 = vmatpush1.msra.mxu0 %v168
    %446 = vmatprep.subr.mxu0 0.0
    %447 = vmatpush1.msra.mxu0 0.0
    %448 = vmatprep.subr.mxu0 0.0
    %449 = vmatpush1.msra.mxu0 0.0
    %450 = vmatprep.subr.mxu0 0.0
    %451 = vmatpush1.msra.mxu0 0.0
    %452 = vmatprep.subr.mxu0 0.0
    %453 = vmatpush1.msra.mxu0 0.0
    %454 = vmatprep.subr.mxu0 0.0
    %455 = vmatpush1.msra.mxu0 0.0
    %456 = vmatprep.subr.mxu0 0.0
    %457 = vmatpush1.msra.mxu0 0.0
    %458 = vmatprep.subr.mxu0 0.0
    %459 = vmatpush1.msra.mxu0 0.0
    %460 = vmatprep.subr.mxu0 0.0
    %461 = vmatpush1.msra.mxu0 0.0
    %462 = vmatprep.subr.mxu0 0.0
    %463 = vmatpush1.msra.mxu0 0.0
    %464 = vmatprep.subr.mxu0 0.0
    %465 = vmatpush1.msra.mxu0 0.0
    %466 = vmatprep.subr.mxu0 0.0
    %467 = vmatpush1.msra.mxu0 0.0
    %468 = vmatprep.subr.mxu0 0.0
    %469 = vmatpush1.msra.mxu0 0.0
    %470 = vmatprep.subr.mxu0 0.0
    %471 = vmatpush1.msra.mxu0 0.0
    %472 = vmatprep.subr.mxu0 0.0
    %473 = vmatpush1.msra.mxu0 0.0
    %474 = vmatprep.subr.mxu0 0.0
    %475 = vmatpush1.msra.mxu0 0.0
    %476 = vmatprep.subr.mxu0 0.0
    %477 = vmatpush1.msra.mxu0 0.0
    %478 = vmatprep.subr.mxu0 0.0
    %479 = vmatpush1.msra.mxu0 0.0
    %480 = vmatprep.subr.mxu0 0.0
    %481 = vmatpush1.msra.mxu0 0.0
    %482 = vmatprep.subr.mxu0 0.0
    %483 = vmatpush1.msra.mxu0 0.0
    %484 = vmatprep.subr.mxu0 0.0
    %485 = vmatpush1.msra.mxu0 0.0
    %486 = vmatprep.subr.mxu0 0.0
    %487 = vmatpush1.msra.mxu0 0.0
    %488 = vmatprep.subr.mxu0 0.0
    %489 = vmatpush1.msra.mxu0 0.0
    %490 = vmatprep.subr.mxu0 0.0
    %491 = vmatpush1.msra.mxu0 0.0
    %492 = vmatprep.subr.mxu0 0.0
    %493 = vmatpush1.msra.mxu0 0.0
    %494 = vmatprep.subr.mxu0 0.0
    %495 = vmatpush1.msra.mxu0 0.0
    %496 = vmatprep.subr.mxu0 0.0
    %497 = vmatpush1.msra.mxu0 0.0
    %498 = vmatprep.subr.mxu0 0.0
    %499 = vmatpush1.msra.mxu0 0.0
    %500 = vmatprep.subr.mxu0 0.0
    %501 = vmatpush1.msra.mxu0 0.0
    %502 = vmatprep.mubr.f32.mxu0 0.0
    %503 = vmatmul.mubr.f32.gmra.mrb[0].mxu0 %v283
    %v504 = vpop.f32.mrb[0].mxu0
    %v505 = vadd.f32 0.0, %v504
    %v506 = vpop.f32.mrb[0].mxu0
    %507 = vdwg.mxu0
    %v509 = vsel %vm363, %v155, 0
    %511 = vmatprep.subr.mxu0 0.0
    %512 = vmatpush1.msra.mxu0 %v509
    %513 = vmatprep.subr.mxu0 0.0
    %514 = vmatpush1.msra.mxu0 0.0
    %515 = vmatprep.subr.mxu0 0.0
    %516 = vmatpush1.msra.mxu0 0.0
    %517 = vmatprep.subr.mxu0 0.0
    %518 = vmatpush1.msra.mxu0 0.0
    %519 = vmatprep.subr.mxu0 0.0
    %520 = vmatpush1.msra.mxu0 0.0
    %521 = vmatprep.subr.mxu0 0.0
    %522 = vmatpush1.msra.mxu0 0.0
    %523 = vmatprep.subr.mxu0 0.0
    %524 = vmatpush1.msra.mxu0 0.0
    %525 = vmatprep.subr.mxu0 0.0
    %526 = vmatpush1.msra.mxu0 0.0
    %527 = vmatprep.subr.mxu0 0.0
    %528 = vmatpush1.msra.mxu0 0.0
    %529 = vmatprep.subr.mxu0 0.0
    %530 = vmatpush1.msra.mxu0 0.0
    %531 = vmatprep.subr.mxu0 0.0
    %532 = vmatpush1.msra.mxu0 0.0
    %533 = vmatprep.subr.mxu0 0.0
    %534 = vmatpush1.msra.mxu0 0.0
    %535 = vmatprep.subr.mxu0 0.0
    %536 = vmatpush1.msra.mxu0 0.0
    %537 = vmatprep.subr.mxu0 0.0
    %538 = vmatpush1.msra.mxu0 0.0
    %539 = vmatprep.subr.mxu0 0.0
    %540 = vmatpush1.msra.mxu0 0.0
    %541 = vmatprep.subr.mxu0 0.0
    %542 = vmatpush1.msra.mxu0 0.0
    %543 = vmatprep.subr.mxu0 0.0
    %544 = vmatpush1.msra.mxu0 0.0
    %545 = vmatprep.subr.mxu0 0.0
    %546 = vmatpush1.msra.mxu0 0.0
    %547 = vmatprep.subr.mxu0 0.0
    %548 = vmatpush1.msra.mxu0 0.0
    %549 = vmatprep.subr.mxu0 0.0
    %550 = vmatpush1.msra.mxu0 0.0
    %551 = vmatprep.subr.mxu0 0.0
    %552 = vmatpush1.msra.mxu0 0.0
    %553 = vmatprep.subr.mxu0 0.0
    %554 = vmatpush1.msra.mxu0 0.0
    %555 = vmatprep.subr.mxu0 0.0
    %556 = vmatpush1.msra.mxu0 0.0
    %557 = vmatprep.subr.mxu0 0.0
    %558 = vmatpush1.msra.mxu0 0.0
    %559 = vmatprep.subr.mxu0 0.0
    %560 = vmatpush1.msra.mxu0 0.0
    %561 = vmatprep.subr.mxu0 0.0
    %562 = vmatpush1.msra.mxu0 0.0
    %563 = vmatprep.subr.mxu0 0.0
    %564 = vmatpush1.msra.mxu0 0.0
    %565 = vmatprep.subr.mxu0 0.0
    %566 = vmatpush1.msra.mxu0 0.0
    %567 = vmatprep.subr.mxu0 0.0
    %568 = vmatpush1.msra.mxu0 0.0
    %569 = vmatprep.subr.mxu0 0.0
    %570 = vmatpush1.msra.mxu0 0.0
    %571 = vmatprep.subr.mxu0 0.0
    %572 = vmatpush1.msra.mxu0 0.0
    %573 = vmatprep.subr.mxu0 0.0
    %574 = vmatpush1.msra.mxu0 0.0
    %575 = vmatprep.mubr.f32.mxu0 0.0
    %576 = vmatmul.mubr.f32.gmra.mrb[0].mxu0 %v361
    %v577 = vpop.f32.mrb[0].mxu0
    %v578 = vadd.f32 %v505, %v577
    %v579 = vpop.f32.mrb[0].mxu0
    %580 = vdwg.mxu0
    %v581 = vadd.f32 %v578, %v192
    %582 = vmatprep.subr.mxu0 0.0
    %583 = vmatpush1.msra.mxu0 %v170
    %584 = vmatprep.subr.mxu0 0.0
    %585 = vmatpush1.msra.mxu0 %v171
    %586 = vmatprep.subr.mxu0 0.0
    %587 = vmatpush1.msra.mxu0 %v172
    %588 = vmatprep.subr.mxu0 0.0
    %589 = vmatpush1.msra.mxu0 %v173
    %590 = vmatprep.subr.mxu0 0.0
    %591 = vmatpush1.msra.mxu0 0.0
    %592 = vmatprep.subr.mxu0 0.0
    %593 = vmatpush1.msra.mxu0 0.0
    %594 = vmatprep.subr.mxu0 0.0
    %595 = vmatpush1.msra.mxu0 0.0
    %596 = vmatprep.subr.mxu0 0.0
    %597 = vmatpush1.msra.mxu0 0.0
    %598 = vmatprep.subr.mxu0 0.0
    %599 = vmatpush1.msra.mxu0 0.0
    %600 = vmatprep.subr.mxu0 0.0
    %601 = vmatpush1.msra.mxu0 0.0
    %602 = vmatprep.subr.mxu0 0.0
    %603 = vmatpush1.msra.mxu0 0.0
    %604 = vmatprep.subr.mxu0 0.0
    %605 = vmatpush1.msra.mxu0 0.0
    %606 = vmatprep.subr.mxu0 0.0
    %607 = vmatpush1.msra.mxu0 0.0
    %608 = vmatprep.subr.mxu0 0.0
    %609 = vmatpush1.msra.mxu0 0.0
    %610 = vmatprep.subr.mxu0 0.0
    %611 = vmatpush1.msra.mxu0 0.0
    %612 = vmatprep.subr.mxu0 0.0
    %613 = vmatpush1.msra.mxu0 0.0
    %614 = vmatprep.subr.mxu0 0.0
    %615 = vmatpush1.msra.mxu0 0.0
    %616 = vmatprep.subr.mxu0 0.0
    %617 = vmatpush1.msra.mxu0 0.0
    %618 = vmatprep.subr.mxu0 0.0
    %619 = vmatpush1.msra.mxu0 0.0
    %620 = vmatprep.subr.mxu0 0.0
    %621 = vmatpush1.msra.mxu0 0.0
    %622 = vmatprep.subr.mxu0 0.0
    %623 = vmatpush1.msra.mxu0 0.0
    %624 = vmatprep.subr.mxu0 0.0
    %625 = vmatpush1.msra.mxu0 0.0
    %626 = vmatprep.subr.mxu0 0.0
    %627 = vmatpush1.msra.mxu0 0.0
    %628 = vmatprep.subr.mxu0 0.0
    %629 = vmatpush1.msra.mxu0 0.0
    %630 = vmatprep.subr.mxu0 0.0
    %631 = vmatpush1.msra.mxu0 0.0
    %632 = vmatprep.subr.mxu0 0.0
    %633 = vmatpush1.msra.mxu0 0.0
    %634 = vmatprep.subr.mxu0 0.0
    %635 = vmatpush1.msra.mxu0 0.0
    %636 = vmatprep.subr.mxu0 0.0
    %637 = vmatpush1.msra.mxu0 0.0
    %638 = vmatprep.subr.mxu0 0.0
    %639 = vmatpush1.msra.mxu0 0.0
    %640 = vmatprep.subr.mxu0 0.0
    %641 = vmatpush1.msra.mxu0 0.0
    %642 = vmatprep.subr.mxu0 0.0
    %643 = vmatpush1.msra.mxu0 0.0
    %644 = vmatprep.subr.mxu0 0.0
    %645 = vmatpush1.msra.mxu0 0.0
    %646 = vmatprep.mubr.f32.mxu0 0.0
    %647 = vmatmul.mubr.f32.gmra.mrb[0].mxu0 %v283
    %v648 = vpop.f32.mrb[0].mxu0
    %v649 = vadd.f32 0.0, %v648
    %v650 = vpop.f32.mrb[0].mxu0
    %651 = vdwg.mxu0
    %v653 = vsel %vm363, %v157, 0
    %655 = vmatprep.subr.mxu0 0.0
    %656 = vmatpush1.msra.mxu0 %v653
    %657 = vmatprep.subr.mxu0 0.0
    %658 = vmatpush1.msra.mxu0 0.0
    %659 = vmatprep.subr.mxu0 0.0
    %660 = vmatpush1.msra.mxu0 0.0
    %661 = vmatprep.subr.mxu0 0.0
    %662 = vmatpush1.msra.mxu0 0.0
    %663 = vmatprep.subr.mxu0 0.0
    %664 = vmatpush1.msra.mxu0 0.0
    %665 = vmatprep.subr.mxu0 0.0
    %666 = vmatpush1.msra.mxu0 0.0
    %667 = vmatprep.subr.mxu0 0.0
    %668 = vmatpush1.msra.mxu0 0.0
    %669 = vmatprep.subr.mxu0 0.0
    %670 = vmatpush1.msra.mxu0 0.0
    %671 = vmatprep.subr.mxu0 0.0
    %672 = vmatpush1.msra.mxu0 0.0
    %673 = vmatprep.subr.mxu0 0.0
    %674 = vmatpush1.msra.mxu0 0.0
    %675 = vmatprep.subr.mxu0 0.0
    %676 = vmatpush1.msra.mxu0 0.0
    %677 = vmatprep.subr.mxu0 0.0
    %678 = vmatpush1.msra.mxu0 0.0
    %679 = vmatprep.subr.mxu0 0.0
    %680 = vmatpush1.msra.mxu0 0.0
    %681 = vmatprep.subr.mxu0 0.0
    %682 = vmatpush1.msra.mxu0 0.0
    %683 = vmatprep.subr.mxu0 0.0
    %684 = vmatpush1.msra.mxu0 0.0
    %685 = vmatprep.subr.mxu0 0.0
    %686 = vmatpush1.msra.mxu0 0.0
    %687 = vmatprep.subr.mxu0 0.0
    %688 = vmatpush1.msra.mxu0 0.0
    %689 = vmatprep.subr.mxu0 0.0
    %690 = vmatpush1.msra.mxu0 0.0
    %691 = vmatprep.subr.mxu0 0.0
    %692 = vmatpush1.msra.mxu0 0.0
    %693 = vmatprep.subr.mxu0 0.0
    %694 = vmatpush1.msra.mxu0 0.0
    %695 = vmatprep.subr.mxu0 0.0
    %696 = vmatpush1.msra.mxu0 0.0
    %697 = vmatprep.subr.mxu0 0.0
    %698 = vmatpush1.msra.mxu0 0.0
    %699 = vmatprep.subr.mxu0 0.0
    %700 = vmatpush1.msra.mxu0 0.0
    %701 = vmatprep.subr.mxu0 0.0
    %702 = vmatpush1.msra.mxu0 0.0
    %703 = vmatprep.subr.mxu0 0.0
    %704 = vmatpush1.msra.mxu0 0.0
    %705 = vmatprep.subr.mxu0 0.0
    %706 = vmatpush1.msra.mxu0 0.0
    %707 = vmatprep.subr.mxu0 0.0
    %708 = vmatpush1.msra.mxu0 0.0
    %709 = vmatprep.subr.mxu0 0.0
    %710 = vmatpush1.msra.mxu0 0.0
    %711 = vmatprep.subr.mxu0 0.0
    %712 = vmatpush1.msra.mxu0 0.0
    %713 = vmatprep.subr.mxu0 0.0
    %714 = vmatpush1.msra.mxu0 0.0
    %715 = vmatprep.subr.mxu0 0.0
    %716 = vmatpush1.msra.mxu0 0.0
    %717 = vmatprep.subr.mxu0 0.0
    %718 = vmatpush1.msra.mxu0 0.0
    %719 = vmatprep.mubr.f32.mxu0 0.0
    %720 = vmatmul.mubr.f32.gmra.mrb[0].mxu0 %v361
    %v721 = vpop.f32.mrb[0].mxu0
    %v722 = vadd.f32 %v649, %v721
    %v723 = vpop.f32.mrb[0].mxu0
    %724 = vdwg.mxu0
    %v725 = vadd.f32 %v722, %v200
    %726 = vmatprep.subr.mxu0 0.0
    %727 = vmatpush1.msra.mxu0 %v175
    %728 = vmatprep.subr.mxu0 0.0
    %729 = vmatpush1.msra.mxu0 %v176
    %730 = vmatprep.subr.mxu0 0.0
    %731 = vmatpush1.msra.mxu0 %v177
    %732 = vmatprep.subr.mxu0 0.0
    %733 = vmatpush1.msra.mxu0 %v178
    %734 = vmatprep.subr.mxu0 0.0
    %735 = vmatpush1.msra.mxu0 0.0
    %736 = vmatprep.subr.mxu0 0.0
    %737 = vmatpush1.msra.mxu0 0.0
    %738 = vmatprep.subr.mxu0 0.0
    %739 = vmatpush1.msra.mxu0 0.0
    %740 = vmatprep.subr.mxu0 0.0
    %741 = vmatpush1.msra.mxu0 0.0
    %742 = vmatprep.subr.mxu0 0.0
    %743 = vmatpush1.msra.mxu0 0.0
    %744 = vmatprep.subr.mxu0 0.0
    %745 = vmatpush1.msra.mxu0 0.0
    %746 = vmatprep.subr.mxu0 0.0
    %747 = vmatpush1.msra.mxu0 0.0
    %748 = vmatprep.subr.mxu0 0.0
    %749 = vmatpush1.msra.mxu0 0.0
    %750 = vmatprep.subr.mxu0 0.0
    %751 = vmatpush1.msra.mxu0 0.0
    %752 = vmatprep.subr.mxu0 0.0
    %753 = vmatpush1.msra.mxu0 0.0
    %754 = vmatprep.subr.mxu0 0.0
    %755 = vmatpush1.msra.mxu0 0.0
    %756 = vmatprep.subr.mxu0 0.0
    %757 = vmatpush1.msra.mxu0 0.0
    %758 = vmatprep.subr.mxu0 0.0
    %759 = vmatpush1.msra.mxu0 0.0
    %760 = vmatprep.subr.mxu0 0.0
    %761 = vmatpush1.msra.mxu0 0.0
    %762 = vmatprep.subr.mxu0 0.0
    %763 = vmatpush1.msra.mxu0 0.0
    %764 = vmatprep.subr.mxu0 0.0
    %765 = vmatpush1.msra.mxu0 0.0
    %766 = vmatprep.subr.mxu0 0.0
    %767 = vmatpush1.msra.mxu0 0.0
    %768 = vmatprep.subr.mxu0 0.0
    %769 = vmatpush1.msra.mxu0 0.0
    %770 = vmatprep.subr.mxu0 0.0
    %771 = vmatpush1.msra.mxu0 0.0
    %772 = vmatprep.subr.mxu0 0.0
    %773 = vmatpush1.msra.mxu0 0.0
    %774 = vmatprep.subr.mxu0 0.0
    %775 = vmatpush1.msra.mxu0 0.0
    %776 = vmatprep.subr.mxu0 0.0
    %777 = vmatpush1.msra.mxu0 0.0
    %778 = vmatprep.subr.mxu0 0.0
    %779 = vmatpush1.msra.mxu0 0.0
    %780 = vmatprep.subr.mxu0 0.0
    %781 = vmatpush1.msra.mxu0 0.0
    %782 = vmatprep.subr.mxu0 0.0
    %783 = vmatpush1.msra.mxu0 0.0
    %784 = vmatprep.subr.mxu0 0.0
    %785 = vmatpush1.msra.mxu0 0.0
    %786 = vmatprep.subr.mxu0 0.0
    %787 = vmatpush1.msra.mxu0 0.0
    %788 = vmatprep.subr.mxu0 0.0
    %789 = vmatpush1.msra.mxu0 0.0
    %790 = vmatprep.mubr.f32.mxu0 0.0
    %791 = vmatmul.mubr.f32.gmra.mrb[0].mxu0 %v283
    %v792 = vpop.f32.mrb[0].mxu0
    %v793 = vadd.f32 0.0, %v792
    %v794 = vpop.f32.mrb[0].mxu0
    %795 = vdwg.mxu0
    %v797 = vsel %vm363, %v159, 0
    %799 = vmatprep.subr.mxu0 0.0
    %800 = vmatpush1.msra.mxu0 %v797
    %801 = vmatprep.subr.mxu0 0.0
    %802 = vmatpush1.msra.mxu0 0.0
    %803 = vmatprep.subr.mxu0 0.0
    %804 = vmatpush1.msra.mxu0 0.0
    %805 = vmatprep.subr.mxu0 0.0
    %806 = vmatpush1.msra.mxu0 0.0
    %807 = vmatprep.subr.mxu0 0.0
    %808 = vmatpush1.msra.mxu0 0.0
    %809 = vmatprep.subr.mxu0 0.0
    %810 = vmatpush1.msra.mxu0 0.0
    %811 = vmatprep.subr.mxu0 0.0
    %812 = vmatpush1.msra.mxu0 0.0
    %813 = vmatprep.subr.mxu0 0.0
    %814 = vmatpush1.msra.mxu0 0.0
    %815 = vmatprep.subr.mxu0 0.0
    %816 = vmatpush1.msra.mxu0 0.0
    %817 = vmatprep.subr.mxu0 0.0
    %818 = vmatpush1.msra.mxu0 0.0
    %819 = vmatprep.subr.mxu0 0.0
    %820 = vmatpush1.msra.mxu0 0.0
    %821 = vmatprep.subr.mxu0 0.0
    %822 = vmatpush1.msra.mxu0 0.0
    %823 = vmatprep.subr.mxu0 0.0
    %824 = vmatpush1.msra.mxu0 0.0
    %825 = vmatprep.subr.mxu0 0.0
    %826 = vmatpush1.msra.mxu0 0.0
    %827 = vmatprep.subr.mxu0 0.0
    %828 = vmatpush1.msra.mxu0 0.0
    %829 = vmatprep.subr.mxu0 0.0
    %830 = vmatpush1.msra.mxu0 0.0
    %831 = vmatprep.subr.mxu0 0.0
    %832 = vmatpush1.msra.mxu0 0.0
    %833 = vmatprep.subr.mxu0 0.0
    %834 = vmatpush1.msra.mxu0 0.0
    %835 = vmatprep.subr.mxu0 0.0
    %836 = vmatpush1.msra.mxu0 0.0
    %837 = vmatprep.subr.mxu0 0.0
    %838 = vmatpush1.msra.mxu0 0.0
    %839 = vmatprep.subr.mxu0 0.0
    %840 = vmatpush1.msra.mxu0 0.0
    %841 = vmatprep.subr.mxu0 0.0
    %842 = vmatpush1.msra.mxu0 0.0
    %843 = vmatprep.subr.mxu0 0.0
    %844 = vmatpush1.msra.mxu0 0.0
    %845 = vmatprep.subr.mxu0 0.0
    %846 = vmatpush1.msra.mxu0 0.0
    %847 = vmatprep.subr.mxu0 0.0
    %848 = vmatpush1.msra.mxu0 0.0
    %849 = vmatprep.subr.mxu0 0.0
    %850 = vmatpush1.msra.mxu0 0.0
    %851 = vmatprep.subr.mxu0 0.0
    %852 = vmatpush1.msra.mxu0 0.0
    %853 = vmatprep.subr.mxu0 0.0
    %854 = vmatpush1.msra.mxu0 0.0
    %855 = vmatprep.subr.mxu0 0.0
    %856 = vmatpush1.msra.mxu0 0.0
    %857 = vmatprep.subr.mxu0 0.0
    %858 = vmatpush1.msra.mxu0 0.0
    %859 = vmatprep.subr.mxu0 0.0
    %860 = vmatpush1.msra.mxu0 0.0
    %861 = vmatprep.subr.mxu0 0.0
    %862 = vmatpush1.msra.mxu0 0.0
    %863 = vmatprep.mubr.f32.mxu0 0.0
    %864 = vmatmul.mubr.f32.gmra.mrb[0].mxu0 %v361
    %v865 = vpop.f32.mrb[0].mxu0
    %v866 = vadd.f32 %v793, %v865
    %v867 = vpop.f32.mrb[0].mxu0
    %868 = vdwg.mxu0
    %v869 = vadd.f32 %v866, %v208
    %v870 = vxor.u32 %v437, 2147483648
    %v871 = vmul.f32 %v870, 1.442695
    %v872 = vpow.pop %v871
    %v873 = vadd.f32 %v872, 1.0
    %v874 = vrcp.pop %v873
    %v875 = vmul.f32 1.0, %v874
    %v876 = vxor.u32 %v581, 2147483648
    %v877 = vmul.f32 %v876, 1.442695
    %v878 = vpow.pop %v877
    %v879 = vadd.f32 %v878, 1.0
    %v880 = vrcp.pop %v879
    %v881 = vmul.f32 1.0, %v880
    %v882 = vtanh.pop %v725
    %v883 = vxor.u32 %v869, 2147483648
    %v884 = vmul.f32 %v883, 1.442695
    %v885 = vpow.pop %v884
    %v886 = vadd.f32 %v885, 1.0
    %v887 = vrcp.pop %v886
    %v888 = vmul.f32 1.0, %v887
    %v889 = vmul.f32 %v881, 0.0
    %v890 = vmul.f32 %v875, %v882
    %v891 = vadd.f32 %v889, %v890
    %v892 = vtanh.pop %v891
    %v893 = vmul.f32 %v888, %v892
    %894 = vmatprep.subr.mxu0 0.0
    %895 = vmatpush1.msra.mxu0 %v229
    %896 = vmatprep.subr.mxu0 0.0
    %897 = vmatpush1.msra.mxu0 %v230
    %898 = vmatprep.subr.mxu0 0.0
    %899 = vmatpush1.msra.mxu0 %v231
    %900 = vmatprep.subr.mxu0 0.0
    %901 = vmatpush1.msra.mxu0 %v232
    %902 = vmatprep.subr.mxu0 0.0
    %903 = vmatpush1.msra.mxu0 0.0
    %904 = vmatprep.subr.mxu0 0.0
    %905 = vmatpush1.msra.mxu0 0.0
    %906 = vmatprep.subr.mxu0 0.0
    %907 = vmatpush1.msra.mxu0 0.0
    %908 = vmatprep.subr.mxu0 0.0
    %909 = vmatpush1.msra.mxu0 0.0
    %910 = vmatprep.subr.mxu0 0.0
    %911 = vmatpush1.msra.mxu0 0.0
    %912 = vmatprep.subr.mxu0 0.0
    %913 = vmatpush1.msra.mxu0 0.0
    %914 = vmatprep.subr.mxu0 0.0
    %915 = vmatpush1.msra.mxu0 0.0
    %916 = vmatprep.subr.mxu0 0.0
    %917 = vmatpush1.msra.mxu0 0.0
    %918 = vmatprep.subr.mxu0 0.0
    %919 = vmatpush1.msra.mxu0 0.0
    %920 = vmatprep.subr.mxu0 0.0
    %921 = vmatpush1.msra.mxu0 0.0
    %922 = vmatprep.subr.mxu0 0.0
    %923 = vmatpush1.msra.mxu0 0.0
    %924 = vmatprep.subr.mxu0 0.0
    %925 = vmatpush1.msra.mxu0 0.0
    %926 = vmatprep.subr.mxu0 0.0
    %927 = vmatpush1.msra.mxu0 0.0
    %928 = vmatprep.subr.mxu0 0.0
    %929 = vmatpush1.msra.mxu0 0.0
    %930 = vmatprep.subr.mxu0 0.0
    %931 = vmatpush1.msra.mxu0 0.0
    %932 = vmatprep.subr.mxu0 0.0
    %933 = vmatpush1.msra.mxu0 0.0
    %934 = vmatprep.subr.mxu0 0.0
    %935 = vmatpush1.msra.mxu0 0.0
    %936 = vmatprep.subr.mxu0 0.0
    %937 = vmatpush1.msra.mxu0 0.0
    %938 = vmatprep.subr.mxu0 0.0
    %939 = vmatpush1.msra.mxu0 0.0
    %940 = vmatprep.subr.mxu0 0.0
    %941 = vmatpush1.msra.mxu0 0.0
    %942 = vmatprep.subr.mxu0 0.0
    %943 = vmatpush1.msra.mxu0 0.0
    %944 = vmatprep.subr.mxu0 0.0
    %945 = vmatpush1.msra.mxu0 0.0
    %946 = vmatprep.subr.mxu0 0.0
    %947 = vmatpush1.msra.mxu0 0.0
    %948 = vmatprep.subr.mxu0 0.0
    %949 = vmatpush1.msra.mxu0 0.0
    %950 = vmatprep.subr.mxu0 0.0
    %951 = vmatpush1.msra.mxu0 0.0
    %952 = vmatprep.subr.mxu0 0.0
    %953 = vmatpush1.msra.mxu0 0.0
    %954 = vmatprep.subr.mxu0 0.0
    %955 = vmatpush1.msra.mxu0 0.0
    %956 = vmatprep.subr.mxu0 0.0
    %957 = vmatpush1.msra.mxu0 0.0
    %958 = vmatprep.mubr.f32.mxu0 0.0
    %959 = vmatmul.mubr.f32.gmra.mrb[0].mxu0 %v283
    %v960 = vpop.f32.mrb[0].mxu0
    %v961 = vadd.f32 0.0, %v960
    %v962 = vpop.f32.mrb[0].mxu0
    %963 = vdwg.mxu0
    %v965 = vsel %vm281, %v893, 0
    %967 = vmatprep.subr.mxu0 0.0
    %968 = vmatpush1.msra.mxu0 %v210
    %969 = vmatprep.subr.mxu0 0.0
    %970 = vmatpush1.msra.mxu0 %v211
    %971 = vmatprep.subr.mxu0 0.0
    %972 = vmatpush1.msra.mxu0 %v212
    %973 = vmatprep.subr.mxu0 0.0
    %974 = vmatpush1.msra.mxu0 %v213
    %975 = vmatprep.subr.mxu0 0.0
    %976 = vmatpush1.msra.mxu0 0.0
    %977 = vmatprep.subr.mxu0 0.0
    %978 = vmatpush1.msra.mxu0 0.0
    %979 = vmatprep.subr.mxu0 0.0
    %980 = vmatpush1.msra.mxu0 0.0
    %981 = vmatprep.subr.mxu0 0.0
    %982 = vmatpush1.msra.mxu0 0.0
    %983 = vmatprep.subr.mxu0 0.0
    %984 = vmatpush1.msra.mxu0 0.0
    %985 = vmatprep.subr.mxu0 0.0
    %986 = vmatpush1.msra.mxu0 0.0
    %987 = vmatprep.subr.mxu0 0.0
    %988 = vmatpush1.msra.mxu0 0.0
    %989 = vmatprep.subr.mxu0 0.0
    %990 = vmatpush1.msra.mxu0 0.0
    %991 = vmatprep.subr.mxu0 0.0
    %992 = vmatpush1.msra.mxu0 0.0
    %993 = vmatprep.subr.mxu0 0.0
    %994 = vmatpush1.msra.mxu0 0.0
    %995 = vmatprep.subr.mxu0 0.0
    %996 = vmatpush1.msra.mxu0 0.0
    %997 = vmatprep.subr.mxu0 0.0
    %998 = vmatpush1.msra.mxu0 0.0
    %999 = vmatprep.subr.mxu0 0.0
    %1000 = vmatpush1.msra.mxu0 0.0
    %1001 = vmatprep.subr.mxu0 0.0
    %1002 = vmatpush1.msra.mxu0 0.0
    %1003 = vmatprep.subr.mxu0 0.0
    %1004 = vmatpush1.msra.mxu0 0.0
    %1005 = vmatprep.subr.mxu0 0.0
    %1006 = vmatpush1.msra.mxu0 0.0
    %1007 = vmatprep.subr.mxu0 0.0
    %1008 = vmatpush1.msra.mxu0 0.0
    %1009 = vmatprep.subr.mxu0 0.0
    %1010 = vmatpush1.msra.mxu0 0.0
    %1011 = vmatprep.subr.mxu0 0.0
    %1012 = vmatpush1.msra.mxu0 0.0
    %1013 = vmatprep.subr.mxu0 0.0
    %1014 = vmatpush1.msra.mxu0 0.0
    %1015 = vmatprep.subr.mxu0 0.0
    %1016 = vmatpush1.msra.mxu0 0.0
    %1017 = vmatprep.subr.mxu0 0.0
    %1018 = vmatpush1.msra.mxu0 0.0
    %1019 = vmatprep.subr.mxu0 0.0
    %1020 = vmatpush1.msra.mxu0 0.0
    %1021 = vmatprep.subr.mxu0 0.0
    %1022 = vmatpush1.msra.mxu0 0.0
    %1023 = vmatprep.subr.mxu0 0.0
    %1024 = vmatpush1.msra.mxu0 0.0
    %1025 = vmatprep.subr.mxu0 0.0
    %1026 = vmatpush1.msra.mxu0 0.0
    %1027 = vmatprep.subr.mxu0 0.0
    %1028 = vmatpush1.msra.mxu0 0.0
    %1029 = vmatprep.subr.mxu0 0.0
    %1030 = vmatpush1.msra.mxu0 0.0
    %1031 = vmatprep.mubr.f32.mxu0 0.0
    %1032 = vmatmul.mubr.f32.gmra.mrb[0].mxu0 %v965
    %v1033 = vpop.f32.mrb[0].mxu0
    %v1034 = vadd.f32 %v961, %v1033
    %v1035 = vpop.f32.mrb[0].mxu0
    %1036 = vdwg.mxu0
    %v1037 = vadd.f32 %v1034, %v253
    %1038 = vmatprep.subr.mxu0 0.0
    %1039 = vmatpush1.msra.mxu0 %v234
    %1040 = vmatprep.subr.mxu0 0.0
    %1041 = vmatpush1.msra.mxu0 %v235
    %1042 = vmatprep.subr.mxu0 0.0
    %1043 = vmatpush1.msra.mxu0 %v236
    %1044 = vmatprep.subr.mxu0 0.0
    %1045 = vmatpush1.msra.mxu0 %v237
    %1046 = vmatprep.subr.mxu0 0.0
    %1047 = vmatpush1.msra.mxu0 0.0
    %1048 = vmatprep.subr.mxu0 0.0
    %1049 = vmatpush1.msra.mxu0 0.0
    %1050 = vmatprep.subr.mxu0 0.0
    %1051 = vmatpush1.msra.mxu0 0.0
    %1052 = vmatprep.subr.mxu0 0.0
    %1053 = vmatpush1.msra.mxu0 0.0
    %1054 = vmatprep.subr.mxu0 0.0
    %1055 = vmatpush1.msra.mxu0 0.0
    %1056 = vmatprep.subr.mxu0 0.0
    %1057 = vmatpush1.msra.mxu0 0.0
    %1058 = vmatprep.subr.mxu0 0.0
    %1059 = vmatpush1.msra.mxu0 0.0
    %1060 = vmatprep.subr.mxu0 0.0
    %1061 = vmatpush1.msra.mxu0 0.0
    %1062 = vmatprep.subr.mxu0 0.0
    %1063 = vmatpush1.msra.mxu0 0.0
    %1064 = vmatprep.subr.mxu0 0.0
    %1065 = vmatpush1.msra.mxu0 0.0
    %1066 = vmatprep.subr.mxu0 0.0
    %1067 = vmatpush1.msra.mxu0 0.0
    %1068 = vmatprep.subr.mxu0 0.0
    %1069 = vmatpush1.msra.mxu0 0.0
    %1070 = vmatprep.subr.mxu0 0.0
    %1071 = vmatpush1.msra.mxu0 0.0
    %1072 = vmatprep.subr.mxu0 0.0
    %1073 = vmatpush1.msra.mxu0 0.0
    %1074 = vmatprep.subr.mxu0 0.0
    %1075 = vmatpush1.msra.mxu0 0.0
    %1076 = vmatprep.subr.mxu0 0.0
    %1077 = vmatpush1.msra.mxu0 0.0
    %1078 = vmatprep.subr.mxu0 0.0
    %1079 = vmatpush1.msra.mxu0 0.0
    %1080 = vmatprep.subr.mxu0 0.0
    %1081 = vmatpush1.msra.mxu0 0.0
    %1082 = vmatprep.subr.mxu0 0.0
    %1083 = vmatpush1.msra.mxu0 0.0
    %1084 = vmatprep.subr.mxu0 0.0
    %1085 = vmatpush1.msra.mxu0 0.0
    %1086 = vmatprep.subr.mxu0 0.0
    %1087 = vmatpush1.msra.mxu0 0.0
    %1088 = vmatprep.subr.mxu0 0.0
    %1089 = vmatpush1.msra.mxu0 0.0
    %1090 = vmatprep.subr.mxu0 0.0
    %1091 = vmatpush1.msra.mxu0 0.0
    %1092 = vmatprep.subr.mxu0 0.0
    %1093 = vmatpush1.msra.mxu0 0.0
    %1094 = vmatprep.subr.mxu0 0.0
    %1095 = vmatpush1.msra.mxu0 0.0
    %1096 = vmatprep.subr.mxu0 0.0
    %1097 = vmatpush1.msra.mxu0 0.0
    %1098 = vmatprep.subr.mxu0 0.0
    %1099 = vmatpush1.msra.mxu0 0.0
    %1100 = vmatprep.subr.mxu0 0.0
    %1101 = vmatpush1.msra.mxu0 0.0
    %1102 = vmatprep.mubr.f32.mxu0 0.0
    %1103 = vmatmul.mubr.f32.gmra.mrb[0].mxu0 %v283
    %v1104 = vpop.f32.mrb[0].mxu0
    %v1105 = vadd.f32 0.0, %v1104
    %v1106 = vpop.f32.mrb[0].mxu0
    %1107 = vdwg.mxu0
    %1108 = vmatprep.subr.mxu0 0.0
    %1109 = vmatpush1.msra.mxu0 %v215
    %1110 = vmatprep.subr.mxu0 0.0
    %1111 = vmatpush1.msra.mxu0 %v216
    %1112 = vmatprep.subr.mxu0 0.0
    %1113 = vmatpush1.msra.mxu0 %v217
    %1114 = vmatprep.subr.mxu0 0.0
    %1115 = vmatpush1.msra.mxu0 %v218
    %1116 = vmatprep.subr.mxu0 0.0
    %1117 = vmatpush1.msra.mxu0 0.0
    %1118 = vmatprep.subr.mxu0 0.0
    %1119 = vmatpush1.msra.mxu0 0.0
    %1120 = vmatprep.subr.mxu0 0.0
    %1121 = vmatpush1.msra.mxu0 0.0
    %1122 = vmatprep.subr.mxu0 0.0
    %1123 = vmatpush1.msra.mxu0 0.0
    %1124 = vmatprep.subr.mxu0 0.0
    %1125 = vmatpush1.msra.mxu0 0.0
    %1126 = vmatprep.subr.mxu0 0.0
    %1127 = vmatpush1.msra.mxu0 0.0
    %1128 = vmatprep.subr.mxu0 0.0
    %1129 = vmatpush1.msra.mxu0 0.0
    %1130 = vmatprep.subr.mxu0 0.0
    %1131 = vmatpush1.msra.mxu0 0.0
    %1132 = vmatprep.subr.mxu0 0.0
    %1133 = vmatpush1.msra.mxu0 0.0
    %1134 = vmatprep.subr.mxu0 0.0
    %1135 = vmatpush1.msra.mxu0 0.0
    %1136 = vmatprep.subr.mxu0 0.0
    %1137 = vmatpush1.msra.mxu0 0.0
    %1138 = vmatprep.subr.mxu0 0.0
    %1139 = vmatpush1.msra.mxu0 0.0
    %1140 = vmatprep.subr.mxu0 0.0
    %1141 = vmatpush1.msra.mxu0 0.0
    %1142 = vmatprep.subr.mxu0 0.0
    %1143 = vmatpush1.msra.mxu0 0.0
    %1144 = vmatprep.subr.mxu0 0.0
    %1145 = vmatpush1.msra.mxu0 0.0
    %1146 = vmatprep.subr.mxu0 0.0
    %1147 = vmatpush1.msra.mxu0 0.0
    %1148 = vmatprep.subr.mxu0 0.0
    %1149 = vmatpush1.msra.mxu0 0.0
    %1150 = vmatprep.subr.mxu0 0.0
    %1151 = vmatpush1.msra.mxu0 0.0
    %1152 = vmatprep.subr.mxu0 0.0
    %1153 = vmatpush1.msra.mxu0 0.0
    %1154 = vmatprep.subr.mxu0 0.0
    %1155 = vmatpush1.msra.mxu0 0.0
    %1156 = vmatprep.subr.mxu0 0.0
    %1157 = vmatpush1.msra.mxu0 0.0
    %1158 = vmatprep.subr.mxu0 0.0
    %1159 = vmatpush1.msra.mxu0 0.0
    %1160 = vmatprep.subr.mxu0 0.0
    %1161 = vmatpush1.msra.mxu0 0.0
    %1162 = vmatprep.subr.mxu0 0.0
    %1163 = vmatpush1.msra.mxu0 0.0
    %1164 = vmatprep.subr.mxu0 0.0
    %1165 = vmatpush1.msra.mxu0 0.0
    %1166 = vmatprep.subr.mxu0 0.0
    %1167 = vmatpush1.msra.mxu0 0.0
    %1168 = vmatprep.subr.mxu0 0.0
    %1169 = vmatpush1.msra.mxu0 0.0
    %1170 = vmatprep.subr.mxu0 0.0
    %1171 = vmatpush1.msra.mxu0 0.0
    %1172 = vmatprep.mubr.f32.mxu0 0.0
    %1173 = vmatmul.mubr.f32.gmra.mrb[0].mxu0 %v965
    %v1174 = vpop.f32.mrb[0].mxu0
    %v1175 = vadd.f32 %v1105, %v1174
    %v1176 = vpop.f32.mrb[0].mxu0
    %1177 = vdwg.mxu0
    %v1178 = vadd.f32 %v1175, %v261
    %1179 = vmatprep.subr.mxu0 0.0
    %1180 = vmatpush1.msra.mxu0 %v239
    %1181 = vmatprep.subr.mxu0 0.0
    %1182 = vmatpush1.msra.mxu0 %v240
    %1183 = vmatprep.subr.mxu0 0.0
    %1184 = vmatpush1.msra.mxu0 %v241
    %1185 = vmatprep.subr.mxu0 0.0
    %1186 = vmatpush1.msra.mxu0 %v242
    %1187 = vmatprep.subr.mxu0 0.0
    %1188 = vmatpush1.msra.mxu0 0.0
    %1189 = vmatprep.subr.mxu0 0.0
    %1190 = vmatpush1.msra.mxu0 0.0
    %1191 = vmatprep.subr.mxu0 0.0
    %1192 = vmatpush1.msra.mxu0 0.0
    %1193 = vmatprep.subr.mxu0 0.0
    %1194 = vmatpush1.msra.mxu0 0.0
    %1195 = vmatprep.subr.mxu0 0.0
    %1196 = vmatpush1.msra.mxu0 0.0
    %1197 = vmatprep.subr.mxu0 0.0
    %1198 = vmatpush1.msra.mxu0 0.0
    %1199 = vmatprep.subr.mxu0 0.0
    %1200 = vmatpush1.msra.mxu0 0.0
    %1201 = vmatprep.subr.mxu0 0.0
    %1202 = vmatpush1.msra.mxu0 0.0
    %1203 = vmatprep.subr.mxu0 0.0
    %1204 = vmatpush1.msra.mxu0 0.0
    %1205 = vmatprep.subr.mxu0 0.0
    %1206 = vmatpush1.msra.mxu0 0.0
    %1207 = vmatprep.subr.mxu0 0.0
    %1208 = vmatpush1.msra.mxu0 0.0
    %1209 = vmatprep.subr.mxu0 0.0
    %1210 = vmatpush1.msra.mxu0 0.0
    %1211 = vmatprep.subr.mxu0 0.0
    %1212 = vmatpush1.msra.mxu0 0.0
    %1213 = vmatprep.subr.mxu0 0.0
    %1214 = vmatpush1.msra.mxu0 0.0
    %1215 = vmatprep.subr.mxu0 0.0
    %1216 = vmatpush1.msra.mxu0 0.0
    %1217 = vmatprep.subr.mxu0 0.0
    %1218 = vmatpush1.msra.mxu0 0.0
    %1219 = vmatprep.subr.mxu0 0.0
    %1220 = vmatpush1.msra.mxu0 0.0
    %1221 = vmatprep.subr.mxu0 0.0
    %1222 = vmatpush1.msra.mxu0 0.0
    %1223 = vmatprep.subr.mxu0 0.0
    %1224 = vmatpush1.msra.mxu0 0.0
    %1225 = vmatprep.subr.mxu0 0.0
    %1226 = vmatpush1.msra.mxu0 0.0
    %1227 = vmatprep.subr.mxu0 0.0
    %1228 = vmatpush1.msra.mxu0 0.0
    %1229 = vmatprep.subr.mxu0 0.0
    %1230 = vmatpush1.msra.mxu0 0.0
    %1231 = vmatprep.subr.mxu0 0.0
    %1232 = vmatpush1.msra.mxu0 0.0
    %1233 = vmatprep.subr.mxu0 0.0
    %1234 = vmatpush1.msra.mxu0 0.0
    %1235 = vmatprep.subr.mxu0 0.0
    %1236 = vmatpush1.msra.mxu0 0.0
    %1237 = vmatprep.subr.mxu0 0.0
    %1238 = vmatpush1.msra.mxu0 0.0
    %1239 = vmatprep.subr.mxu0 0.0
    %1240 = vmatpush1.msra.mxu0 0.0
    %1241 = vmatprep.subr.mxu0 0.0
    %1242 = vmatpush1.msra.mxu0 0.0
    %1243 = vmatprep.mubr.f32.mxu0 0.0
    %1244 = vmatmul.mubr.f32.gmra.mrb[0].mxu0 %v283
    %v1245 = vpop.f32.mrb[0].mxu0
    %v1246 = vadd.f32 0.0, %v1245
    %v1247 = vpop.f32.mrb[0].mxu0
    %1248 = vdwg.mxu0
    %1249 = vmatprep.subr.mxu0 0.0
    %1250 = vmatpush1.msra.mxu0 %v220
    %1251 = vmatprep.subr.mxu0 0.0
    %1252 = vmatpush1.msra.mxu0 %v221
    %1253 = vmatprep.subr.mxu0 0.0
    %1254 = vmatpush1.msra.mxu0 %v222
    %1255 = vmatprep.subr.mxu0 0.0
    %1256 = vmatpush1.msra.mxu0 %v223
    %1257 = vmatprep.subr.mxu0 0.0
    %1258 = vmatpush1.msra.mxu0 0.0
    %1259 = vmatprep.subr.mxu0 0.0
    %1260 = vmatpush1.msra.mxu0 0.0
    %1261 = vmatprep.subr.mxu0 0.0
    %1262 = vmatpush1.msra.mxu0 0.0
    %1263 = vmatprep.subr.mxu0 0.0
    %1264 = vmatpush1.msra.mxu0 0.0
    %1265 = vmatprep.subr.mxu0 0.0
    %1266 = vmatpush1.msra.mxu0 0.0
    %1267 = vmatprep.subr.mxu0 0.0
    %1268 = vmatpush1.msra.mxu0 0.0
    %1269 = vmatprep.subr.mxu0 0.0
    %1270 = vmatpush1.msra.mxu0 0.0
    %1271 = vmatprep.subr.mxu0 0.0
    %1272 = vmatpush1.msra.mxu0 0.0
    %1273 = vmatprep.subr.mxu0 0.0
    %1274 = vmatpush1.msra.mxu0 0.0
    %1275 = vmatprep.subr.mxu0 0.0
    %1276 = vmatpush1.msra.mxu0 0.0
    %1277 = vmatprep.subr.mxu0 0.0
    %1278 = vmatpush1.msra.mxu0 0.0
    %1279 = vmatprep.subr.mxu0 0.0
    %1280 = vmatpush1.msra.mxu0 0.0
    %1281 = vmatprep.subr.mxu0 0.0
    %1282 = vmatpush1.msra.mxu0 0.0
    %1283 = vmatprep.subr.mxu0 0.0
    %1284 = vmatpush1.msra.mxu0 0.0
    %1285 = vmatprep.subr.mxu0 0.0
    %1286 = vmatpush1.msra.mxu0 0.0
    %1287 = vmatprep.subr.mxu0 0.0
    %1288 = vmatpush1.msra.mxu0 0.0
    %1289 = vmatprep.subr.mxu0 0.0
    %1290 = vmatpush1.msra.mxu0 0.0
    %1291 = vmatprep.subr.mxu0 0.0
    %1292 = vmatpush1.msra.mxu0 0.0
    %1293 = vmatprep.subr.mxu0 0.0
    %1294 = vmatpush1.msra.mxu0 0.0
    %1295 = vmatprep.subr.mxu0 0.0
    %1296 = vmatpush1.msra.mxu0 0.0
    %1297 = vmatprep.subr.mxu0 0.0
    %1298 = vmatpush1.msra.mxu0 0.0
    %1299 = vmatprep.subr.mxu0 0.0
    %1300 = vmatpush1.msra.mxu0 0.0
    %1301 = vmatprep.subr.mxu0 0.0
    %1302 = vmatpush1.msra.mxu0 0.0
    %1303 = vmatprep.subr.mxu0 0.0
    %1304 = vmatpush1.msra.mxu0 0.0
    %1305 = vmatprep.subr.mxu0 0.0
    %1306 = vmatpush1.msra.mxu0 0.0
    %1307 = vmatprep.subr.mxu0 0.0
    %1308 = vmatpush1.msra.mxu0 0.0
    %1309 = vmatprep.subr.mxu0 0.0
    %1310 = vmatpush1.msra.mxu0 0.0
    %1311 = vmatprep.subr.mxu0 0.0
    %1312 = vmatpush1.msra.mxu0 0.0
    %1313 = vmatprep.mubr.f32.mxu0 0.0
    %1314 = vmatmul.mubr.f32.gmra.mrb[0].mxu0 %v965
    %v1315 = vpop.f32.mrb[0].mxu0
    %v1316 = vadd.f32 %v1246, %v1315
    %v1317 = vpop.f32.mrb[0].mxu0
    %1318 = vdwg.mxu0
    %v1319 = vadd.f32 %v1316, %v269
    %1320 = vmatprep.subr.mxu0 0.0
    %1321 = vmatpush1.msra.mxu0 %v244
    %1322 = vmatprep.subr.mxu0 0.0
    %1323 = vmatpush1.msra.mxu0 %v245
    %1324 = vmatprep.subr.mxu0 0.0
    %1325 = vmatpush1.msra.mxu0 %v246
    %1326 = vmatprep.subr.mxu0 0.0
    %1327 = vmatpush1.msra.mxu0 %v247
    %1328 = vmatprep.subr.mxu0 0.0
    %1329 = vmatpush1.msra.mxu0 0.0
    %1330 = vmatprep.subr.mxu0 0.0
    %1331 = vmatpush1.msra.mxu0 0.0
    %1332 = vmatprep.subr.mxu0 0.0
    %1333 = vmatpush1.msra.mxu0 0.0
    %1334 = vmatprep.subr.mxu0 0.0
    %1335 = vmatpush1.msra.mxu0 0.0
    %1336 = vmatprep.subr.mxu0 0.0
    %1337 = vmatpush1.msra.mxu0 0.0
    %1338 = vmatprep.subr.mxu0 0.0
    %1339 = vmatpush1.msra.mxu0 0.0
    %1340 = vmatprep.subr.mxu0 0.0
    %1341 = vmatpush1.msra.mxu0 0.0
    %1342 = vmatprep.subr.mxu0 0.0
    %1343 = vmatpush1.msra.mxu0 0.0
    %1344 = vmatprep.subr.mxu0 0.0
    %1345 = vmatpush1.msra.mxu0 0.0
    %1346 = vmatprep.subr.mxu0 0.0
    %1347 = vmatpush1.msra.mxu0 0.0
    %1348 = vmatprep.subr.mxu0 0.0
    %1349 = vmatpush1.msra.mxu0 0.0
    %1350 = vmatprep.subr.mxu0 0.0
    %1351 = vmatpush1.msra.mxu0 0.0
    %1352 = vmatprep.subr.mxu0 0.0
    %1353 = vmatpush1.msra.mxu0 0.0
    %1354 = vmatprep.subr.mxu0 0.0
    %1355 = vmatpush1.msra.mxu0 0.0
    %1356 = vmatprep.subr.mxu0 0.0
    %1357 = vmatpush1.msra.mxu0 0.0
    %1358 = vmatprep.subr.mxu0 0.0
    %1359 = vmatpush1.msra.mxu0 0.0
    %1360 = vmatprep.subr.mxu0 0.0
    %1361 = vmatpush1.msra.mxu0 0.0
    %1362 = vmatprep.subr.mxu0 0.0
    %1363 = vmatpush1.msra.mxu0 0.0
    %1364 = vmatprep.subr.mxu0 0.0
    %1365 = vmatpush1.msra.mxu0 0.0
    %1366 = vmatprep.subr.mxu0 0.0
    %1367 = vmatpush1.msra.mxu0 0.0
    %1368 = vmatprep.subr.mxu0 0.0
    %1369 = vmatpush1.msra.mxu0 0.0
    %1370 = vmatprep.subr.mxu0 0.0
    %1371 = vmatpush1.msra.mxu0 0.0
    %1372 = vmatprep.subr.mxu0 0.0
    %1373 = vmatpush1.msra.mxu0 0.0
    %1374 = vmatprep.subr.mxu0 0.0
    %1375 = vmatpush1.msra.mxu0 0.0
    %1376 = vmatprep.subr.mxu0 0.0
    %1377 = vmatpush1.msra.mxu0 0.0
    %1378 = vmatprep.subr.mxu0 0.0
    %1379 = vmatpush1.msra.mxu0 0.0
    %1380 = vmatprep.subr.mxu0 0.0
    %1381 = vmatpush1.msra.mxu0 0.0
    %1382 = vmatprep.subr.mxu0 0.0
    %1383 = vmatpush1.msra.mxu0 0.0
    %1384 = vmatprep.mubr.f32.mxu0 0.0
    %1385 = vmatmul.mubr.f32.gmra.mrb[0].mxu0 %v283
    %v1386 = vpop.f32.mrb[0].mxu0
    %v1387 = vadd.f32 0.0, %v1386
    %v1388 = vpop.f32.mrb[0].mxu0
    %1389 = vdwg.mxu0
    %1390 = vmatprep.subr.mxu0 0.0
    %1391 = vmatpush1.msra.mxu0 %v225
    %1392 = vmatprep.subr.mxu0 0.0
    %1393 = vmatpush1.msra.mxu0 %v226
    %1394 = vmatprep.subr.mxu0 0.0
    %1395 = vmatpush1.msra.mxu0 %v227
    %1396 = vmatprep.subr.mxu0 0.0
    %1397 = vmatpush1.msra.mxu0 %v228
    %1398 = vmatprep.subr.mxu0 0.0
    %1399 = vmatpush1.msra.mxu0 0.0
    %1400 = vmatprep.subr.mxu0 0.0
    %1401 = vmatpush1.msra.mxu0 0.0
    %1402 = vmatprep.subr.mxu0 0.0
    %1403 = vmatpush1.msra.mxu0 0.0
    %1404 = vmatprep.subr.mxu0 0.0
    %1405 = vmatpush1.msra.mxu0 0.0
    %1406 = vmatprep.subr.mxu0 0.0
    %1407 = vmatpush1.msra.mxu0 0.0
    %1408 = vmatprep.subr.mxu0 0.0
    %1409 = vmatpush1.msra.mxu0 0.0
    %1410 = vmatprep.subr.mxu0 0.0
    %1411 = vmatpush1.msra.mxu0 0.0
    %1412 = vmatprep.subr.mxu0 0.0
    %1413 = vmatpush1.msra.mxu0 0.0
    %1414 = vmatprep.subr.mxu0 0.0
    %1415 = vmatpush1.msra.mxu0 0.0
    %1416 = vmatprep.subr.mxu0 0.0
    %1417 = vmatpush1.msra.mxu0 0.0
    %1418 = vmatprep.subr.mxu0 0.0
    %1419 = vmatpush1.msra.mxu0 0.0
    %1420 = vmatprep.subr.mxu0 0.0
    %1421 = vmatpush1.msra.mxu0 0.0
    %1422 = vmatprep.subr.mxu0 0.0
    %1423 = vmatpush1.msra.mxu0 0.0
    %1424 = vmatprep.subr.mxu0 0.0
    %1425 = vmatpush1.msra.mxu0 0.0
    %1426 = vmatprep.subr.mxu0 0.0
    %1427 = vmatpush1.msra.mxu0 0.0
    %1428 = vmatprep.subr.mxu0 0.0
    %1429 = vmatpush1.msra.mxu0 0.0
    %1430 = vmatprep.subr.mxu0 0.0
    %1431 = vmatpush1.msra.mxu0 0.0
    %1432 = vmatprep.subr.mxu0 0.0
    %1433 = vmatpush1.msra.mxu0 0.0
    %1434 = vmatprep.subr.mxu0 0.0
    %1435 = vmatpush1.msra.mxu0 0.0
    %1436 = vmatprep.subr.mxu0 0.0
    %1437 = vmatpush1.msra.mxu0 0.0
    %1438 = vmatprep.subr.mxu0 0.0
    %1439 = vmatpush1.msra.mxu0 0.0
    %1440 = vmatprep.subr.mxu0 0.0
    %1441 = vmatpush1.msra.mxu0 0.0
    %1442 = vmatprep.subr.mxu0 0.0
    %1443 = vmatpush1.msra.mxu0 0.0
    %1444 = vmatprep.subr.mxu0 0.0
    %1445 = vmatpush1.msra.mxu0 0.0
    %1446 = vmatprep.subr.mxu0 0.0
    %1447 = vmatpush1.msra.mxu0 0.0
    %1448 = vmatprep.subr.mxu0 0.0
    %1449 = vmatpush1.msra.mxu0 0.0
    %1450 = vmatprep.subr.mxu0 0.0
    %1451 = vmatpush1.msra.mxu0 0.0
    %1452 = vmatprep.subr.mxu0 0.0
    %1453 = vmatpush1.msra.mxu0 0.0
    %1454 = vmatprep.mubr.f32.mxu0 0.0
    %1455 = vmatmul.mubr.f32.gmra.mrb[0].mxu0 %v965
    %v1456 = vpop.f32.mrb[0].mxu0
    %v1457 = vadd.f32 %v1387, %v1456
    %v1458 = vpop.f32.mrb[0].mxu0
    %1459 = vdwg.mxu0
    %v1460 = vadd.f32 %v1457, %v277
    %v1461 = vxor.u32 %v1037, 2147483648
    %v1462 = vmul.f32 %v1461, 1.442695
    %v1463 = vpow.pop %v1462
    %v1464 = vadd.f32 %v1463, 1.0
    %v1465 = vrcp.pop %v1464
    %v1466 = vmul.f32 1.0, %v1465
    %v1467 = vxor.u32 %v1178, 2147483648
    %v1468 = vmul.f32 %v1467, 1.442695
    %v1469 = vpow.pop %v1468
    %v1470 = vadd.f32 %v1469, 1.0
    %v1471 = vrcp.pop %v1470
    %v1472 = vmul.f32 1.0, %v1471
    %v1473 = vtanh.pop %v1319
    %v1474 = vxor.u32 %v1460, 2147483648
    %v1475 = vmul.f32 %v1474, 1.442695
    %v1476 = vpow.pop %v1475
    %v1477 = vadd.f32 %v1476, 1.0
    %v1478 = vrcp.pop %v1477
    %v1479 = vmul.f32 1.0, %v1478
    %v1480 = vmul.f32 %v1472, 0.0
    %v1481 = vmul.f32 %v1466, %v1473
    %v1482 = vadd.f32 %v1480, %v1481
    %v1483 = vtanh.pop %v1482
    %v1484 = vmul.f32 %v1479, %v1483
    %v1485 = vld [vmem:[%s0 + $0x1] sm:$0x1]
    %v1486 = vld [vmem:[%s0 + $0x9] sm:$0x1]
    %1487 = vmatprep.subr.mxu0 0.0
    %1488 = vmatpush1.msra.mxu0 %v160
    %1489 = vmatprep.subr.mxu0 0.0
    %1490 = vmatpush1.msra.mxu0 %v161
    %1491 = vmatprep.subr.mxu0 0.0
    %1492 = vmatpush1.msra.mxu0 %v162
    %1493 = vmatprep.subr.mxu0 0.0
    %1494 = vmatpush1.msra.mxu0 %v163
    %1495 = vmatprep.subr.mxu0 0.0
    %1496 = vmatpush1.msra.mxu0 0.0
    %1497 = vmatprep.subr.mxu0 0.0
    %1498 = vmatpush1.msra.mxu0 0.0
    %1499 = vmatprep.subr.mxu0 0.0
    %1500 = vmatpush1.msra.mxu0 0.0
    %1501 = vmatprep.subr.mxu0 0.0
    %1502 = vmatpush1.msra.mxu0 0.0
    %1503 = vmatprep.subr.mxu0 0.0
    %1504 = vmatpush1.msra.mxu0 0.0
    %1505 = vmatprep.subr.mxu0 0.0
    %1506 = vmatpush1.msra.mxu0 0.0
    %1507 = vmatprep.subr.mxu0 0.0
    %1508 = vmatpush1.msra.mxu0 0.0
    %1509 = vmatprep.subr.mxu0 0.0
    %1510 = vmatpush1.msra.mxu0 0.0
    %1511 = vmatprep.subr.mxu0 0.0
    %1512 = vmatpush1.msra.mxu0 0.0
    %1513 = vmatprep.subr.mxu0 0.0
    %1514 = vmatpush1.msra.mxu0 0.0
    %1515 = vmatprep.subr.mxu0 0.0
    %1516 = vmatpush1.msra.mxu0 0.0
    %1517 = vmatprep.subr.mxu0 0.0
    %1518 = vmatpush1.msra.mxu0 0.0
    %1519 = vmatprep.subr.mxu0 0.0
    %1520 = vmatpush1.msra.mxu0 0.0
    %1521 = vmatprep.subr.mxu0 0.0
    %1522 = vmatpush1.msra.mxu0 0.0
    %1523 = vmatprep.subr.mxu0 0.0
    %1524 = vmatpush1.msra.mxu0 0.0
    %1525 = vmatprep.subr.mxu0 0.0
    %1526 = vmatpush1.msra.mxu0 0.0
    %1527 = vmatprep.subr.mxu0 0.0
    %1528 = vmatpush1.msra.mxu0 0.0
    %1529 = vmatprep.subr.mxu0 0.0
    %1530 = vmatpush1.msra.mxu0 0.0
    %1531 = vmatprep.subr.mxu0 0.0
    %1532 = vmatpush1.msra.mxu0 0.0
    %1533 = vmatprep.subr.mxu0 0.0
    %1534 = vmatpush1.msra.mxu0 0.0
    %1535 = vmatprep.subr.mxu0 0.0
    %1536 = vmatpush1.msra.mxu0 0.0
    %1537 = vmatprep.subr.mxu0 0.0
    %1538 = vmatpush1.msra.mxu0 0.0
    %1539 = vmatprep.subr.mxu0 0.0
    %1540 = vmatpush1.msra.mxu0 0.0
    %1541 = vmatprep.subr.mxu0 0.0
    %1542 = vmatpush1.msra.mxu0 0.0
    %1543 = vmatprep.subr.mxu0 0.0
    %1544 = vmatpush1.msra.mxu0 0.0
    %1545 = vmatprep.subr.mxu0 0.0
    %1546 = vmatpush1.msra.mxu0 0.0
    %1547 = vmatprep.subr.mxu0 0.0
    %1548 = vmatpush1.msra.mxu0 0.0
    %1549 = vmatprep.subr.mxu0 0.0
    %1550 = vmatpush1.msra.mxu0 0.0
    %1551 = vmatprep.mubr.f32.mxu0 0.0
    %1552 = vmatmul.mubr.f32.gmra.mrb[0].mxu0 %v965
    %v1553 = vpop.f32.mrb[0].mxu0
    %v1554 = vadd.f32 0.0, %v1553
    %v1555 = vpop.f32.mrb[0].mxu0
    %1556 = vdwg.mxu0
    %v1559 = vrot.slane %v1486, 7
    %v1560 = vsel %vm358, %v1559, %v1485
    %v1561 = vsel %vm360, %v1560, 0
    %1563 = vmatprep.subr.mxu0 0.0
    %1564 = vmatpush1.msra.mxu0 %v365
    %1565 = vmatprep.subr.mxu0 0.0
    %1566 = vmatpush1.msra.mxu0 0.0
    %1567 = vmatprep.subr.mxu0 0.0
    %1568 = vmatpush1.msra.mxu0 0.0
    %1569 = vmatprep.subr.mxu0 0.0
    %1570 = vmatpush1.msra.mxu0 0.0
    %1571 = vmatprep.subr.mxu0 0.0
    %1572 = vmatpush1.msra.mxu0 0.0
    %1573 = vmatprep.subr.mxu0 0.0
    %1574 = vmatpush1.msra.mxu0 0.0
    %1575 = vmatprep.subr.mxu0 0.0
    %1576 = vmatpush1.msra.mxu0 0.0
    %1577 = vmatprep.subr.mxu0 0.0
    %1578 = vmatpush1.msra.mxu0 0.0
    %1579 = vmatprep.subr.mxu0 0.0
    %1580 = vmatpush1.msra.mxu0 0.0
    %1581 = vmatprep.subr.mxu0 0.0
    %1582 = vmatpush1.msra.mxu0 0.0
    %1583 = vmatprep.subr.mxu0 0.0
    %1584 = vmatpush1.msra.mxu0 0.0
    %1585 = vmatprep.subr.mxu0 0.0
    %1586 = vmatpush1.msra.mxu0 0.0
    %1587 = vmatprep.subr.mxu0 0.0
    %1588 = vmatpush1.msra.mxu0 0.0
    %1589 = vmatprep.subr.mxu0 0.0
    %1590 = vmatpush1.msra.mxu0 0.0
    %1591 = vmatprep.subr.mxu0 0.0
    %1592 = vmatpush1.msra.mxu0 0.0
    %1593 = vmatprep.subr.mxu0 0.0
    %1594 = vmatpush1.msra.mxu0 0.0
    %1595 = vmatprep.subr.mxu0 0.0
    %1596 = vmatpush1.msra.mxu0 0.0
    %1597 = vmatprep.subr.mxu0 0.0
    %1598 = vmatpush1.msra.mxu0 0.0
    %1599 = vmatprep.subr.mxu0 0.0
    %1600 = vmatpush1.msra.mxu0 0.0
    %1601 = vmatprep.subr.mxu0 0.0
    %1602 = vmatpush1.msra.mxu0 0.0
    %1603 = vmatprep.subr.mxu0 0.0
    %1604 = vmatpush1.msra.mxu0 0.0
    %1605 = vmatprep.subr.mxu0 0.0
    %1606 = vmatpush1.msra.mxu0 0.0
    %1607 = vmatprep.subr.mxu0 0.0
    %1608 = vmatpush1.msra.mxu0 0.0
    %1609 = vmatprep.subr.mxu0 0.0
    %1610 = vmatpush1.msra.mxu0 0.0
    %1611 = vmatprep.subr.mxu0 0.0
    %1612 = vmatpush1.msra.mxu0 0.0
    %1613 = vmatprep.subr.mxu0 0.0
    %1614 = vmatpush1.msra.mxu0 0.0
    %1615 = vmatprep.subr.mxu0 0.0
    %1616 = vmatpush1.msra.mxu0 0.0
    %1617 = vmatprep.subr.mxu0 0.0
    %1618 = vmatpush1.msra.mxu0 0.0
    %1619 = vmatprep.subr.mxu0 0.0
    %1620 = vmatpush1.msra.mxu0 0.0
    %1621 = vmatprep.subr.mxu0 0.0
    %1622 = vmatpush1.msra.mxu0 0.0
    %1623 = vmatprep.subr.mxu0 0.0
    %1624 = vmatpush1.msra.mxu0 0.0
    %1625 = vmatprep.subr.mxu0 0.0
    %1626 = vmatpush1.msra.mxu0 0.0
    %1627 = vmatprep.mubr.f32.mxu0 0.0
    %1628 = vmatmul.mubr.f32.gmra.mrb[0].mxu0 %v1561
    %v1629 = vpop.f32.mrb[0].mxu0
    %v1630 = vadd.f32 %v1554, %v1629
    %v1631 = vpop.f32.mrb[0].mxu0
    %1632 = vdwg.mxu0
    %v1633 = vadd.f32 %v1630, %v184
    %1634 = vmatprep.subr.mxu0 0.0
    %1635 = vmatpush1.msra.mxu0 %v165
    %1636 = vmatprep.subr.mxu0 0.0
    %1637 = vmatpush1.msra.mxu0 %v166
    %1638 = vmatprep.subr.mxu0 0.0
    %1639 = vmatpush1.msra.mxu0 %v167
    %1640 = vmatprep.subr.mxu0 0.0
    %1641 = vmatpush1.msra.mxu0 %v168
    %1642 = vmatprep.subr.mxu0 0.0
    %1643 = vmatpush1.msra.mxu0 0.0
    %1644 = vmatprep.subr.mxu0 0.0
    %1645 = vmatpush1.msra.mxu0 0.0
    %1646 = vmatprep.subr.mxu0 0.0
    %1647 = vmatpush1.msra.mxu0 0.0
    %1648 = vmatprep.subr.mxu0 0.0
    %1649 = vmatpush1.msra.mxu0 0.0
    %1650 = vmatprep.subr.mxu0 0.0
    %1651 = vmatpush1.msra.mxu0 0.0
    %1652 = vmatprep.subr.mxu0 0.0
    %1653 = vmatpush1.msra.mxu0 0.0
    %1654 = vmatprep.subr.mxu0 0.0
    %1655 = vmatpush1.msra.mxu0 0.0
    %1656 = vmatprep.subr.mxu0 0.0
    %1657 = vmatpush1.msra.mxu0 0.0
    %1658 = vmatprep.subr.mxu0 0.0
    %1659 = vmatpush1.msra.mxu0 0.0
    %1660 = vmatprep.subr.mxu0 0.0
    %1661 = vmatpush1.msra.mxu0 0.0
    %1662 = vmatprep.subr.mxu0 0.0
    %1663 = vmatpush1.msra.mxu0 0.0
    %1664 = vmatprep.subr.mxu0 0.0
    %1665 = vmatpush1.msra.mxu0 0.0
    %1666 = vmatprep.subr.mxu0 0.0
    %1667 = vmatpush1.msra.mxu0 0.0
    %1668 = vmatprep.subr.mxu0 0.0
    %1669 = vmatpush1.msra.mxu0 0.0
    %1670 = vmatprep.subr.mxu0 0.0
    %1671 = vmatpush1.msra.mxu0 0.0
    %1672 = vmatprep.subr.mxu0 0.0
    %1673 = vmatpush1.msra.mxu0 0.0
    %1674 = vmatprep.subr.mxu0 0.0
    %1675 = vmatpush1.msra.mxu0 0.0
    %1676 = vmatprep.subr.mxu0 0.0
    %1677 = vmatpush1.msra.mxu0 0.0
    %1678 = vmatprep.subr.mxu0 0.0
    %1679 = vmatpush1.msra.mxu0 0.0
    %1680 = vmatprep.subr.mxu0 0.0
    %1681 = vmatpush1.msra.mxu0 0.0
    %1682 = vmatprep.subr.mxu0 0.0
    %1683 = vmatpush1.msra.mxu0 0.0
    %1684 = vmatprep.subr.mxu0 0.0
    %1685 = vmatpush1.msra.mxu0 0.0
    %1686 = vmatprep.subr.mxu0 0.0
    %1687 = vmatpush1.msra.mxu0 0.0
    %1688 = vmatprep.subr.mxu0 0.0
    %1689 = vmatpush1.msra.mxu0 0.0
    %1690 = vmatprep.subr.mxu0 0.0
    %1691 = vmatpush1.msra.mxu0 0.0
    %1692 = vmatprep.subr.mxu0 0.0
    %1693 = vmatpush1.msra.mxu0 0.0
    %1694 = vmatprep.subr.mxu0 0.0
    %1695 = vmatpush1.msra.mxu0 0.0
    %1696 = vmatprep.subr.mxu0 0.0
    %1697 = vmatpush1.msra.mxu0 0.0
    %1698 = vmatprep.mubr.f32.mxu0 0.0
    %1699 = vmatmul.mubr.f32.gmra.mrb[0].mxu0 %v965
    %v1700 = vpop.f32.mrb[0].mxu0
    %v1701 = vadd.f32 0.0, %v1700
    %v1702 = vpop.f32.mrb[0].mxu0
    %1703 = vdwg.mxu0
    %1704 = vmatprep.subr.mxu0 0.0
    %1705 = vmatpush1.msra.mxu0 %v509
    %1706 = vmatprep.subr.mxu0 0.0
    %1707 = vmatpush1.msra.mxu0 0.0
    %1708 = vmatprep.subr.mxu0 0.0
    %1709 = vmatpush1.msra.mxu0 0.0
    %1710 = vmatprep.subr.mxu0 0.0
    %1711 = vmatpush1.msra.mxu0 0.0
    %1712 = vmatprep.subr.mxu0 0.0
    %1713 = vmatpush1.msra.mxu0 0.0
    %1714 = vmatprep.subr.mxu0 0.0
    %1715 = vmatpush1.msra.mxu0 0.0
    %1716 = vmatprep.subr.mxu0 0.0
    %1717 = vmatpush1.msra.mxu0 0.0
    %1718 = vmatprep.subr.mxu0 0.0
    %1719 = vmatpush1.msra.mxu0 0.0
    %1720 = vmatprep.subr.mxu0 0.0
    %1721 = vmatpush1.msra.mxu0 0.0
    %1722 = vmatprep.subr.mxu0 0.0
    %1723 = vmatpush1.msra.mxu0 0.0
    %1724 = vmatprep.subr.mxu0 0.0
    %1725 = vmatpush1.msra.mxu0 0.0
    %1726 = vmatprep.subr.mxu0 0.0
    %1727 = vmatpush1.msra.mxu0 0.0
    %1728 = vmatprep.subr.mxu0 0.0
    %1729 = vmatpush1.msra.mxu0 0.0
    %1730 = vmatprep.subr.mxu0 0.0
    %1731 = vmatpush1.msra.mxu0 0.0
    %1732 = vmatprep.subr.mxu0 0.0
    %1733 = vmatpush1.msra.mxu0 0.0
    %1734 = vmatprep.subr.mxu0 0.0
    %1735 = vmatpush1.msra.mxu0 0.0
    %1736 = vmatprep.subr.mxu0 0.0
    %1737 = vmatpush1.msra.mxu0 0.0
    %1738 = vmatprep.subr.mxu0 0.0
    %1739 = vmatpush1.msra.mxu0 0.0
    %1740 = vmatprep.subr.mxu0 0.0
    %1741 = vmatpush1.msra.mxu0 0.0
    %1742 = vmatprep.subr.mxu0 0.0
    %1743 = vmatpush1.msra.mxu0 0.0
    %1744 = vmatprep.subr.mxu0 0.0
    %1745 = vmatpush1.msra.mxu0 0.0
    %1746 = vmatprep.subr.mxu0 0.0
    %1747 = vmatpush1.msra.mxu0 0.0
    %1748 = vmatprep.subr.mxu0 0.0
    %1749 = vmatpush1.msra.mxu0 0.0
    %1750 = vmatprep.subr.mxu0 0.0
    %1751 = vmatpush1.msra.mxu0 0.0
    %1752 = vmatprep.subr.mxu0 0.0
    %1753 = vmatpush1.msra.mxu0 0.0
    %1754 = vmatprep.subr.mxu0 0.0
    %1755 = vmatpush1.msra.mxu0 0.0
    %1756 = vmatprep.subr.mxu0 0.0
    %1757 = vmatpush1.msra.mxu0 0.0
    %1758 = vmatprep.subr.mxu0 0.0
    %1759 = vmatpush1.msra.mxu0 0.0
    %1760 = vmatprep.subr.mxu0 0.0
    %1761 = vmatpush1.msra.mxu0 0.0
    %1762 = vmatprep.subr.mxu0 0.0
    %1763 = vmatpush1.msra.mxu0 0.0
    %1764 = vmatprep.subr.mxu0 0.0
    %1765 = vmatpush1.msra.mxu0 0.0
    %1766 = vmatprep.subr.mxu0 0.0
    %1767 = vmatpush1.msra.mxu0 0.0
    %1768 = vmatprep.mubr.f32.mxu0 0.0
    %1769 = vmatmul.mubr.f32.gmra.mrb[0].mxu0 %v1561
    %v1770 = vpop.f32.mrb[0].mxu0
    %v1771 = vadd.f32 %v1701, %v1770
    %v1772 = vpop.f32.mrb[0].mxu0
    %1773 = vdwg.mxu0
    %v1774 = vadd.f32 %v1771, %v192
    %1775 = vmatprep.subr.mxu0 0.0
    %1776 = vmatpush1.msra.mxu0 %v170
    %1777 = vmatprep.subr.mxu0 0.0
    %1778 = vmatpush1.msra.mxu0 %v171
    %1779 = vmatprep.subr.mxu0 0.0
    %1780 = vmatpush1.msra.mxu0 %v172
    %1781 = vmatprep.subr.mxu0 0.0
    %1782 = vmatpush1.msra.mxu0 %v173
    %1783 = vmatprep.subr.mxu0 0.0
    %1784 = vmatpush1.msra.mxu0 0.0
    %1785 = vmatprep.subr.mxu0 0.0
    %1786 = vmatpush1.msra.mxu0 0.0
    %1787 = vmatprep.subr.mxu0 0.0
    %1788 = vmatpush1.msra.mxu0 0.0
    %1789 = vmatprep.subr.mxu0 0.0
    %1790 = vmatpush1.msra.mxu0 0.0
    %1791 = vmatprep.subr.mxu0 0.0
    %1792 = vmatpush1.msra.mxu0 0.0
    %1793 = vmatprep.subr.mxu0 0.0
    %1794 = vmatpush1.msra.mxu0 0.0
    %1795 = vmatprep.subr.mxu0 0.0
    %1796 = vmatpush1.msra.mxu0 0.0
    %1797 = vmatprep.subr.mxu0 0.0
    %1798 = vmatpush1.msra.mxu0 0.0
    %1799 = vmatprep.subr.mxu0 0.0
    %1800 = vmatpush1.msra.mxu0 0.0
    %1801 = vmatprep.subr.mxu0 0.0
    %1802 = vmatpush1.msra.mxu0 0.0
    %1803 = vmatprep.subr.mxu0 0.0
    %1804 = vmatpush1.msra.mxu0 0.0
    %1805 = vmatprep.subr.mxu0 0.0
    %1806 = vmatpush1.msra.mxu0 0.0
    %1807 = vmatprep.subr.mxu0 0.0
    %1808 = vmatpush1.msra.mxu0 0.0
    %1809 = vmatprep.subr.mxu0 0.0
    %1810 = vmatpush1.msra.mxu0 0.0
    %1811 = vmatprep.subr.mxu0 0.0
    %1812 = vmatpush1.msra.mxu0 0.0
    %1813 = vmatprep.subr.mxu0 0.0
    %1814 = vmatpush1.msra.mxu0 0.0
    %1815 = vmatprep.subr.mxu0 0.0
    %1816 = vmatpush1.msra.mxu0 0.0
    %1817 = vmatprep.subr.mxu0 0.0
    %1818 = vmatpush1.msra.mxu0 0.0
    %1819 = vmatprep.subr.mxu0 0.0
    %1820 = vmatpush1.msra.mxu0 0.0
    %1821 = vmatprep.subr.mxu0 0.0
    %1822 = vmatpush1.msra.mxu0 0.0
    %1823 = vmatprep.subr.mxu0 0.0
    %1824 = vmatpush1.msra.mxu0 0.0
    %1825 = vmatprep.subr.mxu0 0.0
    %1826 = vmatpush1.msra.mxu0 0.0
    %1827 = vmatprep.subr.mxu0 0.0
    %1828 = vmatpush1.msra.mxu0 0.0
    %1829 = vmatprep.subr.mxu0 0.0
    %1830 = vmatpush1.msra.mxu0 0.0
    %1831 = vmatprep.subr.mxu0 0.0
    %1832 = vmatpush1.msra.mxu0 0.0
    %1833 = vmatprep.subr.mxu0 0.0
    %1834 = vmatpush1.msra.mxu0 0.0
    %1835 = vmatprep.subr.mxu0 0.0
    %1836 = vmatpush1.msra.mxu0 0.0
    %1837 = vmatprep.subr.mxu0 0.0
    %1838 = vmatpush1.msra.mxu0 0.0
    %1839 = vmatprep.mubr.f32.mxu0 0.0
    %1840 = vmatmul.mubr.f32.gmra.mrb[0].mxu0 %v965
    %v1841 = vpop.f32.mrb[0].mxu0
    %v1842 = vadd.f32 0.0, %v1841
    %v1843 = vpop.f32.mrb[0].mxu0
    %1844 = vdwg.mxu0
    %1845 = vmatprep.subr.mxu0 0.0
    %1846 = vmatpush1.msra.mxu0 %v653
    %1847 = vmatprep.subr.mxu0 0.0
    %1848 = vmatpush1.msra.mxu0 0.0
    %1849 = vmatprep.subr.mxu0 0.0
    %1850 = vmatpush1.msra.mxu0 0.0
    %1851 = vmatprep.subr.mxu0 0.0
    %1852 = vmatpush1.msra.mxu0 0.0
    %1853 = vmatprep.subr.mxu0 0.0
    %1854 = vmatpush1.msra.mxu0 0.0
    %1855 = vmatprep.subr.mxu0 0.0
    %1856 = vmatpush1.msra.mxu0 0.0
    %1857 = vmatprep.subr.mxu0 0.0
    %1858 = vmatpush1.msra.mxu0 0.0
    %1859 = vmatprep.subr.mxu0 0.0
    %1860 = vmatpush1.msra.mxu0 0.0
    %1861 = vmatprep.subr.mxu0 0.0
    %1862 = vmatpush1.msra.mxu0 0.0
    %1863 = vmatprep.subr.mxu0 0.0
    %1864 = vmatpush1.msra.mxu0 0.0
    %1865 = vmatprep.subr.mxu0 0.0
    %1866 = vmatpush1.msra.mxu0 0.0
    %1867 = vmatprep.subr.mxu0 0.0
    %1868 = vmatpush1.msra.mxu0 0.0
    %1869 = vmatprep.subr.mxu0 0.0
    %1870 = vmatpush1.msra.mxu0 0.0
    %1871 = vmatprep.subr.mxu0 0.0
    %1872 = vmatpush1.msra.mxu0 0.0
    %1873 = vmatprep.subr.mxu0 0.0
    %1874 = vmatpush1.msra.mxu0 0.0
    %1875 = vmatprep.subr.mxu0 0.0
    %1876 = vmatpush1.msra.mxu0 0.0
    %1877 = vmatprep.subr.mxu0 0.0
    %1878 = vmatpush1.msra.mxu0 0.0
    %1879 = vmatprep.subr.mxu0 0.0
    %1880 = vmatpush1.msra.mxu0 0.0
    %1881 = vmatprep.subr.mxu0 0.0
    %1882 = vmatpush1.msra.mxu0 0.0
    %1883 = vmatprep.subr.mxu0 0.0
    %1884 = vmatpush1.msra.mxu0 0.0
    %1885 = vmatprep.subr.mxu0 0.0
    %1886 = vmatpush1.msra.mxu0 0.0
    %1887 = vmatprep.subr.mxu0 0.0
    %1888 = vmatpush1.msra.mxu0 0.0
    %1889 = vmatprep.subr.mxu0 0.0
    %1890 = vmatpush1.msra.mxu0 0.0
    %1891 = vmatprep.subr.mxu0 0.0
    %1892 = vmatpush1.msra.mxu0 0.0
    %1893 = vmatprep.subr.mxu0 0.0
    %1894 = vmatpush1.msra.mxu0 0.0
    %1895 = vmatprep.subr.mxu0 0.0
    %1896 = vmatpush1.msra.mxu0 0.0
    %1897 = vmatprep.subr.mxu0 0.0
    %1898 = vmatpush1.msra.mxu0 0.0
    %1899 = vmatprep.subr.mxu0 0.0
    %1900 = vmatpush1.msra.mxu0 0.0
    %1901 = vmatprep.subr.mxu0 0.0
    %1902 = vmatpush1.msra.mxu0 0.0
    %1903 = vmatprep.subr.mxu0 0.0
    %1904 = vmatpush1.msra.mxu0 0.0
    %1905 = vmatprep.subr.mxu0 0.0
    %1906 = vmatpush1.msra.mxu0 0.0
    %1907 = vmatprep.subr.mxu0 0.0
    %1908 = vmatpush1.msra.mxu0 0.0
    %1909 = vmatprep.mubr.f32.mxu0 0.0
    %1910 = vmatmul.mubr.f32.gmra.mrb[0].mxu0 %v1561
    %v1911 = vpop.f32.mrb[0].mxu0
    %v1912 = vadd.f32 %v1842, %v1911
    %v1913 = vpop.f32.mrb[0].mxu0
    %1914 = vdwg.mxu0
    %v1915 = vadd.f32 %v1912, %v200
    %1916 = vmatprep.subr.mxu0 0.0
    %1917 = vmatpush1.msra.mxu0 %v175
    %1918 = vmatprep.subr.mxu0 0.0
    %1919 = vmatpush1.msra.mxu0 %v176
    %1920 = vmatprep.subr.mxu0 0.0
    %1921 = vmatpush1.msra.mxu0 %v177
    %1922 = vmatprep.subr.mxu0 0.0
    %1923 = vmatpush1.msra.mxu0 %v178
    %1924 = vmatprep.subr.mxu0 0.0
    %1925 = vmatpush1.msra.mxu0 0.0
    %1926 = vmatprep.subr.mxu0 0.0
    %1927 = vmatpush1.msra.mxu0 0.0
    %1928 = vmatprep.subr.mxu0 0.0
    %1929 = vmatpush1.msra.mxu0 0.0
    %1930 = vmatprep.subr.mxu0 0.0
    %1931 = vmatpush1.msra.mxu0 0.0
    %1932 = vmatprep.subr.mxu0 0.0
    %1933 = vmatpush1.msra.mxu0 0.0
    %1934 = vmatprep.subr.mxu0 0.0
    %1935 = vmatpush1.msra.mxu0 0.0
    %1936 = vmatprep.subr.mxu0 0.0
    %1937 = vmatpush1.msra.mxu0 0.0
    %1938 = vmatprep.subr.mxu0 0.0
    %1939 = vmatpush1.msra.mxu0 0.0
    %1940 = vmatprep.subr.mxu0 0.0
    %1941 = vmatpush1.msra.mxu0 0.0
    %1942 = vmatprep.subr.mxu0 0.0
    %1943 = vmatpush1.msra.mxu0 0.0
    %1944 = vmatprep.subr.mxu0 0.0
    %1945 = vmatpush1.msra.mxu0 0.0
    %1946 = vmatprep.subr.mxu0 0.0
    %1947 = vmatpush1.msra.mxu0 0.0
    %1948 = vmatprep.subr.mxu0 0.0
    %1949 = vmatpush1.msra.mxu0 0.0
    %1950 = vmatprep.subr.mxu0 0.0
    %1951 = vmatpush1.msra.mxu0 0.0
    %1952 = vmatprep.subr.mxu0 0.0
    %1953 = vmatpush1.msra.mxu0 0.0
    %1954 = vmatprep.subr.mxu0 0.0
    %1955 = vmatpush1.msra.mxu0 0.0
    %1956 = vmatprep.subr.mxu0 0.0
    %1957 = vmatpush1.msra.mxu0 0.0
    %1958 = vmatprep.subr.mxu0 0.0
    %1959 = vmatpush1.msra.mxu0 0.0
    %1960 = vmatprep.subr.mxu0 0.0
    %1961 = vmatpush1.msra.mxu0 0.0
    %1962 = vmatprep.subr.mxu0 0.0
    %1963 = vmatpush1.msra.mxu0 0.0
    %1964 = vmatprep.subr.mxu0 0.0
    %1965 = vmatpush1.msra.mxu0 0.0
    %1966 = vmatprep.subr.mxu0 0.0
    %1967 = vmatpush1.msra.mxu0 0.0
    %1968 = vmatprep.subr.mxu0 0.0
    %1969 = vmatpush1.msra.mxu0 0.0
    %1970 = vmatprep.subr.mxu0 0.0
    %1971 = vmatpush1.msra.mxu0 0.0
    %1972 = vmatprep.subr.mxu0 0.0
    %1973 = vmatpush1.msra.mxu0 0.0
    %1974 = vmatprep.subr.mxu0 0.0
    %1975 = vmatpush1.msra.mxu0 0.0
    %1976 = vmatprep.subr.mxu0 0.0
    %1977 = vmatpush1.msra.mxu0 0.0
    %1978 = vmatprep.subr.mxu0 0.0
    %1979 = vmatpush1.msra.mxu0 0.0
    %1980 = vmatprep.mubr.f32.mxu0 0.0
    %1981 = vmatmul.mubr.f32.gmra.mrb[0].mxu0 %v965
    %v1982 = vpop.f32.mrb[0].mxu0
    %v1983 = vadd.f32 0.0, %v1982
    %v1984 = vpop.f32.mrb[0].mxu0
    %1985 = vdwg.mxu0
    %1986 = vmatprep.subr.mxu0 0.0
    %1987 = vmatpush1.msra.mxu0 %v797
    %1988 = vmatprep.subr.mxu0 0.0
    %1989 = vmatpush1.msra.mxu0 0.0
    %1990 = vmatprep.subr.mxu0 0.0
    %1991 = vmatpush1.msra.mxu0 0.0
    %1992 = vmatprep.subr.mxu0 0.0
    %1993 = vmatpush1.msra.mxu0 0.0
    %1994 = vmatprep.subr.mxu0 0.0
    %1995 = vmatpush1.msra.mxu0 0.0
    %1996 = vmatprep.subr.mxu0 0.0
    %1997 = vmatpush1.msra.mxu0 0.0
    %1998 = vmatprep.subr.mxu0 0.0
    %1999 = vmatpush1.msra.mxu0 0.0
    %2000 = vmatprep.subr.mxu0 0.0
    %2001 = vmatpush1.msra.mxu0 0.0
    %2002 = vmatprep.subr.mxu0 0.0
    %2003 = vmatpush1.msra.mxu0 0.0
    %2004 = vmatprep.subr.mxu0 0.0
    %2005 = vmatpush1.msra.mxu0 0.0
    %2006 = vmatprep.subr.mxu0 0.0
    %2007 = vmatpush1.msra.mxu0 0.0
    %2008 = vmatprep.subr.mxu0 0.0
    %2009 = vmatpush1.msra.mxu0 0.0
    %2010 = vmatprep.subr.mxu0 0.0
    %2011 = vmatpush1.msra.mxu0 0.0
    %2012 = vmatprep.subr.mxu0 0.0
    %2013 = vmatpush1.msra.mxu0 0.0
    %2014 = vmatprep.subr.mxu0 0.0
    %2015 = vmatpush1.msra.mxu0 0.0
    %2016 = vmatprep.subr.mxu0 0.0
    %2017 = vmatpush1.msra.mxu0 0.0
    %2018 = vmatprep.subr.mxu0 0.0
    %2019 = vmatpush1.msra.mxu0 0.0
    %2020 = vmatprep.subr.mxu0 0.0
    %2021 = vmatpush1.msra.mxu0 0.0
    %2022 = vmatprep.subr.mxu0 0.0
    %2023 = vmatpush1.msra.mxu0 0.0
    %2024 = vmatprep.subr.mxu0 0.0
    %2025 = vmatpush1.msra.mxu0 0.0
    %2026 = vmatprep.subr.mxu0 0.0
    %2027 = vmatpush1.msra.mxu0 0.0
    %2028 = vmatprep.subr.mxu0 0.0
    %2029 = vmatpush1.msra.mxu0 0.0
    %2030 = vmatprep.subr.mxu0 0.0
    %2031 = vmatpush1.msra.mxu0 0.0
    %2032 = vmatprep.subr.mxu0 0.0
    %2033 = vmatpush1.msra.mxu0 0.0
    %2034 = vmatprep.subr.mxu0 0.0
    %2035 = vmatpush1.msra.mxu0 0.0
    %2036 = vmatprep.subr.mxu0 0.0
    %2037 = vmatpush1.msra.mxu0 0.0
    %2038 = vmatprep.subr.mxu0 0.0
    %2039 = vmatpush1.msra.mxu0 0.0
    %2040 = vmatprep.subr.mxu0 0.0
    %2041 = vmatpush1.msra.mxu0 0.0
    %2042 = vmatprep.subr.mxu0 0.0
    %2043 = vmatpush1.msra.mxu0 0.0
    %2044 = vmatprep.subr.mxu0 0.0
    %2045 = vmatpush1.msra.mxu0 0.0
    %2046 = vmatprep.subr.mxu0 0.0
    %2047 = vmatpush1.msra.mxu0 0.0
    %2048 = vmatprep.subr.mxu0 0.0
    %2049 = vmatpush1.msra.mxu0 0.0
    %2050 = vmatprep.mubr.f32.mxu0 0.0
    %2051 = vmatmul.mubr.f32.gmra.mrb[0].mxu0 %v1561
    %v2052 = vpop.f32.mrb[0].mxu0
    %v2053 = vadd.f32 %v1983, %v2052
    %v2054 = vpop.f32.mrb[0].mxu0
    %2055 = vdwg.mxu0
    %v2056 = vadd.f32 %v2053, %v208
    %v2057 = vxor.u32 %v1633, 2147483648
    %v2058 = vmul.f32 %v2057, 1.442695
    %v2059 = vpow.pop %v2058
    %v2060 = vadd.f32 %v2059, 1.0
    %v2061 = vrcp.pop %v2060
    %v2062 = vmul.f32 1.0, %v2061
    %v2063 = vxor.u32 %v1774, 2147483648
    %v2064 = vmul.f32 %v2063, 1.442695
    %v2065 = vpow.pop %v2064
    %v2066 = vadd.f32 %v2065, 1.0
    %v2067 = vrcp.pop %v2066
    %v2068 = vmul.f32 1.0, %v2067
    %v2069 = vtanh.pop %v1915
    %v2070 = vxor.u32 %v2056, 2147483648
    %v2071 = vmul.f32 %v2070, 1.442695
    %v2072 = vpow.pop %v2071
    %v2073 = vadd.f32 %v2072, 1.0
    %v2074 = vrcp.pop %v2073
    %v2075 = vmul.f32 1.0, %v2074
    %v2076 = vmul.f32 %v2068, %v891
    %v2077 = vmul.f32 %v2062, %v2069
    %v2078 = vadd.f32 %v2076, %v2077
    %v2079 = vtanh.pop %v2078
    %v2080 = vmul.f32 %v2075, %v2079
    %v2082 = vsel %vm281, %v1484, 0
    %2084 = vmatprep.subr.mxu0 0.0
    %2085 = vmatpush1.msra.mxu0 %v229
    %2086 = vmatprep.subr.mxu0 0.0
    %2087 = vmatpush1.msra.mxu0 %v230
    %2088 = vmatprep.subr.mxu0 0.0
    %2089 = vmatpush1.msra.mxu0 %v231
    %2090 = vmatprep.subr.mxu0 0.0
    %2091 = vmatpush1.msra.mxu0 %v232
    %2092 = vmatprep.subr.mxu0 0.0
    %2093 = vmatpush1.msra.mxu0 0.0
    %2094 = vmatprep.subr.mxu0 0.0
    %2095 = vmatpush1.msra.mxu0 0.0
    %2096 = vmatprep.subr.mxu0 0.0
    %2097 = vmatpush1.msra.mxu0 0.0
    %2098 = vmatprep.subr.mxu0 0.0
    %2099 = vmatpush1.msra.mxu0 0.0
    %2100 = vmatprep.subr.mxu0 0.0
    %2101 = vmatpush1.msra.mxu0 0.0
    %2102 = vmatprep.subr.mxu0 0.0
    %2103 = vmatpush1.msra.mxu0 0.0
    %2104 = vmatprep.subr.mxu0 0.0
    %2105 = vmatpush1.msra.mxu0 0.0
    %2106 = vmatprep.subr.mxu0 0.0
    %2107 = vmatpush1.msra.mxu0 0.0
    %2108 = vmatprep.subr.mxu0 0.0
    %2109 = vmatpush1.msra.mxu0 0.0
    %2110 = vmatprep.subr.mxu0 0.0
    %2111 = vmatpush1.msra.mxu0 0.0
    %2112 = vmatprep.subr.mxu0 0.0
    %2113 = vmatpush1.msra.mxu0 0.0
    %2114 = vmatprep.subr.mxu0 0.0
    %2115 = vmatpush1.msra.mxu0 0.0
    %2116 = vmatprep.subr.mxu0 0.0
    %2117 = vmatpush1.msra.mxu0 0.0
    %2118 = vmatprep.subr.mxu0 0.0
    %2119 = vmatpush1.msra.mxu0 0.0
    %2120 = vmatprep.subr.mxu0 0.0
    %2121 = vmatpush1.msra.mxu0 0.0
    %2122 = vmatprep.subr.mxu0 0.0
    %2123 = vmatpush1.msra.mxu0 0.0
    %2124 = vmatprep.subr.mxu0 0.0
    %2125 = vmatpush1.msra.mxu0 0.0
    %2126 = vmatprep.subr.mxu0 0.0
    %2127 = vmatpush1.msra.mxu0 0.0
    %2128 = vmatprep.subr.mxu0 0.0
    %2129 = vmatpush1.msra.mxu0 0.0
    %2130 = vmatprep.subr.mxu0 0.0
    %2131 = vmatpush1.msra.mxu0 0.0
    %2132 = vmatprep.subr.mxu0 0.0
    %2133 = vmatpush1.msra.mxu0 0.0
    %2134 = vmatprep.subr.mxu0 0.0
    %2135 = vmatpush1.msra.mxu0 0.0
    %2136 = vmatprep.subr.mxu0 0.0
    %2137 = vmatpush1.msra.mxu0 0.0
    %2138 = vmatprep.subr.mxu0 0.0
    %2139 = vmatpush1.msra.mxu0 0.0
    %2140 = vmatprep.subr.mxu0 0.0
    %2141 = vmatpush1.msra.mxu0 0.0
    %2142 = vmatprep.subr.mxu0 0.0
    %2143 = vmatpush1.msra.mxu0 0.0
    %2144 = vmatprep.subr.mxu0 0.0
    %2145 = vmatpush1.msra.mxu0 0.0
    %2146 = vmatprep.subr.mxu0 0.0
    %2147 = vmatpush1.msra.mxu0 0.0
    %2148 = vmatprep.mubr.f32.mxu0 0.0
    %2149 = vmatmul.mubr.f32.gmra.mrb[0].mxu0 %v2082
    %v2150 = vpop.f32.mrb[0].mxu0
    %v2151 = vadd.f32 0.0, %v2150
    %v2152 = vpop.f32.mrb[0].mxu0
    %2153 = vdwg.mxu0
    %v2155 = vsel %vm281, %v2080, 0
    %2157 = vmatprep.subr.mxu0 0.0
    %2158 = vmatpush1.msra.mxu0 %v210
    %2159 = vmatprep.subr.mxu0 0.0
    %2160 = vmatpush1.msra.mxu0 %v211
    %2161 = vmatprep.subr.mxu0 0.0
    %2162 = vmatpush1.msra.mxu0 %v212
    %2163 = vmatprep.subr.mxu0 0.0
    %2164 = vmatpush1.msra.mxu0 %v213
    %2165 = vmatprep.subr.mxu0 0.0
    %2166 = vmatpush1.msra.mxu0 0.0
    %2167 = vmatprep.subr.mxu0 0.0
    %2168 = vmatpush1.msra.mxu0 0.0
    %2169 = vmatprep.subr.mxu0 0.0
    %2170 = vmatpush1.msra.mxu0 0.0
    %2171 = vmatprep.subr.mxu0 0.0
    %2172 = vmatpush1.msra.mxu0 0.0
    %2173 = vmatprep.subr.mxu0 0.0
    %2174 = vmatpush1.msra.mxu0 0.0
    %2175 = vmatprep.subr.mxu0 0.0
    %2176 = vmatpush1.msra.mxu0 0.0
    %2177 = vmatprep.subr.mxu0 0.0
    %2178 = vmatpush1.msra.mxu0 0.0
    %2179 = vmatprep.subr.mxu0 0.0
    %2180 = vmatpush1.msra.mxu0 0.0
    %2181 = vmatprep.subr.mxu0 0.0
    %2182 = vmatpush1.msra.mxu0 0.0
    %2183 = vmatprep.subr.mxu0 0.0
    %2184 = vmatpush1.msra.mxu0 0.0
    %2185 = vmatprep.subr.mxu0 0.0
    %2186 = vmatpush1.msra.mxu0 0.0
    %2187 = vmatprep.subr.mxu0 0.0
    %2188 = vmatpush1.msra.mxu0 0.0
    %2189 = vmatprep.subr.mxu0 0.0
    %2190 = vmatpush1.msra.mxu0 0.0
    %2191 = vmatprep.subr.mxu0 0.0
    %2192 = vmatpush1.msra.mxu0 0.0
    %2193 = vmatprep.subr.mxu0 0.0
    %2194 = vmatpush1.msra.mxu0 0.0
    %2195 = vmatprep.subr.mxu0 0.0
    %2196 = vmatpush1.msra.mxu0 0.0
    %2197 = vmatprep.subr.mxu0 0.0
    %2198 = vmatpush1.msra.mxu0 0.0
    %2199 = vmatprep.subr.mxu0 0.0
    %2200 = vmatpush1.msra.mxu0 0.0
    %2201 = vmatprep.subr.mxu0 0.0
    %2202 = vmatpush1.msra.mxu0 0.0
    %2203 = vmatprep.subr.mxu0 0.0
    %2204 = vmatpush1.msra.mxu0 0.0
    %2205 = vmatprep.subr.mxu0 0.0
    %2206 = vmatpush1.msra.mxu0 0.0
    %2207 = vmatprep.subr.mxu0 0.0
    %2208 = vmatpush1.msra.mxu0 0.0
    %2209 = vmatprep.subr.mxu0 0.0
    %2210 = vmatpush1.msra.mxu0 0.0
    %2211 = vmatprep.subr.mxu0 0.0
    %2212 = vmatpush1.msra.mxu0 0.0
    %2213 = vmatprep.subr.mxu0 0.0
    %2214 = vmatpush1.msra.mxu0 0.0
    %2215 = vmatprep.subr.mxu0 0.0
    %2216 = vmatpush1.msra.mxu0 0.0
    %2217 = vmatprep.subr.mxu0 0.0
    %2218 = vmatpush1.msra.mxu0 0.0
    %2219 = vmatprep.subr.mxu0 0.0
    %2220 = vmatpush1.msra.mxu0 0.0
    %2221 = vmatprep.mubr.f32.mxu0 0.0
    %2222 = vmatmul.mubr.f32.gmra.mrb[0].mxu0 %v2155
    %v2223 = vpop.f32.mrb[0].mxu0
    %v2224 = vadd.f32 %v2151, %v2223
    %v2225 = vpop.f32.mrb[0].mxu0
    %2226 = vdwg.mxu0
    %v2227 = vadd.f32 %v2224, %v253
    %2228 = vmatprep.subr.mxu0 0.0
    %2229 = vmatpush1.msra.mxu0 %v234
    %2230 = vmatprep.subr.mxu0 0.0
    %2231 = vmatpush1.msra.mxu0 %v235
    %2232 = vmatprep.subr.mxu0 0.0
    %2233 = vmatpush1.msra.mxu0 %v236
    %2234 = vmatprep.subr.mxu0 0.0
    %2235 = vmatpush1.msra.mxu0 %v237
    %2236 = vmatprep.subr.mxu0 0.0
    %2237 = vmatpush1.msra.mxu0 0.0
    %2238 = vmatprep.subr.mxu0 0.0
    %2239 = vmatpush1.msra.mxu0 0.0
    %2240 = vmatprep.subr.mxu0 0.0
    %2241 = vmatpush1.msra.mxu0 0.0
    %2242 = vmatprep.subr.mxu0 0.0
    %2243 = vmatpush1.msra.mxu0 0.0
    %2244 = vmatprep.subr.mxu0 0.0
    %2245 = vmatpush1.msra.mxu0 0.0
    %2246 = vmatprep.subr.mxu0 0.0
    %2247 = vmatpush1.msra.mxu0 0.0
    %2248 = vmatprep.subr.mxu0 0.0
    %2249 = vmatpush1.msra.mxu0 0.0
    %2250 = vmatprep.subr.mxu0 0.0
    %2251 = vmatpush1.msra.mxu0 0.0
    %2252 = vmatprep.subr.mxu0 0.0
    %2253 = vmatpush1.msra.mxu0 0.0
    %2254 = vmatprep.subr.mxu0 0.0
    %2255 = vmatpush1.msra.mxu0 0.0
    %2256 = vmatprep.subr.mxu0 0.0
    %2257 = vmatpush1.msra.mxu0 0.0
    %2258 = vmatprep.subr.mxu0 0.0
    %2259 = vmatpush1.msra.mxu0 0.0
    %2260 = vmatprep.subr.mxu0 0.0
    %2261 = vmatpush1.msra.mxu0 0.0
    %2262 = vmatprep.subr.mxu0 0.0
    %2263 = vmatpush1.msra.mxu0 0.0
    %2264 = vmatprep.subr.mxu0 0.0
    %2265 = vmatpush1.msra.mxu0 0.0
    %2266 = vmatprep.subr.mxu0 0.0
    %2267 = vmatpush1.msra.mxu0 0.0
    %2268 = vmatprep.subr.mxu0 0.0
    %2269 = vmatpush1.msra.mxu0 0.0
    %2270 = vmatprep.subr.mxu0 0.0
    %2271 = vmatpush1.msra.mxu0 0.0
    %2272 = vmatprep.subr.mxu0 0.0
    %2273 = vmatpush1.msra.mxu0 0.0
    %2274 = vmatprep.subr.mxu0 0.0
    %2275 = vmatpush1.msra.mxu0 0.0
    %2276 = vmatprep.subr.mxu0 0.0
    %2277 = vmatpush1.msra.mxu0 0.0
    %2278 = vmatprep.subr.mxu0 0.0
    %2279 = vmatpush1.msra.mxu0 0.0
    %2280 = vmatprep.subr.mxu0 0.0
    %2281 = vmatpush1.msra.mxu0 0.0
    %2282 = vmatprep.subr.mxu0 0.0
    %2283 = vmatpush1.msra.mxu0 0.0
    %2284 = vmatprep.subr.mxu0 0.0
    %2285 = vmatpush1.msra.mxu0 0.0
    %2286 = vmatprep.subr.mxu0 0.0
    %2287 = vmatpush1.msra.mxu0 0.0
    %2288 = vmatprep.subr.mxu0 0.0
    %2289 = vmatpush1.msra.mxu0 0.0
    %2290 = vmatprep.subr.mxu0 0.0
    %2291 = vmatpush1.msra.mxu0 0.0
    %2292 = vmatprep.mubr.f32.mxu0 0.0
    %2293 = vmatmul.mubr.f32.gmra.mrb[0].mxu0 %v2082
    %v2294 = vpop.f32.mrb[0].mxu0
    %v2295 = vadd.f32 0.0, %v2294
    %v2296 = vpop.f32.mrb[0].mxu0
    %2297 = vdwg.mxu0
    %2298 = vmatprep.subr.mxu0 0.0
    %2299 = vmatpush1.msra.mxu0 %v215
    %2300 = vmatprep.subr.mxu0 0.0
    %2301 = vmatpush1.msra.mxu0 %v216
    %2302 = vmatprep.subr.mxu0 0.0
    %2303 = vmatpush1.msra.mxu0 %v217
    %2304 = vmatprep.subr.mxu0 0.0
    %2305 = vmatpush1.msra.mxu0 %v218
    %2306 = vmatprep.subr.mxu0 0.0
    %2307 = vmatpush1.msra.mxu0 0.0
    %2308 = vmatprep.subr.mxu0 0.0
    %2309 = vmatpush1.msra.mxu0 0.0
    %2310 = vmatprep.subr.mxu0 0.0
    %2311 = vmatpush1.msra.mxu0 0.0
    %2312 = vmatprep.subr.mxu0 0.0
    %2313 = vmatpush1.msra.mxu0 0.0
    %2314 = vmatprep.subr.mxu0 0.0
    %2315 = vmatpush1.msra.mxu0 0.0
    %2316 = vmatprep.subr.mxu0 0.0
    %2317 = vmatpush1.msra.mxu0 0.0
    %2318 = vmatprep.subr.mxu0 0.0
    %2319 = vmatpush1.msra.mxu0 0.0
    %2320 = vmatprep.subr.mxu0 0.0
    %2321 = vmatpush1.msra.mxu0 0.0
    %2322 = vmatprep.subr.mxu0 0.0
    %2323 = vmatpush1.msra.mxu0 0.0
    %2324 = vmatprep.subr.mxu0 0.0
    %2325 = vmatpush1.msra.mxu0 0.0
    %2326 = vmatprep.subr.mxu0 0.0
    %2327 = vmatpush1.msra.mxu0 0.0
    %2328 = vmatprep.subr.mxu0 0.0
    %2329 = vmatpush1.msra.mxu0 0.0
    %2330 = vmatprep.subr.mxu0 0.0
    %2331 = vmatpush1.msra.mxu0 0.0
    %2332 = vmatprep.subr.mxu0 0.0
    %2333 = vmatpush1.msra.mxu0 0.0
    %2334 = vmatprep.subr.mxu0 0.0
    %2335 = vmatpush1.msra.mxu0 0.0
    %2336 = vmatprep.subr.mxu0 0.0
    %2337 = vmatpush1.msra.mxu0 0.0
    %2338 = vmatprep.subr.mxu0 0.0
    %2339 = vmatpush1.msra.mxu0 0.0
    %2340 = vmatprep.subr.mxu0 0.0
    %2341 = vmatpush1.msra.mxu0 0.0
    %2342 = vmatprep.subr.mxu0 0.0
    %2343 = vmatpush1.msra.mxu0 0.0
    %2344 = vmatprep.subr.mxu0 0.0
    %2345 = vmatpush1.msra.mxu0 0.0
    %2346 = vmatprep.subr.mxu0 0.0
    %2347 = vmatpush1.msra.mxu0 0.0
    %2348 = vmatprep.subr.mxu0 0.0
    %2349 = vmatpush1.msra.mxu0 0.0
    %2350 = vmatprep.subr.mxu0 0.0
    %2351 = vmatpush1.msra.mxu0 0.0
    %2352 = vmatprep.subr.mxu0 0.0
    %2353 = vmatpush1.msra.mxu0 0.0
    %2354 = vmatprep.subr.mxu0 0.0
    %2355 = vmatpush1.msra.mxu0 0.0
    %2356 = vmatprep.subr.mxu0 0.0
    %2357 = vmatpush1.msra.mxu0 0.0
    %2358 = vmatprep.subr.mxu0 0.0
    %2359 = vmatpush1.msra.mxu0 0.0
    %2360 = vmatprep.subr.mxu0 0.0
    %2361 = vmatpush1.msra.mxu0 0.0
    %2362 = vmatprep.mubr.f32.mxu0 0.0
    %2363 = vmatmul.mubr.f32.gmra.mrb[0].mxu0 %v2155
    %v2364 = vpop.f32.mrb[0].mxu0
    %v2365 = vadd.f32 %v2295, %v2364
    %v2366 = vpop.f32.mrb[0].mxu0
    %2367 = vdwg.mxu0
    %v2368 = vadd.f32 %v2365, %v261
    %2369 = vmatprep.subr.mxu0 0.0
    %2370 = vmatpush1.msra.mxu0 %v239
    %2371 = vmatprep.subr.mxu0 0.0
    %2372 = vmatpush1.msra.mxu0 %v240
    %2373 = vmatprep.subr.mxu0 0.0
    %2374 = vmatpush1.msra.mxu0 %v241
    %2375 = vmatprep.subr.mxu0 0.0
    %2376 = vmatpush1.msra.mxu0 %v242
    %2377 = vmatprep.subr.mxu0 0.0
    %2378 = vmatpush1.msra.mxu0 0.0
    %2379 = vmatprep.subr.mxu0 0.0
    %2380 = vmatpush1.msra.mxu0 0.0
    %2381 = vmatprep.subr.mxu0 0.0
    %2382 = vmatpush1.msra.mxu0 0.0
    %2383 = vmatprep.subr.mxu0 0.0
    %2384 = vmatpush1.msra.mxu0 0.0
    %2385 = vmatprep.subr.mxu0 0.0
    %2386 = vmatpush1.msra.mxu0 0.0
    %2387 = vmatprep.subr.mxu0 0.0
    %2388 = vmatpush1.msra.mxu0 0.0
    %2389 = vmatprep.subr.mxu0 0.0
    %2390 = vmatpush1.msra.mxu0 0.0
    %2391 = vmatprep.subr.mxu0 0.0
    %2392 = vmatpush1.msra.mxu0 0.0
    %2393 = vmatprep.subr.mxu0 0.0
    %2394 = vmatpush1.msra.mxu0 0.0
    %2395 = vmatprep.subr.mxu0 0.0
    %2396 = vmatpush1.msra.mxu0 0.0
    %2397 = vmatprep.subr.mxu0 0.0
    %2398 = vmatpush1.msra.mxu0 0.0
    %2399 = vmatprep.subr.mxu0 0.0
    %2400 = vmatpush1.msra.mxu0 0.0
    %2401 = vmatprep.subr.mxu0 0.0
    %2402 = vmatpush1.msra.mxu0 0.0
    %2403 = vmatprep.subr.mxu0 0.0
    %2404 = vmatpush1.msra.mxu0 0.0
    %2405 = vmatprep.subr.mxu0 0.0
    %2406 = vmatpush1.msra.mxu0 0.0
    %2407 = vmatprep.subr.mxu0 0.0
    %2408 = vmatpush1.msra.mxu0 0.0
    %2409 = vmatprep.subr.mxu0 0.0
    %2410 = vmatpush1.msra.mxu0 0.0
    %2411 = vmatprep.subr.mxu0 0.0
    %2412 = vmatpush1.msra.mxu0 0.0
    %2413 = vmatprep.subr.mxu0 0.0
    %2414 = vmatpush1.msra.mxu0 0.0
    %2415 = vmatprep.subr.mxu0 0.0
    %2416 = vmatpush1.msra.mxu0 0.0
    %2417 = vmatprep.subr.mxu0 0.0
    %2418 = vmatpush1.msra.mxu0 0.0
    %2419 = vmatprep.subr.mxu0 0.0
    %2420 = vmatpush1.msra.mxu0 0.0
    %2421 = vmatprep.subr.mxu0 0.0
    %2422 = vmatpush1.msra.mxu0 0.0
    %2423 = vmatprep.subr.mxu0 0.0
    %2424 = vmatpush1.msra.mxu0 0.0
    %2425 = vmatprep.subr.mxu0 0.0
    %2426 = vmatpush1.msra.mxu0 0.0
    %2427 = vmatprep.subr.mxu0 0.0
    %2428 = vmatpush1.msra.mxu0 0.0
    %2429 = vmatprep.subr.mxu0 0.0
    %2430 = vmatpush1.msra.mxu0 0.0
    %2431 = vmatprep.subr.mxu0 0.0
    %2432 = vmatpush1.msra.mxu0 0.0
    %2433 = vmatprep.mubr.f32.mxu0 0.0
    %2434 = vmatmul.mubr.f32.gmra.mrb[0].mxu0 %v2082
    %v2435 = vpop.f32.mrb[0].mxu0
    %v2436 = vadd.f32 0.0, %v2435
    %v2437 = vpop.f32.mrb[0].mxu0
    %2438 = vdwg.mxu0
    %2439 = vmatprep.subr.mxu0 0.0
    %2440 = vmatpush1.msra.mxu0 %v220
    %2441 = vmatprep.subr.mxu0 0.0
    %2442 = vmatpush1.msra.mxu0 %v221
    %2443 = vmatprep.subr.mxu0 0.0
    %2444 = vmatpush1.msra.mxu0 %v222
    %2445 = vmatprep.subr.mxu0 0.0
    %2446 = vmatpush1.msra.mxu0 %v223
    %2447 = vmatprep.subr.mxu0 0.0
    %2448 = vmatpush1.msra.mxu0 0.0
    %2449 = vmatprep.subr.mxu0 0.0
    %2450 = vmatpush1.msra.mxu0 0.0
    %2451 = vmatprep.subr.mxu0 0.0
    %2452 = vmatpush1.msra.mxu0 0.0
    %2453 = vmatprep.subr.mxu0 0.0
    %2454 = vmatpush1.msra.mxu0 0.0
    %2455 = vmatprep.subr.mxu0 0.0
    %2456 = vmatpush1.msra.mxu0 0.0
    %2457 = vmatprep.subr.mxu0 0.0
    %2458 = vmatpush1.msra.mxu0 0.0
    %2459 = vmatprep.subr.mxu0 0.0
    %2460 = vmatpush1.msra.mxu0 0.0
    %2461 = vmatprep.subr.mxu0 0.0
    %2462 = vmatpush1.msra.mxu0 0.0
    %2463 = vmatprep.subr.mxu0 0.0
    %2464 = vmatpush1.msra.mxu0 0.0
    %2465 = vmatprep.subr.mxu0 0.0
    %2466 = vmatpush1.msra.mxu0 0.0
    %2467 = vmatprep.subr.mxu0 0.0
    %2468 = vmatpush1.msra.mxu0 0.0
    %2469 = vmatprep.subr.mxu0 0.0
    %2470 = vmatpush1.msra.mxu0 0.0
    %2471 = vmatprep.subr.mxu0 0.0
    %2472 = vmatpush1.msra.mxu0 0.0
    %2473 = vmatprep.subr.mxu0 0.0
    %2474 = vmatpush1.msra.mxu0 0.0
    %2475 = vmatprep.subr.mxu0 0.0
    %2476 = vmatpush1.msra.mxu0 0.0
    %2477 = vmatprep.subr.mxu0 0.0
    %2478 = vmatpush1.msra.mxu0 0.0
    %2479 = vmatprep.subr.mxu0 0.0
    %2480 = vmatpush1.msra.mxu0 0.0
    %2481 = vmatprep.subr.mxu0 0.0
    %2482 = vmatpush1.msra.mxu0 0.0
    %2483 = vmatprep.subr.mxu0 0.0
    %2484 = vmatpush1.msra.mxu0 0.0
    %2485 = vmatprep.subr.mxu0 0.0
    %2486 = vmatpush1.msra.mxu0 0.0
    %2487 = vmatprep.subr.mxu0 0.0
    %2488 = vmatpush1.msra.mxu0 0.0
    %2489 = vmatprep.subr.mxu0 0.0
    %2490 = vmatpush1.msra.mxu0 0.0
    %2491 = vmatprep.subr.mxu0 0.0
    %2492 = vmatpush1.msra.mxu0 0.0
    %2493 = vmatprep.subr.mxu0 0.0
    %2494 = vmatpush1.msra.mxu0 0.0
    %2495 = vmatprep.subr.mxu0 0.0
    %2496 = vmatpush1.msra.mxu0 0.0
    %2497 = vmatprep.subr.mxu0 0.0
    %2498 = vmatpush1.msra.mxu0 0.0
    %2499 = vmatprep.subr.mxu0 0.0
    %2500 = vmatpush1.msra.mxu0 0.0
    %2501 = vmatprep.subr.mxu0 0.0
    %2502 = vmatpush1.msra.mxu0 0.0
    %2503 = vmatprep.mubr.f32.mxu0 0.0
    %2504 = vmatmul.mubr.f32.gmra.mrb[0].mxu0 %v2155
    %v2505 = vpop.f32.mrb[0].mxu0
    %v2506 = vadd.f32 %v2436, %v2505
    %v2507 = vpop.f32.mrb[0].mxu0
    %2508 = vdwg.mxu0
    %v2509 = vadd.f32 %v2506, %v269
    %2510 = vmatprep.subr.mxu0 0.0
    %2511 = vmatpush1.msra.mxu0 %v244
    %2512 = vmatprep.subr.mxu0 0.0
    %2513 = vmatpush1.msra.mxu0 %v245
    %2514 = vmatprep.subr.mxu0 0.0
    %2515 = vmatpush1.msra.mxu0 %v246
    %2516 = vmatprep.subr.mxu0 0.0
    %2517 = vmatpush1.msra.mxu0 %v247
    %2518 = vmatprep.subr.mxu0 0.0
    %2519 = vmatpush1.msra.mxu0 0.0
    %2520 = vmatprep.subr.mxu0 0.0
    %2521 = vmatpush1.msra.mxu0 0.0
    %2522 = vmatprep.subr.mxu0 0.0
    %2523 = vmatpush1.msra.mxu0 0.0
    %2524 = vmatprep.subr.mxu0 0.0
    %2525 = vmatpush1.msra.mxu0 0.0
    %2526 = vmatprep.subr.mxu0 0.0
    %2527 = vmatpush1.msra.mxu0 0.0
    %2528 = vmatprep.subr.mxu0 0.0
    %2529 = vmatpush1.msra.mxu0 0.0
    %2530 = vmatprep.subr.mxu0 0.0
    %2531 = vmatpush1.msra.mxu0 0.0
    %2532 = vmatprep.subr.mxu0 0.0
    %2533 = vmatpush1.msra.mxu0 0.0
    %2534 = vmatprep.subr.mxu0 0.0
    %2535 = vmatpush1.msra.mxu0 0.0
    %2536 = vmatprep.subr.mxu0 0.0
    %2537 = vmatpush1.msra.mxu0 0.0
    %2538 = vmatprep.subr.mxu0 0.0
    %2539 = vmatpush1.msra.mxu0 0.0
    %2540 = vmatprep.subr.mxu0 0.0
    %2541 = vmatpush1.msra.mxu0 0.0
    %2542 = vmatprep.subr.mxu0 0.0
    %2543 = vmatpush1.msra.mxu0 0.0
    %2544 = vmatprep.subr.mxu0 0.0
    %2545 = vmatpush1.msra.mxu0 0.0
    %2546 = vmatprep.subr.mxu0 0.0
    %2547 = vmatpush1.msra.mxu0 0.0
    %2548 = vmatprep.subr.mxu0 0.0
    %2549 = vmatpush1.msra.mxu0 0.0
    %2550 = vmatprep.subr.mxu0 0.0
    %2551 = vmatpush1.msra.mxu0 0.0
    %2552 = vmatprep.subr.mxu0 0.0
    %2553 = vmatpush1.msra.mxu0 0.0
    %2554 = vmatprep.subr.mxu0 0.0
    %2555 = vmatpush1.msra.mxu0 0.0
    %2556 = vmatprep.subr.mxu0 0.0
    %2557 = vmatpush1.msra.mxu0 0.0
    %2558 = vmatprep.subr.mxu0 0.0
    %2559 = vmatpush1.msra.mxu0 0.0
    %2560 = vmatprep.subr.mxu0 0.0
    %2561 = vmatpush1.msra.mxu0 0.0
    %2562 = vmatprep.subr.mxu0 0.0
    %2563 = vmatpush1.msra.mxu0 0.0
    %2564 = vmatprep.subr.mxu0 0.0
    %2565 = vmatpush1.msra.mxu0 0.0
    %2566 = vmatprep.subr.mxu0 0.0
    %2567 = vmatpush1.msra.mxu0 0.0
    %2568 = vmatprep.subr.mxu0 0.0
    %2569 = vmatpush1.msra.mxu0 0.0
    %2570 = vmatprep.subr.mxu0 0.0
    %2571 = vmatpush1.msra.mxu0 0.0
    %2572 = vmatprep.subr.mxu0 0.0
    %2573 = vmatpush1.msra.mxu0 0.0
    %2574 = vmatprep.mubr.f32.mxu0 0.0
    %2575 = vmatmul.mubr.f32.gmra.mrb[0].mxu0 %v2082
    %v2576 = vpop.f32.mrb[0].mxu0
    %v2577 = vadd.f32 0.0, %v2576
    %v2578 = vpop.f32.mrb[0].mxu0
    %2579 = vdwg.mxu0
    %2580 = vmatprep.subr.mxu0 0.0
    %2581 = vmatpush1.msra.mxu0 %v225
    %2582 = vmatprep.subr.mxu0 0.0
    %2583 = vmatpush1.msra.mxu0 %v226
    %2584 = vmatprep.subr.mxu0 0.0
    %2585 = vmatpush1.msra.mxu0 %v227
    %2586 = vmatprep.subr.mxu0 0.0
    %2587 = vmatpush1.msra.mxu0 %v228
    %2588 = vmatprep.subr.mxu0 0.0
    %2589 = vmatpush1.msra.mxu0 0.0
    %2590 = vmatprep.subr.mxu0 0.0
    %2591 = vmatpush1.msra.mxu0 0.0
    %2592 = vmatprep.subr.mxu0 0.0
    %2593 = vmatpush1.msra.mxu0 0.0
    %2594 = vmatprep.subr.mxu0 0.0
    %2595 = vmatpush1.msra.mxu0 0.0
    %2596 = vmatprep.subr.mxu0 0.0
    %2597 = vmatpush1.msra.mxu0 0.0
    %2598 = vmatprep.subr.mxu0 0.0
    %2599 = vmatpush1.msra.mxu0 0.0
    %2600 = vmatprep.subr.mxu0 0.0
    %2601 = vmatpush1.msra.mxu0 0.0
    %2602 = vmatprep.subr.mxu0 0.0
    %2603 = vmatpush1.msra.mxu0 0.0
    %2604 = vmatprep.subr.mxu0 0.0
    %2605 = vmatpush1.msra.mxu0 0.0
    %2606 = vmatprep.subr.mxu0 0.0
    %2607 = vmatpush1.msra.mxu0 0.0
    %2608 = vmatprep.subr.mxu0 0.0
    %2609 = vmatpush1.msra.mxu0 0.0
    %2610 = vmatprep.subr.mxu0 0.0
    %2611 = vmatpush1.msra.mxu0 0.0
    %2612 = vmatprep.subr.mxu0 0.0
    %2613 = vmatpush1.msra.mxu0 0.0
    %2614 = vmatprep.subr.mxu0 0.0
    %2615 = vmatpush1.msra.mxu0 0.0
    %2616 = vmatprep.subr.mxu0 0.0
    %2617 = vmatpush1.msra.mxu0 0.0
    %2618 = vmatprep.subr.mxu0 0.0
    %2619 = vmatpush1.msra.mxu0 0.0
    %2620 = vmatprep.subr.mxu0 0.0
    %2621 = vmatpush1.msra.mxu0 0.0
    %2622 = vmatprep.subr.mxu0 0.0
    %2623 = vmatpush1.msra.mxu0 0.0
    %2624 = vmatprep.subr.mxu0 0.0
    %2625 = vmatpush1.msra.mxu0 0.0
    %2626 = vmatprep.subr.mxu0 0.0
    %2627 = vmatpush1.msra.mxu0 0.0
    %2628 = vmatprep.subr.mxu0 0.0
    %2629 = vmatpush1.msra.mxu0 0.0
    %2630 = vmatprep.subr.mxu0 0.0
    %2631 = vmatpush1.msra.mxu0 0.0
    %2632 = vmatprep.subr.mxu0 0.0
    %2633 = vmatpush1.msra.mxu0 0.0
    %2634 = vmatprep.subr.mxu0 0.0
    %2635 = vmatpush1.msra.mxu0 0.0
    %2636 = vmatprep.subr.mxu0 0.0
    %2637 = vmatpush1.msra.mxu0 0.0
    %2638 = vmatprep.subr.mxu0 0.0
    %2639 = vmatpush1.msra.mxu0 0.0
    %2640 = vmatprep.subr.mxu0 0.0
    %2641 = vmatpush1.msra.mxu0 0.0
    %2642 = vmatprep.subr.mxu0 0.0
    %2643 = vmatpush1.msra.mxu0 0.0
    %2644 = vmatprep.mubr.f32.mxu0 0.0
    %2645 = vmatmul.mubr.f32.gmra.mrb[0].mxu0 %v2155
    %v2646 = vpop.f32.mrb[0].mxu0
    %v2647 = vadd.f32 %v2577, %v2646
    %v2648 = vpop.f32.mrb[0].mxu0
    %2649 = vdwg.mxu0
    %v2650 = vadd.f32 %v2647, %v277
    %v2651 = vxor.u32 %v2227, 2147483648
    %v2652 = vmul.f32 %v2651, 1.442695
    %v2653 = vpow.pop %v2652
    %v2654 = vadd.f32 %v2653, 1.0
    %v2655 = vrcp.pop %v2654
    %v2656 = vmul.f32 1.0, %v2655
    %v2657 = vxor.u32 %v2368, 2147483648
    %v2658 = vmul.f32 %v2657, 1.442695
    %v2659 = vpow.pop %v2658
    %v2660 = vadd.f32 %v2659, 1.0
    %v2661 = vrcp.pop %v2660
    %v2662 = vmul.f32 1.0, %v2661
    %v2663 = vtanh.pop %v2509
    %v2664 = vxor.u32 %v2650, 2147483648
    %v2665 = vmul.f32 %v2664, 1.442695
    %v2666 = vpow.pop %v2665
    %v2667 = vadd.f32 %v2666, 1.0
    %v2668 = vrcp.pop %v2667
    %v2669 = vmul.f32 1.0, %v2668
    %v2670 = vmul.f32 %v2662, %v1482
    %v2671 = vmul.f32 %v2656, %v2663
    %v2672 = vadd.f32 %v2670, %v2671
    %v2673 = vtanh.pop %v2672
    %v2674 = vmul.f32 %v2669, %v2673
    %v2675 = vld [vmem:[%s0 + $0x2] sm:$0x1]
    %v2676 = vld [vmem:[%s0 + $0xa] sm:$0x1]
    %2677 = vmatprep.subr.mxu0 0.0
    %2678 = vmatpush1.msra.mxu0 %v160
    %2679 = vmatprep.subr.mxu0 0.0
    %2680 = vmatpush1.msra.mxu0 %v161
    %2681 = vmatprep.subr.mxu0 0.0
    %2682 = vmatpush1.msra.mxu0 %v162
    %2683 = vmatprep.subr.mxu0 0.0
    %2684 = vmatpush1.msra.mxu0 %v163
    %2685 = vmatprep.subr.mxu0 0.0
    %2686 = vmatpush1.msra.mxu0 0.0
    %2687 = vmatprep.subr.mxu0 0.0
    %2688 = vmatpush1.msra.mxu0 0.0
    %2689 = vmatprep.subr.mxu0 0.0
    %2690 = vmatpush1.msra.mxu0 0.0
    %2691 = vmatprep.subr.mxu0 0.0
    %2692 = vmatpush1.msra.mxu0 0.0
    %2693 = vmatprep.subr.mxu0 0.0
    %2694 = vmatpush1.msra.mxu0 0.0
    %2695 = vmatprep.subr.mxu0 0.0
    %2696 = vmatpush1.msra.mxu0 0.0
    %2697 = vmatprep.subr.mxu0 0.0
    %2698 = vmatpush1.msra.mxu0 0.0
    %2699 = vmatprep.subr.mxu0 0.0
    %2700 = vmatpush1.msra.mxu0 0.0
    %2701 = vmatprep.subr.mxu0 0.0
    %2702 = vmatpush1.msra.mxu0 0.0
    %2703 = vmatprep.subr.mxu0 0.0
    %2704 = vmatpush1.msra.mxu0 0.0
    %2705 = vmatprep.subr.mxu0 0.0
    %2706 = vmatpush1.msra.mxu0 0.0
    %2707 = vmatprep.subr.mxu0 0.0
    %2708 = vmatpush1.msra.mxu0 0.0
    %2709 = vmatprep.subr.mxu0 0.0
    %2710 = vmatpush1.msra.mxu0 0.0
    %2711 = vmatprep.subr.mxu0 0.0
    %2712 = vmatpush1.msra.mxu0 0.0
    %2713 = vmatprep.subr.mxu0 0.0
    %2714 = vmatpush1.msra.mxu0 0.0
    %2715 = vmatprep.subr.mxu0 0.0
    %2716 = vmatpush1.msra.mxu0 0.0
    %2717 = vmatprep.subr.mxu0 0.0
    %2718 = vmatpush1.msra.mxu0 0.0
    %2719 = vmatprep.subr.mxu0 0.0
    %2720 = vmatpush1.msra.mxu0 0.0
    %2721 = vmatprep.subr.mxu0 0.0
    %2722 = vmatpush1.msra.mxu0 0.0
    %2723 = vmatprep.subr.mxu0 0.0
    %2724 = vmatpush1.msra.mxu0 0.0
    %2725 = vmatprep.subr.mxu0 0.0
    %2726 = vmatpush1.msra.mxu0 0.0
    %2727 = vmatprep.subr.mxu0 0.0
    %2728 = vmatpush1.msra.mxu0 0.0
    %2729 = vmatprep.subr.mxu0 0.0
    %2730 = vmatpush1.msra.mxu0 0.0
    %2731 = vmatprep.subr.mxu0 0.0
    %2732 = vmatpush1.msra.mxu0 0.0
    %2733 = vmatprep.subr.mxu0 0.0
    %2734 = vmatpush1.msra.mxu0 0.0
    %2735 = vmatprep.subr.mxu0 0.0
    %2736 = vmatpush1.msra.mxu0 0.0
    %2737 = vmatprep.subr.mxu0 0.0
    %2738 = vmatpush1.msra.mxu0 0.0
    %2739 = vmatprep.subr.mxu0 0.0
    %2740 = vmatpush1.msra.mxu0 0.0
    %2741 = vmatprep.mubr.f32.mxu0 0.0
    %2742 = vmatmul.mubr.f32.gmra.mrb[0].mxu0 %v2155
    %v2743 = vpop.f32.mrb[0].mxu0
    %v2744 = vadd.f32 0.0, %v2743
    %v2745 = vpop.f32.mrb[0].mxu0
    %2746 = vdwg.mxu0
    %v2749 = vrot.slane %v2676, 7
    %v2750 = vsel %vm358, %v2749, %v2675
    %v2751 = vsel %vm360, %v2750, 0
    %2753 = vmatprep.subr.mxu0 0.0
    %2754 = vmatpush1.msra.mxu0 %v365
    %2755 = vmatprep.subr.mxu0 0.0
    %2756 = vmatpush1.msra.mxu0 0.0
    %2757 = vmatprep.subr.mxu0 0.0
    %2758 = vmatpush1.msra.mxu0 0.0
    %2759 = vmatprep.subr.mxu0 0.0
    %2760 = vmatpush1.msra.mxu0 0.0
    %2761 = vmatprep.subr.mxu0 0.0
    %2762 = vmatpush1.msra.mxu0 0.0
    %2763 = vmatprep.subr.mxu0 0.0
    %2764 = vmatpush1.msra.mxu0 0.0
    %2765 = vmatprep.subr.mxu0 0.0
    %2766 = vmatpush1.msra.mxu0 0.0
    %2767 = vmatprep.subr.mxu0 0.0
    %2768 = vmatpush1.msra.mxu0 0.0
    %2769 = vmatprep.subr.mxu0 0.0
    %2770 = vmatpush1.msra.mxu0 0.0
    %2771 = vmatprep.subr.mxu0 0.0
    %2772 = vmatpush1.msra.mxu0 0.0
    %2773 = vmatprep.subr.mxu0 0.0
    %2774 = vmatpush1.msra.mxu0 0.0
    %2775 = vmatprep.subr.mxu0 0.0
    %2776 = vmatpush1.msra.mxu0 0.0
    %2777 = vmatprep.subr.mxu0 0.0
    %2778 = vmatpush1.msra.mxu0 0.0
    %2779 = vmatprep.subr.mxu0 0.0
    %2780 = vmatpush1.msra.mxu0 0.0
    %2781 = vmatprep.subr.mxu0 0.0
    %2782 = vmatpush1.msra.mxu0 0.0
    %2783 = vmatprep.subr.mxu0 0.0
    %2784 = vmatpush1.msra.mxu0 0.0
    %2785 = vmatprep.subr.mxu0 0.0
    %2786 = vmatpush1.msra.mxu0 0.0
    %2787 = vmatprep.subr.mxu0 0.0
    %2788 = vmatpush1.msra.mxu0 0.0
    %2789 = vmatprep.subr.mxu0 0.0
    %2790 = vmatpush1.msra.mxu0 0.0
    %2791 = vmatprep.subr.mxu0 0.0
    %2792 = vmatpush1.msra.mxu0 0.0
    %2793 = vmatprep.subr.mxu0 0.0
    %2794 = vmatpush1.msra.mxu0 0.0
    %2795 = vmatprep.subr.mxu0 0.0
    %2796 = vmatpush1.msra.mxu0 0.0
    %2797 = vmatprep.subr.mxu0 0.0
    %2798 = vmatpush1.msra.mxu0 0.0
    %2799 = vmatprep.subr.mxu0 0.0
    %2800 = vmatpush1.msra.mxu0 0.0
    %2801 = vmatprep.subr.mxu0 0.0
    %2802 = vmatpush1.msra.mxu0 0.0
    %2803 = vmatprep.subr.mxu0 0.0
    %2804 = vmatpush1.msra.mxu0 0.0
    %2805 = vmatprep.subr.mxu0 0.0
    %2806 = vmatpush1.msra.mxu0 0.0
    %2807 = vmatprep.subr.mxu0 0.0
    %2808 = vmatpush1.msra.mxu0 0.0
    %2809 = vmatprep.subr.mxu0 0.0
    %2810 = vmatpush1.msra.mxu0 0.0
    %2811 = vmatprep.subr.mxu0 0.0
    %2812 = vmatpush1.msra.mxu0 0.0
    %2813 = vmatprep.subr.mxu0 0.0
    %2814 = vmatpush1.msra.mxu0 0.0
    %2815 = vmatprep.subr.mxu0 0.0
    %2816 = vmatpush1.msra.mxu0 0.0
    %2817 = vmatprep.mubr.f32.mxu0 0.0
    %2818 = vmatmul.mubr.f32.gmra.mrb[0].mxu0 %v2751
    %v2819 = vpop.f32.mrb[0].mxu0
    %v2820 = vadd.f32 %v2744, %v2819
    %v2821 = vpop.f32.mrb[0].mxu0
    %2822 = vdwg.mxu0
    %v2823 = vadd.f32 %v2820, %v184
    %2824 = vmatprep.subr.mxu0 0.0
    %2825 = vmatpush1.msra.mxu0 %v165
    %2826 = vmatprep.subr.mxu0 0.0
    %2827 = vmatpush1.msra.mxu0 %v166
    %2828 = vmatprep.subr.mxu0 0.0
    %2829 = vmatpush1.msra.mxu0 %v167
    %2830 = vmatprep.subr.mxu0 0.0
    %2831 = vmatpush1.msra.mxu0 %v168
    %2832 = vmatprep.subr.mxu0 0.0
    %2833 = vmatpush1.msra.mxu0 0.0
    %2834 = vmatprep.subr.mxu0 0.0
    %2835 = vmatpush1.msra.mxu0 0.0
    %2836 = vmatprep.subr.mxu0 0.0
    %2837 = vmatpush1.msra.mxu0 0.0
    %2838 = vmatprep.subr.mxu0 0.0
    %2839 = vmatpush1.msra.mxu0 0.0
    %2840 = vmatprep.subr.mxu0 0.0
    %2841 = vmatpush1.msra.mxu0 0.0
    %2842 = vmatprep.subr.mxu0 0.0
    %2843 = vmatpush1.msra.mxu0 0.0
    %2844 = vmatprep.subr.mxu0 0.0
    %2845 = vmatpush1.msra.mxu0 0.0
    %2846 = vmatprep.subr.mxu0 0.0
    %2847 = vmatpush1.msra.mxu0 0.0
    %2848 = vmatprep.subr.mxu0 0.0
    %2849 = vmatpush1.msra.mxu0 0.0
    %2850 = vmatprep.subr.mxu0 0.0
    %2851 = vmatpush1.msra.mxu0 0.0
    %2852 = vmatprep.subr.mxu0 0.0
    %2853 = vmatpush1.msra.mxu0 0.0
    %2854 = vmatprep.subr.mxu0 0.0
    %2855 = vmatpush1.msra.mxu0 0.0
    %2856 = vmatprep.subr.mxu0 0.0
    %2857 = vmatpush1.msra.mxu0 0.0
    %2858 = vmatprep.subr.mxu0 0.0
    %2859 = vmatpush1.msra.mxu0 0.0
    %2860 = vmatprep.subr.mxu0 0.0
    %2861 = vmatpush1.msra.mxu0 0.0
    %2862 = vmatprep.subr.mxu0 0.0
    %2863 = vmatpush1.msra.mxu0 0.0
    %2864 = vmatprep.subr.mxu0 0.0
    %2865 = vmatpush1.msra.mxu0 0.0
    %2866 = vmatprep.subr.mxu0 0.0
    %2867 = vmatpush1.msra.mxu0 0.0
    %2868 = vmatprep.subr.mxu0 0.0
    %2869 = vmatpush1.msra.mxu0 0.0
    %2870 = vmatprep.subr.mxu0 0.0
    %2871 = vmatpush1.msra.mxu0 0.0
    %2872 = vmatprep.subr.mxu0 0.0
    %2873 = vmatpush1.msra.mxu0 0.0
    %2874 = vmatprep.subr.mxu0 0.0
    %2875 = vmatpush1.msra.mxu0 0.0
    %2876 = vmatprep.subr.mxu0 0.0
    %2877 = vmatpush1.msra.mxu0 0.0
    %2878 = vmatprep.subr.mxu0 0.0
    %2879 = vmatpush1.msra.mxu0 0.0
    %2880 = vmatprep.subr.mxu0 0.0
    %2881 = vmatpush1.msra.mxu0 0.0
    %2882 = vmatprep.subr.mxu0 0.0
    %2883 = vmatpush1.msra.mxu0 0.0
    %2884 = vmatprep.subr.mxu0 0.0
    %2885 = vmatpush1.msra.mxu0 0.0
    %2886 = vmatprep.subr.mxu0 0.0
    %2887 = vmatpush1.msra.mxu0 0.0
    %2888 = vmatprep.mubr.f32.mxu0 0.0
    %2889 = vmatmul.mubr.f32.gmra.mrb[0].mxu0 %v2155
    %v2890 = vpop.f32.mrb[0].mxu0
    %v2891 = vadd.f32 0.0, %v2890
    %v2892 = vpop.f32.mrb[0].mxu0
    %2893 = vdwg.mxu0
    %2894 = vmatprep.subr.mxu0 0.0
    %2895 = vmatpush1.msra.mxu0 %v509
    %2896 = vmatprep.subr.mxu0 0.0
    %2897 = vmatpush1.msra.mxu0 0.0
    %2898 = vmatprep.subr.mxu0 0.0
    %2899 = vmatpush1.msra.mxu0 0.0
    %2900 = vmatprep.subr.mxu0 0.0
    %2901 = vmatpush1.msra.mxu0 0.0
    %2902 = vmatprep.subr.mxu0 0.0
    %2903 = vmatpush1.msra.mxu0 0.0
    %2904 = vmatprep.subr.mxu0 0.0
    %2905 = vmatpush1.msra.mxu0 0.0
    %2906 = vmatprep.subr.mxu0 0.0
    %2907 = vmatpush1.msra.mxu0 0.0
    %2908 = vmatprep.subr.mxu0 0.0
    %2909 = vmatpush1.msra.mxu0 0.0
    %2910 = vmatprep.subr.mxu0 0.0
    %2911 = vmatpush1.msra.mxu0 0.0
    %2912 = vmatprep.subr.mxu0 0.0
    %2913 = vmatpush1.msra.mxu0 0.0
    %2914 = vmatprep.subr.mxu0 0.0
    %2915 = vmatpush1.msra.mxu0 0.0
    %2916 = vmatprep.subr.mxu0 0.0
    %2917 = vmatpush1.msra.mxu0 0.0
    %2918 = vmatprep.subr.mxu0 0.0
    %2919 = vmatpush1.msra.mxu0 0.0
    %2920 = vmatprep.subr.mxu0 0.0
    %2921 = vmatpush1.msra.mxu0 0.0
    %2922 = vmatprep.subr.mxu0 0.0
    %2923 = vmatpush1.msra.mxu0 0.0
    %2924 = vmatprep.subr.mxu0 0.0
    %2925 = vmatpush1.msra.mxu0 0.0
    %2926 = vmatprep.subr.mxu0 0.0
    %2927 = vmatpush1.msra.mxu0 0.0
    %2928 = vmatprep.subr.mxu0 0.0
    %2929 = vmatpush1.msra.mxu0 0.0
    %2930 = vmatprep.subr.mxu0 0.0
    %2931 = vmatpush1.msra.mxu0 0.0
    %2932 = vmatprep.subr.mxu0 0.0
    %2933 = vmatpush1.msra.mxu0 0.0
    %2934 = vmatprep.subr.mxu0 0.0
    %2935 = vmatpush1.msra.mxu0 0.0
    %2936 = vmatprep.subr.mxu0 0.0
    %2937 = vmatpush1.msra.mxu0 0.0
    %2938 = vmatprep.subr.mxu0 0.0
    %2939 = vmatpush1.msra.mxu0 0.0
    %2940 = vmatprep.subr.mxu0 0.0
    %2941 = vmatpush1.msra.mxu0 0.0
    %2942 = vmatprep.subr.mxu0 0.0
    %2943 = vmatpush1.msra.mxu0 0.0
    %2944 = vmatprep.subr.mxu0 0.0
    %2945 = vmatpush1.msra.mxu0 0.0
    %2946 = vmatprep.subr.mxu0 0.0
    %2947 = vmatpush1.msra.mxu0 0.0
    %2948 = vmatprep.subr.mxu0 0.0
    %2949 = vmatpush1.msra.mxu0 0.0
    %2950 = vmatprep.subr.mxu0 0.0
    %2951 = vmatpush1.msra.mxu0 0.0
    %2952 = vmatprep.subr.mxu0 0.0
    %2953 = vmatpush1.msra.mxu0 0.0
    %2954 = vmatprep.subr.mxu0 0.0
    %2955 = vmatpush1.msra.mxu0 0.0
    %2956 = vmatprep.subr.mxu0 0.0
    %2957 = vmatpush1.msra.mxu0 0.0
    %2958 = vmatprep.mubr.f32.mxu0 0.0
    %2959 = vmatmul.mubr.f32.gmra.mrb[0].mxu0 %v2751
    %v2960 = vpop.f32.mrb[0].mxu0
    %v2961 = vadd.f32 %v2891, %v2960
    %v2962 = vpop.f32.mrb[0].mxu0
    %2963 = vdwg.mxu0
    %v2964 = vadd.f32 %v2961, %v192
    %2965 = vmatprep.subr.mxu0 0.0
    %2966 = vmatpush1.msra.mxu0 %v170
    %2967 = vmatprep.subr.mxu0 0.0
    %2968 = vmatpush1.msra.mxu0 %v171
    %2969 = vmatprep.subr.mxu0 0.0
    %2970 = vmatpush1.msra.mxu0 %v172
    %2971 = vmatprep.subr.mxu0 0.0
    %2972 = vmatpush1.msra.mxu0 %v173
    %2973 = vmatprep.subr.mxu0 0.0
    %2974 = vmatpush1.msra.mxu0 0.0
    %2975 = vmatprep.subr.mxu0 0.0
    %2976 = vmatpush1.msra.mxu0 0.0
    %2977 = vmatprep.subr.mxu0 0.0
    %2978 = vmatpush1.msra.mxu0 0.0
    %2979 = vmatprep.subr.mxu0 0.0
    %2980 = vmatpush1.msra.mxu0 0.0
    %2981 = vmatprep.subr.mxu0 0.0
    %2982 = vmatpush1.msra.mxu0 0.0
    %2983 = vmatprep.subr.mxu0 0.0
    %2984 = vmatpush1.msra.mxu0 0.0
    %2985 = vmatprep.subr.mxu0 0.0
    %2986 = vmatpush1.msra.mxu0 0.0
    %2987 = vmatprep.subr.mxu0 0.0
    %2988 = vmatpush1.msra.mxu0 0.0
    %2989 = vmatprep.subr.mxu0 0.0
    %2990 = vmatpush1.msra.mxu0 0.0
    %2991 = vmatprep.subr.mxu0 0.0
    %2992 = vmatpush1.msra.mxu0 0.0
    %2993 = vmatprep.subr.mxu0 0.0
    %2994 = vmatpush1.msra.mxu0 0.0
    %2995 = vmatprep.subr.mxu0 0.0
    %2996 = vmatpush1.msra.mxu0 0.0
    %2997 = vmatprep.subr.mxu0 0.0
    %2998 = vmatpush1.msra.mxu0 0.0
    %2999 = vmatprep.subr.mxu0 0.0
    %3000 = vmatpush1.msra.mxu0 0.0
    %3001 = vmatprep.subr.mxu0 0.0
    %3002 = vmatpush1.msra.mxu0 0.0
    %3003 = vmatprep.subr.mxu0 0.0
    %3004 = vmatpush1.msra.mxu0 0.0
    %3005 = vmatprep.subr.mxu0 0.0
    %3006 = vmatpush1.msra.mxu0 0.0
    %3007 = vmatprep.subr.mxu0 0.0
    %3008 = vmatpush1.msra.mxu0 0.0
    %3009 = vmatprep.subr.mxu0 0.0
    %3010 = vmatpush1.msra.mxu0 0.0
    %3011 = vmatprep.subr.mxu0 0.0
    %3012 = vmatpush1.msra.mxu0 0.0
    %3013 = vmatprep.subr.mxu0 0.0
    %3014 = vmatpush1.msra.mxu0 0.0
    %3015 = vmatprep.subr.mxu0 0.0
    %3016 = vmatpush1.msra.mxu0 0.0
    %3017 = vmatprep.subr.mxu0 0.0
    %3018 = vmatpush1.msra.mxu0 0.0
    %3019 = vmatprep.subr.mxu0 0.0
    %3020 = vmatpush1.msra.mxu0 0.0
    %3021 = vmatprep.subr.mxu0 0.0
    %3022 = vmatpush1.msra.mxu0 0.0
    %3023 = vmatprep.subr.mxu0 0.0
    %3024 = vmatpush1.msra.mxu0 0.0
    %3025 = vmatprep.subr.mxu0 0.0
    %3026 = vmatpush1.msra.mxu0 0.0
    %3027 = vmatprep.subr.mxu0 0.0
    %3028 = vmatpush1.msra.mxu0 0.0
    %3029 = vmatprep.mubr.f32.mxu0 0.0
    %3030 = vmatmul.mubr.f32.gmra.mrb[0].mxu0 %v2155
    %v3031 = vpop.f32.mrb[0].mxu0
    %v3032 = vadd.f32 0.0, %v3031
    %v3033 = vpop.f32.mrb[0].mxu0
    %3034 = vdwg.mxu0
    %3035 = vmatprep.subr.mxu0 0.0
    %3036 = vmatpush1.msra.mxu0 %v653
    %3037 = vmatprep.subr.mxu0 0.0
    %3038 = vmatpush1.msra.mxu0 0.0
    %3039 = vmatprep.subr.mxu0 0.0
    %3040 = vmatpush1.msra.mxu0 0.0
    %3041 = vmatprep.subr.mxu0 0.0
    %3042 = vmatpush1.msra.mxu0 0.0
    %3043 = vmatprep.subr.mxu0 0.0
    %3044 = vmatpush1.msra.mxu0 0.0
    %3045 = vmatprep.subr.mxu0 0.0
    %3046 = vmatpush1.msra.mxu0 0.0
    %3047 = vmatprep.subr.mxu0 0.0
    %3048 = vmatpush1.msra.mxu0 0.0
    %3049 = vmatprep.subr.mxu0 0.0
    %3050 = vmatpush1.msra.mxu0 0.0
    %3051 = vmatprep.subr.mxu0 0.0
    %3052 = vmatpush1.msra.mxu0 0.0
    %3053 = vmatprep.subr.mxu0 0.0
    %3054 = vmatpush1.msra.mxu0 0.0
    %3055 = vmatprep.subr.mxu0 0.0
    %3056 = vmatpush1.msra.mxu0 0.0
    %3057 = vmatprep.subr.mxu0 0.0
    %3058 = vmatpush1.msra.mxu0 0.0
    %3059 = vmatprep.subr.mxu0 0.0
    %3060 = vmatpush1.msra.mxu0 0.0
    %3061 = vmatprep.subr.mxu0 0.0
    %3062 = vmatpush1.msra.mxu0 0.0
    %3063 = vmatprep.subr.mxu0 0.0
    %3064 = vmatpush1.msra.mxu0 0.0
    %3065 = vmatprep.subr.mxu0 0.0
    %3066 = vmatpush1.msra.mxu0 0.0
    %3067 = vmatprep.subr.mxu0 0.0
    %3068 = vmatpush1.msra.mxu0 0.0
    %3069 = vmatprep.subr.mxu0 0.0
    %3070 = vmatpush1.msra.mxu0 0.0
    %3071 = vmatprep.subr.mxu0 0.0
    %3072 = vmatpush1.msra.mxu0 0.0
    %3073 = vmatprep.subr.mxu0 0.0
    %3074 = vmatpush1.msra.mxu0 0.0
    %3075 = vmatprep.subr.mxu0 0.0
    %3076 = vmatpush1.msra.mxu0 0.0
    %3077 = vmatprep.subr.mxu0 0.0
    %3078 = vmatpush1.msra.mxu0 0.0
    %3079 = vmatprep.subr.mxu0 0.0
    %3080 = vmatpush1.msra.mxu0 0.0
    %3081 = vmatprep.subr.mxu0 0.0
    %3082 = vmatpush1.msra.mxu0 0.0
    %3083 = vmatprep.subr.mxu0 0.0
    %3084 = vmatpush1.msra.mxu0 0.0
    %3085 = vmatprep.subr.mxu0 0.0
    %3086 = vmatpush1.msra.mxu0 0.0
    %3087 = vmatprep.subr.mxu0 0.0
    %3088 = vmatpush1.msra.mxu0 0.0
    %3089 = vmatprep.subr.mxu0 0.0
    %3090 = vmatpush1.msra.mxu0 0.0
    %3091 = vmatprep.subr.mxu0 0.0
    %3092 = vmatpush1.msra.mxu0 0.0
    %3093 = vmatprep.subr.mxu0 0.0
    %3094 = vmatpush1.msra.mxu0 0.0
    %3095 = vmatprep.subr.mxu0 0.0
    %3096 = vmatpush1.msra.mxu0 0.0
    %3097 = vmatprep.subr.mxu0 0.0
    %3098 = vmatpush1.msra.mxu0 0.0
    %3099 = vmatprep.mubr.f32.mxu0 0.0
    %3100 = vmatmul.mubr.f32.gmra.mrb[0].mxu0 %v2751
    %v3101 = vpop.f32.mrb[0].mxu0
    %v3102 = vadd.f32 %v3032, %v3101
    %v3103 = vpop.f32.mrb[0].mxu0
    %3104 = vdwg.mxu0
    %v3105 = vadd.f32 %v3102, %v200
    %3106 = vmatprep.subr.mxu0 0.0
    %3107 = vmatpush1.msra.mxu0 %v175
    %3108 = vmatprep.subr.mxu0 0.0
    %3109 = vmatpush1.msra.mxu0 %v176
    %3110 = vmatprep.subr.mxu0 0.0
    %3111 = vmatpush1.msra.mxu0 %v177
    %3112 = vmatprep.subr.mxu0 0.0
    %3113 = vmatpush1.msra.mxu0 %v178
    %3114 = vmatprep.subr.mxu0 0.0
    %3115 = vmatpush1.msra.mxu0 0.0
    %3116 = vmatprep.subr.mxu0 0.0
    %3117 = vmatpush1.msra.mxu0 0.0
    %3118 = vmatprep.subr.mxu0 0.0
    %3119 = vmatpush1.msra.mxu0 0.0
    %3120 = vmatprep.subr.mxu0 0.0
    %3121 = vmatpush1.msra.mxu0 0.0
    %3122 = vmatprep.subr.mxu0 0.0
    %3123 = vmatpush1.msra.mxu0 0.0
    %3124 = vmatprep.subr.mxu0 0.0
    %3125 = vmatpush1.msra.mxu0 0.0
    %3126 = vmatprep.subr.mxu0 0.0
    %3127 = vmatpush1.msra.mxu0 0.0
    %3128 = vmatprep.subr.mxu0 0.0
    %3129 = vmatpush1.msra.mxu0 0.0
    %3130 = vmatprep.subr.mxu0 0.0
    %3131 = vmatpush1.msra.mxu0 0.0
    %3132 = vmatprep.subr.mxu0 0.0
    %3133 = vmatpush1.msra.mxu0 0.0
    %3134 = vmatprep.subr.mxu0 0.0
    %3135 = vmatpush1.msra.mxu0 0.0
    %3136 = vmatprep.subr.mxu0 0.0
    %3137 = vmatpush1.msra.mxu0 0.0
    %3138 = vmatprep.subr.mxu0 0.0
    %3139 = vmatpush1.msra.mxu0 0.0
    %3140 = vmatprep.subr.mxu0 0.0
    %3141 = vmatpush1.msra.mxu0 0.0
    %3142 = vmatprep.subr.mxu0 0.0
    %3143 = vmatpush1.msra.mxu0 0.0
    %3144 = vmatprep.subr.mxu0 0.0
    %3145 = vmatpush1.msra.mxu0 0.0
    %3146 = vmatprep.subr.mxu0 0.0
    %3147 = vmatpush1.msra.mxu0 0.0
    %3148 = vmatprep.subr.mxu0 0.0
    %3149 = vmatpush1.msra.mxu0 0.0
    %3150 = vmatprep.subr.mxu0 0.0
    %3151 = vmatpush1.msra.mxu0 0.0
    %3152 = vmatprep.subr.mxu0 0.0
    %3153 = vmatpush1.msra.mxu0 0.0
    %3154 = vmatprep.subr.mxu0 0.0
    %3155 = vmatpush1.msra.mxu0 0.0
    %3156 = vmatprep.subr.mxu0 0.0
    %3157 = vmatpush1.msra.mxu0 0.0
    %3158 = vmatprep.subr.mxu0 0.0
    %3159 = vmatpush1.msra.mxu0 0.0
    %3160 = vmatprep.subr.mxu0 0.0
    %3161 = vmatpush1.msra.mxu0 0.0
    %3162 = vmatprep.subr.mxu0 0.0
    %3163 = vmatpush1.msra.mxu0 0.0
    %3164 = vmatprep.subr.mxu0 0.0
    %3165 = vmatpush1.msra.mxu0 0.0
    %3166 = vmatprep.subr.mxu0 0.0
    %3167 = vmatpush1.msra.mxu0 0.0
    %3168 = vmatprep.subr.mxu0 0.0
    %3169 = vmatpush1.msra.mxu0 0.0
    %3170 = vmatprep.mubr.f32.mxu0 0.0
    %3171 = vmatmul.mubr.f32.gmra.mrb[0].mxu0 %v2155
    %v3172 = vpop.f32.mrb[0].mxu0
    %v3173 = vadd.f32 0.0, %v3172
    %v3174 = vpop.f32.mrb[0].mxu0
    %3175 = vdwg.mxu0
    %3176 = vmatprep.subr.mxu0 0.0
    %3177 = vmatpush1.msra.mxu0 %v797
    %3178 = vmatprep.subr.mxu0 0.0
    %3179 = vmatpush1.msra.mxu0 0.0
    %3180 = vmatprep.subr.mxu0 0.0
    %3181 = vmatpush1.msra.mxu0 0.0
    %3182 = vmatprep.subr.mxu0 0.0
    %3183 = vmatpush1.msra.mxu0 0.0
    %3184 = vmatprep.subr.mxu0 0.0
    %3185 = vmatpush1.msra.mxu0 0.0
    %3186 = vmatprep.subr.mxu0 0.0
    %3187 = vmatpush1.msra.mxu0 0.0
    %3188 = vmatprep.subr.mxu0 0.0
    %3189 = vmatpush1.msra.mxu0 0.0
    %3190 = vmatprep.subr.mxu0 0.0
    %3191 = vmatpush1.msra.mxu0 0.0
    %3192 = vmatprep.subr.mxu0 0.0
    %3193 = vmatpush1.msra.mxu0 0.0
    %3194 = vmatprep.subr.mxu0 0.0
    %3195 = vmatpush1.msra.mxu0 0.0
    %3196 = vmatprep.subr.mxu0 0.0
    %3197 = vmatpush1.msra.mxu0 0.0
    %3198 = vmatprep.subr.mxu0 0.0
    %3199 = vmatpush1.msra.mxu0 0.0
    %3200 = vmatprep.subr.mxu0 0.0
    %3201 = vmatpush1.msra.mxu0 0.0
    %3202 = vmatprep.subr.mxu0 0.0
    %3203 = vmatpush1.msra.mxu0 0.0
    %3204 = vmatprep.subr.mxu0 0.0
    %3205 = vmatpush1.msra.mxu0 0.0
    %3206 = vmatprep.subr.mxu0 0.0
    %3207 = vmatpush1.msra.mxu0 0.0
    %3208 = vmatprep.subr.mxu0 0.0
    %3209 = vmatpush1.msra.mxu0 0.0
    %3210 = vmatprep.subr.mxu0 0.0
    %3211 = vmatpush1.msra.mxu0 0.0
    %3212 = vmatprep.subr.mxu0 0.0
    %3213 = vmatpush1.msra.mxu0 0.0
    %3214 = vmatprep.subr.mxu0 0.0
    %3215 = vmatpush1.msra.mxu0 0.0
    %3216 = vmatprep.subr.mxu0 0.0
    %3217 = vmatpush1.msra.mxu0 0.0
    %3218 = vmatprep.subr.mxu0 0.0
    %3219 = vmatpush1.msra.mxu0 0.0
    %3220 = vmatprep.subr.mxu0 0.0
    %3221 = vmatpush1.msra.mxu0 0.0
    %3222 = vmatprep.subr.mxu0 0.0
    %3223 = vmatpush1.msra.mxu0 0.0
    %3224 = vmatprep.subr.mxu0 0.0
    %3225 = vmatpush1.msra.mxu0 0.0
    %3226 = vmatprep.subr.mxu0 0.0
    %3227 = vmatpush1.msra.mxu0 0.0
    %3228 = vmatprep.subr.mxu0 0.0
    %3229 = vmatpush1.msra.mxu0 0.0
    %3230 = vmatprep.subr.mxu0 0.0
    %3231 = vmatpush1.msra.mxu0 0.0
    %3232 = vmatprep.subr.mxu0 0.0
    %3233 = vmatpush1.msra.mxu0 0.0
    %3234 = vmatprep.subr.mxu0 0.0
    %3235 = vmatpush1.msra.mxu0 0.0
    %3236 = vmatprep.subr.mxu0 0.0
    %3237 = vmatpush1.msra.mxu0 0.0
    %3238 = vmatprep.subr.mxu0 0.0
    %3239 = vmatpush1.msra.mxu0 0.0
    %3240 = vmatprep.mubr.f32.mxu0 0.0
    %3241 = vmatmul.mubr.f32.gmra.mrb[0].mxu0 %v2751
    %v3242 = vpop.f32.mrb[0].mxu0
    %v3243 = vadd.f32 %v3173, %v3242
    %v3244 = vpop.f32.mrb[0].mxu0
    %3245 = vdwg.mxu0
    %v3246 = vadd.f32 %v3243, %v208
    %v3247 = vxor.u32 %v2823, 2147483648
    %v3248 = vmul.f32 %v3247, 1.442695
    %v3249 = vpow.pop %v3248
    %v3250 = vadd.f32 %v3249, 1.0
    %v3251 = vrcp.pop %v3250
    %v3252 = vmul.f32 1.0, %v3251
    %v3253 = vxor.u32 %v2964, 2147483648
    %v3254 = vmul.f32 %v3253, 1.442695
    %v3255 = vpow.pop %v3254
    %v3256 = vadd.f32 %v3255, 1.0
    %v3257 = vrcp.pop %v3256
    %v3258 = vmul.f32 1.0, %v3257
    %v3259 = vtanh.pop %v3105
    %v3260 = vxor.u32 %v3246, 2147483648
    %v3261 = vmul.f32 %v3260, 1.442695
    %v3262 = vpow.pop %v3261
    %v3263 = vadd.f32 %v3262, 1.0
    %v3264 = vrcp.pop %v3263
    %v3265 = vmul.f32 1.0, %v3264
    %v3266 = vmul.f32 %v3258, %v2078
    %v3267 = vmul.f32 %v3252, %v3259
    %v3268 = vadd.f32 %v3266, %v3267
    %v3269 = vtanh.pop %v3268
    %v3270 = vmul.f32 %v3265, %v3269
    %v3272 = vsel %vm281, %v2674, 0
    %3274 = vmatprep.subr.mxu0 0.0
    %3275 = vmatpush1.msra.mxu0 %v229
    %3276 = vmatprep.subr.mxu0 0.0
    %3277 = vmatpush1.msra.mxu0 %v230
    %3278 = vmatprep.subr.mxu0 0.0
    %3279 = vmatpush1.msra.mxu0 %v231
    %3280 = vmatprep.subr.mxu0 0.0
    %3281 = vmatpush1.msra.mxu0 %v232
    %3282 = vmatprep.subr.mxu0 0.0
    %3283 = vmatpush1.msra.mxu0 0.0
    %3284 = vmatprep.subr.mxu0 0.0
    %3285 = vmatpush1.msra.mxu0 0.0
    %3286 = vmatprep.subr.mxu0 0.0
    %3287 = vmatpush1.msra.mxu0 0.0
    %3288 = vmatprep.subr.mxu0 0.0
    %3289 = vmatpush1.msra.mxu0 0.0
    %3290 = vmatprep.subr.mxu0 0.0
    %3291 = vmatpush1.msra.mxu0 0.0
    %3292 = vmatprep.subr.mxu0 0.0
    %3293 = vmatpush1.msra.mxu0 0.0
    %3294 = vmatprep.subr.mxu0 0.0
    %3295 = vmatpush1.msra.mxu0 0.0
    %3296 = vmatprep.subr.mxu0 0.0
    %3297 = vmatpush1.msra.mxu0 0.0
    %3298 = vmatprep.subr.mxu0 0.0
    %3299 = vmatpush1.msra.mxu0 0.0
    %3300 = vmatprep.subr.mxu0 0.0
    %3301 = vmatpush1.msra.mxu0 0.0
    %3302 = vmatprep.subr.mxu0 0.0
    %3303 = vmatpush1.msra.mxu0 0.0
    %3304 = vmatprep.subr.mxu0 0.0
    %3305 = vmatpush1.msra.mxu0 0.0
    %3306 = vmatprep.subr.mxu0 0.0
    %3307 = vmatpush1.msra.mxu0 0.0
    %3308 = vmatprep.subr.mxu0 0.0
    %3309 = vmatpush1.msra.mxu0 0.0
    %3310 = vmatprep.subr.mxu0 0.0
    %3311 = vmatpush1.msra.mxu0 0.0
    %3312 = vmatprep.subr.mxu0 0.0
    %3313 = vmatpush1.msra.mxu0 0.0
    %3314 = vmatprep.subr.mxu0 0.0
    %3315 = vmatpush1.msra.mxu0 0.0
    %3316 = vmatprep.subr.mxu0 0.0
    %3317 = vmatpush1.msra.mxu0 0.0
    %3318 = vmatprep.subr.mxu0 0.0
    %3319 = vmatpush1.msra.mxu0 0.0
    %3320 = vmatprep.subr.mxu0 0.0
    %3321 = vmatpush1.msra.mxu0 0.0
    %3322 = vmatprep.subr.mxu0 0.0
    %3323 = vmatpush1.msra.mxu0 0.0
    %3324 = vmatprep.subr.mxu0 0.0
    %3325 = vmatpush1.msra.mxu0 0.0
    %3326 = vmatprep.subr.mxu0 0.0
    %3327 = vmatpush1.msra.mxu0 0.0
    %3328 = vmatprep.subr.mxu0 0.0
    %3329 = vmatpush1.msra.mxu0 0.0
    %3330 = vmatprep.subr.mxu0 0.0
    %3331 = vmatpush1.msra.mxu0 0.0
    %3332 = vmatprep.subr.mxu0 0.0
    %3333 = vmatpush1.msra.mxu0 0.0
    %3334 = vmatprep.subr.mxu0 0.0
    %3335 = vmatpush1.msra.mxu0 0.0
    %3336 = vmatprep.subr.mxu0 0.0
    %3337 = vmatpush1.msra.mxu0 0.0
    %3338 = vmatprep.mubr.f32.mxu0 0.0
    %3339 = vmatmul.mubr.f32.gmra.mrb[0].mxu0 %v3272
    %v3340 = vpop.f32.mrb[0].mxu0
    %v3341 = vadd.f32 0.0, %v3340
    %v3342 = vpop.f32.mrb[0].mxu0
    %3343 = vdwg.mxu0
    %v3345 = vsel %vm281, %v3270, 0
    %3347 = vmatprep.subr.mxu0 0.0
    %3348 = vmatpush1.msra.mxu0 %v210
    %3349 = vmatprep.subr.mxu0 0.0
    %3350 = vmatpush1.msra.mxu0 %v211
    %3351 = vmatprep.subr.mxu0 0.0
    %3352 = vmatpush1.msra.mxu0 %v212
    %3353 = vmatprep.subr.mxu0 0.0
    %3354 = vmatpush1.msra.mxu0 %v213
    %3355 = vmatprep.subr.mxu0 0.0
    %3356 = vmatpush1.msra.mxu0 0.0
    %3357 = vmatprep.subr.mxu0 0.0
    %3358 = vmatpush1.msra.mxu0 0.0
    %3359 = vmatprep.subr.mxu0 0.0
    %3360 = vmatpush1.msra.mxu0 0.0
    %3361 = vmatprep.subr.mxu0 0.0
    %3362 = vmatpush1.msra.mxu0 0.0
    %3363 = vmatprep.subr.mxu0 0.0
    %3364 = vmatpush1.msra.mxu0 0.0
    %3365 = vmatprep.subr.mxu0 0.0
    %3366 = vmatpush1.msra.mxu0 0.0
    %3367 = vmatprep.subr.mxu0 0.0
    %3368 = vmatpush1.msra.mxu0 0.0
    %3369 = vmatprep.subr.mxu0 0.0
    %3370 = vmatpush1.msra.mxu0 0.0
    %3371 = vmatprep.subr.mxu0 0.0
    %3372 = vmatpush1.msra.mxu0 0.0
    %3373 = vmatprep.subr.mxu0 0.0
    %3374 = vmatpush1.msra.mxu0 0.0
    %3375 = vmatprep.subr.mxu0 0.0
    %3376 = vmatpush1.msra.mxu0 0.0
    %3377 = vmatprep.subr.mxu0 0.0
    %3378 = vmatpush1.msra.mxu0 0.0
    %3379 = vmatprep.subr.mxu0 0.0
    %3380 = vmatpush1.msra.mxu0 0.0
    %3381 = vmatprep.subr.mxu0 0.0
    %3382 = vmatpush1.msra.mxu0 0.0
    %3383 = vmatprep.subr.mxu0 0.0
    %3384 = vmatpush1.msra.mxu0 0.0
    %3385 = vmatprep.subr.mxu0 0.0
    %3386 = vmatpush1.msra.mxu0 0.0
    %3387 = vmatprep.subr.mxu0 0.0
    %3388 = vmatpush1.msra.mxu0 0.0
    %3389 = vmatprep.subr.mxu0 0.0
    %3390 = vmatpush1.msra.mxu0 0.0
    %3391 = vmatprep.subr.mxu0 0.0
    %3392 = vmatpush1.msra.mxu0 0.0
    %3393 = vmatprep.subr.mxu0 0.0
    %3394 = vmatpush1.msra.mxu0 0.0
    %3395 = vmatprep.subr.mxu0 0.0
    %3396 = vmatpush1.msra.mxu0 0.0
    %3397 = vmatprep.subr.mxu0 0.0
    %3398 = vmatpush1.msra.mxu0 0.0
    %3399 = vmatprep.subr.mxu0 0.0
    %3400 = vmatpush1.msra.mxu0 0.0
    %3401 = vmatprep.subr.mxu0 0.0
    %3402 = vmatpush1.msra.mxu0 0.0
    %3403 = vmatprep.subr.mxu0 0.0
    %3404 = vmatpush1.msra.mxu0 0.0
    %3405 = vmatprep.subr.mxu0 0.0
    %3406 = vmatpush1.msra.mxu0 0.0
    %3407 = vmatprep.subr.mxu0 0.0
    %3408 = vmatpush1.msra.mxu0 0.0
    %3409 = vmatprep.subr.mxu0 0.0
    %3410 = vmatpush1.msra.mxu0 0.0
    %3411 = vmatprep.mubr.f32.mxu0 0.0
    %3412 = vmatmul.mubr.f32.gmra.mrb[0].mxu0 %v3345
    %v3413 = vpop.f32.mrb[0].mxu0
    %v3414 = vadd.f32 %v3341, %v3413
    %v3415 = vpop.f32.mrb[0].mxu0
    %3416 = vdwg.mxu0
    %v3417 = vadd.f32 %v3414, %v253
    %3418 = vmatprep.subr.mxu0 0.0
    %3419 = vmatpush1.msra.mxu0 %v234
    %3420 = vmatprep.subr.mxu0 0.0
    %3421 = vmatpush1.msra.mxu0 %v235
    %3422 = vmatprep.subr.mxu0 0.0
    %3423 = vmatpush1.msra.mxu0 %v236
    %3424 = vmatprep.subr.mxu0 0.0
    %3425 = vmatpush1.msra.mxu0 %v237
    %3426 = vmatprep.subr.mxu0 0.0
    %3427 = vmatpush1.msra.mxu0 0.0
    %3428 = vmatprep.subr.mxu0 0.0
    %3429 = vmatpush1.msra.mxu0 0.0
    %3430 = vmatprep.subr.mxu0 0.0
    %3431 = vmatpush1.msra.mxu0 0.0
    %3432 = vmatprep.subr.mxu0 0.0
    %3433 = vmatpush1.msra.mxu0 0.0
    %3434 = vmatprep.subr.mxu0 0.0
    %3435 = vmatpush1.msra.mxu0 0.0
    %3436 = vmatprep.subr.mxu0 0.0
    %3437 = vmatpush1.msra.mxu0 0.0
    %3438 = vmatprep.subr.mxu0 0.0
    %3439 = vmatpush1.msra.mxu0 0.0
    %3440 = vmatprep.subr.mxu0 0.0
    %3441 = vmatpush1.msra.mxu0 0.0
    %3442 = vmatprep.subr.mxu0 0.0
    %3443 = vmatpush1.msra.mxu0 0.0
    %3444 = vmatprep.subr.mxu0 0.0
    %3445 = vmatpush1.msra.mxu0 0.0
    %3446 = vmatprep.subr.mxu0 0.0
    %3447 = vmatpush1.msra.mxu0 0.0
    %3448 = vmatprep.subr.mxu0 0.0
    %3449 = vmatpush1.msra.mxu0 0.0
    %3450 = vmatprep.subr.mxu0 0.0
    %3451 = vmatpush1.msra.mxu0 0.0
    %3452 = vmatprep.subr.mxu0 0.0
    %3453 = vmatpush1.msra.mxu0 0.0
    %3454 = vmatprep.subr.mxu0 0.0
    %3455 = vmatpush1.msra.mxu0 0.0
    %3456 = vmatprep.subr.mxu0 0.0
    %3457 = vmatpush1.msra.mxu0 0.0
    %3458 = vmatprep.subr.mxu0 0.0
    %3459 = vmatpush1.msra.mxu0 0.0
    %3460 = vmatprep.subr.mxu0 0.0
    %3461 = vmatpush1.msra.mxu0 0.0
    %3462 = vmatprep.subr.mxu0 0.0
    %3463 = vmatpush1.msra.mxu0 0.0
    %3464 = vmatprep.subr.mxu0 0.0
    %3465 = vmatpush1.msra.mxu0 0.0
    %3466 = vmatprep.subr.mxu0 0.0
    %3467 = vmatpush1.msra.mxu0 0.0
    %3468 = vmatprep.subr.mxu0 0.0
    %3469 = vmatpush1.msra.mxu0 0.0
    %3470 = vmatprep.subr.mxu0 0.0
    %3471 = vmatpush1.msra.mxu0 0.0
    %3472 = vmatprep.subr.mxu0 0.0
    %3473 = vmatpush1.msra.mxu0 0.0
    %3474 = vmatprep.subr.mxu0 0.0
    %3475 = vmatpush1.msra.mxu0 0.0
    %3476 = vmatprep.subr.mxu0 0.0
    %3477 = vmatpush1.msra.mxu0 0.0
    %3478 = vmatprep.subr.mxu0 0.0
    %3479 = vmatpush1.msra.mxu0 0.0
    %3480 = vmatprep.subr.mxu0 0.0
    %3481 = vmatpush1.msra.mxu0 0.0
    %3482 = vmatprep.mubr.f32.mxu0 0.0
    %3483 = vmatmul.mubr.f32.gmra.mrb[0].mxu0 %v3272
    %v3484 = vpop.f32.mrb[0].mxu0
    %v3485 = vadd.f32 0.0, %v3484
    %v3486 = vpop.f32.mrb[0].mxu0
    %3487 = vdwg.mxu0
    %3488 = vmatprep.subr.mxu0 0.0
    %3489 = vmatpush1.msra.mxu0 %v215
    %3490 = vmatprep.subr.mxu0 0.0
    %3491 = vmatpush1.msra.mxu0 %v216
    %3492 = vmatprep.subr.mxu0 0.0
    %3493 = vmatpush1.msra.mxu0 %v217
    %3494 = vmatprep.subr.mxu0 0.0
    %3495 = vmatpush1.msra.mxu0 %v218
    %3496 = vmatprep.subr.mxu0 0.0
    %3497 = vmatpush1.msra.mxu0 0.0
    %3498 = vmatprep.subr.mxu0 0.0
    %3499 = vmatpush1.msra.mxu0 0.0
    %3500 = vmatprep.subr.mxu0 0.0
    %3501 = vmatpush1.msra.mxu0 0.0
    %3502 = vmatprep.subr.mxu0 0.0
    %3503 = vmatpush1.msra.mxu0 0.0
    %3504 = vmatprep.subr.mxu0 0.0
    %3505 = vmatpush1.msra.mxu0 0.0
    %3506 = vmatprep.subr.mxu0 0.0
    %3507 = vmatpush1.msra.mxu0 0.0
    %3508 = vmatprep.subr.mxu0 0.0
    %3509 = vmatpush1.msra.mxu0 0.0
    %3510 = vmatprep.subr.mxu0 0.0
    %3511 = vmatpush1.msra.mxu0 0.0
    %3512 = vmatprep.subr.mxu0 0.0
    %3513 = vmatpush1.msra.mxu0 0.0
    %3514 = vmatprep.subr.mxu0 0.0
    %3515 = vmatpush1.msra.mxu0 0.0
    %3516 = vmatprep.subr.mxu0 0.0
    %3517 = vmatpush1.msra.mxu0 0.0
    %3518 = vmatprep.subr.mxu0 0.0
    %3519 = vmatpush1.msra.mxu0 0.0
    %3520 = vmatprep.subr.mxu0 0.0
    %3521 = vmatpush1.msra.mxu0 0.0
    %3522 = vmatprep.subr.mxu0 0.0
    %3523 = vmatpush1.msra.mxu0 0.0
    %3524 = vmatprep.subr.mxu0 0.0
    %3525 = vmatpush1.msra.mxu0 0.0
    %3526 = vmatprep.subr.mxu0 0.0
    %3527 = vmatpush1.msra.mxu0 0.0
    %3528 = vmatprep.subr.mxu0 0.0
    %3529 = vmatpush1.msra.mxu0 0.0
    %3530 = vmatprep.subr.mxu0 0.0
    %3531 = vmatpush1.msra.mxu0 0.0
    %3532 = vmatprep.subr.mxu0 0.0
    %3533 = vmatpush1.msra.mxu0 0.0
    %3534 = vmatprep.subr.mxu0 0.0
    %3535 = vmatpush1.msra.mxu0 0.0
    %3536 = vmatprep.subr.mxu0 0.0
    %3537 = vmatpush1.msra.mxu0 0.0
    %3538 = vmatprep.subr.mxu0 0.0
    %3539 = vmatpush1.msra.mxu0 0.0
    %3540 = vmatprep.subr.mxu0 0.0
    %3541 = vmatpush1.msra.mxu0 0.0
    %3542 = vmatprep.subr.mxu0 0.0
    %3543 = vmatpush1.msra.mxu0 0.0
    %3544 = vmatprep.subr.mxu0 0.0
    %3545 = vmatpush1.msra.mxu0 0.0
    %3546 = vmatprep.subr.mxu0 0.0
    %3547 = vmatpush1.msra.mxu0 0.0
    %3548 = vmatprep.subr.mxu0 0.0
    %3549 = vmatpush1.msra.mxu0 0.0
    %3550 = vmatprep.subr.mxu0 0.0
    %3551 = vmatpush1.msra.mxu0 0.0
    %3552 = vmatprep.mubr.f32.mxu0 0.0
    %3553 = vmatmul.mubr.f32.gmra.mrb[0].mxu0 %v3345
    %v3554 = vpop.f32.mrb[0].mxu0
    %v3555 = vadd.f32 %v3485, %v3554
    %v3556 = vpop.f32.mrb[0].mxu0
    %3557 = vdwg.mxu0
    %v3558 = vadd.f32 %v3555, %v261
    %3559 = vmatprep.subr.mxu0 0.0
    %3560 = vmatpush1.msra.mxu0 %v239
    %3561 = vmatprep.subr.mxu0 0.0
    %3562 = vmatpush1.msra.mxu0 %v240
    %3563 = vmatprep.subr.mxu0 0.0
    %3564 = vmatpush1.msra.mxu0 %v241
    %3565 = vmatprep.subr.mxu0 0.0
    %3566 = vmatpush1.msra.mxu0 %v242
    %3567 = vmatprep.subr.mxu0 0.0
    %3568 = vmatpush1.msra.mxu0 0.0
    %3569 = vmatprep.subr.mxu0 0.0
    %3570 = vmatpush1.msra.mxu0 0.0
    %3571 = vmatprep.subr.mxu0 0.0
    %3572 = vmatpush1.msra.mxu0 0.0
    %3573 = vmatprep.subr.mxu0 0.0
    %3574 = vmatpush1.msra.mxu0 0.0
    %3575 = vmatprep.subr.mxu0 0.0
    %3576 = vmatpush1.msra.mxu0 0.0
    %3577 = vmatprep.subr.mxu0 0.0
    %3578 = vmatpush1.msra.mxu0 0.0
    %3579 = vmatprep.subr.mxu0 0.0
    %3580 = vmatpush1.msra.mxu0 0.0
    %3581 = vmatprep.subr.mxu0 0.0
    %3582 = vmatpush1.msra.mxu0 0.0
    %3583 = vmatprep.subr.mxu0 0.0
    %3584 = vmatpush1.msra.mxu0 0.0
    %3585 = vmatprep.subr.mxu0 0.0
    %3586 = vmatpush1.msra.mxu0 0.0
    %3587 = vmatprep.subr.mxu0 0.0
    %3588 = vmatpush1.msra.mxu0 0.0
    %3589 = vmatprep.subr.mxu0 0.0
    %3590 = vmatpush1.msra.mxu0 0.0
    %3591 = vmatprep.subr.mxu0 0.0
    %3592 = vmatpush1.msra.mxu0 0.0
    %3593 = vmatprep.subr.mxu0 0.0
    %3594 = vmatpush1.msra.mxu0 0.0
    %3595 = vmatprep.subr.mxu0 0.0
    %3596 = vmatpush1.msra.mxu0 0.0
    %3597 = vmatprep.subr.mxu0 0.0
    %3598 = vmatpush1.msra.mxu0 0.0
    %3599 = vmatprep.subr.mxu0 0.0
    %3600 = vmatpush1.msra.mxu0 0.0
    %3601 = vmatprep.subr.mxu0 0.0
    %3602 = vmatpush1.msra.mxu0 0.0
    %3603 = vmatprep.subr.mxu0 0.0
    %3604 = vmatpush1.msra.mxu0 0.0
    %3605 = vmatprep.subr.mxu0 0.0
    %3606 = vmatpush1.msra.mxu0 0.0
    %3607 = vmatprep.subr.mxu0 0.0
    %3608 = vmatpush1.msra.mxu0 0.0
    %3609 = vmatprep.subr.mxu0 0.0
    %3610 = vmatpush1.msra.mxu0 0.0
    %3611 = vmatprep.subr.mxu0 0.0
    %3612 = vmatpush1.msra.mxu0 0.0
    %3613 = vmatprep.subr.mxu0 0.0
    %3614 = vmatpush1.msra.mxu0 0.0
    %3615 = vmatprep.subr.mxu0 0.0
    %3616 = vmatpush1.msra.mxu0 0.0
    %3617 = vmatprep.subr.mxu0 0.0
    %3618 = vmatpush1.msra.mxu0 0.0
    %3619 = vmatprep.subr.mxu0 0.0
    %3620 = vmatpush1.msra.mxu0 0.0
    %3621 = vmatprep.subr.mxu0 0.0
    %3622 = vmatpush1.msra.mxu0 0.0
    %3623 = vmatprep.mubr.f32.mxu0 0.0
    %3624 = vmatmul.mubr.f32.gmra.mrb[0].mxu0 %v3272
    %v3625 = vpop.f32.mrb[0].mxu0
    %v3626 = vadd.f32 0.0, %v3625
    %v3627 = vpop.f32.mrb[0].mxu0
    %3628 = vdwg.mxu0
    %3629 = vmatprep.subr.mxu0 0.0
    %3630 = vmatpush1.msra.mxu0 %v220
    %3631 = vmatprep.subr.mxu0 0.0
    %3632 = vmatpush1.msra.mxu0 %v221
    %3633 = vmatprep.subr.mxu0 0.0
    %3634 = vmatpush1.msra.mxu0 %v222
    %3635 = vmatprep.subr.mxu0 0.0
    %3636 = vmatpush1.msra.mxu0 %v223
    %3637 = vmatprep.subr.mxu0 0.0
    %3638 = vmatpush1.msra.mxu0 0.0
    %3639 = vmatprep.subr.mxu0 0.0
    %3640 = vmatpush1.msra.mxu0 0.0
    %3641 = vmatprep.subr.mxu0 0.0
    %3642 = vmatpush1.msra.mxu0 0.0
    %3643 = vmatprep.subr.mxu0 0.0
    %3644 = vmatpush1.msra.mxu0 0.0
    %3645 = vmatprep.subr.mxu0 0.0
    %3646 = vmatpush1.msra.mxu0 0.0
    %3647 = vmatprep.subr.mxu0 0.0
    %3648 = vmatpush1.msra.mxu0 0.0
    %3649 = vmatprep.subr.mxu0 0.0
    %3650 = vmatpush1.msra.mxu0 0.0
    %3651 = vmatprep.subr.mxu0 0.0
    %3652 = vmatpush1.msra.mxu0 0.0
    %3653 = vmatprep.subr.mxu0 0.0
    %3654 = vmatpush1.msra.mxu0 0.0
    %3655 = vmatprep.subr.mxu0 0.0
    %3656 = vmatpush1.msra.mxu0 0.0
    %3657 = vmatprep.subr.mxu0 0.0
    %3658 = vmatpush1.msra.mxu0 0.0
    %3659 = vmatprep.subr.mxu0 0.0
    %3660 = vmatpush1.msra.mxu0 0.0
    %3661 = vmatprep.subr.mxu0 0.0
    %3662 = vmatpush1.msra.mxu0 0.0
    %3663 = vmatprep.subr.mxu0 0.0
    %3664 = vmatpush1.msra.mxu0 0.0
    %3665 = vmatprep.subr.mxu0 0.0
    %3666 = vmatpush1.msra.mxu0 0.0
    %3667 = vmatprep.subr.mxu0 0.0
    %3668 = vmatpush1.msra.mxu0 0.0
    %3669 = vmatprep.subr.mxu0 0.0
    %3670 = vmatpush1.msra.mxu0 0.0
    %3671 = vmatprep.subr.mxu0 0.0
    %3672 = vmatpush1.msra.mxu0 0.0
    %3673 = vmatprep.subr.mxu0 0.0
    %3674 = vmatpush1.msra.mxu0 0.0
    %3675 = vmatprep.subr.mxu0 0.0
    %3676 = vmatpush1.msra.mxu0 0.0
    %3677 = vmatprep.subr.mxu0 0.0
    %3678 = vmatpush1.msra.mxu0 0.0
    %3679 = vmatprep.subr.mxu0 0.0
    %3680 = vmatpush1.msra.mxu0 0.0
    %3681 = vmatprep.subr.mxu0 0.0
    %3682 = vmatpush1.msra.mxu0 0.0
    %3683 = vmatprep.subr.mxu0 0.0
    %3684 = vmatpush1.msra.mxu0 0.0
    %3685 = vmatprep.subr.mxu0 0.0
    %3686 = vmatpush1.msra.mxu0 0.0
    %3687 = vmatprep.subr.mxu0 0.0
    %3688 = vmatpush1.msra.mxu0 0.0
    %3689 = vmatprep.subr.mxu0 0.0
    %3690 = vmatpush1.msra.mxu0 0.0
    %3691 = vmatprep.subr.mxu0 0.0
    %3692 = vmatpush1.msra.mxu0 0.0
    %3693 = vmatprep.mubr.f32.mxu0 0.0
    %3694 = vmatmul.mubr.f32.gmra.mrb[0].mxu0 %v3345
    %v3695 = vpop.f32.mrb[0].mxu0
    %v3696 = vadd.f32 %v3626, %v3695
    %v3697 = vpop.f32.mrb[0].mxu0
    %3698 = vdwg.mxu0
    %v3699 = vadd.f32 %v3696, %v269
    %3700 = vmatprep.subr.mxu0 0.0
    %3701 = vmatpush1.msra.mxu0 %v244
    %3702 = vmatprep.subr.mxu0 0.0
    %3703 = vmatpush1.msra.mxu0 %v245
    %3704 = vmatprep.subr.mxu0 0.0
    %3705 = vmatpush1.msra.mxu0 %v246
    %3706 = vmatprep.subr.mxu0 0.0
    %3707 = vmatpush1.msra.mxu0 %v247
    %3708 = vmatprep.subr.mxu0 0.0
    %3709 = vmatpush1.msra.mxu0 0.0
    %3710 = vmatprep.subr.mxu0 0.0
    %3711 = vmatpush1.msra.mxu0 0.0
    %3712 = vmatprep.subr.mxu0 0.0
    %3713 = vmatpush1.msra.mxu0 0.0
    %3714 = vmatprep.subr.mxu0 0.0
    %3715 = vmatpush1.msra.mxu0 0.0
    %3716 = vmatprep.subr.mxu0 0.0
    %3717 = vmatpush1.msra.mxu0 0.0
    %3718 = vmatprep.subr.mxu0 0.0
    %3719 = vmatpush1.msra.mxu0 0.0
    %3720 = vmatprep.subr.mxu0 0.0
    %3721 = vmatpush1.msra.mxu0 0.0
    %3722 = vmatprep.subr.mxu0 0.0
    %3723 = vmatpush1.msra.mxu0 0.0
    %3724 = vmatprep.subr.mxu0 0.0
    %3725 = vmatpush1.msra.mxu0 0.0
    %3726 = vmatprep.subr.mxu0 0.0
    %3727 = vmatpush1.msra.mxu0 0.0
    %3728 = vmatprep.subr.mxu0 0.0
    %3729 = vmatpush1.msra.mxu0 0.0
    %3730 = vmatprep.subr.mxu0 0.0
    %3731 = vmatpush1.msra.mxu0 0.0
    %3732 = vmatprep.subr.mxu0 0.0
    %3733 = vmatpush1.msra.mxu0 0.0
    %3734 = vmatprep.subr.mxu0 0.0
    %3735 = vmatpush1.msra.mxu0 0.0
    %3736 = vmatprep.subr.mxu0 0.0
    %3737 = vmatpush1.msra.mxu0 0.0
    %3738 = vmatprep.subr.mxu0 0.0
    %3739 = vmatpush1.msra.mxu0 0.0
    %3740 = vmatprep.subr.mxu0 0.0
    %3741 = vmatpush1.msra.mxu0 0.0
    %3742 = vmatprep.subr.mxu0 0.0
    %3743 = vmatpush1.msra.mxu0 0.0
    %3744 = vmatprep.subr.mxu0 0.0
    %3745 = vmatpush1.msra.mxu0 0.0
    %3746 = vmatprep.subr.mxu0 0.0
    %3747 = vmatpush1.msra.mxu0 0.0
    %3748 = vmatprep.subr.mxu0 0.0
    %3749 = vmatpush1.msra.mxu0 0.0
    %3750 = vmatprep.subr.mxu0 0.0
    %3751 = vmatpush1.msra.mxu0 0.0
    %3752 = vmatprep.subr.mxu0 0.0
    %3753 = vmatpush1.msra.mxu0 0.0
    %3754 = vmatprep.subr.mxu0 0.0
    %3755 = vmatpush1.msra.mxu0 0.0
    %3756 = vmatprep.subr.mxu0 0.0
    %3757 = vmatpush1.msra.mxu0 0.0
    %3758 = vmatprep.subr.mxu0 0.0
    %3759 = vmatpush1.msra.mxu0 0.0
    %3760 = vmatprep.subr.mxu0 0.0
    %3761 = vmatpush1.msra.mxu0 0.0
    %3762 = vmatprep.subr.mxu0 0.0
    %3763 = vmatpush1.msra.mxu0 0.0
    %3764 = vmatprep.mubr.f32.mxu0 0.0
    %3765 = vmatmul.mubr.f32.gmra.mrb[0].mxu0 %v3272
    %v3766 = vpop.f32.mrb[0].mxu0
    %v3767 = vadd.f32 0.0, %v3766
    %v3768 = vpop.f32.mrb[0].mxu0
    %3769 = vdwg.mxu0
    %3770 = vmatprep.subr.mxu0 0.0
    %3771 = vmatpush1.msra.mxu0 %v225
    %3772 = vmatprep.subr.mxu0 0.0
    %3773 = vmatpush1.msra.mxu0 %v226
    %3774 = vmatprep.subr.mxu0 0.0
    %3775 = vmatpush1.msra.mxu0 %v227
    %3776 = vmatprep.subr.mxu0 0.0
    %3777 = vmatpush1.msra.mxu0 %v228
    %3778 = vmatprep.subr.mxu0 0.0
    %3779 = vmatpush1.msra.mxu0 0.0
    %3780 = vmatprep.subr.mxu0 0.0
    %3781 = vmatpush1.msra.mxu0 0.0
    %3782 = vmatprep.subr.mxu0 0.0
    %3783 = vmatpush1.msra.mxu0 0.0
    %3784 = vmatprep.subr.mxu0 0.0
    %3785 = vmatpush1.msra.mxu0 0.0
    %3786 = vmatprep.subr.mxu0 0.0
    %3787 = vmatpush1.msra.mxu0 0.0
    %3788 = vmatprep.subr.mxu0 0.0
    %3789 = vmatpush1.msra.mxu0 0.0
    %3790 = vmatprep.subr.mxu0 0.0
    %3791 = vmatpush1.msra.mxu0 0.0
    %3792 = vmatprep.subr.mxu0 0.0
    %3793 = vmatpush1.msra.mxu0 0.0
    %3794 = vmatprep.subr.mxu0 0.0
    %3795 = vmatpush1.msra.mxu0 0.0
    %3796 = vmatprep.subr.mxu0 0.0
    %3797 = vmatpush1.msra.mxu0 0.0
    %3798 = vmatprep.subr.mxu0 0.0
    %3799 = vmatpush1.msra.mxu0 0.0
    %3800 = vmatprep.subr.mxu0 0.0
    %3801 = vmatpush1.msra.mxu0 0.0
    %3802 = vmatprep.subr.mxu0 0.0
    %3803 = vmatpush1.msra.mxu0 0.0
    %3804 = vmatprep.subr.mxu0 0.0
    %3805 = vmatpush1.msra.mxu0 0.0
    %3806 = vmatprep.subr.mxu0 0.0
    %3807 = vmatpush1.msra.mxu0 0.0
    %3808 = vmatprep.subr.mxu0 0.0
    %3809 = vmatpush1.msra.mxu0 0.0
    %3810 = vmatprep.subr.mxu0 0.0
    %3811 = vmatpush1.msra.mxu0 0.0
    %3812 = vmatprep.subr.mxu0 0.0
    %3813 = vmatpush1.msra.mxu0 0.0
    %3814 = vmatprep.subr.mxu0 0.0
    %3815 = vmatpush1.msra.mxu0 0.0
    %3816 = vmatprep.subr.mxu0 0.0
    %3817 = vmatpush1.msra.mxu0 0.0
    %3818 = vmatprep.subr.mxu0 0.0
    %3819 = vmatpush1.msra.mxu0 0.0
    %3820 = vmatprep.subr.mxu0 0.0
    %3821 = vmatpush1.msra.mxu0 0.0
    %3822 = vmatprep.subr.mxu0 0.0
    %3823 = vmatpush1.msra.mxu0 0.0
    %3824 = vmatprep.subr.mxu0 0.0
    %3825 = vmatpush1.msra.mxu0 0.0
    %3826 = vmatprep.subr.mxu0 0.0
    %3827 = vmatpush1.msra.mxu0 0.0
    %3828 = vmatprep.subr.mxu0 0.0
    %3829 = vmatpush1.msra.mxu0 0.0
    %3830 = vmatprep.subr.mxu0 0.0
    %3831 = vmatpush1.msra.mxu0 0.0
    %3832 = vmatprep.subr.mxu0 0.0
    %3833 = vmatpush1.msra.mxu0 0.0
    %3834 = vmatprep.mubr.f32.mxu0 0.0
    %3835 = vmatmul.mubr.f32.gmra.mrb[0].mxu0 %v3345
    %v3836 = vpop.f32.mrb[0].mxu0
    %v3837 = vadd.f32 %v3767, %v3836
    %v3838 = vpop.f32.mrb[0].mxu0
    %3839 = vdwg.mxu0
    %v3840 = vadd.f32 %v3837, %v277
    %v3841 = vxor.u32 %v3417, 2147483648
    %v3842 = vmul.f32 %v3841, 1.442695
    %v3843 = vpow.pop %v3842
    %v3844 = vadd.f32 %v3843, 1.0
    %v3845 = vrcp.pop %v3844
    %v3846 = vmul.f32 1.0, %v3845
    %v3847 = vxor.u32 %v3558, 2147483648
    %v3848 = vmul.f32 %v3847, 1.442695
    %v3849 = vpow.pop %v3848
    %v3850 = vadd.f32 %v3849, 1.0
    %v3851 = vrcp.pop %v3850
    %v3852 = vmul.f32 1.0, %v3851
    %v3853 = vtanh.pop %v3699
    %v3854 = vxor.u32 %v3840, 2147483648
    %v3855 = vmul.f32 %v3854, 1.442695
    %v3856 = vpow.pop %v3855
    %v3857 = vadd.f32 %v3856, 1.0
    %v3858 = vrcp.pop %v3857
    %v3859 = vmul.f32 1.0, %v3858
    %v3860 = vmul.f32 %v3852, %v2672
    %v3861 = vmul.f32 %v3846, %v3853
    %v3862 = vadd.f32 %v3860, %v3861
    %v3863 = vtanh.pop %v3862
    %v3864 = vmul.f32 %v3859, %v3863
    %v3865 = vld [vmem:[%s0 + $0x3] sm:$0x1]
    %v3866 = vld [vmem:[%s0 + $0xb] sm:$0x1]
    %3867 = vmatprep.subr.mxu0 0.0
    %3868 = vmatpush1.msra.mxu0 %v160
    %3869 = vmatprep.subr.mxu0 0.0
    %3870 = vmatpush1.msra.mxu0 %v161
    %3871 = vmatprep.subr.mxu0 0.0
    %3872 = vmatpush1.msra.mxu0 %v162
    %3873 = vmatprep.subr.mxu0 0.0
    %3874 = vmatpush1.msra.mxu0 %v163
    %3875 = vmatprep.subr.mxu0 0.0
    %3876 = vmatpush1.msra.mxu0 0.0
    %3877 = vmatprep.subr.mxu0 0.0
    %3878 = vmatpush1.msra.mxu0 0.0
    %3879 = vmatprep.subr.mxu0 0.0
    %3880 = vmatpush1.msra.mxu0 0.0
    %3881 = vmatprep.subr.mxu0 0.0
    %3882 = vmatpush1.msra.mxu0 0.0
    %3883 = vmatprep.subr.mxu0 0.0
    %3884 = vmatpush1.msra.mxu0 0.0
    %3885 = vmatprep.subr.mxu0 0.0
    %3886 = vmatpush1.msra.mxu0 0.0
    %3887 = vmatprep.subr.mxu0 0.0
    %3888 = vmatpush1.msra.mxu0 0.0
    %3889 = vmatprep.subr.mxu0 0.0
    %3890 = vmatpush1.msra.mxu0 0.0
    %3891 = vmatprep.subr.mxu0 0.0
    %3892 = vmatpush1.msra.mxu0 0.0
    %3893 = vmatprep.subr.mxu0 0.0
    %3894 = vmatpush1.msra.mxu0 0.0
    %3895 = vmatprep.subr.mxu0 0.0
    %3896 = vmatpush1.msra.mxu0 0.0
    %3897 = vmatprep.subr.mxu0 0.0
    %3898 = vmatpush1.msra.mxu0 0.0
    %3899 = vmatprep.subr.mxu0 0.0
    %3900 = vmatpush1.msra.mxu0 0.0
    %3901 = vmatprep.subr.mxu0 0.0
    %3902 = vmatpush1.msra.mxu0 0.0
    %3903 = vmatprep.subr.mxu0 0.0
    %3904 = vmatpush1.msra.mxu0 0.0
    %3905 = vmatprep.subr.mxu0 0.0
    %3906 = vmatpush1.msra.mxu0 0.0
    %3907 = vmatprep.subr.mxu0 0.0
    %3908 = vmatpush1.msra.mxu0 0.0
    %3909 = vmatprep.subr.mxu0 0.0
    %3910 = vmatpush1.msra.mxu0 0.0
    %3911 = vmatprep.subr.mxu0 0.0
    %3912 = vmatpush1.msra.mxu0 0.0
    %3913 = vmatprep.subr.mxu0 0.0
    %3914 = vmatpush1.msra.mxu0 0.0
    %3915 = vmatprep.subr.mxu0 0.0
    %3916 = vmatpush1.msra.mxu0 0.0
    %3917 = vmatprep.subr.mxu0 0.0
    %3918 = vmatpush1.msra.mxu0 0.0
    %3919 = vmatprep.subr.mxu0 0.0
    %3920 = vmatpush1.msra.mxu0 0.0
    %3921 = vmatprep.subr.mxu0 0.0
    %3922 = vmatpush1.msra.mxu0 0.0
    %3923 = vmatprep.subr.mxu0 0.0
    %3924 = vmatpush1.msra.mxu0 0.0
    %3925 = vmatprep.subr.mxu0 0.0
    %3926 = vmatpush1.msra.mxu0 0.0
    %3927 = vmatprep.subr.mxu0 0.0
    %3928 = vmatpush1.msra.mxu0 0.0
    %3929 = vmatprep.subr.mxu0 0.0
    %3930 = vmatpush1.msra.mxu0 0.0
    %3931 = vmatprep.mubr.f32.mxu0 0.0
    %3932 = vmatmul.mubr.f32.gmra.mrb[0].mxu0 %v3345
    %v3933 = vpop.f32.mrb[0].mxu0
    %v3934 = vadd.f32 0.0, %v3933
    %v3935 = vpop.f32.mrb[0].mxu0
    %3936 = vdwg.mxu0
    %v3939 = vrot.slane %v3866, 7
    %v3940 = vsel %vm358, %v3939, %v3865
    %v3941 = vsel %vm360, %v3940, 0
    %3943 = vmatprep.subr.mxu0 0.0
    %3944 = vmatpush1.msra.mxu0 %v365
    %3945 = vmatprep.subr.mxu0 0.0
    %3946 = vmatpush1.msra.mxu0 0.0
    %3947 = vmatprep.subr.mxu0 0.0
    %3948 = vmatpush1.msra.mxu0 0.0
    %3949 = vmatprep.subr.mxu0 0.0
    %3950 = vmatpush1.msra.mxu0 0.0
    %3951 = vmatprep.subr.mxu0 0.0
    %3952 = vmatpush1.msra.mxu0 0.0
    %3953 = vmatprep.subr.mxu0 0.0
    %3954 = vmatpush1.msra.mxu0 0.0
    %3955 = vmatprep.subr.mxu0 0.0
    %3956 = vmatpush1.msra.mxu0 0.0
    %3957 = vmatprep.subr.mxu0 0.0
    %3958 = vmatpush1.msra.mxu0 0.0
    %3959 = vmatprep.subr.mxu0 0.0
    %3960 = vmatpush1.msra.mxu0 0.0
    %3961 = vmatprep.subr.mxu0 0.0
    %3962 = vmatpush1.msra.mxu0 0.0
    %3963 = vmatprep.subr.mxu0 0.0
    %3964 = vmatpush1.msra.mxu0 0.0
    %3965 = vmatprep.subr.mxu0 0.0
    %3966 = vmatpush1.msra.mxu0 0.0
    %3967 = vmatprep.subr.mxu0 0.0
    %3968 = vmatpush1.msra.mxu0 0.0
    %3969 = vmatprep.subr.mxu0 0.0
    %3970 = vmatpush1.msra.mxu0 0.0
    %3971 = vmatprep.subr.mxu0 0.0
    %3972 = vmatpush1.msra.mxu0 0.0
    %3973 = vmatprep.subr.mxu0 0.0
    %3974 = vmatpush1.msra.mxu0 0.0
    %3975 = vmatprep.subr.mxu0 0.0
    %3976 = vmatpush1.msra.mxu0 0.0
    %3977 = vmatprep.subr.mxu0 0.0
    %3978 = vmatpush1.msra.mxu0 0.0
    %3979 = vmatprep.subr.mxu0 0.0
    %3980 = vmatpush1.msra.mxu0 0.0
    %3981 = vmatprep.subr.mxu0 0.0
    %3982 = vmatpush1.msra.mxu0 0.0
    %3983 = vmatprep.subr.mxu0 0.0
    %3984 = vmatpush1.msra.mxu0 0.0
    %3985 = vmatprep.subr.mxu0 0.0
    %3986 = vmatpush1.msra.mxu0 0.0
    %3987 = vmatprep.subr.mxu0 0.0
    %3988 = vmatpush1.msra.mxu0 0.0
    %3989 = vmatprep.subr.mxu0 0.0
    %3990 = vmatpush1.msra.mxu0 0.0
    %3991 = vmatprep.subr.mxu0 0.0
    %3992 = vmatpush1.msra.mxu0 0.0
    %3993 = vmatprep.subr.mxu0 0.0
    %3994 = vmatpush1.msra.mxu0 0.0
    %3995 = vmatprep.subr.mxu0 0.0
    %3996 = vmatpush1.msra.mxu0 0.0
    %3997 = vmatprep.subr.mxu0 0.0
    %3998 = vmatpush1.msra.mxu0 0.0
    %3999 = vmatprep.subr.mxu0 0.0
    %4000 = vmatpush1.msra.mxu0 0.0
    %4001 = vmatprep.subr.mxu0 0.0
    %4002 = vmatpush1.msra.mxu0 0.0
    %4003 = vmatprep.subr.mxu0 0.0
    %4004 = vmatpush1.msra.mxu0 0.0
    %4005 = vmatprep.subr.mxu0 0.0
    %4006 = vmatpush1.msra.mxu0 0.0
    %4007 = vmatprep.mubr.f32.mxu0 0.0
    %4008 = vmatmul.mubr.f32.gmra.mrb[0].mxu0 %v3941
    %v4009 = vpop.f32.mrb[0].mxu0
    %v4010 = vadd.f32 %v3934, %v4009
    %v4011 = vpop.f32.mrb[0].mxu0
    %4012 = vdwg.mxu0
    %v4013 = vadd.f32 %v4010, %v184
    %4014 = vmatprep.subr.mxu0 0.0
    %4015 = vmatpush1.msra.mxu0 %v165
    %4016 = vmatprep.subr.mxu0 0.0
    %4017 = vmatpush1.msra.mxu0 %v166
    %4018 = vmatprep.subr.mxu0 0.0
    %4019 = vmatpush1.msra.mxu0 %v167
    %4020 = vmatprep.subr.mxu0 0.0
    %4021 = vmatpush1.msra.mxu0 %v168
    %4022 = vmatprep.subr.mxu0 0.0
    %4023 = vmatpush1.msra.mxu0 0.0
    %4024 = vmatprep.subr.mxu0 0.0
    %4025 = vmatpush1.msra.mxu0 0.0
    %4026 = vmatprep.subr.mxu0 0.0
    %4027 = vmatpush1.msra.mxu0 0.0
    %4028 = vmatprep.subr.mxu0 0.0
    %4029 = vmatpush1.msra.mxu0 0.0
    %4030 = vmatprep.subr.mxu0 0.0
    %4031 = vmatpush1.msra.mxu0 0.0
    %4032 = vmatprep.subr.mxu0 0.0
    %4033 = vmatpush1.msra.mxu0 0.0
    %4034 = vmatprep.subr.mxu0 0.0
    %4035 = vmatpush1.msra.mxu0 0.0
    %4036 = vmatprep.subr.mxu0 0.0
    %4037 = vmatpush1.msra.mxu0 0.0
    %4038 = vmatprep.subr.mxu0 0.0
    %4039 = vmatpush1.msra.mxu0 0.0
    %4040 = vmatprep.subr.mxu0 0.0
    %4041 = vmatpush1.msra.mxu0 0.0
    %4042 = vmatprep.subr.mxu0 0.0
    %4043 = vmatpush1.msra.mxu0 0.0
    %4044 = vmatprep.subr.mxu0 0.0
    %4045 = vmatpush1.msra.mxu0 0.0
    %4046 = vmatprep.subr.mxu0 0.0
    %4047 = vmatpush1.msra.mxu0 0.0
    %4048 = vmatprep.subr.mxu0 0.0
    %4049 = vmatpush1.msra.mxu0 0.0
    %4050 = vmatprep.subr.mxu0 0.0
    %4051 = vmatpush1.msra.mxu0 0.0
    %4052 = vmatprep.subr.mxu0 0.0
    %4053 = vmatpush1.msra.mxu0 0.0
    %4054 = vmatprep.subr.mxu0 0.0
    %4055 = vmatpush1.msra.mxu0 0.0
    %4056 = vmatprep.subr.mxu0 0.0
    %4057 = vmatpush1.msra.mxu0 0.0
    %4058 = vmatprep.subr.mxu0 0.0
    %4059 = vmatpush1.msra.mxu0 0.0
    %4060 = vmatprep.subr.mxu0 0.0
    %4061 = vmatpush1.msra.mxu0 0.0
    %4062 = vmatprep.subr.mxu0 0.0
    %4063 = vmatpush1.msra.mxu0 0.0
    %4064 = vmatprep.subr.mxu0 0.0
    %4065 = vmatpush1.msra.mxu0 0.0
    %4066 = vmatprep.subr.mxu0 0.0
    %4067 = vmatpush1.msra.mxu0 0.0
    %4068 = vmatprep.subr.mxu0 0.0
    %4069 = vmatpush1.msra.mxu0 0.0
    %4070 = vmatprep.subr.mxu0 0.0
    %4071 = vmatpush1.msra.mxu0 0.0
    %4072 = vmatprep.subr.mxu0 0.0
    %4073 = vmatpush1.msra.mxu0 0.0
    %4074 = vmatprep.subr.mxu0 0.0
    %4075 = vmatpush1.msra.mxu0 0.0
    %4076 = vmatprep.subr.mxu0 0.0
    %4077 = vmatpush1.msra.mxu0 0.0
    %4078 = vmatprep.mubr.f32.mxu0 0.0
    %4079 = vmatmul.mubr.f32.gmra.mrb[0].mxu0 %v3345
    %v4080 = vpop.f32.mrb[0].mxu0
    %v4081 = vadd.f32 0.0, %v4080
    %v4082 = vpop.f32.mrb[0].mxu0
    %4083 = vdwg.mxu0
    %4084 = vmatprep.subr.mxu0 0.0
    %4085 = vmatpush1.msra.mxu0 %v509
    %4086 = vmatprep.subr.mxu0 0.0
    %4087 = vmatpush1.msra.mxu0 0.0
    %4088 = vmatprep.subr.mxu0 0.0
    %4089 = vmatpush1.msra.mxu0 0.0
    %4090 = vmatprep.subr.mxu0 0.0
    %4091 = vmatpush1.msra.mxu0 0.0
    %4092 = vmatprep.subr.mxu0 0.0
    %4093 = vmatpush1.msra.mxu0 0.0
    %4094 = vmatprep.subr.mxu0 0.0
    %4095 = vmatpush1.msra.mxu0 0.0
    %4096 = vmatprep.subr.mxu0 0.0
    %4097 = vmatpush1.msra.mxu0 0.0
    %4098 = vmatprep.subr.mxu0 0.0
    %4099 = vmatpush1.msra.mxu0 0.0
    %4100 = vmatprep.subr.mxu0 0.0
    %4101 = vmatpush1.msra.mxu0 0.0
    %4102 = vmatprep.subr.mxu0 0.0
    %4103 = vmatpush1.msra.mxu0 0.0
    %4104 = vmatprep.subr.mxu0 0.0
    %4105 = vmatpush1.msra.mxu0 0.0
    %4106 = vmatprep.subr.mxu0 0.0
    %4107 = vmatpush1.msra.mxu0 0.0
    %4108 = vmatprep.subr.mxu0 0.0
    %4109 = vmatpush1.msra.mxu0 0.0
    %4110 = vmatprep.subr.mxu0 0.0
    %4111 = vmatpush1.msra.mxu0 0.0
    %4112 = vmatprep.subr.mxu0 0.0
    %4113 = vmatpush1.msra.mxu0 0.0
    %4114 = vmatprep.subr.mxu0 0.0
    %4115 = vmatpush1.msra.mxu0 0.0
    %4116 = vmatprep.subr.mxu0 0.0
    %4117 = vmatpush1.msra.mxu0 0.0
    %4118 = vmatprep.subr.mxu0 0.0
    %4119 = vmatpush1.msra.mxu0 0.0
    %4120 = vmatprep.subr.mxu0 0.0
    %4121 = vmatpush1.msra.mxu0 0.0
    %4122 = vmatprep.subr.mxu0 0.0
    %4123 = vmatpush1.msra.mxu0 0.0
    %4124 = vmatprep.subr.mxu0 0.0
    %4125 = vmatpush1.msra.mxu0 0.0
    %4126 = vmatprep.subr.mxu0 0.0
    %4127 = vmatpush1.msra.mxu0 0.0
    %4128 = vmatprep.subr.mxu0 0.0
    %4129 = vmatpush1.msra.mxu0 0.0
    %4130 = vmatprep.subr.mxu0 0.0
    %4131 = vmatpush1.msra.mxu0 0.0
    %4132 = vmatprep.subr.mxu0 0.0
    %4133 = vmatpush1.msra.mxu0 0.0
    %4134 = vmatprep.subr.mxu0 0.0
    %4135 = vmatpush1.msra.mxu0 0.0
    %4136 = vmatprep.subr.mxu0 0.0
    %4137 = vmatpush1.msra.mxu0 0.0
    %4138 = vmatprep.subr.mxu0 0.0
    %4139 = vmatpush1.msra.mxu0 0.0
    %4140 = vmatprep.subr.mxu0 0.0
    %4141 = vmatpush1.msra.mxu0 0.0
    %4142 = vmatprep.subr.mxu0 0.0
    %4143 = vmatpush1.msra.mxu0 0.0
    %4144 = vmatprep.subr.mxu0 0.0
    %4145 = vmatpush1.msra.mxu0 0.0
    %4146 = vmatprep.subr.mxu0 0.0
    %4147 = vmatpush1.msra.mxu0 0.0
    %4148 = vmatprep.mubr.f32.mxu0 0.0
    %4149 = vmatmul.mubr.f32.gmra.mrb[0].mxu0 %v3941
    %v4150 = vpop.f32.mrb[0].mxu0
    %v4151 = vadd.f32 %v4081, %v4150
    %v4152 = vpop.f32.mrb[0].mxu0
    %4153 = vdwg.mxu0
    %v4154 = vadd.f32 %v4151, %v192
    %4155 = vmatprep.subr.mxu0 0.0
    %4156 = vmatpush1.msra.mxu0 %v170
    %4157 = vmatprep.subr.mxu0 0.0
    %4158 = vmatpush1.msra.mxu0 %v171
    %4159 = vmatprep.subr.mxu0 0.0
    %4160 = vmatpush1.msra.mxu0 %v172
    %4161 = vmatprep.subr.mxu0 0.0
    %4162 = vmatpush1.msra.mxu0 %v173
    %4163 = vmatprep.subr.mxu0 0.0
    %4164 = vmatpush1.msra.mxu0 0.0
    %4165 = vmatprep.subr.mxu0 0.0
    %4166 = vmatpush1.msra.mxu0 0.0
    %4167 = vmatprep.subr.mxu0 0.0
    %4168 = vmatpush1.msra.mxu0 0.0
    %4169 = vmatprep.subr.mxu0 0.0
    %4170 = vmatpush1.msra.mxu0 0.0
    %4171 = vmatprep.subr.mxu0 0.0
    %4172 = vmatpush1.msra.mxu0 0.0
    %4173 = vmatprep.subr.mxu0 0.0
    %4174 = vmatpush1.msra.mxu0 0.0
    %4175 = vmatprep.subr.mxu0 0.0
    %4176 = vmatpush1.msra.mxu0 0.0
    %4177 = vmatprep.subr.mxu0 0.0
    %4178 = vmatpush1.msra.mxu0 0.0
    %4179 = vmatprep.subr.mxu0 0.0
    %4180 = vmatpush1.msra.mxu0 0.0
    %4181 = vmatprep.subr.mxu0 0.0
    %4182 = vmatpush1.msra.mxu0 0.0
    %4183 = vmatprep.subr.mxu0 0.0
    %4184 = vmatpush1.msra.mxu0 0.0
    %4185 = vmatprep.subr.mxu0 0.0
    %4186 = vmatpush1.msra.mxu0 0.0
    %4187 = vmatprep.subr.mxu0 0.0
    %4188 = vmatpush1.msra.mxu0 0.0
    %4189 = vmatprep.subr.mxu0 0.0
    %4190 = vmatpush1.msra.mxu0 0.0
    %4191 = vmatprep.subr.mxu0 0.0
    %4192 = vmatpush1.msra.mxu0 0.0
    %4193 = vmatprep.subr.mxu0 0.0
    %4194 = vmatpush1.msra.mxu0 0.0
    %4195 = vmatprep.subr.mxu0 0.0
    %4196 = vmatpush1.msra.mxu0 0.0
    %4197 = vmatprep.subr.mxu0 0.0
    %4198 = vmatpush1.msra.mxu0 0.0
    %4199 = vmatprep.subr.mxu0 0.0
    %4200 = vmatpush1.msra.mxu0 0.0
    %4201 = vmatprep.subr.mxu0 0.0
    %4202 = vmatpush1.msra.mxu0 0.0
    %4203 = vmatprep.subr.mxu0 0.0
    %4204 = vmatpush1.msra.mxu0 0.0
    %4205 = vmatprep.subr.mxu0 0.0
    %4206 = vmatpush1.msra.mxu0 0.0
    %4207 = vmatprep.subr.mxu0 0.0
    %4208 = vmatpush1.msra.mxu0 0.0
    %4209 = vmatprep.subr.mxu0 0.0
    %4210 = vmatpush1.msra.mxu0 0.0
    %4211 = vmatprep.subr.mxu0 0.0
    %4212 = vmatpush1.msra.mxu0 0.0
    %4213 = vmatprep.subr.mxu0 0.0
    %4214 = vmatpush1.msra.mxu0 0.0
    %4215 = vmatprep.subr.mxu0 0.0
    %4216 = vmatpush1.msra.mxu0 0.0
    %4217 = vmatprep.subr.mxu0 0.0
    %4218 = vmatpush1.msra.mxu0 0.0
    %4219 = vmatprep.mubr.f32.mxu0 0.0
    %4220 = vmatmul.mubr.f32.gmra.mrb[0].mxu0 %v3345
    %v4221 = vpop.f32.mrb[0].mxu0
    %v4222 = vadd.f32 0.0, %v4221
    %v4223 = vpop.f32.mrb[0].mxu0
    %4224 = vdwg.mxu0
    %4225 = vmatprep.subr.mxu0 0.0
    %4226 = vmatpush1.msra.mxu0 %v653
    %4227 = vmatprep.subr.mxu0 0.0
    %4228 = vmatpush1.msra.mxu0 0.0
    %4229 = vmatprep.subr.mxu0 0.0
    %4230 = vmatpush1.msra.mxu0 0.0
    %4231 = vmatprep.subr.mxu0 0.0
    %4232 = vmatpush1.msra.mxu0 0.0
    %4233 = vmatprep.subr.mxu0 0.0
    %4234 = vmatpush1.msra.mxu0 0.0
    %4235 = vmatprep.subr.mxu0 0.0
    %4236 = vmatpush1.msra.mxu0 0.0
    %4237 = vmatprep.subr.mxu0 0.0
    %4238 = vmatpush1.msra.mxu0 0.0
    %4239 = vmatprep.subr.mxu0 0.0
    %4240 = vmatpush1.msra.mxu0 0.0
    %4241 = vmatprep.subr.mxu0 0.0
    %4242 = vmatpush1.msra.mxu0 0.0
    %4243 = vmatprep.subr.mxu0 0.0
    %4244 = vmatpush1.msra.mxu0 0.0
    %4245 = vmatprep.subr.mxu0 0.0
    %4246 = vmatpush1.msra.mxu0 0.0
    %4247 = vmatprep.subr.mxu0 0.0
    %4248 = vmatpush1.msra.mxu0 0.0
    %4249 = vmatprep.subr.mxu0 0.0
    %4250 = vmatpush1.msra.mxu0 0.0
    %4251 = vmatprep.subr.mxu0 0.0
    %4252 = vmatpush1.msra.mxu0 0.0
    %4253 = vmatprep.subr.mxu0 0.0
    %4254 = vmatpush1.msra.mxu0 0.0
    %4255 = vmatprep.subr.mxu0 0.0
    %4256 = vmatpush1.msra.mxu0 0.0
    %4257 = vmatprep.subr.mxu0 0.0
    %4258 = vmatpush1.msra.mxu0 0.0
    %4259 = vmatprep.subr.mxu0 0.0
    %4260 = vmatpush1.msra.mxu0 0.0
    %4261 = vmatprep.subr.mxu0 0.0
    %4262 = vmatpush1.msra.mxu0 0.0
    %4263 = vmatprep.subr.mxu0 0.0
    %4264 = vmatpush1.msra.mxu0 0.0
    %4265 = vmatprep.subr.mxu0 0.0
    %4266 = vmatpush1.msra.mxu0 0.0
    %4267 = vmatprep.subr.mxu0 0.0
    %4268 = vmatpush1.msra.mxu0 0.0
    %4269 = vmatprep.subr.mxu0 0.0
    %4270 = vmatpush1.msra.mxu0 0.0
    %4271 = vmatprep.subr.mxu0 0.0
    %4272 = vmatpush1.msra.mxu0 0.0
    %4273 = vmatprep.subr.mxu0 0.0
    %4274 = vmatpush1.msra.mxu0 0.0
    %4275 = vmatprep.subr.mxu0 0.0
    %4276 = vmatpush1.msra.mxu0 0.0
    %4277 = vmatprep.subr.mxu0 0.0
    %4278 = vmatpush1.msra.mxu0 0.0
    %4279 = vmatprep.subr.mxu0 0.0
    %4280 = vmatpush1.msra.mxu0 0.0
    %4281 = vmatprep.subr.mxu0 0.0
    %4282 = vmatpush1.msra.mxu0 0.0
    %4283 = vmatprep.subr.mxu0 0.0
    %4284 = vmatpush1.msra.mxu0 0.0
    %4285 = vmatprep.subr.mxu0 0.0
    %4286 = vmatpush1.msra.mxu0 0.0
    %4287 = vmatprep.subr.mxu0 0.0
    %4288 = vmatpush1.msra.mxu0 0.0
    %4289 = vmatprep.mubr.f32.mxu0 0.0
    %4290 = vmatmul.mubr.f32.gmra.mrb[0].mxu0 %v3941
    %v4291 = vpop.f32.mrb[0].mxu0
    %v4292 = vadd.f32 %v4222, %v4291
    %v4293 = vpop.f32.mrb[0].mxu0
    %4294 = vdwg.mxu0
    %v4295 = vadd.f32 %v4292, %v200
    %4296 = vmatprep.subr.mxu0 0.0
    %4297 = vmatpush1.msra.mxu0 %v175
    %4298 = vmatprep.subr.mxu0 0.0
    %4299 = vmatpush1.msra.mxu0 %v176
    %4300 = vmatprep.subr.mxu0 0.0
    %4301 = vmatpush1.msra.mxu0 %v177
    %4302 = vmatprep.subr.mxu0 0.0
    %4303 = vmatpush1.msra.mxu0 %v178
    %4304 = vmatprep.subr.mxu0 0.0
    %4305 = vmatpush1.msra.mxu0 0.0
    %4306 = vmatprep.subr.mxu0 0.0
    %4307 = vmatpush1.msra.mxu0 0.0
    %4308 = vmatprep.subr.mxu0 0.0
    %4309 = vmatpush1.msra.mxu0 0.0
    %4310 = vmatprep.subr.mxu0 0.0
    %4311 = vmatpush1.msra.mxu0 0.0
    %4312 = vmatprep.subr.mxu0 0.0
    %4313 = vmatpush1.msra.mxu0 0.0
    %4314 = vmatprep.subr.mxu0 0.0
    %4315 = vmatpush1.msra.mxu0 0.0
    %4316 = vmatprep.subr.mxu0 0.0
    %4317 = vmatpush1.msra.mxu0 0.0
    %4318 = vmatprep.subr.mxu0 0.0
    %4319 = vmatpush1.msra.mxu0 0.0
    %4320 = vmatprep.subr.mxu0 0.0
    %4321 = vmatpush1.msra.mxu0 0.0
    %4322 = vmatprep.subr.mxu0 0.0
    %4323 = vmatpush1.msra.mxu0 0.0
    %4324 = vmatprep.subr.mxu0 0.0
    %4325 = vmatpush1.msra.mxu0 0.0
    %4326 = vmatprep.subr.mxu0 0.0
    %4327 = vmatpush1.msra.mxu0 0.0
    %4328 = vmatprep.subr.mxu0 0.0
    %4329 = vmatpush1.msra.mxu0 0.0
    %4330 = vmatprep.subr.mxu0 0.0
    %4331 = vmatpush1.msra.mxu0 0.0
    %4332 = vmatprep.subr.mxu0 0.0
    %4333 = vmatpush1.msra.mxu0 0.0
    %4334 = vmatprep.subr.mxu0 0.0
    %4335 = vmatpush1.msra.mxu0 0.0
    %4336 = vmatprep.subr.mxu0 0.0
    %4337 = vmatpush1.msra.mxu0 0.0
    %4338 = vmatprep.subr.mxu0 0.0
    %4339 = vmatpush1.msra.mxu0 0.0
    %4340 = vmatprep.subr.mxu0 0.0
    %4341 = vmatpush1.msra.mxu0 0.0
    %4342 = vmatprep.subr.mxu0 0.0
    %4343 = vmatpush1.msra.mxu0 0.0
    %4344 = vmatprep.subr.mxu0 0.0
    %4345 = vmatpush1.msra.mxu0 0.0
    %4346 = vmatprep.subr.mxu0 0.0
    %4347 = vmatpush1.msra.mxu0 0.0
    %4348 = vmatprep.subr.mxu0 0.0
    %4349 = vmatpush1.msra.mxu0 0.0
    %4350 = vmatprep.subr.mxu0 0.0
    %4351 = vmatpush1.msra.mxu0 0.0
    %4352 = vmatprep.subr.mxu0 0.0
    %4353 = vmatpush1.msra.mxu0 0.0
    %4354 = vmatprep.subr.mxu0 0.0
    %4355 = vmatpush1.msra.mxu0 0.0
    %4356 = vmatprep.subr.mxu0 0.0
    %4357 = vmatpush1.msra.mxu0 0.0
    %4358 = vmatprep.subr.mxu0 0.0
    %4359 = vmatpush1.msra.mxu0 0.0
    %4360 = vmatprep.mubr.f32.mxu0 0.0
    %4361 = vmatmul.mubr.f32.gmra.mrb[0].mxu0 %v3345
    %v4362 = vpop.f32.mrb[0].mxu0
    %v4363 = vadd.f32 0.0, %v4362
    %v4364 = vpop.f32.mrb[0].mxu0
    %4365 = vdwg.mxu0
    %4366 = vmatprep.subr.mxu0 0.0
    %4367 = vmatpush1.msra.mxu0 %v797
    %4368 = vmatprep.subr.mxu0 0.0
    %4369 = vmatpush1.msra.mxu0 0.0
    %4370 = vmatprep.subr.mxu0 0.0
    %4371 = vmatpush1.msra.mxu0 0.0
    %4372 = vmatprep.subr.mxu0 0.0
    %4373 = vmatpush1.msra.mxu0 0.0
    %4374 = vmatprep.subr.mxu0 0.0
    %4375 = vmatpush1.msra.mxu0 0.0
    %4376 = vmatprep.subr.mxu0 0.0
    %4377 = vmatpush1.msra.mxu0 0.0
    %4378 = vmatprep.subr.mxu0 0.0
    %4379 = vmatpush1.msra.mxu0 0.0
    %4380 = vmatprep.subr.mxu0 0.0
    %4381 = vmatpush1.msra.mxu0 0.0
    %4382 = vmatprep.subr.mxu0 0.0
    %4383 = vmatpush1.msra.mxu0 0.0
    %4384 = vmatprep.subr.mxu0 0.0
    %4385 = vmatpush1.msra.mxu0 0.0
    %4386 = vmatprep.subr.mxu0 0.0
    %4387 = vmatpush1.msra.mxu0 0.0
    %4388 = vmatprep.subr.mxu0 0.0
    %4389 = vmatpush1.msra.mxu0 0.0
    %4390 = vmatprep.subr.mxu0 0.0
    %4391 = vmatpush1.msra.mxu0 0.0
    %4392 = vmatprep.subr.mxu0 0.0
    %4393 = vmatpush1.msra.mxu0 0.0
    %4394 = vmatprep.subr.mxu0 0.0
    %4395 = vmatpush1.msra.mxu0 0.0
    %4396 = vmatprep.subr.mxu0 0.0
    %4397 = vmatpush1.msra.mxu0 0.0
    %4398 = vmatprep.subr.mxu0 0.0
    %4399 = vmatpush1.msra.mxu0 0.0
    %4400 = vmatprep.subr.mxu0 0.0
    %4401 = vmatpush1.msra.mxu0 0.0
    %4402 = vmatprep.subr.mxu0 0.0
    %4403 = vmatpush1.msra.mxu0 0.0
    %4404 = vmatprep.subr.mxu0 0.0
    %4405 = vmatpush1.msra.mxu0 0.0
    %4406 = vmatprep.subr.mxu0 0.0
    %4407 = vmatpush1.msra.mxu0 0.0
    %4408 = vmatprep.subr.mxu0 0.0
    %4409 = vmatpush1.msra.mxu0 0.0
    %4410 = vmatprep.subr.mxu0 0.0
    %4411 = vmatpush1.msra.mxu0 0.0
    %4412 = vmatprep.subr.mxu0 0.0
    %4413 = vmatpush1.msra.mxu0 0.0
    %4414 = vmatprep.subr.mxu0 0.0
    %4415 = vmatpush1.msra.mxu0 0.0
    %4416 = vmatprep.subr.mxu0 0.0
    %4417 = vmatpush1.msra.mxu0 0.0
    %4418 = vmatprep.subr.mxu0 0.0
    %4419 = vmatpush1.msra.mxu0 0.0
    %4420 = vmatprep.subr.mxu0 0.0
    %4421 = vmatpush1.msra.mxu0 0.0
    %4422 = vmatprep.subr.mxu0 0.0
    %4423 = vmatpush1.msra.mxu0 0.0
    %4424 = vmatprep.subr.mxu0 0.0
    %4425 = vmatpush1.msra.mxu0 0.0
    %4426 = vmatprep.subr.mxu0 0.0
    %4427 = vmatpush1.msra.mxu0 0.0
    %4428 = vmatprep.subr.mxu0 0.0
    %4429 = vmatpush1.msra.mxu0 0.0
    %4430 = vmatprep.mubr.f32.mxu0 0.0
    %4431 = vmatmul.mubr.f32.gmra.mrb[0].mxu0 %v3941
    %v4432 = vpop.f32.mrb[0].mxu0
    %v4433 = vadd.f32 %v4363, %v4432
    %v4434 = vpop.f32.mrb[0].mxu0
    %4435 = vdwg.mxu0
    %v4436 = vadd.f32 %v4433, %v208
    %v4437 = vxor.u32 %v4013, 2147483648
    %v4438 = vmul.f32 %v4437, 1.442695
    %v4439 = vpow.pop %v4438
    %v4440 = vadd.f32 %v4439, 1.0
    %v4441 = vrcp.pop %v4440
    %v4442 = vmul.f32 1.0, %v4441
    %v4443 = vxor.u32 %v4154, 2147483648
    %v4444 = vmul.f32 %v4443, 1.442695
    %v4445 = vpow.pop %v4444
    %v4446 = vadd.f32 %v4445, 1.0
    %v4447 = vrcp.pop %v4446
    %v4448 = vmul.f32 1.0, %v4447
    %v4449 = vtanh.pop %v4295
    %v4450 = vxor.u32 %v4436, 2147483648
    %v4451 = vmul.f32 %v4450, 1.442695
    %v4452 = vpow.pop %v4451
    %v4453 = vadd.f32 %v4452, 1.0
    %v4454 = vrcp.pop %v4453
    %v4455 = vmul.f32 1.0, %v4454
    %v4456 = vmul.f32 %v4448, %v3268
    %v4457 = vmul.f32 %v4442, %v4449
    %v4458 = vadd.f32 %v4456, %v4457
    %v4459 = vtanh.pop %v4458
    %v4460 = vmul.f32 %v4455, %v4459
    %v4462 = vsel %vm281, %v3864, 0
    %4464 = vmatprep.subr.mxu0 0.0
    %4465 = vmatpush1.msra.mxu0 %v229
    %4466 = vmatprep.subr.mxu0 0.0
    %4467 = vmatpush1.msra.mxu0 %v230
    %4468 = vmatprep.subr.mxu0 0.0
    %4469 = vmatpush1.msra.mxu0 %v231
    %4470 = vmatprep.subr.mxu0 0.0
    %4471 = vmatpush1.msra.mxu0 %v232
    %4472 = vmatprep.subr.mxu0 0.0
    %4473 = vmatpush1.msra.mxu0 0.0
    %4474 = vmatprep.subr.mxu0 0.0
    %4475 = vmatpush1.msra.mxu0 0.0
    %4476 = vmatprep.subr.mxu0 0.0
    %4477 = vmatpush1.msra.mxu0 0.0
    %4478 = vmatprep.subr.mxu0 0.0
    %4479 = vmatpush1.msra.mxu0 0.0
    %4480 = vmatprep.subr.mxu0 0.0
    %4481 = vmatpush1.msra.mxu0 0.0
    %4482 = vmatprep.subr.mxu0 0.0
    %4483 = vmatpush1.msra.mxu0 0.0
    %4484 = vmatprep.subr.mxu0 0.0
    %4485 = vmatpush1.msra.mxu0 0.0
    %4486 = vmatprep.subr.mxu0 0.0
    %4487 = vmatpush1.msra.mxu0 0.0
    %4488 = vmatprep.subr.mxu0 0.0
    %4489 = vmatpush1.msra.mxu0 0.0
    %4490 = vmatprep.subr.mxu0 0.0
    %4491 = vmatpush1.msra.mxu0 0.0
    %4492 = vmatprep.subr.mxu0 0.0
    %4493 = vmatpush1.msra.mxu0 0.0
    %4494 = vmatprep.subr.mxu0 0.0
    %4495 = vmatpush1.msra.mxu0 0.0
    %4496 = vmatprep.subr.mxu0 0.0
    %4497 = vmatpush1.msra.mxu0 0.0
    %4498 = vmatprep.subr.mxu0 0.0
    %4499 = vmatpush1.msra.mxu0 0.0
    %4500 = vmatprep.subr.mxu0 0.0
    %4501 = vmatpush1.msra.mxu0 0.0
    %4502 = vmatprep.subr.mxu0 0.0
    %4503 = vmatpush1.msra.mxu0 0.0
    %4504 = vmatprep.subr.mxu0 0.0
    %4505 = vmatpush1.msra.mxu0 0.0
    %4506 = vmatprep.subr.mxu0 0.0
    %4507 = vmatpush1.msra.mxu0 0.0
    %4508 = vmatprep.subr.mxu0 0.0
    %4509 = vmatpush1.msra.mxu0 0.0
    %4510 = vmatprep.subr.mxu0 0.0
    %4511 = vmatpush1.msra.mxu0 0.0
    %4512 = vmatprep.subr.mxu0 0.0
    %4513 = vmatpush1.msra.mxu0 0.0
    %4514 = vmatprep.subr.mxu0 0.0
    %4515 = vmatpush1.msra.mxu0 0.0
    %4516 = vmatprep.subr.mxu0 0.0
    %4517 = vmatpush1.msra.mxu0 0.0
    %4518 = vmatprep.subr.mxu0 0.0
    %4519 = vmatpush1.msra.mxu0 0.0
    %4520 = vmatprep.subr.mxu0 0.0
    %4521 = vmatpush1.msra.mxu0 0.0
    %4522 = vmatprep.subr.mxu0 0.0
    %4523 = vmatpush1.msra.mxu0 0.0
    %4524 = vmatprep.subr.mxu0 0.0
    %4525 = vmatpush1.msra.mxu0 0.0
    %4526 = vmatprep.subr.mxu0 0.0
    %4527 = vmatpush1.msra.mxu0 0.0
    %4528 = vmatprep.mubr.f32.mxu0 0.0
    %4529 = vmatmul.mubr.f32.gmra.mrb[0].mxu0 %v4462
    %v4530 = vpop.f32.mrb[0].mxu0
    %v4531 = vadd.f32 0.0, %v4530
    %v4532 = vpop.f32.mrb[0].mxu0
    %4533 = vdwg.mxu0
    %v4535 = vsel %vm281, %v4460, 0
    %4537 = vmatprep.subr.mxu0 0.0
    %4538 = vmatpush1.msra.mxu0 %v210
    %4539 = vmatprep.subr.mxu0 0.0
    %4540 = vmatpush1.msra.mxu0 %v211
    %4541 = vmatprep.subr.mxu0 0.0
    %4542 = vmatpush1.msra.mxu0 %v212
    %4543 = vmatprep.subr.mxu0 0.0
    %4544 = vmatpush1.msra.mxu0 %v213
    %4545 = vmatprep.subr.mxu0 0.0
    %4546 = vmatpush1.msra.mxu0 0.0
    %4547 = vmatprep.subr.mxu0 0.0
    %4548 = vmatpush1.msra.mxu0 0.0
    %4549 = vmatprep.subr.mxu0 0.0
    %4550 = vmatpush1.msra.mxu0 0.0
    %4551 = vmatprep.subr.mxu0 0.0
    %4552 = vmatpush1.msra.mxu0 0.0
    %4553 = vmatprep.subr.mxu0 0.0
    %4554 = vmatpush1.msra.mxu0 0.0
    %4555 = vmatprep.subr.mxu0 0.0
    %4556 = vmatpush1.msra.mxu0 0.0
    %4557 = vmatprep.subr.mxu0 0.0
    %4558 = vmatpush1.msra.mxu0 0.0
    %4559 = vmatprep.subr.mxu0 0.0
    %4560 = vmatpush1.msra.mxu0 0.0
    %4561 = vmatprep.subr.mxu0 0.0
    %4562 = vmatpush1.msra.mxu0 0.0
    %4563 = vmatprep.subr.mxu0 0.0
    %4564 = vmatpush1.msra.mxu0 0.0
    %4565 = vmatprep.subr.mxu0 0.0
    %4566 = vmatpush1.msra.mxu0 0.0
    %4567 = vmatprep.subr.mxu0 0.0
    %4568 = vmatpush1.msra.mxu0 0.0
    %4569 = vmatprep.subr.mxu0 0.0
    %4570 = vmatpush1.msra.mxu0 0.0
    %4571 = vmatprep.subr.mxu0 0.0
    %4572 = vmatpush1.msra.mxu0 0.0
    %4573 = vmatprep.subr.mxu0 0.0
    %4574 = vmatpush1.msra.mxu0 0.0
    %4575 = vmatprep.subr.mxu0 0.0
    %4576 = vmatpush1.msra.mxu0 0.0
    %4577 = vmatprep.subr.mxu0 0.0
    %4578 = vmatpush1.msra.mxu0 0.0
    %4579 = vmatprep.subr.mxu0 0.0
    %4580 = vmatpush1.msra.mxu0 0.0
    %4581 = vmatprep.subr.mxu0 0.0
    %4582 = vmatpush1.msra.mxu0 0.0
    %4583 = vmatprep.subr.mxu0 0.0
    %4584 = vmatpush1.msra.mxu0 0.0
    %4585 = vmatprep.subr.mxu0 0.0
    %4586 = vmatpush1.msra.mxu0 0.0
    %4587 = vmatprep.subr.mxu0 0.0
    %4588 = vmatpush1.msra.mxu0 0.0
    %4589 = vmatprep.subr.mxu0 0.0
    %4590 = vmatpush1.msra.mxu0 0.0
    %4591 = vmatprep.subr.mxu0 0.0
    %4592 = vmatpush1.msra.mxu0 0.0
    %4593 = vmatprep.subr.mxu0 0.0
    %4594 = vmatpush1.msra.mxu0 0.0
    %4595 = vmatprep.subr.mxu0 0.0
    %4596 = vmatpush1.msra.mxu0 0.0
    %4597 = vmatprep.subr.mxu0 0.0
    %4598 = vmatpush1.msra.mxu0 0.0
    %4599 = vmatprep.subr.mxu0 0.0
    %4600 = vmatpush1.msra.mxu0 0.0
    %4601 = vmatprep.mubr.f32.mxu0 0.0
    %4602 = vmatmul.mubr.f32.gmra.mrb[0].mxu0 %v4535
    %v4603 = vpop.f32.mrb[0].mxu0
    %v4604 = vadd.f32 %v4531, %v4603
    %v4605 = vpop.f32.mrb[0].mxu0
    %4606 = vdwg.mxu0
    %v4607 = vadd.f32 %v4604, %v253
    %4608 = vmatprep.subr.mxu0 0.0
    %4609 = vmatpush1.msra.mxu0 %v234
    %4610 = vmatprep.subr.mxu0 0.0
    %4611 = vmatpush1.msra.mxu0 %v235
    %4612 = vmatprep.subr.mxu0 0.0
    %4613 = vmatpush1.msra.mxu0 %v236
    %4614 = vmatprep.subr.mxu0 0.0
    %4615 = vmatpush1.msra.mxu0 %v237
    %4616 = vmatprep.subr.mxu0 0.0
    %4617 = vmatpush1.msra.mxu0 0.0
    %4618 = vmatprep.subr.mxu0 0.0
    %4619 = vmatpush1.msra.mxu0 0.0
    %4620 = vmatprep.subr.mxu0 0.0
    %4621 = vmatpush1.msra.mxu0 0.0
    %4622 = vmatprep.subr.mxu0 0.0
    %4623 = vmatpush1.msra.mxu0 0.0
    %4624 = vmatprep.subr.mxu0 0.0
    %4625 = vmatpush1.msra.mxu0 0.0
    %4626 = vmatprep.subr.mxu0 0.0
    %4627 = vmatpush1.msra.mxu0 0.0
    %4628 = vmatprep.subr.mxu0 0.0
    %4629 = vmatpush1.msra.mxu0 0.0
    %4630 = vmatprep.subr.mxu0 0.0
    %4631 = vmatpush1.msra.mxu0 0.0
    %4632 = vmatprep.subr.mxu0 0.0
    %4633 = vmatpush1.msra.mxu0 0.0
    %4634 = vmatprep.subr.mxu0 0.0
    %4635 = vmatpush1.msra.mxu0 0.0
    %4636 = vmatprep.subr.mxu0 0.0
    %4637 = vmatpush1.msra.mxu0 0.0
    %4638 = vmatprep.subr.mxu0 0.0
    %4639 = vmatpush1.msra.mxu0 0.0
    %4640 = vmatprep.subr.mxu0 0.0
    %4641 = vmatpush1.msra.mxu0 0.0
    %4642 = vmatprep.subr.mxu0 0.0
    %4643 = vmatpush1.msra.mxu0 0.0
    %4644 = vmatprep.subr.mxu0 0.0
    %4645 = vmatpush1.msra.mxu0 0.0
    %4646 = vmatprep.subr.mxu0 0.0
    %4647 = vmatpush1.msra.mxu0 0.0
    %4648 = vmatprep.subr.mxu0 0.0
    %4649 = vmatpush1.msra.mxu0 0.0
    %4650 = vmatprep.subr.mxu0 0.0
    %4651 = vmatpush1.msra.mxu0 0.0
    %4652 = vmatprep.subr.mxu0 0.0
    %4653 = vmatpush1.msra.mxu0 0.0
    %4654 = vmatprep.subr.mxu0 0.0
    %4655 = vmatpush1.msra.mxu0 0.0
    %4656 = vmatprep.subr.mxu0 0.0
    %4657 = vmatpush1.msra.mxu0 0.0
    %4658 = vmatprep.subr.mxu0 0.0
    %4659 = vmatpush1.msra.mxu0 0.0
    %4660 = vmatprep.subr.mxu0 0.0
    %4661 = vmatpush1.msra.mxu0 0.0
    %4662 = vmatprep.subr.mxu0 0.0
    %4663 = vmatpush1.msra.mxu0 0.0
    %4664 = vmatprep.subr.mxu0 0.0
    %4665 = vmatpush1.msra.mxu0 0.0
    %4666 = vmatprep.subr.mxu0 0.0
    %4667 = vmatpush1.msra.mxu0 0.0
    %4668 = vmatprep.subr.mxu0 0.0
    %4669 = vmatpush1.msra.mxu0 0.0
    %4670 = vmatprep.subr.mxu0 0.0
    %4671 = vmatpush1.msra.mxu0 0.0
    %4672 = vmatprep.mubr.f32.mxu0 0.0
    %4673 = vmatmul.mubr.f32.gmra.mrb[0].mxu0 %v4462
    %v4674 = vpop.f32.mrb[0].mxu0
    %v4675 = vadd.f32 0.0, %v4674
    %v4676 = vpop.f32.mrb[0].mxu0
    %4677 = vdwg.mxu0
    %4678 = vmatprep.subr.mxu0 0.0
    %4679 = vmatpush1.msra.mxu0 %v215
    %4680 = vmatprep.subr.mxu0 0.0
    %4681 = vmatpush1.msra.mxu0 %v216
    %4682 = vmatprep.subr.mxu0 0.0
    %4683 = vmatpush1.msra.mxu0 %v217
    %4684 = vmatprep.subr.mxu0 0.0
    %4685 = vmatpush1.msra.mxu0 %v218
    %4686 = vmatprep.subr.mxu0 0.0
    %4687 = vmatpush1.msra.mxu0 0.0
    %4688 = vmatprep.subr.mxu0 0.0
    %4689 = vmatpush1.msra.mxu0 0.0
    %4690 = vmatprep.subr.mxu0 0.0
    %4691 = vmatpush1.msra.mxu0 0.0
    %4692 = vmatprep.subr.mxu0 0.0
    %4693 = vmatpush1.msra.mxu0 0.0
    %4694 = vmatprep.subr.mxu0 0.0
    %4695 = vmatpush1.msra.mxu0 0.0
    %4696 = vmatprep.subr.mxu0 0.0
    %4697 = vmatpush1.msra.mxu0 0.0
    %4698 = vmatprep.subr.mxu0 0.0
    %4699 = vmatpush1.msra.mxu0 0.0
    %4700 = vmatprep.subr.mxu0 0.0
    %4701 = vmatpush1.msra.mxu0 0.0
    %4702 = vmatprep.subr.mxu0 0.0
    %4703 = vmatpush1.msra.mxu0 0.0
    %4704 = vmatprep.subr.mxu0 0.0
    %4705 = vmatpush1.msra.mxu0 0.0
    %4706 = vmatprep.subr.mxu0 0.0
    %4707 = vmatpush1.msra.mxu0 0.0
    %4708 = vmatprep.subr.mxu0 0.0
    %4709 = vmatpush1.msra.mxu0 0.0
    %4710 = vmatprep.subr.mxu0 0.0
    %4711 = vmatpush1.msra.mxu0 0.0
    %4712 = vmatprep.subr.mxu0 0.0
    %4713 = vmatpush1.msra.mxu0 0.0
    %4714 = vmatprep.subr.mxu0 0.0
    %4715 = vmatpush1.msra.mxu0 0.0
    %4716 = vmatprep.subr.mxu0 0.0
    %4717 = vmatpush1.msra.mxu0 0.0
    %4718 = vmatprep.subr.mxu0 0.0
    %4719 = vmatpush1.msra.mxu0 0.0
    %4720 = vmatprep.subr.mxu0 0.0
    %4721 = vmatpush1.msra.mxu0 0.0
    %4722 = vmatprep.subr.mxu0 0.0
    %4723 = vmatpush1.msra.mxu0 0.0
    %4724 = vmatprep.subr.mxu0 0.0
    %4725 = vmatpush1.msra.mxu0 0.0
    %4726 = vmatprep.subr.mxu0 0.0
    %4727 = vmatpush1.msra.mxu0 0.0
    %4728 = vmatprep.subr.mxu0 0.0
    %4729 = vmatpush1.msra.mxu0 0.0
    %4730 = vmatprep.subr.mxu0 0.0
    %4731 = vmatpush1.msra.mxu0 0.0
    %4732 = vmatprep.subr.mxu0 0.0
    %4733 = vmatpush1.msra.mxu0 0.0
    %4734 = vmatprep.subr.mxu0 0.0
    %4735 = vmatpush1.msra.mxu0 0.0
    %4736 = vmatprep.subr.mxu0 0.0
    %4737 = vmatpush1.msra.mxu0 0.0
    %4738 = vmatprep.subr.mxu0 0.0
    %4739 = vmatpush1.msra.mxu0 0.0
    %4740 = vmatprep.subr.mxu0 0.0
    %4741 = vmatpush1.msra.mxu0 0.0
    %4742 = vmatprep.mubr.f32.mxu0 0.0
    %4743 = vmatmul.mubr.f32.gmra.mrb[0].mxu0 %v4535
    %v4744 = vpop.f32.mrb[0].mxu0
    %v4745 = vadd.f32 %v4675, %v4744
    %v4746 = vpop.f32.mrb[0].mxu0
    %4747 = vdwg.mxu0
    %v4748 = vadd.f32 %v4745, %v261
    %4749 = vmatprep.subr.mxu0 0.0
    %4750 = vmatpush1.msra.mxu0 %v239
    %4751 = vmatprep.subr.mxu0 0.0
    %4752 = vmatpush1.msra.mxu0 %v240
    %4753 = vmatprep.subr.mxu0 0.0
    %4754 = vmatpush1.msra.mxu0 %v241
    %4755 = vmatprep.subr.mxu0 0.0
    %4756 = vmatpush1.msra.mxu0 %v242
    %4757 = vmatprep.subr.mxu0 0.0
    %4758 = vmatpush1.msra.mxu0 0.0
    %4759 = vmatprep.subr.mxu0 0.0
    %4760 = vmatpush1.msra.mxu0 0.0
    %4761 = vmatprep.subr.mxu0 0.0
    %4762 = vmatpush1.msra.mxu0 0.0
    %4763 = vmatprep.subr.mxu0 0.0
    %4764 = vmatpush1.msra.mxu0 0.0
    %4765 = vmatprep.subr.mxu0 0.0
    %4766 = vmatpush1.msra.mxu0 0.0
    %4767 = vmatprep.subr.mxu0 0.0
    %4768 = vmatpush1.msra.mxu0 0.0
    %4769 = vmatprep.subr.mxu0 0.0
    %4770 = vmatpush1.msra.mxu0 0.0
    %4771 = vmatprep.subr.mxu0 0.0
    %4772 = vmatpush1.msra.mxu0 0.0
    %4773 = vmatprep.subr.mxu0 0.0
    %4774 = vmatpush1.msra.mxu0 0.0
    %4775 = vmatprep.subr.mxu0 0.0
    %4776 = vmatpush1.msra.mxu0 0.0
    %4777 = vmatprep.subr.mxu0 0.0
    %4778 = vmatpush1.msra.mxu0 0.0
    %4779 = vmatprep.subr.mxu0 0.0
    %4780 = vmatpush1.msra.mxu0 0.0
    %4781 = vmatprep.subr.mxu0 0.0
    %4782 = vmatpush1.msra.mxu0 0.0
    %4783 = vmatprep.subr.mxu0 0.0
    %4784 = vmatpush1.msra.mxu0 0.0
    %4785 = vmatprep.subr.mxu0 0.0
    %4786 = vmatpush1.msra.mxu0 0.0
    %4787 = vmatprep.subr.mxu0 0.0
    %4788 = vmatpush1.msra.mxu0 0.0
    %4789 = vmatprep.subr.mxu0 0.0
    %4790 = vmatpush1.msra.mxu0 0.0
    %4791 = vmatprep.subr.mxu0 0.0
    %4792 = vmatpush1.msra.mxu0 0.0
    %4793 = vmatprep.subr.mxu0 0.0
    %4794 = vmatpush1.msra.mxu0 0.0
    %4795 = vmatprep.subr.mxu0 0.0
    %4796 = vmatpush1.msra.mxu0 0.0
    %4797 = vmatprep.subr.mxu0 0.0
    %4798 = vmatpush1.msra.mxu0 0.0
    %4799 = vmatprep.subr.mxu0 0.0
    %4800 = vmatpush1.msra.mxu0 0.0
    %4801 = vmatprep.subr.mxu0 0.0
    %4802 = vmatpush1.msra.mxu0 0.0
    %4803 = vmatprep.subr.mxu0 0.0
    %4804 = vmatpush1.msra.mxu0 0.0
    %4805 = vmatprep.subr.mxu0 0.0
    %4806 = vmatpush1.msra.mxu0 0.0
    %4807 = vmatprep.subr.mxu0 0.0
    %4808 = vmatpush1.msra.mxu0 0.0
    %4809 = vmatprep.subr.mxu0 0.0
    %4810 = vmatpush1.msra.mxu0 0.0
    %4811 = vmatprep.subr.mxu0 0.0
    %4812 = vmatpush1.msra.mxu0 0.0
    %4813 = vmatprep.mubr.f32.mxu0 0.0
    %4814 = vmatmul.mubr.f32.gmra.mrb[0].mxu0 %v4462
    %v4815 = vpop.f32.mrb[0].mxu0
    %v4816 = vadd.f32 0.0, %v4815
    %v4817 = vpop.f32.mrb[0].mxu0
    %4818 = vdwg.mxu0
    %4819 = vmatprep.subr.mxu0 0.0
    %4820 = vmatpush1.msra.mxu0 %v220
    %4821 = vmatprep.subr.mxu0 0.0
    %4822 = vmatpush1.msra.mxu0 %v221
    %4823 = vmatprep.subr.mxu0 0.0
    %4824 = vmatpush1.msra.mxu0 %v222
    %4825 = vmatprep.subr.mxu0 0.0
    %4826 = vmatpush1.msra.mxu0 %v223
    %4827 = vmatprep.subr.mxu0 0.0
    %4828 = vmatpush1.msra.mxu0 0.0
    %4829 = vmatprep.subr.mxu0 0.0
    %4830 = vmatpush1.msra.mxu0 0.0
    %4831 = vmatprep.subr.mxu0 0.0
    %4832 = vmatpush1.msra.mxu0 0.0
    %4833 = vmatprep.subr.mxu0 0.0
    %4834 = vmatpush1.msra.mxu0 0.0
    %4835 = vmatprep.subr.mxu0 0.0
    %4836 = vmatpush1.msra.mxu0 0.0
    %4837 = vmatprep.subr.mxu0 0.0
    %4838 = vmatpush1.msra.mxu0 0.0
    %4839 = vmatprep.subr.mxu0 0.0
    %4840 = vmatpush1.msra.mxu0 0.0
    %4841 = vmatprep.subr.mxu0 0.0
    %4842 = vmatpush1.msra.mxu0 0.0
    %4843 = vmatprep.subr.mxu0 0.0
    %4844 = vmatpush1.msra.mxu0 0.0
    %4845 = vmatprep.subr.mxu0 0.0
    %4846 = vmatpush1.msra.mxu0 0.0
    %4847 = vmatprep.subr.mxu0 0.0
    %4848 = vmatpush1.msra.mxu0 0.0
    %4849 = vmatprep.subr.mxu0 0.0
    %4850 = vmatpush1.msra.mxu0 0.0
    %4851 = vmatprep.subr.mxu0 0.0
    %4852 = vmatpush1.msra.mxu0 0.0
    %4853 = vmatprep.subr.mxu0 0.0
    %4854 = vmatpush1.msra.mxu0 0.0
    %4855 = vmatprep.subr.mxu0 0.0
    %4856 = vmatpush1.msra.mxu0 0.0
    %4857 = vmatprep.subr.mxu0 0.0
    %4858 = vmatpush1.msra.mxu0 0.0
    %4859 = vmatprep.subr.mxu0 0.0
    %4860 = vmatpush1.msra.mxu0 0.0
    %4861 = vmatprep.subr.mxu0 0.0
    %4862 = vmatpush1.msra.mxu0 0.0
    %4863 = vmatprep.subr.mxu0 0.0
    %4864 = vmatpush1.msra.mxu0 0.0
    %4865 = vmatprep.subr.mxu0 0.0
    %4866 = vmatpush1.msra.mxu0 0.0
    %4867 = vmatprep.subr.mxu0 0.0
    %4868 = vmatpush1.msra.mxu0 0.0
    %4869 = vmatprep.subr.mxu0 0.0
    %4870 = vmatpush1.msra.mxu0 0.0
    %4871 = vmatprep.subr.mxu0 0.0
    %4872 = vmatpush1.msra.mxu0 0.0
    %4873 = vmatprep.subr.mxu0 0.0
    %4874 = vmatpush1.msra.mxu0 0.0
    %4875 = vmatprep.subr.mxu0 0.0
    %4876 = vmatpush1.msra.mxu0 0.0
    %4877 = vmatprep.subr.mxu0 0.0
    %4878 = vmatpush1.msra.mxu0 0.0
    %4879 = vmatprep.subr.mxu0 0.0
    %4880 = vmatpush1.msra.mxu0 0.0
    %4881 = vmatprep.subr.mxu0 0.0
    %4882 = vmatpush1.msra.mxu0 0.0
    %4883 = vmatprep.mubr.f32.mxu0 0.0
    %4884 = vmatmul.mubr.f32.gmra.mrb[0].mxu0 %v4535
    %v4885 = vpop.f32.mrb[0].mxu0
    %v4886 = vadd.f32 %v4816, %v4885
    %v4887 = vpop.f32.mrb[0].mxu0
    %4888 = vdwg.mxu0
    %v4889 = vadd.f32 %v4886, %v269
    %4890 = vmatprep.subr.mxu0 0.0
    %4891 = vmatpush1.msra.mxu0 %v244
    %4892 = vmatprep.subr.mxu0 0.0
    %4893 = vmatpush1.msra.mxu0 %v245
    %4894 = vmatprep.subr.mxu0 0.0
    %4895 = vmatpush1.msra.mxu0 %v246
    %4896 = vmatprep.subr.mxu0 0.0
    %4897 = vmatpush1.msra.mxu0 %v247
    %4898 = vmatprep.subr.mxu0 0.0
    %4899 = vmatpush1.msra.mxu0 0.0
    %4900 = vmatprep.subr.mxu0 0.0
    %4901 = vmatpush1.msra.mxu0 0.0
    %4902 = vmatprep.subr.mxu0 0.0
    %4903 = vmatpush1.msra.mxu0 0.0
    %4904 = vmatprep.subr.mxu0 0.0
    %4905 = vmatpush1.msra.mxu0 0.0
    %4906 = vmatprep.subr.mxu0 0.0
    %4907 = vmatpush1.msra.mxu0 0.0
    %4908 = vmatprep.subr.mxu0 0.0
    %4909 = vmatpush1.msra.mxu0 0.0
    %4910 = vmatprep.subr.mxu0 0.0
    %4911 = vmatpush1.msra.mxu0 0.0
    %4912 = vmatprep.subr.mxu0 0.0
    %4913 = vmatpush1.msra.mxu0 0.0
    %4914 = vmatprep.subr.mxu0 0.0
    %4915 = vmatpush1.msra.mxu0 0.0
    %4916 = vmatprep.subr.mxu0 0.0
    %4917 = vmatpush1.msra.mxu0 0.0
    %4918 = vmatprep.subr.mxu0 0.0
    %4919 = vmatpush1.msra.mxu0 0.0
    %4920 = vmatprep.subr.mxu0 0.0
    %4921 = vmatpush1.msra.mxu0 0.0
    %4922 = vmatprep.subr.mxu0 0.0
    %4923 = vmatpush1.msra.mxu0 0.0
    %4924 = vmatprep.subr.mxu0 0.0
    %4925 = vmatpush1.msra.mxu0 0.0
    %4926 = vmatprep.subr.mxu0 0.0
    %4927 = vmatpush1.msra.mxu0 0.0
    %4928 = vmatprep.subr.mxu0 0.0
    %4929 = vmatpush1.msra.mxu0 0.0
    %4930 = vmatprep.subr.mxu0 0.0
    %4931 = vmatpush1.msra.mxu0 0.0
    %4932 = vmatprep.subr.mxu0 0.0
    %4933 = vmatpush1.msra.mxu0 0.0
    %4934 = vmatprep.subr.mxu0 0.0
    %4935 = vmatpush1.msra.mxu0 0.0
    %4936 = vmatprep.subr.mxu0 0.0
    %4937 = vmatpush1.msra.mxu0 0.0
    %4938 = vmatprep.subr.mxu0 0.0
    %4939 = vmatpush1.msra.mxu0 0.0
    %4940 = vmatprep.subr.mxu0 0.0
    %4941 = vmatpush1.msra.mxu0 0.0
    %4942 = vmatprep.subr.mxu0 0.0
    %4943 = vmatpush1.msra.mxu0 0.0
    %4944 = vmatprep.subr.mxu0 0.0
    %4945 = vmatpush1.msra.mxu0 0.0
    %4946 = vmatprep.subr.mxu0 0.0
    %4947 = vmatpush1.msra.mxu0 0.0
    %4948 = vmatprep.subr.mxu0 0.0
    %4949 = vmatpush1.msra.mxu0 0.0
    %4950 = vmatprep.subr.mxu0 0.0
    %4951 = vmatpush1.msra.mxu0 0.0
    %4952 = vmatprep.subr.mxu0 0.0
    %4953 = vmatpush1.msra.mxu0 0.0
    %4954 = vmatprep.mubr.f32.mxu0 0.0
    %4955 = vmatmul.mubr.f32.gmra.mrb[0].mxu0 %v4462
    %v4956 = vpop.f32.mrb[0].mxu0
    %v4957 = vadd.f32 0.0, %v4956
    %v4958 = vpop.f32.mrb[0].mxu0
    %4959 = vdwg.mxu0
    %4960 = vmatprep.subr.mxu0 0.0
    %4961 = vmatpush1.msra.mxu0 %v225
    %4962 = vmatprep.subr.mxu0 0.0
    %4963 = vmatpush1.msra.mxu0 %v226
    %4964 = vmatprep.subr.mxu0 0.0
    %4965 = vmatpush1.msra.mxu0 %v227
    %4966 = vmatprep.subr.mxu0 0.0
    %4967 = vmatpush1.msra.mxu0 %v228
    %4968 = vmatprep.subr.mxu0 0.0
    %4969 = vmatpush1.msra.mxu0 0.0
    %4970 = vmatprep.subr.mxu0 0.0
    %4971 = vmatpush1.msra.mxu0 0.0
    %4972 = vmatprep.subr.mxu0 0.0
    %4973 = vmatpush1.msra.mxu0 0.0
    %4974 = vmatprep.subr.mxu0 0.0
    %4975 = vmatpush1.msra.mxu0 0.0
    %4976 = vmatprep.subr.mxu0 0.0
    %4977 = vmatpush1.msra.mxu0 0.0
    %4978 = vmatprep.subr.mxu0 0.0
    %4979 = vmatpush1.msra.mxu0 0.0
    %4980 = vmatprep.subr.mxu0 0.0
    %4981 = vmatpush1.msra.mxu0 0.0
    %4982 = vmatprep.subr.mxu0 0.0
    %4983 = vmatpush1.msra.mxu0 0.0
    %4984 = vmatprep.subr.mxu0 0.0
    %4985 = vmatpush1.msra.mxu0 0.0
    %4986 = vmatprep.subr.mxu0 0.0
    %4987 = vmatpush1.msra.mxu0 0.0
    %4988 = vmatprep.subr.mxu0 0.0
    %4989 = vmatpush1.msra.mxu0 0.0
    %4990 = vmatprep.subr.mxu0 0.0
    %4991 = vmatpush1.msra.mxu0 0.0
    %4992 = vmatprep.subr.mxu0 0.0
    %4993 = vmatpush1.msra.mxu0 0.0
    %4994 = vmatprep.subr.mxu0 0.0
    %4995 = vmatpush1.msra.mxu0 0.0
    %4996 = vmatprep.subr.mxu0 0.0
    %4997 = vmatpush1.msra.mxu0 0.0
    %4998 = vmatprep.subr.mxu0 0.0
    %4999 = vmatpush1.msra.mxu0 0.0
    %5000 = vmatprep.subr.mxu0 0.0
    %5001 = vmatpush1.msra.mxu0 0.0
    %5002 = vmatprep.subr.mxu0 0.0
    %5003 = vmatpush1.msra.mxu0 0.0
    %5004 = vmatprep.subr.mxu0 0.0
    %5005 = vmatpush1.msra.mxu0 0.0
    %5006 = vmatprep.subr.mxu0 0.0
    %5007 = vmatpush1.msra.mxu0 0.0
    %5008 = vmatprep.subr.mxu0 0.0
    %5009 = vmatpush1.msra.mxu0 0.0
    %5010 = vmatprep.subr.mxu0 0.0
    %5011 = vmatpush1.msra.mxu0 0.0
    %5012 = vmatprep.subr.mxu0 0.0
    %5013 = vmatpush1.msra.mxu0 0.0
    %5014 = vmatprep.subr.mxu0 0.0
    %5015 = vmatpush1.msra.mxu0 0.0
    %5016 = vmatprep.subr.mxu0 0.0
    %5017 = vmatpush1.msra.mxu0 0.0
    %5018 = vmatprep.subr.mxu0 0.0
    %5019 = vmatpush1.msra.mxu0 0.0
    %5020 = vmatprep.subr.mxu0 0.0
    %5021 = vmatpush1.msra.mxu0 0.0
    %5022 = vmatprep.subr.mxu0 0.0
    %5023 = vmatpush1.msra.mxu0 0.0
    %5024 = vmatprep.mubr.f32.mxu0 0.0
    %5025 = vmatmul.mubr.f32.gmra.mrb[0].mxu0 %v4535
    %v5026 = vpop.f32.mrb[0].mxu0
    %v5027 = vadd.f32 %v4957, %v5026
    %v5028 = vpop.f32.mrb[0].mxu0
    %5029 = vdwg.mxu0
    %v5030 = vadd.f32 %v5027, %v277
    %v5031 = vxor.u32 %v4607, 2147483648
    %v5032 = vmul.f32 %v5031, 1.442695
    %v5033 = vpow.pop %v5032
    %v5034 = vadd.f32 %v5033, 1.0
    %v5035 = vrcp.pop %v5034
    %v5036 = vmul.f32 1.0, %v5035
    %v5037 = vxor.u32 %v4748, 2147483648
    %v5038 = vmul.f32 %v5037, 1.442695
    %v5039 = vpow.pop %v5038
    %v5040 = vadd.f32 %v5039, 1.0
    %v5041 = vrcp.pop %v5040
    %v5042 = vmul.f32 1.0, %v5041
    %v5043 = vtanh.pop %v4889
    %v5044 = vxor.u32 %v5030, 2147483648
    %v5045 = vmul.f32 %v5044, 1.442695
    %v5046 = vpow.pop %v5045
    %v5047 = vadd.f32 %v5046, 1.0
    %v5048 = vrcp.pop %v5047
    %v5049 = vmul.f32 1.0, %v5048
    %v5050 = vmul.f32 %v5042, %v3862
    %v5051 = vmul.f32 %v5036, %v5043
    %v5052 = vadd.f32 %v5050, %v5051
    %v5053 = vtanh.pop %v5052
    %v5054 = vmul.f32 %v5049, %v5053
    %v5055 = vld [vmem:[%s0 + $0x4] sm:$0x1]
    %v5056 = vld [vmem:[%s0 + $0xc] sm:$0x1]
    %5057 = vmatprep.subr.mxu0 0.0
    %5058 = vmatpush1.msra.mxu0 %v160
    %5059 = vmatprep.subr.mxu0 0.0
    %5060 = vmatpush1.msra.mxu0 %v161
    %5061 = vmatprep.subr.mxu0 0.0
    %5062 = vmatpush1.msra.mxu0 %v162
    %5063 = vmatprep.subr.mxu0 0.0
    %5064 = vmatpush1.msra.mxu0 %v163
    %5065 = vmatprep.subr.mxu0 0.0
    %5066 = vmatpush1.msra.mxu0 0.0
    %5067 = vmatprep.subr.mxu0 0.0
    %5068 = vmatpush1.msra.mxu0 0.0
    %5069 = vmatprep.subr.mxu0 0.0
    %5070 = vmatpush1.msra.mxu0 0.0
    %5071 = vmatprep.subr.mxu0 0.0
    %5072 = vmatpush1.msra.mxu0 0.0
    %5073 = vmatprep.subr.mxu0 0.0
    %5074 = vmatpush1.msra.mxu0 0.0
    %5075 = vmatprep.subr.mxu0 0.0
    %5076 = vmatpush1.msra.mxu0 0.0
    %5077 = vmatprep.subr.mxu0 0.0
    %5078 = vmatpush1.msra.mxu0 0.0
    %5079 = vmatprep.subr.mxu0 0.0
    %5080 = vmatpush1.msra.mxu0 0.0
    %5081 = vmatprep.subr.mxu0 0.0
    %5082 = vmatpush1.msra.mxu0 0.0
    %5083 = vmatprep.subr.mxu0 0.0
    %5084 = vmatpush1.msra.mxu0 0.0
    %5085 = vmatprep.subr.mxu0 0.0
    %5086 = vmatpush1.msra.mxu0 0.0
    %5087 = vmatprep.subr.mxu0 0.0
    %5088 = vmatpush1.msra.mxu0 0.0
    %5089 = vmatprep.subr.mxu0 0.0
    %5090 = vmatpush1.msra.mxu0 0.0
    %5091 = vmatprep.subr.mxu0 0.0
    %5092 = vmatpush1.msra.mxu0 0.0
    %5093 = vmatprep.subr.mxu0 0.0
    %5094 = vmatpush1.msra.mxu0 0.0
    %5095 = vmatprep.subr.mxu0 0.0
    %5096 = vmatpush1.msra.mxu0 0.0
    %5097 = vmatprep.subr.mxu0 0.0
    %5098 = vmatpush1.msra.mxu0 0.0
    %5099 = vmatprep.subr.mxu0 0.0
    %5100 = vmatpush1.msra.mxu0 0.0
    %5101 = vmatprep.subr.mxu0 0.0
    %5102 = vmatpush1.msra.mxu0 0.0
    %5103 = vmatprep.subr.mxu0 0.0
    %5104 = vmatpush1.msra.mxu0 0.0
    %5105 = vmatprep.subr.mxu0 0.0
    %5106 = vmatpush1.msra.mxu0 0.0
    %5107 = vmatprep.subr.mxu0 0.0
    %5108 = vmatpush1.msra.mxu0 0.0
    %5109 = vmatprep.subr.mxu0 0.0
    %5110 = vmatpush1.msra.mxu0 0.0
    %5111 = vmatprep.subr.mxu0 0.0
    %5112 = vmatpush1.msra.mxu0 0.0
    %5113 = vmatprep.subr.mxu0 0.0
    %5114 = vmatpush1.msra.mxu0 0.0
    %5115 = vmatprep.subr.mxu0 0.0
    %5116 = vmatpush1.msra.mxu0 0.0
    %5117 = vmatprep.subr.mxu0 0.0
    %5118 = vmatpush1.msra.mxu0 0.0
    %5119 = vmatprep.subr.mxu0 0.0
    %5120 = vmatpush1.msra.mxu0 0.0
    %5121 = vmatprep.mubr.f32.mxu0 0.0
    %5122 = vmatmul.mubr.f32.gmra.mrb[0].mxu0 %v4535
    %v5123 = vpop.f32.mrb[0].mxu0
    %v5124 = vadd.f32 0.0, %v5123
    %v5125 = vpop.f32.mrb[0].mxu0
    %5126 = vdwg.mxu0
    %v5129 = vrot.slane %v5056, 7
    %v5130 = vsel %vm358, %v5129, %v5055
    %v5131 = vsel %vm360, %v5130, 0
    %5133 = vmatprep.subr.mxu0 0.0
    %5134 = vmatpush1.msra.mxu0 %v365
    %5135 = vmatprep.subr.mxu0 0.0
    %5136 = vmatpush1.msra.mxu0 0.0
    %5137 = vmatprep.subr.mxu0 0.0
    %5138 = vmatpush1.msra.mxu0 0.0
    %5139 = vmatprep.subr.mxu0 0.0
    %5140 = vmatpush1.msra.mxu0 0.0
    %5141 = vmatprep.subr.mxu0 0.0
    %5142 = vmatpush1.msra.mxu0 0.0
    %5143 = vmatprep.subr.mxu0 0.0
    %5144 = vmatpush1.msra.mxu0 0.0
    %5145 = vmatprep.subr.mxu0 0.0
    %5146 = vmatpush1.msra.mxu0 0.0
    %5147 = vmatprep.subr.mxu0 0.0
    %5148 = vmatpush1.msra.mxu0 0.0
    %5149 = vmatprep.subr.mxu0 0.0
    %5150 = vmatpush1.msra.mxu0 0.0
    %5151 = vmatprep.subr.mxu0 0.0
    %5152 = vmatpush1.msra.mxu0 0.0
    %5153 = vmatprep.subr.mxu0 0.0
    %5154 = vmatpush1.msra.mxu0 0.0
    %5155 = vmatprep.subr.mxu0 0.0
    %5156 = vmatpush1.msra.mxu0 0.0
    %5157 = vmatprep.subr.mxu0 0.0
    %5158 = vmatpush1.msra.mxu0 0.0
    %5159 = vmatprep.subr.mxu0 0.0
    %5160 = vmatpush1.msra.mxu0 0.0
    %5161 = vmatprep.subr.mxu0 0.0
    %5162 = vmatpush1.msra.mxu0 0.0
    %5163 = vmatprep.subr.mxu0 0.0
    %5164 = vmatpush1.msra.mxu0 0.0
    %5165 = vmatprep.subr.mxu0 0.0
    %5166 = vmatpush1.msra.mxu0 0.0
    %5167 = vmatprep.subr.mxu0 0.0
    %5168 = vmatpush1.msra.mxu0 0.0
    %5169 = vmatprep.subr.mxu0 0.0
    %5170 = vmatpush1.msra.mxu0 0.0
    %5171 = vmatprep.subr.mxu0 0.0
    %5172 = vmatpush1.msra.mxu0 0.0
    %5173 = vmatprep.subr.mxu0 0.0
    %5174 = vmatpush1.msra.mxu0 0.0
    %5175 = vmatprep.subr.mxu0 0.0
    %5176 = vmatpush1.msra.mxu0 0.0
    %5177 = vmatprep.subr.mxu0 0.0
    %5178 = vmatpush1.msra.mxu0 0.0
    %5179 = vmatprep.subr.mxu0 0.0
    %5180 = vmatpush1.msra.mxu0 0.0
    %5181 = vmatprep.subr.mxu0 0.0
    %5182 = vmatpush1.msra.mxu0 0.0
    %5183 = vmatprep.subr.mxu0 0.0
    %5184 = vmatpush1.msra.mxu0 0.0
    %5185 = vmatprep.subr.mxu0 0.0
    %5186 = vmatpush1.msra.mxu0 0.0
    %5187 = vmatprep.subr.mxu0 0.0
    %5188 = vmatpush1.msra.mxu0 0.0
    %5189 = vmatprep.subr.mxu0 0.0
    %5190 = vmatpush1.msra.mxu0 0.0
    %5191 = vmatprep.subr.mxu0 0.0
    %5192 = vmatpush1.msra.mxu0 0.0
    %5193 = vmatprep.subr.mxu0 0.0
    %5194 = vmatpush1.msra.mxu0 0.0
    %5195 = vmatprep.subr.mxu0 0.0
    %5196 = vmatpush1.msra.mxu0 0.0
    %5197 = vmatprep.mubr.f32.mxu0 0.0
    %5198 = vmatmul.mubr.f32.gmra.mrb[0].mxu0 %v5131
    %v5199 = vpop.f32.mrb[0].mxu0
    %v5200 = vadd.f32 %v5124, %v5199
    %v5201 = vpop.f32.mrb[0].mxu0
    %5202 = vdwg.mxu0
    %v5203 = vadd.f32 %v5200, %v184
    %5204 = vmatprep.subr.mxu0 0.0
    %5205 = vmatpush1.msra.mxu0 %v165
    %5206 = vmatprep.subr.mxu0 0.0
    %5207 = vmatpush1.msra.mxu0 %v166
    %5208 = vmatprep.subr.mxu0 0.0
    %5209 = vmatpush1.msra.mxu0 %v167
    %5210 = vmatprep.subr.mxu0 0.0
    %5211 = vmatpush1.msra.mxu0 %v168
    %5212 = vmatprep.subr.mxu0 0.0
    %5213 = vmatpush1.msra.mxu0 0.0
    %5214 = vmatprep.subr.mxu0 0.0
    %5215 = vmatpush1.msra.mxu0 0.0
    %5216 = vmatprep.subr.mxu0 0.0
    %5217 = vmatpush1.msra.mxu0 0.0
    %5218 = vmatprep.subr.mxu0 0.0
    %5219 = vmatpush1.msra.mxu0 0.0
    %5220 = vmatprep.subr.mxu0 0.0
    %5221 = vmatpush1.msra.mxu0 0.0
    %5222 = vmatprep.subr.mxu0 0.0
    %5223 = vmatpush1.msra.mxu0 0.0
    %5224 = vmatprep.subr.mxu0 0.0
    %5225 = vmatpush1.msra.mxu0 0.0
    %5226 = vmatprep.subr.mxu0 0.0
    %5227 = vmatpush1.msra.mxu0 0.0
    %5228 = vmatprep.subr.mxu0 0.0
    %5229 = vmatpush1.msra.mxu0 0.0
    %5230 = vmatprep.subr.mxu0 0.0
    %5231 = vmatpush1.msra.mxu0 0.0
    %5232 = vmatprep.subr.mxu0 0.0
    %5233 = vmatpush1.msra.mxu0 0.0
    %5234 = vmatprep.subr.mxu0 0.0
    %5235 = vmatpush1.msra.mxu0 0.0
    %5236 = vmatprep.subr.mxu0 0.0
    %5237 = vmatpush1.msra.mxu0 0.0
    %5238 = vmatprep.subr.mxu0 0.0
    %5239 = vmatpush1.msra.mxu0 0.0
    %5240 = vmatprep.subr.mxu0 0.0
    %5241 = vmatpush1.msra.mxu0 0.0
    %5242 = vmatprep.subr.mxu0 0.0
    %5243 = vmatpush1.msra.mxu0 0.0
    %5244 = vmatprep.subr.mxu0 0.0
    %5245 = vmatpush1.msra.mxu0 0.0
    %5246 = vmatprep.subr.mxu0 0.0
    %5247 = vmatpush1.msra.mxu0 0.0
    %5248 = vmatprep.subr.mxu0 0.0
    %5249 = vmatpush1.msra.mxu0 0.0
    %5250 = vmatprep.subr.mxu0 0.0
    %5251 = vmatpush1.msra.mxu0 0.0
    %5252 = vmatprep.subr.mxu0 0.0
    %5253 = vmatpush1.msra.mxu0 0.0
    %5254 = vmatprep.subr.mxu0 0.0
    %5255 = vmatpush1.msra.mxu0 0.0
    %5256 = vmatprep.subr.mxu0 0.0
    %5257 = vmatpush1.msra.mxu0 0.0
    %5258 = vmatprep.subr.mxu0 0.0
    %5259 = vmatpush1.msra.mxu0 0.0
    %5260 = vmatprep.subr.mxu0 0.0
    %5261 = vmatpush1.msra.mxu0 0.0
    %5262 = vmatprep.subr.mxu0 0.0
    %5263 = vmatpush1.msra.mxu0 0.0
    %5264 = vmatprep.subr.mxu0 0.0
    %5265 = vmatpush1.msra.mxu0 0.0
    %5266 = vmatprep.subr.mxu0 0.0
    %5267 = vmatpush1.msra.mxu0 0.0
    %5268 = vmatprep.mubr.f32.mxu0 0.0
    %5269 = vmatmul.mubr.f32.gmra.mrb[0].mxu0 %v4535
    %v5270 = vpop.f32.mrb[0].mxu0
    %v5271 = vadd.f32 0.0, %v5270
    %v5272 = vpop.f32.mrb[0].mxu0
    %5273 = vdwg.mxu0
    %5274 = vmatprep.subr.mxu0 0.0
    %5275 = vmatpush1.msra.mxu0 %v509
    %5276 = vmatprep.subr.mxu0 0.0
    %5277 = vmatpush1.msra.mxu0 0.0
    %5278 = vmatprep.subr.mxu0 0.0
    %5279 = vmatpush1.msra.mxu0 0.0
    %5280 = vmatprep.subr.mxu0 0.0
    %5281 = vmatpush1.msra.mxu0 0.0
    %5282 = vmatprep.subr.mxu0 0.0
    %5283 = vmatpush1.msra.mxu0 0.0
    %5284 = vmatprep.subr.mxu0 0.0
    %5285 = vmatpush1.msra.mxu0 0.0
    %5286 = vmatprep.subr.mxu0 0.0
    %5287 = vmatpush1.msra.mxu0 0.0
    %5288 = vmatprep.subr.mxu0 0.0
    %5289 = vmatpush1.msra.mxu0 0.0
    %5290 = vmatprep.subr.mxu0 0.0
    %5291 = vmatpush1.msra.mxu0 0.0
    %5292 = vmatprep.subr.mxu0 0.0
    %5293 = vmatpush1.msra.mxu0 0.0
    %5294 = vmatprep.subr.mxu0 0.0
    %5295 = vmatpush1.msra.mxu0 0.0
    %5296 = vmatprep.subr.mxu0 0.0
    %5297 = vmatpush1.msra.mxu0 0.0
    %5298 = vmatprep.subr.mxu0 0.0
    %5299 = vmatpush1.msra.mxu0 0.0
    %5300 = vmatprep.subr.mxu0 0.0
    %5301 = vmatpush1.msra.mxu0 0.0
    %5302 = vmatprep.subr.mxu0 0.0
    %5303 = vmatpush1.msra.mxu0 0.0
    %5304 = vmatprep.subr.mxu0 0.0
    %5305 = vmatpush1.msra.mxu0 0.0
    %5306 = vmatprep.subr.mxu0 0.0
    %5307 = vmatpush1.msra.mxu0 0.0
    %5308 = vmatprep.subr.mxu0 0.0
    %5309 = vmatpush1.msra.mxu0 0.0
    %5310 = vmatprep.subr.mxu0 0.0
    %5311 = vmatpush1.msra.mxu0 0.0
    %5312 = vmatprep.subr.mxu0 0.0
    %5313 = vmatpush1.msra.mxu0 0.0
    %5314 = vmatprep.subr.mxu0 0.0
    %5315 = vmatpush1.msra.mxu0 0.0
    %5316 = vmatprep.subr.mxu0 0.0
    %5317 = vmatpush1.msra.mxu0 0.0
    %5318 = vmatprep.subr.mxu0 0.0
    %5319 = vmatpush1.msra.mxu0 0.0
    %5320 = vmatprep.subr.mxu0 0.0
    %5321 = vmatpush1.msra.mxu0 0.0
    %5322 = vmatprep.subr.mxu0 0.0
    %5323 = vmatpush1.msra.mxu0 0.0
    %5324 = vmatprep.subr.mxu0 0.0
    %5325 = vmatpush1.msra.mxu0 0.0
    %5326 = vmatprep.subr.mxu0 0.0
    %5327 = vmatpush1.msra.mxu0 0.0
    %5328 = vmatprep.subr.mxu0 0.0
    %5329 = vmatpush1.msra.mxu0 0.0
    %5330 = vmatprep.subr.mxu0 0.0
    %5331 = vmatpush1.msra.mxu0 0.0
    %5332 = vmatprep.subr.mxu0 0.0
    %5333 = vmatpush1.msra.mxu0 0.0
    %5334 = vmatprep.subr.mxu0 0.0
    %5335 = vmatpush1.msra.mxu0 0.0
    %5336 = vmatprep.subr.mxu0 0.0
    %5337 = vmatpush1.msra.mxu0 0.0
    %5338 = vmatprep.mubr.f32.mxu0 0.0
    %5339 = vmatmul.mubr.f32.gmra.mrb[0].mxu0 %v5131
    %v5340 = vpop.f32.mrb[0].mxu0
    %v5341 = vadd.f32 %v5271, %v5340
    %v5342 = vpop.f32.mrb[0].mxu0
    %5343 = vdwg.mxu0
    %v5344 = vadd.f32 %v5341, %v192
    %5345 = vmatprep.subr.mxu0 0.0
    %5346 = vmatpush1.msra.mxu0 %v170
    %5347 = vmatprep.subr.mxu0 0.0
    %5348 = vmatpush1.msra.mxu0 %v171
    %5349 = vmatprep.subr.mxu0 0.0
    %5350 = vmatpush1.msra.mxu0 %v172
    %5351 = vmatprep.subr.mxu0 0.0
    %5352 = vmatpush1.msra.mxu0 %v173
    %5353 = vmatprep.subr.mxu0 0.0
    %5354 = vmatpush1.msra.mxu0 0.0
    %5355 = vmatprep.subr.mxu0 0.0
    %5356 = vmatpush1.msra.mxu0 0.0
    %5357 = vmatprep.subr.mxu0 0.0
    %5358 = vmatpush1.msra.mxu0 0.0
    %5359 = vmatprep.subr.mxu0 0.0
    %5360 = vmatpush1.msra.mxu0 0.0
    %5361 = vmatprep.subr.mxu0 0.0
    %5362 = vmatpush1.msra.mxu0 0.0
    %5363 = vmatprep.subr.mxu0 0.0
    %5364 = vmatpush1.msra.mxu0 0.0
    %5365 = vmatprep.subr.mxu0 0.0
    %5366 = vmatpush1.msra.mxu0 0.0
    %5367 = vmatprep.subr.mxu0 0.0
    %5368 = vmatpush1.msra.mxu0 0.0
    %5369 = vmatprep.subr.mxu0 0.0
    %5370 = vmatpush1.msra.mxu0 0.0
    %5371 = vmatprep.subr.mxu0 0.0
    %5372 = vmatpush1.msra.mxu0 0.0
    %5373 = vmatprep.subr.mxu0 0.0
    %5374 = vmatpush1.msra.mxu0 0.0
    %5375 = vmatprep.subr.mxu0 0.0
    %5376 = vmatpush1.msra.mxu0 0.0
    %5377 = vmatprep.subr.mxu0 0.0
    %5378 = vmatpush1.msra.mxu0 0.0
    %5379 = vmatprep.subr.mxu0 0.0
    %5380 = vmatpush1.msra.mxu0 0.0
    %5381 = vmatprep.subr.mxu0 0.0
    %5382 = vmatpush1.msra.mxu0 0.0
    %5383 = vmatprep.subr.mxu0 0.0
    %5384 = vmatpush1.msra.mxu0 0.0
    %5385 = vmatprep.subr.mxu0 0.0
    %5386 = vmatpush1.msra.mxu0 0.0
    %5387 = vmatprep.subr.mxu0 0.0
    %5388 = vmatpush1.msra.mxu0 0.0
    %5389 = vmatprep.subr.mxu0 0.0
    %5390 = vmatpush1.msra.mxu0 0.0
    %5391 = vmatprep.subr.mxu0 0.0
    %5392 = vmatpush1.msra.mxu0 0.0
    %5393 = vmatprep.subr.mxu0 0.0
    %5394 = vmatpush1.msra.mxu0 0.0
    %5395 = vmatprep.subr.mxu0 0.0
    %5396 = vmatpush1.msra.mxu0 0.0
    %5397 = vmatprep.subr.mxu0 0.0
    %5398 = vmatpush1.msra.mxu0 0.0
    %5399 = vmatprep.subr.mxu0 0.0
    %5400 = vmatpush1.msra.mxu0 0.0
    %5401 = vmatprep.subr.mxu0 0.0
    %5402 = vmatpush1.msra.mxu0 0.0
    %5403 = vmatprep.subr.mxu0 0.0
    %5404 = vmatpush1.msra.mxu0 0.0
    %5405 = vmatprep.subr.mxu0 0.0
    %5406 = vmatpush1.msra.mxu0 0.0
    %5407 = vmatprep.subr.mxu0 0.0
    %5408 = vmatpush1.msra.mxu0 0.0
    %5409 = vmatprep.mubr.f32.mxu0 0.0
    %5410 = vmatmul.mubr.f32.gmra.mrb[0].mxu0 %v4535
    %v5411 = vpop.f32.mrb[0].mxu0
    %v5412 = vadd.f32 0.0, %v5411
    %v5413 = vpop.f32.mrb[0].mxu0
    %5414 = vdwg.mxu0
    %5415 = vmatprep.subr.mxu0 0.0
    %5416 = vmatpush1.msra.mxu0 %v653
    %5417 = vmatprep.subr.mxu0 0.0
    %5418 = vmatpush1.msra.mxu0 0.0
    %5419 = vmatprep.subr.mxu0 0.0
    %5420 = vmatpush1.msra.mxu0 0.0
    %5421 = vmatprep.subr.mxu0 0.0
    %5422 = vmatpush1.msra.mxu0 0.0
    %5423 = vmatprep.subr.mxu0 0.0
    %5424 = vmatpush1.msra.mxu0 0.0
    %5425 = vmatprep.subr.mxu0 0.0
    %5426 = vmatpush1.msra.mxu0 0.0
    %5427 = vmatprep.subr.mxu0 0.0
    %5428 = vmatpush1.msra.mxu0 0.0
    %5429 = vmatprep.subr.mxu0 0.0
    %5430 = vmatpush1.msra.mxu0 0.0
    %5431 = vmatprep.subr.mxu0 0.0
    %5432 = vmatpush1.msra.mxu0 0.0
    %5433 = vmatprep.subr.mxu0 0.0
    %5434 = vmatpush1.msra.mxu0 0.0
    %5435 = vmatprep.subr.mxu0 0.0
    %5436 = vmatpush1.msra.mxu0 0.0
    %5437 = vmatprep.subr.mxu0 0.0
    %5438 = vmatpush1.msra.mxu0 0.0
    %5439 = vmatprep.subr.mxu0 0.0
    %5440 = vmatpush1.msra.mxu0 0.0
    %5441 = vmatprep.subr.mxu0 0.0
    %5442 = vmatpush1.msra.mxu0 0.0
    %5443 = vmatprep.subr.mxu0 0.0
    %5444 = vmatpush1.msra.mxu0 0.0
    %5445 = vmatprep.subr.mxu0 0.0
    %5446 = vmatpush1.msra.mxu0 0.0
    %5447 = vmatprep.subr.mxu0 0.0
    %5448 = vmatpush1.msra.mxu0 0.0
    %5449 = vmatprep.subr.mxu0 0.0
    %5450 = vmatpush1.msra.mxu0 0.0
    %5451 = vmatprep.subr.mxu0 0.0
    %5452 = vmatpush1.msra.mxu0 0.0
    %5453 = vmatprep.subr.mxu0 0.0
    %5454 = vmatpush1.msra.mxu0 0.0
    %5455 = vmatprep.subr.mxu0 0.0
    %5456 = vmatpush1.msra.mxu0 0.0
    %5457 = vmatprep.subr.mxu0 0.0
    %5458 = vmatpush1.msra.mxu0 0.0
    %5459 = vmatprep.subr.mxu0 0.0
    %5460 = vmatpush1.msra.mxu0 0.0
    %5461 = vmatprep.subr.mxu0 0.0
    %5462 = vmatpush1.msra.mxu0 0.0
    %5463 = vmatprep.subr.mxu0 0.0
    %5464 = vmatpush1.msra.mxu0 0.0
    %5465 = vmatprep.subr.mxu0 0.0
    %5466 = vmatpush1.msra.mxu0 0.0
    %5467 = vmatprep.subr.mxu0 0.0
    %5468 = vmatpush1.msra.mxu0 0.0
    %5469 = vmatprep.subr.mxu0 0.0
    %5470 = vmatpush1.msra.mxu0 0.0
    %5471 = vmatprep.subr.mxu0 0.0
    %5472 = vmatpush1.msra.mxu0 0.0
    %5473 = vmatprep.subr.mxu0 0.0
    %5474 = vmatpush1.msra.mxu0 0.0
    %5475 = vmatprep.subr.mxu0 0.0
    %5476 = vmatpush1.msra.mxu0 0.0
    %5477 = vmatprep.subr.mxu0 0.0
    %5478 = vmatpush1.msra.mxu0 0.0
    %5479 = vmatprep.mubr.f32.mxu0 0.0
    %5480 = vmatmul.mubr.f32.gmra.mrb[0].mxu0 %v5131
    %v5481 = vpop.f32.mrb[0].mxu0
    %v5482 = vadd.f32 %v5412, %v5481
    %v5483 = vpop.f32.mrb[0].mxu0
    %5484 = vdwg.mxu0
    %v5485 = vadd.f32 %v5482, %v200
    %5486 = vmatprep.subr.mxu0 0.0
    %5487 = vmatpush1.msra.mxu0 %v175
    %5488 = vmatprep.subr.mxu0 0.0
    %5489 = vmatpush1.msra.mxu0 %v176
    %5490 = vmatprep.subr.mxu0 0.0
    %5491 = vmatpush1.msra.mxu0 %v177
    %5492 = vmatprep.subr.mxu0 0.0
    %5493 = vmatpush1.msra.mxu0 %v178
    %5494 = vmatprep.subr.mxu0 0.0
    %5495 = vmatpush1.msra.mxu0 0.0
    %5496 = vmatprep.subr.mxu0 0.0
    %5497 = vmatpush1.msra.mxu0 0.0
    %5498 = vmatprep.subr.mxu0 0.0
    %5499 = vmatpush1.msra.mxu0 0.0
    %5500 = vmatprep.subr.mxu0 0.0
    %5501 = vmatpush1.msra.mxu0 0.0
    %5502 = vmatprep.subr.mxu0 0.0
    %5503 = vmatpush1.msra.mxu0 0.0
    %5504 = vmatprep.subr.mxu0 0.0
    %5505 = vmatpush1.msra.mxu0 0.0
    %5506 = vmatprep.subr.mxu0 0.0
    %5507 = vmatpush1.msra.mxu0 0.0
    %5508 = vmatprep.subr.mxu0 0.0
    %5509 = vmatpush1.msra.mxu0 0.0
    %5510 = vmatprep.subr.mxu0 0.0
    %5511 = vmatpush1.msra.mxu0 0.0
    %5512 = vmatprep.subr.mxu0 0.0
    %5513 = vmatpush1.msra.mxu0 0.0
    %5514 = vmatprep.subr.mxu0 0.0
    %5515 = vmatpush1.msra.mxu0 0.0
    %5516 = vmatprep.subr.mxu0 0.0
    %5517 = vmatpush1.msra.mxu0 0.0
    %5518 = vmatprep.subr.mxu0 0.0
    %5519 = vmatpush1.msra.mxu0 0.0
    %5520 = vmatprep.subr.mxu0 0.0
    %5521 = vmatpush1.msra.mxu0 0.0
    %5522 = vmatprep.subr.mxu0 0.0
    %5523 = vmatpush1.msra.mxu0 0.0
    %5524 = vmatprep.subr.mxu0 0.0
    %5525 = vmatpush1.msra.mxu0 0.0
    %5526 = vmatprep.subr.mxu0 0.0
    %5527 = vmatpush1.msra.mxu0 0.0
    %5528 = vmatprep.subr.mxu0 0.0
    %5529 = vmatpush1.msra.mxu0 0.0
    %5530 = vmatprep.subr.mxu0 0.0
    %5531 = vmatpush1.msra.mxu0 0.0
    %5532 = vmatprep.subr.mxu0 0.0
    %5533 = vmatpush1.msra.mxu0 0.0
    %5534 = vmatprep.subr.mxu0 0.0
    %5535 = vmatpush1.msra.mxu0 0.0
    %5536 = vmatprep.subr.mxu0 0.0
    %5537 = vmatpush1.msra.mxu0 0.0
    %5538 = vmatprep.subr.mxu0 0.0
    %5539 = vmatpush1.msra.mxu0 0.0
    %5540 = vmatprep.subr.mxu0 0.0
    %5541 = vmatpush1.msra.mxu0 0.0
    %5542 = vmatprep.subr.mxu0 0.0
    %5543 = vmatpush1.msra.mxu0 0.0
    %5544 = vmatprep.subr.mxu0 0.0
    %5545 = vmatpush1.msra.mxu0 0.0
    %5546 = vmatprep.subr.mxu0 0.0
    %5547 = vmatpush1.msra.mxu0 0.0
    %5548 = vmatprep.subr.mxu0 0.0
    %5549 = vmatpush1.msra.mxu0 0.0
    %5550 = vmatprep.mubr.f32.mxu0 0.0
    %5551 = vmatmul.mubr.f32.gmra.mrb[0].mxu0 %v4535
    %v5552 = vpop.f32.mrb[0].mxu0
    %v5553 = vadd.f32 0.0, %v5552
    %v5554 = vpop.f32.mrb[0].mxu0
    %5555 = vdwg.mxu0
    %5556 = vmatprep.subr.mxu0 0.0
    %5557 = vmatpush1.msra.mxu0 %v797
    %5558 = vmatprep.subr.mxu0 0.0
    %5559 = vmatpush1.msra.mxu0 0.0
    %5560 = vmatprep.subr.mxu0 0.0
    %5561 = vmatpush1.msra.mxu0 0.0
    %5562 = vmatprep.subr.mxu0 0.0
    %5563 = vmatpush1.msra.mxu0 0.0
    %5564 = vmatprep.subr.mxu0 0.0
    %5565 = vmatpush1.msra.mxu0 0.0
    %5566 = vmatprep.subr.mxu0 0.0
    %5567 = vmatpush1.msra.mxu0 0.0
    %5568 = vmatprep.subr.mxu0 0.0
    %5569 = vmatpush1.msra.mxu0 0.0
    %5570 = vmatprep.subr.mxu0 0.0
    %5571 = vmatpush1.msra.mxu0 0.0
    %5572 = vmatprep.subr.mxu0 0.0
    %5573 = vmatpush1.msra.mxu0 0.0
    %5574 = vmatprep.subr.mxu0 0.0
    %5575 = vmatpush1.msra.mxu0 0.0
    %5576 = vmatprep.subr.mxu0 0.0
    %5577 = vmatpush1.msra.mxu0 0.0
    %5578 = vmatprep.subr.mxu0 0.0
    %5579 = vmatpush1.msra.mxu0 0.0
    %5580 = vmatprep.subr.mxu0 0.0
    %5581 = vmatpush1.msra.mxu0 0.0
    %5582 = vmatprep.subr.mxu0 0.0
    %5583 = vmatpush1.msra.mxu0 0.0
    %5584 = vmatprep.subr.mxu0 0.0
    %5585 = vmatpush1.msra.mxu0 0.0
    %5586 = vmatprep.subr.mxu0 0.0
    %5587 = vmatpush1.msra.mxu0 0.0
    %5588 = vmatprep.subr.mxu0 0.0
    %5589 = vmatpush1.msra.mxu0 0.0
    %5590 = vmatprep.subr.mxu0 0.0
    %5591 = vmatpush1.msra.mxu0 0.0
    %5592 = vmatprep.subr.mxu0 0.0
    %5593 = vmatpush1.msra.mxu0 0.0
    %5594 = vmatprep.subr.mxu0 0.0
    %5595 = vmatpush1.msra.mxu0 0.0
    %5596 = vmatprep.subr.mxu0 0.0
    %5597 = vmatpush1.msra.mxu0 0.0
    %5598 = vmatprep.subr.mxu0 0.0
    %5599 = vmatpush1.msra.mxu0 0.0
    %5600 = vmatprep.subr.mxu0 0.0
    %5601 = vmatpush1.msra.mxu0 0.0
    %5602 = vmatprep.subr.mxu0 0.0
    %5603 = vmatpush1.msra.mxu0 0.0
    %5604 = vmatprep.subr.mxu0 0.0
    %5605 = vmatpush1.msra.mxu0 0.0
    %5606 = vmatprep.subr.mxu0 0.0
    %5607 = vmatpush1.msra.mxu0 0.0
    %5608 = vmatprep.subr.mxu0 0.0
    %5609 = vmatpush1.msra.mxu0 0.0
    %5610 = vmatprep.subr.mxu0 0.0
    %5611 = vmatpush1.msra.mxu0 0.0
    %5612 = vmatprep.subr.mxu0 0.0
    %5613 = vmatpush1.msra.mxu0 0.0
    %5614 = vmatprep.subr.mxu0 0.0
    %5615 = vmatpush1.msra.mxu0 0.0
    %5616 = vmatprep.subr.mxu0 0.0
    %5617 = vmatpush1.msra.mxu0 0.0
    %5618 = vmatprep.subr.mxu0 0.0
    %5619 = vmatpush1.msra.mxu0 0.0
    %5620 = vmatprep.mubr.f32.mxu0 0.0
    %5621 = vmatmul.mubr.f32.gmra.mrb[0].mxu0 %v5131
    %v5622 = vpop.f32.mrb[0].mxu0
    %v5623 = vadd.f32 %v5553, %v5622
    %v5624 = vpop.f32.mrb[0].mxu0
    %5625 = vdwg.mxu0
    %v5626 = vadd.f32 %v5623, %v208
    %v5627 = vxor.u32 %v5203, 2147483648
    %v5628 = vmul.f32 %v5627, 1.442695
    %v5629 = vpow.pop %v5628
    %v5630 = vadd.f32 %v5629, 1.0
    %v5631 = vrcp.pop %v5630
    %v5632 = vmul.f32 1.0, %v5631
    %v5633 = vxor.u32 %v5344, 2147483648
    %v5634 = vmul.f32 %v5633, 1.442695
    %v5635 = vpow.pop %v5634
    %v5636 = vadd.f32 %v5635, 1.0
    %v5637 = vrcp.pop %v5636
    %v5638 = vmul.f32 1.0, %v5637
    %v5639 = vtanh.pop %v5485
    %v5640 = vxor.u32 %v5626, 2147483648
    %v5641 = vmul.f32 %v5640, 1.442695
    %v5642 = vpow.pop %v5641
    %v5643 = vadd.f32 %v5642, 1.0
    %v5644 = vrcp.pop %v5643
    %v5645 = vmul.f32 1.0, %v5644
    %v5646 = vmul.f32 %v5638, %v4458
    %v5647 = vmul.f32 %v5632, %v5639
    %v5648 = vadd.f32 %v5646, %v5647
    %v5649 = vtanh.pop %v5648
    %v5650 = vmul.f32 %v5645, %v5649
    %v5652 = vsel %vm281, %v5054, 0
    %5654 = vmatprep.subr.mxu0 0.0
    %5655 = vmatpush1.msra.mxu0 %v229
    %5656 = vmatprep.subr.mxu0 0.0
    %5657 = vmatpush1.msra.mxu0 %v230
    %5658 = vmatprep.subr.mxu0 0.0
    %5659 = vmatpush1.msra.mxu0 %v231
    %5660 = vmatprep.subr.mxu0 0.0
    %5661 = vmatpush1.msra.mxu0 %v232
    %5662 = vmatprep.subr.mxu0 0.0
    %5663 = vmatpush1.msra.mxu0 0.0
    %5664 = vmatprep.subr.mxu0 0.0
    %5665 = vmatpush1.msra.mxu0 0.0
    %5666 = vmatprep.subr.mxu0 0.0
    %5667 = vmatpush1.msra.mxu0 0.0
    %5668 = vmatprep.subr.mxu0 0.0
    %5669 = vmatpush1.msra.mxu0 0.0
    %5670 = vmatprep.subr.mxu0 0.0
    %5671 = vmatpush1.msra.mxu0 0.0
    %5672 = vmatprep.subr.mxu0 0.0
    %5673 = vmatpush1.msra.mxu0 0.0
    %5674 = vmatprep.subr.mxu0 0.0
    %5675 = vmatpush1.msra.mxu0 0.0
    %5676 = vmatprep.subr.mxu0 0.0
    %5677 = vmatpush1.msra.mxu0 0.0
    %5678 = vmatprep.subr.mxu0 0.0
    %5679 = vmatpush1.msra.mxu0 0.0
    %5680 = vmatprep.subr.mxu0 0.0
    %5681 = vmatpush1.msra.mxu0 0.0
    %5682 = vmatprep.subr.mxu0 0.0
    %5683 = vmatpush1.msra.mxu0 0.0
    %5684 = vmatprep.subr.mxu0 0.0
    %5685 = vmatpush1.msra.mxu0 0.0
    %5686 = vmatprep.subr.mxu0 0.0
    %5687 = vmatpush1.msra.mxu0 0.0
    %5688 = vmatprep.subr.mxu0 0.0
    %5689 = vmatpush1.msra.mxu0 0.0
    %5690 = vmatprep.subr.mxu0 0.0
    %5691 = vmatpush1.msra.mxu0 0.0
    %5692 = vmatprep.subr.mxu0 0.0
    %5693 = vmatpush1.msra.mxu0 0.0
    %5694 = vmatprep.subr.mxu0 0.0
    %5695 = vmatpush1.msra.mxu0 0.0
    %5696 = vmatprep.subr.mxu0 0.0
    %5697 = vmatpush1.msra.mxu0 0.0
    %5698 = vmatprep.subr.mxu0 0.0
    %5699 = vmatpush1.msra.mxu0 0.0
    %5700 = vmatprep.subr.mxu0 0.0
    %5701 = vmatpush1.msra.mxu0 0.0
    %5702 = vmatprep.subr.mxu0 0.0
    %5703 = vmatpush1.msra.mxu0 0.0
    %5704 = vmatprep.subr.mxu0 0.0
    %5705 = vmatpush1.msra.mxu0 0.0
    %5706 = vmatprep.subr.mxu0 0.0
    %5707 = vmatpush1.msra.mxu0 0.0
    %5708 = vmatprep.subr.mxu0 0.0
    %5709 = vmatpush1.msra.mxu0 0.0
    %5710 = vmatprep.subr.mxu0 0.0
    %5711 = vmatpush1.msra.mxu0 0.0
    %5712 = vmatprep.subr.mxu0 0.0
    %5713 = vmatpush1.msra.mxu0 0.0
    %5714 = vmatprep.subr.mxu0 0.0
    %5715 = vmatpush1.msra.mxu0 0.0
    %5716 = vmatprep.subr.mxu0 0.0
    %5717 = vmatpush1.msra.mxu0 0.0
    %5718 = vmatprep.mubr.f32.mxu0 0.0
    %5719 = vmatmul.mubr.f32.gmra.mrb[0].mxu0 %v5652
    %v5720 = vpop.f32.mrb[0].mxu0
    %v5721 = vadd.f32 0.0, %v5720
    %v5722 = vpop.f32.mrb[0].mxu0
    %5723 = vdwg.mxu0
    %v5725 = vsel %vm281, %v5650, 0
    %5727 = vmatprep.subr.mxu0 0.0
    %5728 = vmatpush1.msra.mxu0 %v210
    %5729 = vmatprep.subr.mxu0 0.0
    %5730 = vmatpush1.msra.mxu0 %v211
    %5731 = vmatprep.subr.mxu0 0.0
    %5732 = vmatpush1.msra.mxu0 %v212
    %5733 = vmatprep.subr.mxu0 0.0
    %5734 = vmatpush1.msra.mxu0 %v213
    %5735 = vmatprep.subr.mxu0 0.0
    %5736 = vmatpush1.msra.mxu0 0.0
    %5737 = vmatprep.subr.mxu0 0.0
    %5738 = vmatpush1.msra.mxu0 0.0
    %5739 = vmatprep.subr.mxu0 0.0
    %5740 = vmatpush1.msra.mxu0 0.0
    %5741 = vmatprep.subr.mxu0 0.0
    %5742 = vmatpush1.msra.mxu0 0.0
    %5743 = vmatprep.subr.mxu0 0.0
    %5744 = vmatpush1.msra.mxu0 0.0
    %5745 = vmatprep.subr.mxu0 0.0
    %5746 = vmatpush1.msra.mxu0 0.0
    %5747 = vmatprep.subr.mxu0 0.0
    %5748 = vmatpush1.msra.mxu0 0.0
    %5749 = vmatprep.subr.mxu0 0.0
    %5750 = vmatpush1.msra.mxu0 0.0
    %5751 = vmatprep.subr.mxu0 0.0
    %5752 = vmatpush1.msra.mxu0 0.0
    %5753 = vmatprep.subr.mxu0 0.0
    %5754 = vmatpush1.msra.mxu0 0.0
    %5755 = vmatprep.subr.mxu0 0.0
    %5756 = vmatpush1.msra.mxu0 0.0
    %5757 = vmatprep.subr.mxu0 0.0
    %5758 = vmatpush1.msra.mxu0 0.0
    %5759 = vmatprep.subr.mxu0 0.0
    %5760 = vmatpush1.msra.mxu0 0.0
    %5761 = vmatprep.subr.mxu0 0.0
    %5762 = vmatpush1.msra.mxu0 0.0
    %5763 = vmatprep.subr.mxu0 0.0
    %5764 = vmatpush1.msra.mxu0 0.0
    %5765 = vmatprep.subr.mxu0 0.0
    %5766 = vmatpush1.msra.mxu0 0.0
    %5767 = vmatprep.subr.mxu0 0.0
    %5768 = vmatpush1.msra.mxu0 0.0
    %5769 = vmatprep.subr.mxu0 0.0
    %5770 = vmatpush1.msra.mxu0 0.0
    %5771 = vmatprep.subr.mxu0 0.0
    %5772 = vmatpush1.msra.mxu0 0.0
    %5773 = vmatprep.subr.mxu0 0.0
    %5774 = vmatpush1.msra.mxu0 0.0
    %5775 = vmatprep.subr.mxu0 0.0
    %5776 = vmatpush1.msra.mxu0 0.0
    %5777 = vmatprep.subr.mxu0 0.0
    %5778 = vmatpush1.msra.mxu0 0.0
    %5779 = vmatprep.subr.mxu0 0.0
    %5780 = vmatpush1.msra.mxu0 0.0
    %5781 = vmatprep.subr.mxu0 0.0
    %5782 = vmatpush1.msra.mxu0 0.0
    %5783 = vmatprep.subr.mxu0 0.0
    %5784 = vmatpush1.msra.mxu0 0.0
    %5785 = vmatprep.subr.mxu0 0.0
    %5786 = vmatpush1.msra.mxu0 0.0
    %5787 = vmatprep.subr.mxu0 0.0
    %5788 = vmatpush1.msra.mxu0 0.0
    %5789 = vmatprep.subr.mxu0 0.0
    %5790 = vmatpush1.msra.mxu0 0.0
    %5791 = vmatprep.mubr.f32.mxu0 0.0
    %5792 = vmatmul.mubr.f32.gmra.mrb[0].mxu0 %v5725
    %v5793 = vpop.f32.mrb[0].mxu0
    %v5794 = vadd.f32 %v5721, %v5793
    %v5795 = vpop.f32.mrb[0].mxu0
    %5796 = vdwg.mxu0
    %v5797 = vadd.f32 %v5794, %v253
    %5798 = vmatprep.subr.mxu0 0.0
    %5799 = vmatpush1.msra.mxu0 %v234
    %5800 = vmatprep.subr.mxu0 0.0
    %5801 = vmatpush1.msra.mxu0 %v235
    %5802 = vmatprep.subr.mxu0 0.0
    %5803 = vmatpush1.msra.mxu0 %v236
    %5804 = vmatprep.subr.mxu0 0.0
    %5805 = vmatpush1.msra.mxu0 %v237
    %5806 = vmatprep.subr.mxu0 0.0
    %5807 = vmatpush1.msra.mxu0 0.0
    %5808 = vmatprep.subr.mxu0 0.0
    %5809 = vmatpush1.msra.mxu0 0.0
    %5810 = vmatprep.subr.mxu0 0.0
    %5811 = vmatpush1.msra.mxu0 0.0
    %5812 = vmatprep.subr.mxu0 0.0
    %5813 = vmatpush1.msra.mxu0 0.0
    %5814 = vmatprep.subr.mxu0 0.0
    %5815 = vmatpush1.msra.mxu0 0.0
    %5816 = vmatprep.subr.mxu0 0.0
    %5817 = vmatpush1.msra.mxu0 0.0
    %5818 = vmatprep.subr.mxu0 0.0
    %5819 = vmatpush1.msra.mxu0 0.0
    %5820 = vmatprep.subr.mxu0 0.0
    %5821 = vmatpush1.msra.mxu0 0.0
    %5822 = vmatprep.subr.mxu0 0.0
    %5823 = vmatpush1.msra.mxu0 0.0
    %5824 = vmatprep.subr.mxu0 0.0
    %5825 = vmatpush1.msra.mxu0 0.0
    %5826 = vmatprep.subr.mxu0 0.0
    %5827 = vmatpush1.msra.mxu0 0.0
    %5828 = vmatprep.subr.mxu0 0.0
    %5829 = vmatpush1.msra.mxu0 0.0
    %5830 = vmatprep.subr.mxu0 0.0
    %5831 = vmatpush1.msra.mxu0 0.0
    %5832 = vmatprep.subr.mxu0 0.0
    %5833 = vmatpush1.msra.mxu0 0.0
    %5834 = vmatprep.subr.mxu0 0.0
    %5835 = vmatpush1.msra.mxu0 0.0
    %5836 = vmatprep.subr.mxu0 0.0
    %5837 = vmatpush1.msra.mxu0 0.0
    %5838 = vmatprep.subr.mxu0 0.0
    %5839 = vmatpush1.msra.mxu0 0.0
    %5840 = vmatprep.subr.mxu0 0.0
    %5841 = vmatpush1.msra.mxu0 0.0
    %5842 = vmatprep.subr.mxu0 0.0
    %5843 = vmatpush1.msra.mxu0 0.0
    %5844 = vmatprep.subr.mxu0 0.0
    %5845 = vmatpush1.msra.mxu0 0.0
    %5846 = vmatprep.subr.mxu0 0.0
    %5847 = vmatpush1.msra.mxu0 0.0
    %5848 = vmatprep.subr.mxu0 0.0
    %5849 = vmatpush1.msra.mxu0 0.0
    %5850 = vmatprep.subr.mxu0 0.0
    %5851 = vmatpush1.msra.mxu0 0.0
    %5852 = vmatprep.subr.mxu0 0.0
    %5853 = vmatpush1.msra.mxu0 0.0
    %5854 = vmatprep.subr.mxu0 0.0
    %5855 = vmatpush1.msra.mxu0 0.0
    %5856 = vmatprep.subr.mxu0 0.0
    %5857 = vmatpush1.msra.mxu0 0.0
    %5858 = vmatprep.subr.mxu0 0.0
    %5859 = vmatpush1.msra.mxu0 0.0
    %5860 = vmatprep.subr.mxu0 0.0
    %5861 = vmatpush1.msra.mxu0 0.0
    %5862 = vmatprep.mubr.f32.mxu0 0.0
    %5863 = vmatmul.mubr.f32.gmra.mrb[0].mxu0 %v5652
    %v5864 = vpop.f32.mrb[0].mxu0
    %v5865 = vadd.f32 0.0, %v5864
    %v5866 = vpop.f32.mrb[0].mxu0
    %5867 = vdwg.mxu0
    %5868 = vmatprep.subr.mxu0 0.0
    %5869 = vmatpush1.msra.mxu0 %v215
    %5870 = vmatprep.subr.mxu0 0.0
    %5871 = vmatpush1.msra.mxu0 %v216
    %5872 = vmatprep.subr.mxu0 0.0
    %5873 = vmatpush1.msra.mxu0 %v217
    %5874 = vmatprep.subr.mxu0 0.0
    %5875 = vmatpush1.msra.mxu0 %v218
    %5876 = vmatprep.subr.mxu0 0.0
    %5877 = vmatpush1.msra.mxu0 0.0
    %5878 = vmatprep.subr.mxu0 0.0
    %5879 = vmatpush1.msra.mxu0 0.0
    %5880 = vmatprep.subr.mxu0 0.0
    %5881 = vmatpush1.msra.mxu0 0.0
    %5882 = vmatprep.subr.mxu0 0.0
    %5883 = vmatpush1.msra.mxu0 0.0
    %5884 = vmatprep.subr.mxu0 0.0
    %5885 = vmatpush1.msra.mxu0 0.0
    %5886 = vmatprep.subr.mxu0 0.0
    %5887 = vmatpush1.msra.mxu0 0.0
    %5888 = vmatprep.subr.mxu0 0.0
    %5889 = vmatpush1.msra.mxu0 0.0
    %5890 = vmatprep.subr.mxu0 0.0
    %5891 = vmatpush1.msra.mxu0 0.0
    %5892 = vmatprep.subr.mxu0 0.0
    %5893 = vmatpush1.msra.mxu0 0.0
    %5894 = vmatprep.subr.mxu0 0.0
    %5895 = vmatpush1.msra.mxu0 0.0
    %5896 = vmatprep.subr.mxu0 0.0
    %5897 = vmatpush1.msra.mxu0 0.0
    %5898 = vmatprep.subr.mxu0 0.0
    %5899 = vmatpush1.msra.mxu0 0.0
    %5900 = vmatprep.subr.mxu0 0.0
    %5901 = vmatpush1.msra.mxu0 0.0
    %5902 = vmatprep.subr.mxu0 0.0
    %5903 = vmatpush1.msra.mxu0 0.0
    %5904 = vmatprep.subr.mxu0 0.0
    %5905 = vmatpush1.msra.mxu0 0.0
    %5906 = vmatprep.subr.mxu0 0.0
    %5907 = vmatpush1.msra.mxu0 0.0
    %5908 = vmatprep.subr.mxu0 0.0
    %5909 = vmatpush1.msra.mxu0 0.0
    %5910 = vmatprep.subr.mxu0 0.0
    %5911 = vmatpush1.msra.mxu0 0.0
    %5912 = vmatprep.subr.mxu0 0.0
    %5913 = vmatpush1.msra.mxu0 0.0
    %5914 = vmatprep.subr.mxu0 0.0
    %5915 = vmatpush1.msra.mxu0 0.0
    %5916 = vmatprep.subr.mxu0 0.0
    %5917 = vmatpush1.msra.mxu0 0.0
    %5918 = vmatprep.subr.mxu0 0.0
    %5919 = vmatpush1.msra.mxu0 0.0
    %5920 = vmatprep.subr.mxu0 0.0
    %5921 = vmatpush1.msra.mxu0 0.0
    %5922 = vmatprep.subr.mxu0 0.0
    %5923 = vmatpush1.msra.mxu0 0.0
    %5924 = vmatprep.subr.mxu0 0.0
    %5925 = vmatpush1.msra.mxu0 0.0
    %5926 = vmatprep.subr.mxu0 0.0
    %5927 = vmatpush1.msra.mxu0 0.0
    %5928 = vmatprep.subr.mxu0 0.0
    %5929 = vmatpush1.msra.mxu0 0.0
    %5930 = vmatprep.subr.mxu0 0.0
    %5931 = vmatpush1.msra.mxu0 0.0
    %5932 = vmatprep.mubr.f32.mxu0 0.0
    %5933 = vmatmul.mubr.f32.gmra.mrb[0].mxu0 %v5725
    %v5934 = vpop.f32.mrb[0].mxu0
    %v5935 = vadd.f32 %v5865, %v5934
    %v5936 = vpop.f32.mrb[0].mxu0
    %5937 = vdwg.mxu0
    %v5938 = vadd.f32 %v5935, %v261
    %5939 = vmatprep.subr.mxu0 0.0
    %5940 = vmatpush1.msra.mxu0 %v239
    %5941 = vmatprep.subr.mxu0 0.0
    %5942 = vmatpush1.msra.mxu0 %v240
    %5943 = vmatprep.subr.mxu0 0.0
    %5944 = vmatpush1.msra.mxu0 %v241
    %5945 = vmatprep.subr.mxu0 0.0
    %5946 = vmatpush1.msra.mxu0 %v242
    %5947 = vmatprep.subr.mxu0 0.0
    %5948 = vmatpush1.msra.mxu0 0.0
    %5949 = vmatprep.subr.mxu0 0.0
    %5950 = vmatpush1.msra.mxu0 0.0
    %5951 = vmatprep.subr.mxu0 0.0
    %5952 = vmatpush1.msra.mxu0 0.0
    %5953 = vmatprep.subr.mxu0 0.0
    %5954 = vmatpush1.msra.mxu0 0.0
    %5955 = vmatprep.subr.mxu0 0.0
    %5956 = vmatpush1.msra.mxu0 0.0
    %5957 = vmatprep.subr.mxu0 0.0
    %5958 = vmatpush1.msra.mxu0 0.0
    %5959 = vmatprep.subr.mxu0 0.0
    %5960 = vmatpush1.msra.mxu0 0.0
    %5961 = vmatprep.subr.mxu0 0.0
    %5962 = vmatpush1.msra.mxu0 0.0
    %5963 = vmatprep.subr.mxu0 0.0
    %5964 = vmatpush1.msra.mxu0 0.0
    %5965 = vmatprep.subr.mxu0 0.0
    %5966 = vmatpush1.msra.mxu0 0.0
    %5967 = vmatprep.subr.mxu0 0.0
    %5968 = vmatpush1.msra.mxu0 0.0
    %5969 = vmatprep.subr.mxu0 0.0
    %5970 = vmatpush1.msra.mxu0 0.0
    %5971 = vmatprep.subr.mxu0 0.0
    %5972 = vmatpush1.msra.mxu0 0.0
    %5973 = vmatprep.subr.mxu0 0.0
    %5974 = vmatpush1.msra.mxu0 0.0
    %5975 = vmatprep.subr.mxu0 0.0
    %5976 = vmatpush1.msra.mxu0 0.0
    %5977 = vmatprep.subr.mxu0 0.0
    %5978 = vmatpush1.msra.mxu0 0.0
    %5979 = vmatprep.subr.mxu0 0.0
    %5980 = vmatpush1.msra.mxu0 0.0
    %5981 = vmatprep.subr.mxu0 0.0
    %5982 = vmatpush1.msra.mxu0 0.0
    %5983 = vmatprep.subr.mxu0 0.0
    %5984 = vmatpush1.msra.mxu0 0.0
    %5985 = vmatprep.subr.mxu0 0.0
    %5986 = vmatpush1.msra.mxu0 0.0
    %5987 = vmatprep.subr.mxu0 0.0
    %5988 = vmatpush1.msra.mxu0 0.0
    %5989 = vmatprep.subr.mxu0 0.0
    %5990 = vmatpush1.msra.mxu0 0.0
    %5991 = vmatprep.subr.mxu0 0.0
    %5992 = vmatpush1.msra.mxu0 0.0
    %5993 = vmatprep.subr.mxu0 0.0
    %5994 = vmatpush1.msra.mxu0 0.0
    %5995 = vmatprep.subr.mxu0 0.0
    %5996 = vmatpush1.msra.mxu0 0.0
    %5997 = vmatprep.subr.mxu0 0.0
    %5998 = vmatpush1.msra.mxu0 0.0
    %5999 = vmatprep.subr.mxu0 0.0
    %6000 = vmatpush1.msra.mxu0 0.0
    %6001 = vmatprep.subr.mxu0 0.0
    %6002 = vmatpush1.msra.mxu0 0.0
    %6003 = vmatprep.mubr.f32.mxu0 0.0
    %6004 = vmatmul.mubr.f32.gmra.mrb[0].mxu0 %v5652
    %v6005 = vpop.f32.mrb[0].mxu0
    %v6006 = vadd.f32 0.0, %v6005
    %v6007 = vpop.f32.mrb[0].mxu0
    %6008 = vdwg.mxu0
    %6009 = vmatprep.subr.mxu0 0.0
    %6010 = vmatpush1.msra.mxu0 %v220
    %6011 = vmatprep.subr.mxu0 0.0
    %6012 = vmatpush1.msra.mxu0 %v221
    %6013 = vmatprep.subr.mxu0 0.0
    %6014 = vmatpush1.msra.mxu0 %v222
    %6015 = vmatprep.subr.mxu0 0.0
    %6016 = vmatpush1.msra.mxu0 %v223
    %6017 = vmatprep.subr.mxu0 0.0
    %6018 = vmatpush1.msra.mxu0 0.0
    %6019 = vmatprep.subr.mxu0 0.0
    %6020 = vmatpush1.msra.mxu0 0.0
    %6021 = vmatprep.subr.mxu0 0.0
    %6022 = vmatpush1.msra.mxu0 0.0
    %6023 = vmatprep.subr.mxu0 0.0
    %6024 = vmatpush1.msra.mxu0 0.0
    %6025 = vmatprep.subr.mxu0 0.0
    %6026 = vmatpush1.msra.mxu0 0.0
    %6027 = vmatprep.subr.mxu0 0.0
    %6028 = vmatpush1.msra.mxu0 0.0
    %6029 = vmatprep.subr.mxu0 0.0
    %6030 = vmatpush1.msra.mxu0 0.0
    %6031 = vmatprep.subr.mxu0 0.0
    %6032 = vmatpush1.msra.mxu0 0.0
    %6033 = vmatprep.subr.mxu0 0.0
    %6034 = vmatpush1.msra.mxu0 0.0
    %6035 = vmatprep.subr.mxu0 0.0
    %6036 = vmatpush1.msra.mxu0 0.0
    %6037 = vmatprep.subr.mxu0 0.0
    %6038 = vmatpush1.msra.mxu0 0.0
    %6039 = vmatprep.subr.mxu0 0.0
    %6040 = vmatpush1.msra.mxu0 0.0
    %6041 = vmatprep.subr.mxu0 0.0
    %6042 = vmatpush1.msra.mxu0 0.0
    %6043 = vmatprep.subr.mxu0 0.0
    %6044 = vmatpush1.msra.mxu0 0.0
    %6045 = vmatprep.subr.mxu0 0.0
    %6046 = vmatpush1.msra.mxu0 0.0
    %6047 = vmatprep.subr.mxu0 0.0
    %6048 = vmatpush1.msra.mxu0 0.0
    %6049 = vmatprep.subr.mxu0 0.0
    %6050 = vmatpush1.msra.mxu0 0.0
    %6051 = vmatprep.subr.mxu0 0.0
    %6052 = vmatpush1.msra.mxu0 0.0
    %6053 = vmatprep.subr.mxu0 0.0
    %6054 = vmatpush1.msra.mxu0 0.0
    %6055 = vmatprep.subr.mxu0 0.0
    %6056 = vmatpush1.msra.mxu0 0.0
    %6057 = vmatprep.subr.mxu0 0.0
    %6058 = vmatpush1.msra.mxu0 0.0
    %6059 = vmatprep.subr.mxu0 0.0
    %6060 = vmatpush1.msra.mxu0 0.0
    %6061 = vmatprep.subr.mxu0 0.0
    %6062 = vmatpush1.msra.mxu0 0.0
    %6063 = vmatprep.subr.mxu0 0.0
    %6064 = vmatpush1.msra.mxu0 0.0
    %6065 = vmatprep.subr.mxu0 0.0
    %6066 = vmatpush1.msra.mxu0 0.0
    %6067 = vmatprep.subr.mxu0 0.0
    %6068 = vmatpush1.msra.mxu0 0.0
    %6069 = vmatprep.subr.mxu0 0.0
    %6070 = vmatpush1.msra.mxu0 0.0
    %6071 = vmatprep.subr.mxu0 0.0
    %6072 = vmatpush1.msra.mxu0 0.0
    %6073 = vmatprep.mubr.f32.mxu0 0.0
    %6074 = vmatmul.mubr.f32.gmra.mrb[0].mxu0 %v5725
    %v6075 = vpop.f32.mrb[0].mxu0
    %v6076 = vadd.f32 %v6006, %v6075
    %v6077 = vpop.f32.mrb[0].mxu0
    %6078 = vdwg.mxu0
    %v6079 = vadd.f32 %v6076, %v269
    %6080 = vmatprep.subr.mxu0 0.0
    %6081 = vmatpush1.msra.mxu0 %v244
    %6082 = vmatprep.subr.mxu0 0.0
    %6083 = vmatpush1.msra.mxu0 %v245
    %6084 = vmatprep.subr.mxu0 0.0
    %6085 = vmatpush1.msra.mxu0 %v246
    %6086 = vmatprep.subr.mxu0 0.0
    %6087 = vmatpush1.msra.mxu0 %v247
    %6088 = vmatprep.subr.mxu0 0.0
    %6089 = vmatpush1.msra.mxu0 0.0
    %6090 = vmatprep.subr.mxu0 0.0
    %6091 = vmatpush1.msra.mxu0 0.0
    %6092 = vmatprep.subr.mxu0 0.0
    %6093 = vmatpush1.msra.mxu0 0.0
    %6094 = vmatprep.subr.mxu0 0.0
    %6095 = vmatpush1.msra.mxu0 0.0
    %6096 = vmatprep.subr.mxu0 0.0
    %6097 = vmatpush1.msra.mxu0 0.0
    %6098 = vmatprep.subr.mxu0 0.0
    %6099 = vmatpush1.msra.mxu0 0.0
    %6100 = vmatprep.subr.mxu0 0.0
    %6101 = vmatpush1.msra.mxu0 0.0
    %6102 = vmatprep.subr.mxu0 0.0
    %6103 = vmatpush1.msra.mxu0 0.0
    %6104 = vmatprep.subr.mxu0 0.0
    %6105 = vmatpush1.msra.mxu0 0.0
    %6106 = vmatprep.subr.mxu0 0.0
    %6107 = vmatpush1.msra.mxu0 0.0
    %6108 = vmatprep.subr.mxu0 0.0
    %6109 = vmatpush1.msra.mxu0 0.0
    %6110 = vmatprep.subr.mxu0 0.0
    %6111 = vmatpush1.msra.mxu0 0.0
    %6112 = vmatprep.subr.mxu0 0.0
    %6113 = vmatpush1.msra.mxu0 0.0
    %6114 = vmatprep.subr.mxu0 0.0
    %6115 = vmatpush1.msra.mxu0 0.0
    %6116 = vmatprep.subr.mxu0 0.0
    %6117 = vmatpush1.msra.mxu0 0.0
    %6118 = vmatprep.subr.mxu0 0.0
    %6119 = vmatpush1.msra.mxu0 0.0
    %6120 = vmatprep.subr.mxu0 0.0
    %6121 = vmatpush1.msra.mxu0 0.0
    %6122 = vmatprep.subr.mxu0 0.0
    %6123 = vmatpush1.msra.mxu0 0.0
    %6124 = vmatprep.subr.mxu0 0.0
    %6125 = vmatpush1.msra.mxu0 0.0
    %6126 = vmatprep.subr.mxu0 0.0
    %6127 = vmatpush1.msra.mxu0 0.0
    %6128 = vmatprep.subr.mxu0 0.0
    %6129 = vmatpush1.msra.mxu0 0.0
    %6130 = vmatprep.subr.mxu0 0.0
    %6131 = vmatpush1.msra.mxu0 0.0
    %6132 = vmatprep.subr.mxu0 0.0
    %6133 = vmatpush1.msra.mxu0 0.0
    %6134 = vmatprep.subr.mxu0 0.0
    %6135 = vmatpush1.msra.mxu0 0.0
    %6136 = vmatprep.subr.mxu0 0.0
    %6137 = vmatpush1.msra.mxu0 0.0
    %6138 = vmatprep.subr.mxu0 0.0
    %6139 = vmatpush1.msra.mxu0 0.0
    %6140 = vmatprep.subr.mxu0 0.0
    %6141 = vmatpush1.msra.mxu0 0.0
    %6142 = vmatprep.subr.mxu0 0.0
    %6143 = vmatpush1.msra.mxu0 0.0
    %6144 = vmatprep.mubr.f32.mxu0 0.0
    %6145 = vmatmul.mubr.f32.gmra.mrb[0].mxu0 %v5652
    %v6146 = vpop.f32.mrb[0].mxu0
    %v6147 = vadd.f32 0.0, %v6146
    %v6148 = vpop.f32.mrb[0].mxu0
    %6149 = vdwg.mxu0
    %6150 = vmatprep.subr.mxu0 0.0
    %6151 = vmatpush1.msra.mxu0 %v225
    %6152 = vmatprep.subr.mxu0 0.0
    %6153 = vmatpush1.msra.mxu0 %v226
    %6154 = vmatprep.subr.mxu0 0.0
    %6155 = vmatpush1.msra.mxu0 %v227
    %6156 = vmatprep.subr.mxu0 0.0
    %6157 = vmatpush1.msra.mxu0 %v228
    %6158 = vmatprep.subr.mxu0 0.0
    %6159 = vmatpush1.msra.mxu0 0.0
    %6160 = vmatprep.subr.mxu0 0.0
    %6161 = vmatpush1.msra.mxu0 0.0
    %6162 = vmatprep.subr.mxu0 0.0
    %6163 = vmatpush1.msra.mxu0 0.0
    %6164 = vmatprep.subr.mxu0 0.0
    %6165 = vmatpush1.msra.mxu0 0.0
    %6166 = vmatprep.subr.mxu0 0.0
    %6167 = vmatpush1.msra.mxu0 0.0
    %6168 = vmatprep.subr.mxu0 0.0
    %6169 = vmatpush1.msra.mxu0 0.0
    %6170 = vmatprep.subr.mxu0 0.0
    %6171 = vmatpush1.msra.mxu0 0.0
    %6172 = vmatprep.subr.mxu0 0.0
    %6173 = vmatpush1.msra.mxu0 0.0
    %6174 = vmatprep.subr.mxu0 0.0
    %6175 = vmatpush1.msra.mxu0 0.0
    %6176 = vmatprep.subr.mxu0 0.0
    %6177 = vmatpush1.msra.mxu0 0.0
    %6178 = vmatprep.subr.mxu0 0.0
    %6179 = vmatpush1.msra.mxu0 0.0
    %6180 = vmatprep.subr.mxu0 0.0
    %6181 = vmatpush1.msra.mxu0 0.0
    %6182 = vmatprep.subr.mxu0 0.0
    %6183 = vmatpush1.msra.mxu0 0.0
    %6184 = vmatprep.subr.mxu0 0.0
    %6185 = vmatpush1.msra.mxu0 0.0
    %6186 = vmatprep.subr.mxu0 0.0
    %6187 = vmatpush1.msra.mxu0 0.0
    %6188 = vmatprep.subr.mxu0 0.0
    %6189 = vmatpush1.msra.mxu0 0.0
    %6190 = vmatprep.subr.mxu0 0.0
    %6191 = vmatpush1.msra.mxu0 0.0
    %6192 = vmatprep.subr.mxu0 0.0
    %6193 = vmatpush1.msra.mxu0 0.0
    %6194 = vmatprep.subr.mxu0 0.0
    %6195 = vmatpush1.msra.mxu0 0.0
    %6196 = vmatprep.subr.mxu0 0.0
    %6197 = vmatpush1.msra.mxu0 0.0
    %6198 = vmatprep.subr.mxu0 0.0
    %6199 = vmatpush1.msra.mxu0 0.0
    %6200 = vmatprep.subr.mxu0 0.0
    %6201 = vmatpush1.msra.mxu0 0.0
    %6202 = vmatprep.subr.mxu0 0.0
    %6203 = vmatpush1.msra.mxu0 0.0
    %6204 = vmatprep.subr.mxu0 0.0
    %6205 = vmatpush1.msra.mxu0 0.0
    %6206 = vmatprep.subr.mxu0 0.0
    %6207 = vmatpush1.msra.mxu0 0.0
    %6208 = vmatprep.subr.mxu0 0.0
    %6209 = vmatpush1.msra.mxu0 0.0
    %6210 = vmatprep.subr.mxu0 0.0
    %6211 = vmatpush1.msra.mxu0 0.0
    %6212 = vmatprep.subr.mxu0 0.0
    %6213 = vmatpush1.msra.mxu0 0.0
    %6214 = vmatprep.mubr.f32.mxu0 0.0
    %6215 = vmatmul.mubr.f32.gmra.mrb[0].mxu0 %v5725
    %v6216 = vpop.f32.mrb[0].mxu0
    %v6217 = vadd.f32 %v6147, %v6216
    %v6218 = vpop.f32.mrb[0].mxu0
    %6219 = vdwg.mxu0
    %v6220 = vadd.f32 %v6217, %v277
    %v6221 = vxor.u32 %v5797, 2147483648
    %v6222 = vmul.f32 %v6221, 1.442695
    %v6223 = vpow.pop %v6222
    %v6224 = vadd.f32 %v6223, 1.0
    %v6225 = vrcp.pop %v6224
    %v6226 = vmul.f32 1.0, %v6225
    %v6227 = vxor.u32 %v5938, 2147483648
    %v6228 = vmul.f32 %v6227, 1.442695
    %v6229 = vpow.pop %v6228
    %v6230 = vadd.f32 %v6229, 1.0
    %v6231 = vrcp.pop %v6230
    %v6232 = vmul.f32 1.0, %v6231
    %v6233 = vtanh.pop %v6079
    %v6234 = vxor.u32 %v6220, 2147483648
    %v6235 = vmul.f32 %v6234, 1.442695
    %v6236 = vpow.pop %v6235
    %v6237 = vadd.f32 %v6236, 1.0
    %v6238 = vrcp.pop %v6237
    %v6239 = vmul.f32 1.0, %v6238
    %v6240 = vmul.f32 %v6232, %v5052
    %v6241 = vmul.f32 %v6226, %v6233
    %v6242 = vadd.f32 %v6240, %v6241
    %v6243 = vtanh.pop %v6242
    %v6244 = vmul.f32 %v6239, %v6243
    %v6245 = vld [vmem:[%s0 + $0x5] sm:$0x1]
    %v6246 = vld [vmem:[%s0 + $0xd] sm:$0x1]
    %6247 = vmatprep.subr.mxu0 0.0
    %6248 = vmatpush1.msra.mxu0 %v160
    %6249 = vmatprep.subr.mxu0 0.0
    %6250 = vmatpush1.msra.mxu0 %v161
    %6251 = vmatprep.subr.mxu0 0.0
    %6252 = vmatpush1.msra.mxu0 %v162
    %6253 = vmatprep.subr.mxu0 0.0
    %6254 = vmatpush1.msra.mxu0 %v163
    %6255 = vmatprep.subr.mxu0 0.0
    %6256 = vmatpush1.msra.mxu0 0.0
    %6257 = vmatprep.subr.mxu0 0.0
    %6258 = vmatpush1.msra.mxu0 0.0
    %6259 = vmatprep.subr.mxu0 0.0
    %6260 = vmatpush1.msra.mxu0 0.0
    %6261 = vmatprep.subr.mxu0 0.0
    %6262 = vmatpush1.msra.mxu0 0.0
    %6263 = vmatprep.subr.mxu0 0.0
    %6264 = vmatpush1.msra.mxu0 0.0
    %6265 = vmatprep.subr.mxu0 0.0
    %6266 = vmatpush1.msra.mxu0 0.0
    %6267 = vmatprep.subr.mxu0 0.0
    %6268 = vmatpush1.msra.mxu0 0.0
    %6269 = vmatprep.subr.mxu0 0.0
    %6270 = vmatpush1.msra.mxu0 0.0
    %6271 = vmatprep.subr.mxu0 0.0
    %6272 = vmatpush1.msra.mxu0 0.0
    %6273 = vmatprep.subr.mxu0 0.0
    %6274 = vmatpush1.msra.mxu0 0.0
    %6275 = vmatprep.subr.mxu0 0.0
    %6276 = vmatpush1.msra.mxu0 0.0
    %6277 = vmatprep.subr.mxu0 0.0
    %6278 = vmatpush1.msra.mxu0 0.0
    %6279 = vmatprep.subr.mxu0 0.0
    %6280 = vmatpush1.msra.mxu0 0.0
    %6281 = vmatprep.subr.mxu0 0.0
    %6282 = vmatpush1.msra.mxu0 0.0
    %6283 = vmatprep.subr.mxu0 0.0
    %6284 = vmatpush1.msra.mxu0 0.0
    %6285 = vmatprep.subr.mxu0 0.0
    %6286 = vmatpush1.msra.mxu0 0.0
    %6287 = vmatprep.subr.mxu0 0.0
    %6288 = vmatpush1.msra.mxu0 0.0
    %6289 = vmatprep.subr.mxu0 0.0
    %6290 = vmatpush1.msra.mxu0 0.0
    %6291 = vmatprep.subr.mxu0 0.0
    %6292 = vmatpush1.msra.mxu0 0.0
    %6293 = vmatprep.subr.mxu0 0.0
    %6294 = vmatpush1.msra.mxu0 0.0
    %6295 = vmatprep.subr.mxu0 0.0
    %6296 = vmatpush1.msra.mxu0 0.0
    %6297 = vmatprep.subr.mxu0 0.0
    %6298 = vmatpush1.msra.mxu0 0.0
    %6299 = vmatprep.subr.mxu0 0.0
    %6300 = vmatpush1.msra.mxu0 0.0
    %6301 = vmatprep.subr.mxu0 0.0
    %6302 = vmatpush1.msra.mxu0 0.0
    %6303 = vmatprep.subr.mxu0 0.0
    %6304 = vmatpush1.msra.mxu0 0.0
    %6305 = vmatprep.subr.mxu0 0.0
    %6306 = vmatpush1.msra.mxu0 0.0
    %6307 = vmatprep.subr.mxu0 0.0
    %6308 = vmatpush1.msra.mxu0 0.0
    %6309 = vmatprep.subr.mxu0 0.0
    %6310 = vmatpush1.msra.mxu0 0.0
    %6311 = vmatprep.mubr.f32.mxu0 0.0
    %6312 = vmatmul.mubr.f32.gmra.mrb[0].mxu0 %v5725
    %v6313 = vpop.f32.mrb[0].mxu0
    %v6314 = vadd.f32 0.0, %v6313
    %v6315 = vpop.f32.mrb[0].mxu0
    %6316 = vdwg.mxu0
    %v6319 = vrot.slane %v6246, 7
    %v6320 = vsel %vm358, %v6319, %v6245
    %v6321 = vsel %vm360, %v6320, 0
    %6323 = vmatprep.subr.mxu0 0.0
    %6324 = vmatpush1.msra.mxu0 %v365
    %6325 = vmatprep.subr.mxu0 0.0
    %6326 = vmatpush1.msra.mxu0 0.0
    %6327 = vmatprep.subr.mxu0 0.0
    %6328 = vmatpush1.msra.mxu0 0.0
    %6329 = vmatprep.subr.mxu0 0.0
    %6330 = vmatpush1.msra.mxu0 0.0
    %6331 = vmatprep.subr.mxu0 0.0
    %6332 = vmatpush1.msra.mxu0 0.0
    %6333 = vmatprep.subr.mxu0 0.0
    %6334 = vmatpush1.msra.mxu0 0.0
    %6335 = vmatprep.subr.mxu0 0.0
    %6336 = vmatpush1.msra.mxu0 0.0
    %6337 = vmatprep.subr.mxu0 0.0
    %6338 = vmatpush1.msra.mxu0 0.0
    %6339 = vmatprep.subr.mxu0 0.0
    %6340 = vmatpush1.msra.mxu0 0.0
    %6341 = vmatprep.subr.mxu0 0.0
    %6342 = vmatpush1.msra.mxu0 0.0
    %6343 = vmatprep.subr.mxu0 0.0
    %6344 = vmatpush1.msra.mxu0 0.0
    %6345 = vmatprep.subr.mxu0 0.0
    %6346 = vmatpush1.msra.mxu0 0.0
    %6347 = vmatprep.subr.mxu0 0.0
    %6348 = vmatpush1.msra.mxu0 0.0
    %6349 = vmatprep.subr.mxu0 0.0
    %6350 = vmatpush1.msra.mxu0 0.0
    %6351 = vmatprep.subr.mxu0 0.0
    %6352 = vmatpush1.msra.mxu0 0.0
    %6353 = vmatprep.subr.mxu0 0.0
    %6354 = vmatpush1.msra.mxu0 0.0
    %6355 = vmatprep.subr.mxu0 0.0
    %6356 = vmatpush1.msra.mxu0 0.0
    %6357 = vmatprep.subr.mxu0 0.0
    %6358 = vmatpush1.msra.mxu0 0.0
    %6359 = vmatprep.subr.mxu0 0.0
    %6360 = vmatpush1.msra.mxu0 0.0
    %6361 = vmatprep.subr.mxu0 0.0
    %6362 = vmatpush1.msra.mxu0 0.0
    %6363 = vmatprep.subr.mxu0 0.0
    %6364 = vmatpush1.msra.mxu0 0.0
    %6365 = vmatprep.subr.mxu0 0.0
    %6366 = vmatpush1.msra.mxu0 0.0
    %6367 = vmatprep.subr.mxu0 0.0
    %6368 = vmatpush1.msra.mxu0 0.0
    %6369 = vmatprep.subr.mxu0 0.0
    %6370 = vmatpush1.msra.mxu0 0.0
    %6371 = vmatprep.subr.mxu0 0.0
    %6372 = vmatpush1.msra.mxu0 0.0
    %6373 = vmatprep.subr.mxu0 0.0
    %6374 = vmatpush1.msra.mxu0 0.0
    %6375 = vmatprep.subr.mxu0 0.0
    %6376 = vmatpush1.msra.mxu0 0.0
    %6377 = vmatprep.subr.mxu0 0.0
    %6378 = vmatpush1.msra.mxu0 0.0
    %6379 = vmatprep.subr.mxu0 0.0
    %6380 = vmatpush1.msra.mxu0 0.0
    %6381 = vmatprep.subr.mxu0 0.0
    %6382 = vmatpush1.msra.mxu0 0.0
    %6383 = vmatprep.subr.mxu0 0.0
    %6384 = vmatpush1.msra.mxu0 0.0
    %6385 = vmatprep.subr.mxu0 0.0
    %6386 = vmatpush1.msra.mxu0 0.0
    %6387 = vmatprep.mubr.f32.mxu0 0.0
    %6388 = vmatmul.mubr.f32.gmra.mrb[0].mxu0 %v6321
    %v6389 = vpop.f32.mrb[0].mxu0
    %v6390 = vadd.f32 %v6314, %v6389
    %v6391 = vpop.f32.mrb[0].mxu0
    %6392 = vdwg.mxu0
    %v6393 = vadd.f32 %v6390, %v184
    %6394 = vmatprep.subr.mxu0 0.0
    %6395 = vmatpush1.msra.mxu0 %v165
    %6396 = vmatprep.subr.mxu0 0.0
    %6397 = vmatpush1.msra.mxu0 %v166
    %6398 = vmatprep.subr.mxu0 0.0
    %6399 = vmatpush1.msra.mxu0 %v167
    %6400 = vmatprep.subr.mxu0 0.0
    %6401 = vmatpush1.msra.mxu0 %v168
    %6402 = vmatprep.subr.mxu0 0.0
    %6403 = vmatpush1.msra.mxu0 0.0
    %6404 = vmatprep.subr.mxu0 0.0
    %6405 = vmatpush1.msra.mxu0 0.0
    %6406 = vmatprep.subr.mxu0 0.0
    %6407 = vmatpush1.msra.mxu0 0.0
    %6408 = vmatprep.subr.mxu0 0.0
    %6409 = vmatpush1.msra.mxu0 0.0
    %6410 = vmatprep.subr.mxu0 0.0
    %6411 = vmatpush1.msra.mxu0 0.0
    %6412 = vmatprep.subr.mxu0 0.0
    %6413 = vmatpush1.msra.mxu0 0.0
    %6414 = vmatprep.subr.mxu0 0.0
    %6415 = vmatpush1.msra.mxu0 0.0
    %6416 = vmatprep.subr.mxu0 0.0
    %6417 = vmatpush1.msra.mxu0 0.0
    %6418 = vmatprep.subr.mxu0 0.0
    %6419 = vmatpush1.msra.mxu0 0.0
    %6420 = vmatprep.subr.mxu0 0.0
    %6421 = vmatpush1.msra.mxu0 0.0
    %6422 = vmatprep.subr.mxu0 0.0
    %6423 = vmatpush1.msra.mxu0 0.0
    %6424 = vmatprep.subr.mxu0 0.0
    %6425 = vmatpush1.msra.mxu0 0.0
    %6426 = vmatprep.subr.mxu0 0.0
    %6427 = vmatpush1.msra.mxu0 0.0
    %6428 = vmatprep.subr.mxu0 0.0
    %6429 = vmatpush1.msra.mxu0 0.0
    %6430 = vmatprep.subr.mxu0 0.0
    %6431 = vmatpush1.msra.mxu0 0.0
    %6432 = vmatprep.subr.mxu0 0.0
    %6433 = vmatpush1.msra.mxu0 0.0
    %6434 = vmatprep.subr.mxu0 0.0
    %6435 = vmatpush1.msra.mxu0 0.0
    %6436 = vmatprep.subr.mxu0 0.0
    %6437 = vmatpush1.msra.mxu0 0.0
    %6438 = vmatprep.subr.mxu0 0.0
    %6439 = vmatpush1.msra.mxu0 0.0
    %6440 = vmatprep.subr.mxu0 0.0
    %6441 = vmatpush1.msra.mxu0 0.0
    %6442 = vmatprep.subr.mxu0 0.0
    %6443 = vmatpush1.msra.mxu0 0.0
    %6444 = vmatprep.subr.mxu0 0.0
    %6445 = vmatpush1.msra.mxu0 0.0
    %6446 = vmatprep.subr.mxu0 0.0
    %6447 = vmatpush1.msra.mxu0 0.0
    %6448 = vmatprep.subr.mxu0 0.0
    %6449 = vmatpush1.msra.mxu0 0.0
    %6450 = vmatprep.subr.mxu0 0.0
    %6451 = vmatpush1.msra.mxu0 0.0
    %6452 = vmatprep.subr.mxu0 0.0
    %6453 = vmatpush1.msra.mxu0 0.0
    %6454 = vmatprep.subr.mxu0 0.0
    %6455 = vmatpush1.msra.mxu0 0.0
    %6456 = vmatprep.subr.mxu0 0.0
    %6457 = vmatpush1.msra.mxu0 0.0
    %6458 = vmatprep.mubr.f32.mxu0 0.0
    %6459 = vmatmul.mubr.f32.gmra.mrb[0].mxu0 %v5725
    %v6460 = vpop.f32.mrb[0].mxu0
    %v6461 = vadd.f32 0.0, %v6460
    %v6462 = vpop.f32.mrb[0].mxu0
    %6463 = vdwg.mxu0
    %6464 = vmatprep.subr.mxu0 0.0
    %6465 = vmatpush1.msra.mxu0 %v509
    %6466 = vmatprep.subr.mxu0 0.0
    %6467 = vmatpush1.msra.mxu0 0.0
    %6468 = vmatprep.subr.mxu0 0.0
    %6469 = vmatpush1.msra.mxu0 0.0
    %6470 = vmatprep.subr.mxu0 0.0
    %6471 = vmatpush1.msra.mxu0 0.0
    %6472 = vmatprep.subr.mxu0 0.0
    %6473 = vmatpush1.msra.mxu0 0.0
    %6474 = vmatprep.subr.mxu0 0.0
    %6475 = vmatpush1.msra.mxu0 0.0
    %6476 = vmatprep.subr.mxu0 0.0
    %6477 = vmatpush1.msra.mxu0 0.0
    %6478 = vmatprep.subr.mxu0 0.0
    %6479 = vmatpush1.msra.mxu0 0.0
    %6480 = vmatprep.subr.mxu0 0.0
    %6481 = vmatpush1.msra.mxu0 0.0
    %6482 = vmatprep.subr.mxu0 0.0
    %6483 = vmatpush1.msra.mxu0 0.0
    %6484 = vmatprep.subr.mxu0 0.0
    %6485 = vmatpush1.msra.mxu0 0.0
    %6486 = vmatprep.subr.mxu0 0.0
    %6487 = vmatpush1.msra.mxu0 0.0
    %6488 = vmatprep.subr.mxu0 0.0
    %6489 = vmatpush1.msra.mxu0 0.0
    %6490 = vmatprep.subr.mxu0 0.0
    %6491 = vmatpush1.msra.mxu0 0.0
    %6492 = vmatprep.subr.mxu0 0.0
    %6493 = vmatpush1.msra.mxu0 0.0
    %6494 = vmatprep.subr.mxu0 0.0
    %6495 = vmatpush1.msra.mxu0 0.0
    %6496 = vmatprep.subr.mxu0 0.0
    %6497 = vmatpush1.msra.mxu0 0.0
    %6498 = vmatprep.subr.mxu0 0.0
    %6499 = vmatpush1.msra.mxu0 0.0
    %6500 = vmatprep.subr.mxu0 0.0
    %6501 = vmatpush1.msra.mxu0 0.0
    %6502 = vmatprep.subr.mxu0 0.0
    %6503 = vmatpush1.msra.mxu0 0.0
    %6504 = vmatprep.subr.mxu0 0.0
    %6505 = vmatpush1.msra.mxu0 0.0
    %6506 = vmatprep.subr.mxu0 0.0
    %6507 = vmatpush1.msra.mxu0 0.0
    %6508 = vmatprep.subr.mxu0 0.0
    %6509 = vmatpush1.msra.mxu0 0.0
    %6510 = vmatprep.subr.mxu0 0.0
    %6511 = vmatpush1.msra.mxu0 0.0
    %6512 = vmatprep.subr.mxu0 0.0
    %6513 = vmatpush1.msra.mxu0 0.0
    %6514 = vmatprep.subr.mxu0 0.0
    %6515 = vmatpush1.msra.mxu0 0.0
    %6516 = vmatprep.subr.mxu0 0.0
    %6517 = vmatpush1.msra.mxu0 0.0
    %6518 = vmatprep.subr.mxu0 0.0
    %6519 = vmatpush1.msra.mxu0 0.0
    %6520 = vmatprep.subr.mxu0 0.0
    %6521 = vmatpush1.msra.mxu0 0.0
    %6522 = vmatprep.subr.mxu0 0.0
    %6523 = vmatpush1.msra.mxu0 0.0
    %6524 = vmatprep.subr.mxu0 0.0
    %6525 = vmatpush1.msra.mxu0 0.0
    %6526 = vmatprep.subr.mxu0 0.0
    %6527 = vmatpush1.msra.mxu0 0.0
    %6528 = vmatprep.mubr.f32.mxu0 0.0
    %6529 = vmatmul.mubr.f32.gmra.mrb[0].mxu0 %v6321
    %v6530 = vpop.f32.mrb[0].mxu0
    %v6531 = vadd.f32 %v6461, %v6530
    %v6532 = vpop.f32.mrb[0].mxu0
    %6533 = vdwg.mxu0
    %v6534 = vadd.f32 %v6531, %v192
    %6535 = vmatprep.subr.mxu0 0.0
    %6536 = vmatpush1.msra.mxu0 %v170
    %6537 = vmatprep.subr.mxu0 0.0
    %6538 = vmatpush1.msra.mxu0 %v171
    %6539 = vmatprep.subr.mxu0 0.0
    %6540 = vmatpush1.msra.mxu0 %v172
    %6541 = vmatprep.subr.mxu0 0.0
    %6542 = vmatpush1.msra.mxu0 %v173
    %6543 = vmatprep.subr.mxu0 0.0
    %6544 = vmatpush1.msra.mxu0 0.0
    %6545 = vmatprep.subr.mxu0 0.0
    %6546 = vmatpush1.msra.mxu0 0.0
    %6547 = vmatprep.subr.mxu0 0.0
    %6548 = vmatpush1.msra.mxu0 0.0
    %6549 = vmatprep.subr.mxu0 0.0
    %6550 = vmatpush1.msra.mxu0 0.0
    %6551 = vmatprep.subr.mxu0 0.0
    %6552 = vmatpush1.msra.mxu0 0.0
    %6553 = vmatprep.subr.mxu0 0.0
    %6554 = vmatpush1.msra.mxu0 0.0
    %6555 = vmatprep.subr.mxu0 0.0
    %6556 = vmatpush1.msra.mxu0 0.0
    %6557 = vmatprep.subr.mxu0 0.0
    %6558 = vmatpush1.msra.mxu0 0.0
    %6559 = vmatprep.subr.mxu0 0.0
    %6560 = vmatpush1.msra.mxu0 0.0
    %6561 = vmatprep.subr.mxu0 0.0
    %6562 = vmatpush1.msra.mxu0 0.0
    %6563 = vmatprep.subr.mxu0 0.0
    %6564 = vmatpush1.msra.mxu0 0.0
    %6565 = vmatprep.subr.mxu0 0.0
    %6566 = vmatpush1.msra.mxu0 0.0
    %6567 = vmatprep.subr.mxu0 0.0
    %6568 = vmatpush1.msra.mxu0 0.0
    %6569 = vmatprep.subr.mxu0 0.0
    %6570 = vmatpush1.msra.mxu0 0.0
    %6571 = vmatprep.subr.mxu0 0.0
    %6572 = vmatpush1.msra.mxu0 0.0
    %6573 = vmatprep.subr.mxu0 0.0
    %6574 = vmatpush1.msra.mxu0 0.0
    %6575 = vmatprep.subr.mxu0 0.0
    %6576 = vmatpush1.msra.mxu0 0.0
    %6577 = vmatprep.subr.mxu0 0.0
    %6578 = vmatpush1.msra.mxu0 0.0
    %6579 = vmatprep.subr.mxu0 0.0
    %6580 = vmatpush1.msra.mxu0 0.0
    %6581 = vmatprep.subr.mxu0 0.0
    %6582 = vmatpush1.msra.mxu0 0.0
    %6583 = vmatprep.subr.mxu0 0.0
    %6584 = vmatpush1.msra.mxu0 0.0
    %6585 = vmatprep.subr.mxu0 0.0
    %6586 = vmatpush1.msra.mxu0 0.0
    %6587 = vmatprep.subr.mxu0 0.0
    %6588 = vmatpush1.msra.mxu0 0.0
    %6589 = vmatprep.subr.mxu0 0.0
    %6590 = vmatpush1.msra.mxu0 0.0
    %6591 = vmatprep.subr.mxu0 0.0
    %6592 = vmatpush1.msra.mxu0 0.0
    %6593 = vmatprep.subr.mxu0 0.0
    %6594 = vmatpush1.msra.mxu0 0.0
    %6595 = vmatprep.subr.mxu0 0.0
    %6596 = vmatpush1.msra.mxu0 0.0
    %6597 = vmatprep.subr.mxu0 0.0
    %6598 = vmatpush1.msra.mxu0 0.0
    %6599 = vmatprep.mubr.f32.mxu0 0.0
    %6600 = vmatmul.mubr.f32.gmra.mrb[0].mxu0 %v5725
    %v6601 = vpop.f32.mrb[0].mxu0
    %v6602 = vadd.f32 0.0, %v6601
    %v6603 = vpop.f32.mrb[0].mxu0
    %6604 = vdwg.mxu0
    %6605 = vmatprep.subr.mxu0 0.0
    %6606 = vmatpush1.msra.mxu0 %v653
    %6607 = vmatprep.subr.mxu0 0.0
    %6608 = vmatpush1.msra.mxu0 0.0
    %6609 = vmatprep.subr.mxu0 0.0
    %6610 = vmatpush1.msra.mxu0 0.0
    %6611 = vmatprep.subr.mxu0 0.0
    %6612 = vmatpush1.msra.mxu0 0.0
    %6613 = vmatprep.subr.mxu0 0.0
    %6614 = vmatpush1.msra.mxu0 0.0
    %6615 = vmatprep.subr.mxu0 0.0
    %6616 = vmatpush1.msra.mxu0 0.0
    %6617 = vmatprep.subr.mxu0 0.0
    %6618 = vmatpush1.msra.mxu0 0.0
    %6619 = vmatprep.subr.mxu0 0.0
    %6620 = vmatpush1.msra.mxu0 0.0
    %6621 = vmatprep.subr.mxu0 0.0
    %6622 = vmatpush1.msra.mxu0 0.0
    %6623 = vmatprep.subr.mxu0 0.0
    %6624 = vmatpush1.msra.mxu0 0.0
    %6625 = vmatprep.subr.mxu0 0.0
    %6626 = vmatpush1.msra.mxu0 0.0
    %6627 = vmatprep.subr.mxu0 0.0
    %6628 = vmatpush1.msra.mxu0 0.0
    %6629 = vmatprep.subr.mxu0 0.0
    %6630 = vmatpush1.msra.mxu0 0.0
    %6631 = vmatprep.subr.mxu0 0.0
    %6632 = vmatpush1.msra.mxu0 0.0
    %6633 = vmatprep.subr.mxu0 0.0
    %6634 = vmatpush1.msra.mxu0 0.0
    %6635 = vmatprep.subr.mxu0 0.0
    %6636 = vmatpush1.msra.mxu0 0.0
    %6637 = vmatprep.subr.mxu0 0.0
    %6638 = vmatpush1.msra.mxu0 0.0
    %6639 = vmatprep.subr.mxu0 0.0
    %6640 = vmatpush1.msra.mxu0 0.0
    %6641 = vmatprep.subr.mxu0 0.0
    %6642 = vmatpush1.msra.mxu0 0.0
    %6643 = vmatprep.subr.mxu0 0.0
    %6644 = vmatpush1.msra.mxu0 0.0
    %6645 = vmatprep.subr.mxu0 0.0
    %6646 = vmatpush1.msra.mxu0 0.0
    %6647 = vmatprep.subr.mxu0 0.0
    %6648 = vmatpush1.msra.mxu0 0.0
    %6649 = vmatprep.subr.mxu0 0.0
    %6650 = vmatpush1.msra.mxu0 0.0
    %6651 = vmatprep.subr.mxu0 0.0
    %6652 = vmatpush1.msra.mxu0 0.0
    %6653 = vmatprep.subr.mxu0 0.0
    %6654 = vmatpush1.msra.mxu0 0.0
    %6655 = vmatprep.subr.mxu0 0.0
    %6656 = vmatpush1.msra.mxu0 0.0
    %6657 = vmatprep.subr.mxu0 0.0
    %6658 = vmatpush1.msra.mxu0 0.0
    %6659 = vmatprep.subr.mxu0 0.0
    %6660 = vmatpush1.msra.mxu0 0.0
    %6661 = vmatprep.subr.mxu0 0.0
    %6662 = vmatpush1.msra.mxu0 0.0
    %6663 = vmatprep.subr.mxu0 0.0
    %6664 = vmatpush1.msra.mxu0 0.0
    %6665 = vmatprep.subr.mxu0 0.0
    %6666 = vmatpush1.msra.mxu0 0.0
    %6667 = vmatprep.subr.mxu0 0.0
    %6668 = vmatpush1.msra.mxu0 0.0
    %6669 = vmatprep.mubr.f32.mxu0 0.0
    %6670 = vmatmul.mubr.f32.gmra.mrb[0].mxu0 %v6321
    %v6671 = vpop.f32.mrb[0].mxu0
    %v6672 = vadd.f32 %v6602, %v6671
    %v6673 = vpop.f32.mrb[0].mxu0
    %6674 = vdwg.mxu0
    %v6675 = vadd.f32 %v6672, %v200
    %6676 = vmatprep.subr.mxu0 0.0
    %6677 = vmatpush1.msra.mxu0 %v175
    %6678 = vmatprep.subr.mxu0 0.0
    %6679 = vmatpush1.msra.mxu0 %v176
    %6680 = vmatprep.subr.mxu0 0.0
    %6681 = vmatpush1.msra.mxu0 %v177
    %6682 = vmatprep.subr.mxu0 0.0
    %6683 = vmatpush1.msra.mxu0 %v178
    %6684 = vmatprep.subr.mxu0 0.0
    %6685 = vmatpush1.msra.mxu0 0.0
    %6686 = vmatprep.subr.mxu0 0.0
    %6687 = vmatpush1.msra.mxu0 0.0
    %6688 = vmatprep.subr.mxu0 0.0
    %6689 = vmatpush1.msra.mxu0 0.0
    %6690 = vmatprep.subr.mxu0 0.0
    %6691 = vmatpush1.msra.mxu0 0.0
    %6692 = vmatprep.subr.mxu0 0.0
    %6693 = vmatpush1.msra.mxu0 0.0
    %6694 = vmatprep.subr.mxu0 0.0
    %6695 = vmatpush1.msra.mxu0 0.0
    %6696 = vmatprep.subr.mxu0 0.0
    %6697 = vmatpush1.msra.mxu0 0.0
    %6698 = vmatprep.subr.mxu0 0.0
    %6699 = vmatpush1.msra.mxu0 0.0
    %6700 = vmatprep.subr.mxu0 0.0
    %6701 = vmatpush1.msra.mxu0 0.0
    %6702 = vmatprep.subr.mxu0 0.0
    %6703 = vmatpush1.msra.mxu0 0.0
    %6704 = vmatprep.subr.mxu0 0.0
    %6705 = vmatpush1.msra.mxu0 0.0
    %6706 = vmatprep.subr.mxu0 0.0
    %6707 = vmatpush1.msra.mxu0 0.0
    %6708 = vmatprep.subr.mxu0 0.0
    %6709 = vmatpush1.msra.mxu0 0.0
    %6710 = vmatprep.subr.mxu0 0.0
    %6711 = vmatpush1.msra.mxu0 0.0
    %6712 = vmatprep.subr.mxu0 0.0
    %6713 = vmatpush1.msra.mxu0 0.0
    %6714 = vmatprep.subr.mxu0 0.0
    %6715 = vmatpush1.msra.mxu0 0.0
    %6716 = vmatprep.subr.mxu0 0.0
    %6717 = vmatpush1.msra.mxu0 0.0
    %6718 = vmatprep.subr.mxu0 0.0
    %6719 = vmatpush1.msra.mxu0 0.0
    %6720 = vmatprep.subr.mxu0 0.0
    %6721 = vmatpush1.msra.mxu0 0.0
    %6722 = vmatprep.subr.mxu0 0.0
    %6723 = vmatpush1.msra.mxu0 0.0
    %6724 = vmatprep.subr.mxu0 0.0
    %6725 = vmatpush1.msra.mxu0 0.0
    %6726 = vmatprep.subr.mxu0 0.0
    %6727 = vmatpush1.msra.mxu0 0.0
    %6728 = vmatprep.subr.mxu0 0.0
    %6729 = vmatpush1.msra.mxu0 0.0
    %6730 = vmatprep.subr.mxu0 0.0
    %6731 = vmatpush1.msra.mxu0 0.0
    %6732 = vmatprep.subr.mxu0 0.0
    %6733 = vmatpush1.msra.mxu0 0.0
    %6734 = vmatprep.subr.mxu0 0.0
    %6735 = vmatpush1.msra.mxu0 0.0
    %6736 = vmatprep.subr.mxu0 0.0
    %6737 = vmatpush1.msra.mxu0 0.0
    %6738 = vmatprep.subr.mxu0 0.0
    %6739 = vmatpush1.msra.mxu0 0.0
    %6740 = vmatprep.mubr.f32.mxu0 0.0
    %6741 = vmatmul.mubr.f32.gmra.mrb[0].mxu0 %v5725
    %v6742 = vpop.f32.mrb[0].mxu0
    %v6743 = vadd.f32 0.0, %v6742
    %v6744 = vpop.f32.mrb[0].mxu0
    %6745 = vdwg.mxu0
    %6746 = vmatprep.subr.mxu0 0.0
    %6747 = vmatpush1.msra.mxu0 %v797
    %6748 = vmatprep.subr.mxu0 0.0
    %6749 = vmatpush1.msra.mxu0 0.0
    %6750 = vmatprep.subr.mxu0 0.0
    %6751 = vmatpush1.msra.mxu0 0.0
    %6752 = vmatprep.subr.mxu0 0.0
    %6753 = vmatpush1.msra.mxu0 0.0
    %6754 = vmatprep.subr.mxu0 0.0
    %6755 = vmatpush1.msra.mxu0 0.0
    %6756 = vmatprep.subr.mxu0 0.0
    %6757 = vmatpush1.msra.mxu0 0.0
    %6758 = vmatprep.subr.mxu0 0.0
    %6759 = vmatpush1.msra.mxu0 0.0
    %6760 = vmatprep.subr.mxu0 0.0
    %6761 = vmatpush1.msra.mxu0 0.0
    %6762 = vmatprep.subr.mxu0 0.0
    %6763 = vmatpush1.msra.mxu0 0.0
    %6764 = vmatprep.subr.mxu0 0.0
    %6765 = vmatpush1.msra.mxu0 0.0
    %6766 = vmatprep.subr.mxu0 0.0
    %6767 = vmatpush1.msra.mxu0 0.0
    %6768 = vmatprep.subr.mxu0 0.0
    %6769 = vmatpush1.msra.mxu0 0.0
    %6770 = vmatprep.subr.mxu0 0.0
    %6771 = vmatpush1.msra.mxu0 0.0
    %6772 = vmatprep.subr.mxu0 0.0
    %6773 = vmatpush1.msra.mxu0 0.0
    %6774 = vmatprep.subr.mxu0 0.0
    %6775 = vmatpush1.msra.mxu0 0.0
    %6776 = vmatprep.subr.mxu0 0.0
    %6777 = vmatpush1.msra.mxu0 0.0
    %6778 = vmatprep.subr.mxu0 0.0
    %6779 = vmatpush1.msra.mxu0 0.0
    %6780 = vmatprep.subr.mxu0 0.0
    %6781 = vmatpush1.msra.mxu0 0.0
    %6782 = vmatprep.subr.mxu0 0.0
    %6783 = vmatpush1.msra.mxu0 0.0
    %6784 = vmatprep.subr.mxu0 0.0
    %6785 = vmatpush1.msra.mxu0 0.0
    %6786 = vmatprep.subr.mxu0 0.0
    %6787 = vmatpush1.msra.mxu0 0.0
    %6788 = vmatprep.subr.mxu0 0.0
    %6789 = vmatpush1.msra.mxu0 0.0
    %6790 = vmatprep.subr.mxu0 0.0
    %6791 = vmatpush1.msra.mxu0 0.0
    %6792 = vmatprep.subr.mxu0 0.0
    %6793 = vmatpush1.msra.mxu0 0.0
    %6794 = vmatprep.subr.mxu0 0.0
    %6795 = vmatpush1.msra.mxu0 0.0
    %6796 = vmatprep.subr.mxu0 0.0
    %6797 = vmatpush1.msra.mxu0 0.0
    %6798 = vmatprep.subr.mxu0 0.0
    %6799 = vmatpush1.msra.mxu0 0.0
    %6800 = vmatprep.subr.mxu0 0.0
    %6801 = vmatpush1.msra.mxu0 0.0
    %6802 = vmatprep.subr.mxu0 0.0
    %6803 = vmatpush1.msra.mxu0 0.0
    %6804 = vmatprep.subr.mxu0 0.0
    %6805 = vmatpush1.msra.mxu0 0.0
    %6806 = vmatprep.subr.mxu0 0.0
    %6807 = vmatpush1.msra.mxu0 0.0
    %6808 = vmatprep.subr.mxu0 0.0
    %6809 = vmatpush1.msra.mxu0 0.0
    %6810 = vmatprep.mubr.f32.mxu0 0.0
    %6811 = vmatmul.mubr.f32.gmra.mrb[0].mxu0 %v6321
    %v6812 = vpop.f32.mrb[0].mxu0
    %v6813 = vadd.f32 %v6743, %v6812
    %v6814 = vpop.f32.mrb[0].mxu0
    %6815 = vdwg.mxu0
    %v6816 = vadd.f32 %v6813, %v208
    %v6817 = vxor.u32 %v6393, 2147483648
    %v6818 = vmul.f32 %v6817, 1.442695
    %v6819 = vpow.pop %v6818
    %v6820 = vadd.f32 %v6819, 1.0
    %v6821 = vrcp.pop %v6820
    %v6822 = vmul.f32 1.0, %v6821
    %v6823 = vxor.u32 %v6534, 2147483648
    %v6824 = vmul.f32 %v6823, 1.442695
    %v6825 = vpow.pop %v6824
    %v6826 = vadd.f32 %v6825, 1.0
    %v6827 = vrcp.pop %v6826
    %v6828 = vmul.f32 1.0, %v6827
    %v6829 = vtanh.pop %v6675
    %v6830 = vxor.u32 %v6816, 2147483648
    %v6831 = vmul.f32 %v6830, 1.442695
    %v6832 = vpow.pop %v6831
    %v6833 = vadd.f32 %v6832, 1.0
    %v6834 = vrcp.pop %v6833
    %v6835 = vmul.f32 1.0, %v6834
    %v6836 = vmul.f32 %v6828, %v5648
    %v6837 = vmul.f32 %v6822, %v6829
    %v6838 = vadd.f32 %v6836, %v6837
    %v6839 = vtanh.pop %v6838
    %v6840 = vmul.f32 %v6835, %v6839
    %v6842 = vsel %vm281, %v6244, 0
    %6844 = vmatprep.subr.mxu0 0.0
    %6845 = vmatpush1.msra.mxu0 %v229
    %6846 = vmatprep.subr.mxu0 0.0
    %6847 = vmatpush1.msra.mxu0 %v230
    %6848 = vmatprep.subr.mxu0 0.0
    %6849 = vmatpush1.msra.mxu0 %v231
    %6850 = vmatprep.subr.mxu0 0.0
    %6851 = vmatpush1.msra.mxu0 %v232
    %6852 = vmatprep.subr.mxu0 0.0
    %6853 = vmatpush1.msra.mxu0 0.0
    %6854 = vmatprep.subr.mxu0 0.0
    %6855 = vmatpush1.msra.mxu0 0.0
    %6856 = vmatprep.subr.mxu0 0.0
    %6857 = vmatpush1.msra.mxu0 0.0
    %6858 = vmatprep.subr.mxu0 0.0
    %6859 = vmatpush1.msra.mxu0 0.0
    %6860 = vmatprep.subr.mxu0 0.0
    %6861 = vmatpush1.msra.mxu0 0.0
    %6862 = vmatprep.subr.mxu0 0.0
    %6863 = vmatpush1.msra.mxu0 0.0
    %6864 = vmatprep.subr.mxu0 0.0
    %6865 = vmatpush1.msra.mxu0 0.0
    %6866 = vmatprep.subr.mxu0 0.0
    %6867 = vmatpush1.msra.mxu0 0.0
    %6868 = vmatprep.subr.mxu0 0.0
    %6869 = vmatpush1.msra.mxu0 0.0
    %6870 = vmatprep.subr.mxu0 0.0
    %6871 = vmatpush1.msra.mxu0 0.0
    %6872 = vmatprep.subr.mxu0 0.0
    %6873 = vmatpush1.msra.mxu0 0.0
    %6874 = vmatprep.subr.mxu0 0.0
    %6875 = vmatpush1.msra.mxu0 0.0
    %6876 = vmatprep.subr.mxu0 0.0
    %6877 = vmatpush1.msra.mxu0 0.0
    %6878 = vmatprep.subr.mxu0 0.0
    %6879 = vmatpush1.msra.mxu0 0.0
    %6880 = vmatprep.subr.mxu0 0.0
    %6881 = vmatpush1.msra.mxu0 0.0
    %6882 = vmatprep.subr.mxu0 0.0
    %6883 = vmatpush1.msra.mxu0 0.0
    %6884 = vmatprep.subr.mxu0 0.0
    %6885 = vmatpush1.msra.mxu0 0.0
    %6886 = vmatprep.subr.mxu0 0.0
    %6887 = vmatpush1.msra.mxu0 0.0
    %6888 = vmatprep.subr.mxu0 0.0
    %6889 = vmatpush1.msra.mxu0 0.0
    %6890 = vmatprep.subr.mxu0 0.0
    %6891 = vmatpush1.msra.mxu0 0.0
    %6892 = vmatprep.subr.mxu0 0.0
    %6893 = vmatpush1.msra.mxu0 0.0
    %6894 = vmatprep.subr.mxu0 0.0
    %6895 = vmatpush1.msra.mxu0 0.0
    %6896 = vmatprep.subr.mxu0 0.0
    %6897 = vmatpush1.msra.mxu0 0.0
    %6898 = vmatprep.subr.mxu0 0.0
    %6899 = vmatpush1.msra.mxu0 0.0
    %6900 = vmatprep.subr.mxu0 0.0
    %6901 = vmatpush1.msra.mxu0 0.0
    %6902 = vmatprep.subr.mxu0 0.0
    %6903 = vmatpush1.msra.mxu0 0.0
    %6904 = vmatprep.subr.mxu0 0.0
    %6905 = vmatpush1.msra.mxu0 0.0
    %6906 = vmatprep.subr.mxu0 0.0
    %6907 = vmatpush1.msra.mxu0 0.0
    %6908 = vmatprep.mubr.f32.mxu0 0.0
    %6909 = vmatmul.mubr.f32.gmra.mrb[0].mxu0 %v6842
    %v6910 = vpop.f32.mrb[0].mxu0
    %v6911 = vadd.f32 0.0, %v6910
    %v6912 = vpop.f32.mrb[0].mxu0
    %6913 = vdwg.mxu0
    %v6915 = vsel %vm281, %v6840, 0
    %6917 = vmatprep.subr.mxu0 0.0
    %6918 = vmatpush1.msra.mxu0 %v210
    %6919 = vmatprep.subr.mxu0 0.0
    %6920 = vmatpush1.msra.mxu0 %v211
    %6921 = vmatprep.subr.mxu0 0.0
    %6922 = vmatpush1.msra.mxu0 %v212
    %6923 = vmatprep.subr.mxu0 0.0
    %6924 = vmatpush1.msra.mxu0 %v213
    %6925 = vmatprep.subr.mxu0 0.0
    %6926 = vmatpush1.msra.mxu0 0.0
    %6927 = vmatprep.subr.mxu0 0.0
    %6928 = vmatpush1.msra.mxu0 0.0
    %6929 = vmatprep.subr.mxu0 0.0
    %6930 = vmatpush1.msra.mxu0 0.0
    %6931 = vmatprep.subr.mxu0 0.0
    %6932 = vmatpush1.msra.mxu0 0.0
    %6933 = vmatprep.subr.mxu0 0.0
    %6934 = vmatpush1.msra.mxu0 0.0
    %6935 = vmatprep.subr.mxu0 0.0
    %6936 = vmatpush1.msra.mxu0 0.0
    %6937 = vmatprep.subr.mxu0 0.0
    %6938 = vmatpush1.msra.mxu0 0.0
    %6939 = vmatprep.subr.mxu0 0.0
    %6940 = vmatpush1.msra.mxu0 0.0
    %6941 = vmatprep.subr.mxu0 0.0
    %6942 = vmatpush1.msra.mxu0 0.0
    %6943 = vmatprep.subr.mxu0 0.0
    %6944 = vmatpush1.msra.mxu0 0.0
    %6945 = vmatprep.subr.mxu0 0.0
    %6946 = vmatpush1.msra.mxu0 0.0
    %6947 = vmatprep.subr.mxu0 0.0
    %6948 = vmatpush1.msra.mxu0 0.0
    %6949 = vmatprep.subr.mxu0 0.0
    %6950 = vmatpush1.msra.mxu0 0.0
    %6951 = vmatprep.subr.mxu0 0.0
    %6952 = vmatpush1.msra.mxu0 0.0
    %6953 = vmatprep.subr.mxu0 0.0
    %6954 = vmatpush1.msra.mxu0 0.0
    %6955 = vmatprep.subr.mxu0 0.0
    %6956 = vmatpush1.msra.mxu0 0.0
    %6957 = vmatprep.subr.mxu0 0.0
    %6958 = vmatpush1.msra.mxu0 0.0
    %6959 = vmatprep.subr.mxu0 0.0
    %6960 = vmatpush1.msra.mxu0 0.0
    %6961 = vmatprep.subr.mxu0 0.0
    %6962 = vmatpush1.msra.mxu0 0.0
    %6963 = vmatprep.subr.mxu0 0.0
    %6964 = vmatpush1.msra.mxu0 0.0
    %6965 = vmatprep.subr.mxu0 0.0
    %6966 = vmatpush1.msra.mxu0 0.0
    %6967 = vmatprep.subr.mxu0 0.0
    %6968 = vmatpush1.msra.mxu0 0.0
    %6969 = vmatprep.subr.mxu0 0.0
    %6970 = vmatpush1.msra.mxu0 0.0
    %6971 = vmatprep.subr.mxu0 0.0
    %6972 = vmatpush1.msra.mxu0 0.0
    %6973 = vmatprep.subr.mxu0 0.0
    %6974 = vmatpush1.msra.mxu0 0.0
    %6975 = vmatprep.subr.mxu0 0.0
    %6976 = vmatpush1.msra.mxu0 0.0
    %6977 = vmatprep.subr.mxu0 0.0
    %6978 = vmatpush1.msra.mxu0 0.0
    %6979 = vmatprep.subr.mxu0 0.0
    %6980 = vmatpush1.msra.mxu0 0.0
    %6981 = vmatprep.mubr.f32.mxu0 0.0
    %6982 = vmatmul.mubr.f32.gmra.mrb[0].mxu0 %v6915
    %v6983 = vpop.f32.mrb[0].mxu0
    %v6984 = vadd.f32 %v6911, %v6983
    %v6985 = vpop.f32.mrb[0].mxu0
    %6986 = vdwg.mxu0
    %v6987 = vadd.f32 %v6984, %v253
    %6988 = vmatprep.subr.mxu0 0.0
    %6989 = vmatpush1.msra.mxu0 %v234
    %6990 = vmatprep.subr.mxu0 0.0
    %6991 = vmatpush1.msra.mxu0 %v235
    %6992 = vmatprep.subr.mxu0 0.0
    %6993 = vmatpush1.msra.mxu0 %v236
    %6994 = vmatprep.subr.mxu0 0.0
    %6995 = vmatpush1.msra.mxu0 %v237
    %6996 = vmatprep.subr.mxu0 0.0
    %6997 = vmatpush1.msra.mxu0 0.0
    %6998 = vmatprep.subr.mxu0 0.0
    %6999 = vmatpush1.msra.mxu0 0.0
    %7000 = vmatprep.subr.mxu0 0.0
    %7001 = vmatpush1.msra.mxu0 0.0
    %7002 = vmatprep.subr.mxu0 0.0
    %7003 = vmatpush1.msra.mxu0 0.0
    %7004 = vmatprep.subr.mxu0 0.0
    %7005 = vmatpush1.msra.mxu0 0.0
    %7006 = vmatprep.subr.mxu0 0.0
    %7007 = vmatpush1.msra.mxu0 0.0
    %7008 = vmatprep.subr.mxu0 0.0
    %7009 = vmatpush1.msra.mxu0 0.0
    %7010 = vmatprep.subr.mxu0 0.0
    %7011 = vmatpush1.msra.mxu0 0.0
    %7012 = vmatprep.subr.mxu0 0.0
    %7013 = vmatpush1.msra.mxu0 0.0
    %7014 = vmatprep.subr.mxu0 0.0
    %7015 = vmatpush1.msra.mxu0 0.0
    %7016 = vmatprep.subr.mxu0 0.0
    %7017 = vmatpush1.msra.mxu0 0.0
    %7018 = vmatprep.subr.mxu0 0.0
    %7019 = vmatpush1.msra.mxu0 0.0
    %7020 = vmatprep.subr.mxu0 0.0
    %7021 = vmatpush1.msra.mxu0 0.0
    %7022 = vmatprep.subr.mxu0 0.0
    %7023 = vmatpush1.msra.mxu0 0.0
    %7024 = vmatprep.subr.mxu0 0.0
    %7025 = vmatpush1.msra.mxu0 0.0
    %7026 = vmatprep.subr.mxu0 0.0
    %7027 = vmatpush1.msra.mxu0 0.0
    %7028 = vmatprep.subr.mxu0 0.0
    %7029 = vmatpush1.msra.mxu0 0.0
    %7030 = vmatprep.subr.mxu0 0.0
    %7031 = vmatpush1.msra.mxu0 0.0
    %7032 = vmatprep.subr.mxu0 0.0
    %7033 = vmatpush1.msra.mxu0 0.0
    %7034 = vmatprep.subr.mxu0 0.0
    %7035 = vmatpush1.msra.mxu0 0.0
    %7036 = vmatprep.subr.mxu0 0.0
    %7037 = vmatpush1.msra.mxu0 0.0
    %7038 = vmatprep.subr.mxu0 0.0
    %7039 = vmatpush1.msra.mxu0 0.0
    %7040 = vmatprep.subr.mxu0 0.0
    %7041 = vmatpush1.msra.mxu0 0.0
    %7042 = vmatprep.subr.mxu0 0.0
    %7043 = vmatpush1.msra.mxu0 0.0
    %7044 = vmatprep.subr.mxu0 0.0
    %7045 = vmatpush1.msra.mxu0 0.0
    %7046 = vmatprep.subr.mxu0 0.0
    %7047 = vmatpush1.msra.mxu0 0.0
    %7048 = vmatprep.subr.mxu0 0.0
    %7049 = vmatpush1.msra.mxu0 0.0
    %7050 = vmatprep.subr.mxu0 0.0
    %7051 = vmatpush1.msra.mxu0 0.0
    %7052 = vmatprep.mubr.f32.mxu0 0.0
    %7053 = vmatmul.mubr.f32.gmra.mrb[0].mxu0 %v6842
    %v7054 = vpop.f32.mrb[0].mxu0
    %v7055 = vadd.f32 0.0, %v7054
    %v7056 = vpop.f32.mrb[0].mxu0
    %7057 = vdwg.mxu0
    %7058 = vmatprep.subr.mxu0 0.0
    %7059 = vmatpush1.msra.mxu0 %v215
    %7060 = vmatprep.subr.mxu0 0.0
    %7061 = vmatpush1.msra.mxu0 %v216
    %7062 = vmatprep.subr.mxu0 0.0
    %7063 = vmatpush1.msra.mxu0 %v217
    %7064 = vmatprep.subr.mxu0 0.0
    %7065 = vmatpush1.msra.mxu0 %v218
    %7066 = vmatprep.subr.mxu0 0.0
    %7067 = vmatpush1.msra.mxu0 0.0
    %7068 = vmatprep.subr.mxu0 0.0
    %7069 = vmatpush1.msra.mxu0 0.0
    %7070 = vmatprep.subr.mxu0 0.0
    %7071 = vmatpush1.msra.mxu0 0.0
    %7072 = vmatprep.subr.mxu0 0.0
    %7073 = vmatpush1.msra.mxu0 0.0
    %7074 = vmatprep.subr.mxu0 0.0
    %7075 = vmatpush1.msra.mxu0 0.0
    %7076 = vmatprep.subr.mxu0 0.0
    %7077 = vmatpush1.msra.mxu0 0.0
    %7078 = vmatprep.subr.mxu0 0.0
    %7079 = vmatpush1.msra.mxu0 0.0
    %7080 = vmatprep.subr.mxu0 0.0
    %7081 = vmatpush1.msra.mxu0 0.0
    %7082 = vmatprep.subr.mxu0 0.0
    %7083 = vmatpush1.msra.mxu0 0.0
    %7084 = vmatprep.subr.mxu0 0.0
    %7085 = vmatpush1.msra.mxu0 0.0
    %7086 = vmatprep.subr.mxu0 0.0
    %7087 = vmatpush1.msra.mxu0 0.0
    %7088 = vmatprep.subr.mxu0 0.0
    %7089 = vmatpush1.msra.mxu0 0.0
    %7090 = vmatprep.subr.mxu0 0.0
    %7091 = vmatpush1.msra.mxu0 0.0
    %7092 = vmatprep.subr.mxu0 0.0
    %7093 = vmatpush1.msra.mxu0 0.0
    %7094 = vmatprep.subr.mxu0 0.0
    %7095 = vmatpush1.msra.mxu0 0.0
    %7096 = vmatprep.subr.mxu0 0.0
    %7097 = vmatpush1.msra.mxu0 0.0
    %7098 = vmatprep.subr.mxu0 0.0
    %7099 = vmatpush1.msra.mxu0 0.0
    %7100 = vmatprep.subr.mxu0 0.0
    %7101 = vmatpush1.msra.mxu0 0.0
    %7102 = vmatprep.subr.mxu0 0.0
    %7103 = vmatpush1.msra.mxu0 0.0
    %7104 = vmatprep.subr.mxu0 0.0
    %7105 = vmatpush1.msra.mxu0 0.0
    %7106 = vmatprep.subr.mxu0 0.0
    %7107 = vmatpush1.msra.mxu0 0.0
    %7108 = vmatprep.subr.mxu0 0.0
    %7109 = vmatpush1.msra.mxu0 0.0
    %7110 = vmatprep.subr.mxu0 0.0
    %7111 = vmatpush1.msra.mxu0 0.0
    %7112 = vmatprep.subr.mxu0 0.0
    %7113 = vmatpush1.msra.mxu0 0.0
    %7114 = vmatprep.subr.mxu0 0.0
    %7115 = vmatpush1.msra.mxu0 0.0
    %7116 = vmatprep.subr.mxu0 0.0
    %7117 = vmatpush1.msra.mxu0 0.0
    %7118 = vmatprep.subr.mxu0 0.0
    %7119 = vmatpush1.msra.mxu0 0.0
    %7120 = vmatprep.subr.mxu0 0.0
    %7121 = vmatpush1.msra.mxu0 0.0
    %7122 = vmatprep.mubr.f32.mxu0 0.0
    %7123 = vmatmul.mubr.f32.gmra.mrb[0].mxu0 %v6915
    %v7124 = vpop.f32.mrb[0].mxu0
    %v7125 = vadd.f32 %v7055, %v7124
    %v7126 = vpop.f32.mrb[0].mxu0
    %7127 = vdwg.mxu0
    %v7128 = vadd.f32 %v7125, %v261
    %7129 = vmatprep.subr.mxu0 0.0
    %7130 = vmatpush1.msra.mxu0 %v239
    %7131 = vmatprep.subr.mxu0 0.0
    %7132 = vmatpush1.msra.mxu0 %v240
    %7133 = vmatprep.subr.mxu0 0.0
    %7134 = vmatpush1.msra.mxu0 %v241
    %7135 = vmatprep.subr.mxu0 0.0
    %7136 = vmatpush1.msra.mxu0 %v242
    %7137 = vmatprep.subr.mxu0 0.0
    %7138 = vmatpush1.msra.mxu0 0.0
    %7139 = vmatprep.subr.mxu0 0.0
    %7140 = vmatpush1.msra.mxu0 0.0
    %7141 = vmatprep.subr.mxu0 0.0
    %7142 = vmatpush1.msra.mxu0 0.0
    %7143 = vmatprep.subr.mxu0 0.0
    %7144 = vmatpush1.msra.mxu0 0.0
    %7145 = vmatprep.subr.mxu0 0.0
    %7146 = vmatpush1.msra.mxu0 0.0
    %7147 = vmatprep.subr.mxu0 0.0
    %7148 = vmatpush1.msra.mxu0 0.0
    %7149 = vmatprep.subr.mxu0 0.0
    %7150 = vmatpush1.msra.mxu0 0.0
    %7151 = vmatprep.subr.mxu0 0.0
    %7152 = vmatpush1.msra.mxu0 0.0
    %7153 = vmatprep.subr.mxu0 0.0
    %7154 = vmatpush1.msra.mxu0 0.0
    %7155 = vmatprep.subr.mxu0 0.0
    %7156 = vmatpush1.msra.mxu0 0.0
    %7157 = vmatprep.subr.mxu0 0.0
    %7158 = vmatpush1.msra.mxu0 0.0
    %7159 = vmatprep.subr.mxu0 0.0
    %7160 = vmatpush1.msra.mxu0 0.0
    %7161 = vmatprep.subr.mxu0 0.0
    %7162 = vmatpush1.msra.mxu0 0.0
    %7163 = vmatprep.subr.mxu0 0.0
    %7164 = vmatpush1.msra.mxu0 0.0
    %7165 = vmatprep.subr.mxu0 0.0
    %7166 = vmatpush1.msra.mxu0 0.0
    %7167 = vmatprep.subr.mxu0 0.0
    %7168 = vmatpush1.msra.mxu0 0.0
    %7169 = vmatprep.subr.mxu0 0.0
    %7170 = vmatpush1.msra.mxu0 0.0
    %7171 = vmatprep.subr.mxu0 0.0
    %7172 = vmatpush1.msra.mxu0 0.0
    %7173 = vmatprep.subr.mxu0 0.0
    %7174 = vmatpush1.msra.mxu0 0.0
    %7175 = vmatprep.subr.mxu0 0.0
    %7176 = vmatpush1.msra.mxu0 0.0
    %7177 = vmatprep.subr.mxu0 0.0
    %7178 = vmatpush1.msra.mxu0 0.0
    %7179 = vmatprep.subr.mxu0 0.0
    %7180 = vmatpush1.msra.mxu0 0.0
    %7181 = vmatprep.subr.mxu0 0.0
    %7182 = vmatpush1.msra.mxu0 0.0
    %7183 = vmatprep.subr.mxu0 0.0
    %7184 = vmatpush1.msra.mxu0 0.0
    %7185 = vmatprep.subr.mxu0 0.0
    %7186 = vmatpush1.msra.mxu0 0.0
    %7187 = vmatprep.subr.mxu0 0.0
    %7188 = vmatpush1.msra.mxu0 0.0
    %7189 = vmatprep.subr.mxu0 0.0
    %7190 = vmatpush1.msra.mxu0 0.0
    %7191 = vmatprep.subr.mxu0 0.0
    %7192 = vmatpush1.msra.mxu0 0.0
    %7193 = vmatprep.mubr.f32.mxu0 0.0
    %7194 = vmatmul.mubr.f32.gmra.mrb[0].mxu0 %v6842
    %v7195 = vpop.f32.mrb[0].mxu0
    %v7196 = vadd.f32 0.0, %v7195
    %v7197 = vpop.f32.mrb[0].mxu0
    %7198 = vdwg.mxu0
    %7199 = vmatprep.subr.mxu0 0.0
    %7200 = vmatpush1.msra.mxu0 %v220
    %7201 = vmatprep.subr.mxu0 0.0
    %7202 = vmatpush1.msra.mxu0 %v221
    %7203 = vmatprep.subr.mxu0 0.0
    %7204 = vmatpush1.msra.mxu0 %v222
    %7205 = vmatprep.subr.mxu0 0.0
    %7206 = vmatpush1.msra.mxu0 %v223
    %7207 = vmatprep.subr.mxu0 0.0
    %7208 = vmatpush1.msra.mxu0 0.0
    %7209 = vmatprep.subr.mxu0 0.0
    %7210 = vmatpush1.msra.mxu0 0.0
    %7211 = vmatprep.subr.mxu0 0.0
    %7212 = vmatpush1.msra.mxu0 0.0
    %7213 = vmatprep.subr.mxu0 0.0
    %7214 = vmatpush1.msra.mxu0 0.0
    %7215 = vmatprep.subr.mxu0 0.0
    %7216 = vmatpush1.msra.mxu0 0.0
    %7217 = vmatprep.subr.mxu0 0.0
    %7218 = vmatpush1.msra.mxu0 0.0
    %7219 = vmatprep.subr.mxu0 0.0
    %7220 = vmatpush1.msra.mxu0 0.0
    %7221 = vmatprep.subr.mxu0 0.0
    %7222 = vmatpush1.msra.mxu0 0.0
    %7223 = vmatprep.subr.mxu0 0.0
    %7224 = vmatpush1.msra.mxu0 0.0
    %7225 = vmatprep.subr.mxu0 0.0
    %7226 = vmatpush1.msra.mxu0 0.0
    %7227 = vmatprep.subr.mxu0 0.0
    %7228 = vmatpush1.msra.mxu0 0.0
    %7229 = vmatprep.subr.mxu0 0.0
    %7230 = vmatpush1.msra.mxu0 0.0
    %7231 = vmatprep.subr.mxu0 0.0
    %7232 = vmatpush1.msra.mxu0 0.0
    %7233 = vmatprep.subr.mxu0 0.0
    %7234 = vmatpush1.msra.mxu0 0.0
    %7235 = vmatprep.subr.mxu0 0.0
    %7236 = vmatpush1.msra.mxu0 0.0
    %7237 = vmatprep.subr.mxu0 0.0
    %7238 = vmatpush1.msra.mxu0 0.0
    %7239 = vmatprep.subr.mxu0 0.0
    %7240 = vmatpush1.msra.mxu0 0.0
    %7241 = vmatprep.subr.mxu0 0.0
    %7242 = vmatpush1.msra.mxu0 0.0
    %7243 = vmatprep.subr.mxu0 0.0
    %7244 = vmatpush1.msra.mxu0 0.0
    %7245 = vmatprep.subr.mxu0 0.0
    %7246 = vmatpush1.msra.mxu0 0.0
    %7247 = vmatprep.subr.mxu0 0.0
    %7248 = vmatpush1.msra.mxu0 0.0
    %7249 = vmatprep.subr.mxu0 0.0
    %7250 = vmatpush1.msra.mxu0 0.0
    %7251 = vmatprep.subr.mxu0 0.0
    %7252 = vmatpush1.msra.mxu0 0.0
    %7253 = vmatprep.subr.mxu0 0.0
    %7254 = vmatpush1.msra.mxu0 0.0
    %7255 = vmatprep.subr.mxu0 0.0
    %7256 = vmatpush1.msra.mxu0 0.0
    %7257 = vmatprep.subr.mxu0 0.0
    %7258 = vmatpush1.msra.mxu0 0.0
    %7259 = vmatprep.subr.mxu0 0.0
    %7260 = vmatpush1.msra.mxu0 0.0
    %7261 = vmatprep.subr.mxu0 0.0
    %7262 = vmatpush1.msra.mxu0 0.0
    %7263 = vmatprep.mubr.f32.mxu0 0.0
    %7264 = vmatmul.mubr.f32.gmra.mrb[0].mxu0 %v6915
    %v7265 = vpop.f32.mrb[0].mxu0
    %v7266 = vadd.f32 %v7196, %v7265
    %v7267 = vpop.f32.mrb[0].mxu0
    %7268 = vdwg.mxu0
    %v7269 = vadd.f32 %v7266, %v269
    %7270 = vmatprep.subr.mxu0 0.0
    %7271 = vmatpush1.msra.mxu0 %v244
    %7272 = vmatprep.subr.mxu0 0.0
    %7273 = vmatpush1.msra.mxu0 %v245
    %7274 = vmatprep.subr.mxu0 0.0
    %7275 = vmatpush1.msra.mxu0 %v246
    %7276 = vmatprep.subr.mxu0 0.0
    %7277 = vmatpush1.msra.mxu0 %v247
    %7278 = vmatprep.subr.mxu0 0.0
    %7279 = vmatpush1.msra.mxu0 0.0
    %7280 = vmatprep.subr.mxu0 0.0
    %7281 = vmatpush1.msra.mxu0 0.0
    %7282 = vmatprep.subr.mxu0 0.0
    %7283 = vmatpush1.msra.mxu0 0.0
    %7284 = vmatprep.subr.mxu0 0.0
    %7285 = vmatpush1.msra.mxu0 0.0
    %7286 = vmatprep.subr.mxu0 0.0
    %7287 = vmatpush1.msra.mxu0 0.0
    %7288 = vmatprep.subr.mxu0 0.0
    %7289 = vmatpush1.msra.mxu0 0.0
    %7290 = vmatprep.subr.mxu0 0.0
    %7291 = vmatpush1.msra.mxu0 0.0
    %7292 = vmatprep.subr.mxu0 0.0
    %7293 = vmatpush1.msra.mxu0 0.0
    %7294 = vmatprep.subr.mxu0 0.0
    %7295 = vmatpush1.msra.mxu0 0.0
    %7296 = vmatprep.subr.mxu0 0.0
    %7297 = vmatpush1.msra.mxu0 0.0
    %7298 = vmatprep.subr.mxu0 0.0
    %7299 = vmatpush1.msra.mxu0 0.0
    %7300 = vmatprep.subr.mxu0 0.0
    %7301 = vmatpush1.msra.mxu0 0.0
    %7302 = vmatprep.subr.mxu0 0.0
    %7303 = vmatpush1.msra.mxu0 0.0
    %7304 = vmatprep.subr.mxu0 0.0
    %7305 = vmatpush1.msra.mxu0 0.0
    %7306 = vmatprep.subr.mxu0 0.0
    %7307 = vmatpush1.msra.mxu0 0.0
    %7308 = vmatprep.subr.mxu0 0.0
    %7309 = vmatpush1.msra.mxu0 0.0
    %7310 = vmatprep.subr.mxu0 0.0
    %7311 = vmatpush1.msra.mxu0 0.0
    %7312 = vmatprep.subr.mxu0 0.0
    %7313 = vmatpush1.msra.mxu0 0.0
    %7314 = vmatprep.subr.mxu0 0.0
    %7315 = vmatpush1.msra.mxu0 0.0
    %7316 = vmatprep.subr.mxu0 0.0
    %7317 = vmatpush1.msra.mxu0 0.0
    %7318 = vmatprep.subr.mxu0 0.0
    %7319 = vmatpush1.msra.mxu0 0.0
    %7320 = vmatprep.subr.mxu0 0.0
    %7321 = vmatpush1.msra.mxu0 0.0
    %7322 = vmatprep.subr.mxu0 0.0
    %7323 = vmatpush1.msra.mxu0 0.0
    %7324 = vmatprep.subr.mxu0 0.0
    %7325 = vmatpush1.msra.mxu0 0.0
    %7326 = vmatprep.subr.mxu0 0.0
    %7327 = vmatpush1.msra.mxu0 0.0
    %7328 = vmatprep.subr.mxu0 0.0
    %7329 = vmatpush1.msra.mxu0 0.0
    %7330 = vmatprep.subr.mxu0 0.0
    %7331 = vmatpush1.msra.mxu0 0.0
    %7332 = vmatprep.subr.mxu0 0.0
    %7333 = vmatpush1.msra.mxu0 0.0
    %7334 = vmatprep.mubr.f32.mxu0 0.0
    %7335 = vmatmul.mubr.f32.gmra.mrb[0].mxu0 %v6842
    %v7336 = vpop.f32.mrb[0].mxu0
    %v7337 = vadd.f32 0.0, %v7336
    %v7338 = vpop.f32.mrb[0].mxu0
    %7339 = vdwg.mxu0
    %7340 = vmatprep.subr.mxu0 0.0
    %7341 = vmatpush1.msra.mxu0 %v225
    %7342 = vmatprep.subr.mxu0 0.0
    %7343 = vmatpush1.msra.mxu0 %v226
    %7344 = vmatprep.subr.mxu0 0.0
    %7345 = vmatpush1.msra.mxu0 %v227
    %7346 = vmatprep.subr.mxu0 0.0
    %7347 = vmatpush1.msra.mxu0 %v228
    %7348 = vmatprep.subr.mxu0 0.0
    %7349 = vmatpush1.msra.mxu0 0.0
    %7350 = vmatprep.subr.mxu0 0.0
    %7351 = vmatpush1.msra.mxu0 0.0
    %7352 = vmatprep.subr.mxu0 0.0
    %7353 = vmatpush1.msra.mxu0 0.0
    %7354 = vmatprep.subr.mxu0 0.0
    %7355 = vmatpush1.msra.mxu0 0.0
    %7356 = vmatprep.subr.mxu0 0.0
    %7357 = vmatpush1.msra.mxu0 0.0
    %7358 = vmatprep.subr.mxu0 0.0
    %7359 = vmatpush1.msra.mxu0 0.0
    %7360 = vmatprep.subr.mxu0 0.0
    %7361 = vmatpush1.msra.mxu0 0.0
    %7362 = vmatprep.subr.mxu0 0.0
    %7363 = vmatpush1.msra.mxu0 0.0
    %7364 = vmatprep.subr.mxu0 0.0
    %7365 = vmatpush1.msra.mxu0 0.0
    %7366 = vmatprep.subr.mxu0 0.0
    %7367 = vmatpush1.msra.mxu0 0.0
    %7368 = vmatprep.subr.mxu0 0.0
    %7369 = vmatpush1.msra.mxu0 0.0
    %7370 = vmatprep.subr.mxu0 0.0
    %7371 = vmatpush1.msra.mxu0 0.0
    %7372 = vmatprep.subr.mxu0 0.0
    %7373 = vmatpush1.msra.mxu0 0.0
    %7374 = vmatprep.subr.mxu0 0.0
    %7375 = vmatpush1.msra.mxu0 0.0
    %7376 = vmatprep.subr.mxu0 0.0
    %7377 = vmatpush1.msra.mxu0 0.0
    %7378 = vmatprep.subr.mxu0 0.0
    %7379 = vmatpush1.msra.mxu0 0.0
    %7380 = vmatprep.subr.mxu0 0.0
    %7381 = vmatpush1.msra.mxu0 0.0
    %7382 = vmatprep.subr.mxu0 0.0
    %7383 = vmatpush1.msra.mxu0 0.0
    %7384 = vmatprep.subr.mxu0 0.0
    %7385 = vmatpush1.msra.mxu0 0.0
    %7386 = vmatprep.subr.mxu0 0.0
    %7387 = vmatpush1.msra.mxu0 0.0
    %7388 = vmatprep.subr.mxu0 0.0
    %7389 = vmatpush1.msra.mxu0 0.0
    %7390 = vmatprep.subr.mxu0 0.0
    %7391 = vmatpush1.msra.mxu0 0.0
    %7392 = vmatprep.subr.mxu0 0.0
    %7393 = vmatpush1.msra.mxu0 0.0
    %7394 = vmatprep.subr.mxu0 0.0
    %7395 = vmatpush1.msra.mxu0 0.0
    %7396 = vmatprep.subr.mxu0 0.0
    %7397 = vmatpush1.msra.mxu0 0.0
    %7398 = vmatprep.subr.mxu0 0.0
    %7399 = vmatpush1.msra.mxu0 0.0
    %7400 = vmatprep.subr.mxu0 0.0
    %7401 = vmatpush1.msra.mxu0 0.0
    %7402 = vmatprep.subr.mxu0 0.0
    %7403 = vmatpush1.msra.mxu0 0.0
    %7404 = vmatprep.mubr.f32.mxu0 0.0
    %7405 = vmatmul.mubr.f32.gmra.mrb[0].mxu0 %v6915
    %v7406 = vpop.f32.mrb[0].mxu0
    %v7407 = vadd.f32 %v7337, %v7406
    %v7408 = vpop.f32.mrb[0].mxu0
    %7409 = vdwg.mxu0
    %v7410 = vadd.f32 %v7407, %v277
    %v7411 = vxor.u32 %v6987, 2147483648
    %v7412 = vmul.f32 %v7411, 1.442695
    %v7413 = vpow.pop %v7412
    %v7414 = vadd.f32 %v7413, 1.0
    %v7415 = vrcp.pop %v7414
    %v7416 = vmul.f32 1.0, %v7415
    %v7417 = vxor.u32 %v7128, 2147483648
    %v7418 = vmul.f32 %v7417, 1.442695
    %v7419 = vpow.pop %v7418
    %v7420 = vadd.f32 %v7419, 1.0
    %v7421 = vrcp.pop %v7420
    %v7422 = vmul.f32 1.0, %v7421
    %v7423 = vtanh.pop %v7269
    %v7424 = vxor.u32 %v7410, 2147483648
    %v7425 = vmul.f32 %v7424, 1.442695
    %v7426 = vpow.pop %v7425
    %v7427 = vadd.f32 %v7426, 1.0
    %v7428 = vrcp.pop %v7427
    %v7429 = vmul.f32 1.0, %v7428
    %v7430 = vmul.f32 %v7422, %v6242
    %v7431 = vmul.f32 %v7416, %v7423
    %v7432 = vadd.f32 %v7430, %v7431
    %v7433 = vtanh.pop %v7432
    %v7434 = vmul.f32 %v7429, %v7433
    %v7435 = vld [vmem:[%s0 + $0x6] sm:$0x1]
    %v7436 = vld [vmem:[%s0 + $0xe] sm:$0x1]
    %7437 = vmatprep.subr.mxu0 0.0
    %7438 = vmatpush1.msra.mxu0 %v160
    %7439 = vmatprep.subr.mxu0 0.0
    %7440 = vmatpush1.msra.mxu0 %v161
    %7441 = vmatprep.subr.mxu0 0.0
    %7442 = vmatpush1.msra.mxu0 %v162
    %7443 = vmatprep.subr.mxu0 0.0
    %7444 = vmatpush1.msra.mxu0 %v163
    %7445 = vmatprep.subr.mxu0 0.0
    %7446 = vmatpush1.msra.mxu0 0.0
    %7447 = vmatprep.subr.mxu0 0.0
    %7448 = vmatpush1.msra.mxu0 0.0
    %7449 = vmatprep.subr.mxu0 0.0
    %7450 = vmatpush1.msra.mxu0 0.0
    %7451 = vmatprep.subr.mxu0 0.0
    %7452 = vmatpush1.msra.mxu0 0.0
    %7453 = vmatprep.subr.mxu0 0.0
    %7454 = vmatpush1.msra.mxu0 0.0
    %7455 = vmatprep.subr.mxu0 0.0
    %7456 = vmatpush1.msra.mxu0 0.0
    %7457 = vmatprep.subr.mxu0 0.0
    %7458 = vmatpush1.msra.mxu0 0.0
    %7459 = vmatprep.subr.mxu0 0.0
    %7460 = vmatpush1.msra.mxu0 0.0
    %7461 = vmatprep.subr.mxu0 0.0
    %7462 = vmatpush1.msra.mxu0 0.0
    %7463 = vmatprep.subr.mxu0 0.0
    %7464 = vmatpush1.msra.mxu0 0.0
    %7465 = vmatprep.subr.mxu0 0.0
    %7466 = vmatpush1.msra.mxu0 0.0
    %7467 = vmatprep.subr.mxu0 0.0
    %7468 = vmatpush1.msra.mxu0 0.0
    %7469 = vmatprep.subr.mxu0 0.0
    %7470 = vmatpush1.msra.mxu0 0.0
    %7471 = vmatprep.subr.mxu0 0.0
    %7472 = vmatpush1.msra.mxu0 0.0
    %7473 = vmatprep.subr.mxu0 0.0
    %7474 = vmatpush1.msra.mxu0 0.0
    %7475 = vmatprep.subr.mxu0 0.0
    %7476 = vmatpush1.msra.mxu0 0.0
    %7477 = vmatprep.subr.mxu0 0.0
    %7478 = vmatpush1.msra.mxu0 0.0
    %7479 = vmatprep.subr.mxu0 0.0
    %7480 = vmatpush1.msra.mxu0 0.0
    %7481 = vmatprep.subr.mxu0 0.0
    %7482 = vmatpush1.msra.mxu0 0.0
    %7483 = vmatprep.subr.mxu0 0.0
    %7484 = vmatpush1.msra.mxu0 0.0
    %7485 = vmatprep.subr.mxu0 0.0
    %7486 = vmatpush1.msra.mxu0 0.0
    %7487 = vmatprep.subr.mxu0 0.0
    %7488 = vmatpush1.msra.mxu0 0.0
    %7489 = vmatprep.subr.mxu0 0.0
    %7490 = vmatpush1.msra.mxu0 0.0
    %7491 = vmatprep.subr.mxu0 0.0
    %7492 = vmatpush1.msra.mxu0 0.0
    %7493 = vmatprep.subr.mxu0 0.0
    %7494 = vmatpush1.msra.mxu0 0.0
    %7495 = vmatprep.subr.mxu0 0.0
    %7496 = vmatpush1.msra.mxu0 0.0
    %7497 = vmatprep.subr.mxu0 0.0
    %7498 = vmatpush1.msra.mxu0 0.0
    %7499 = vmatprep.subr.mxu0 0.0
    %7500 = vmatpush1.msra.mxu0 0.0
    %7501 = vmatprep.mubr.f32.mxu0 0.0
    %7502 = vmatmul.mubr.f32.gmra.mrb[0].mxu0 %v6915
    %v7503 = vpop.f32.mrb[0].mxu0
    %v7504 = vadd.f32 0.0, %v7503
    %v7505 = vpop.f32.mrb[0].mxu0
    %7506 = vdwg.mxu0
    %v7509 = vrot.slane %v7436, 7
    %v7510 = vsel %vm358, %v7509, %v7435
    %v7511 = vsel %vm360, %v7510, 0
    %7513 = vmatprep.subr.mxu0 0.0
    %7514 = vmatpush1.msra.mxu0 %v365
    %7515 = vmatprep.subr.mxu0 0.0
    %7516 = vmatpush1.msra.mxu0 0.0
    %7517 = vmatprep.subr.mxu0 0.0
    %7518 = vmatpush1.msra.mxu0 0.0
    %7519 = vmatprep.subr.mxu0 0.0
    %7520 = vmatpush1.msra.mxu0 0.0
    %7521 = vmatprep.subr.mxu0 0.0
    %7522 = vmatpush1.msra.mxu0 0.0
    %7523 = vmatprep.subr.mxu0 0.0
    %7524 = vmatpush1.msra.mxu0 0.0
    %7525 = vmatprep.subr.mxu0 0.0
    %7526 = vmatpush1.msra.mxu0 0.0
    %7527 = vmatprep.subr.mxu0 0.0
    %7528 = vmatpush1.msra.mxu0 0.0
    %7529 = vmatprep.subr.mxu0 0.0
    %7530 = vmatpush1.msra.mxu0 0.0
    %7531 = vmatprep.subr.mxu0 0.0
    %7532 = vmatpush1.msra.mxu0 0.0
    %7533 = vmatprep.subr.mxu0 0.0
    %7534 = vmatpush1.msra.mxu0 0.0
    %7535 = vmatprep.subr.mxu0 0.0
    %7536 = vmatpush1.msra.mxu0 0.0
    %7537 = vmatprep.subr.mxu0 0.0
    %7538 = vmatpush1.msra.mxu0 0.0
    %7539 = vmatprep.subr.mxu0 0.0
    %7540 = vmatpush1.msra.mxu0 0.0
    %7541 = vmatprep.subr.mxu0 0.0
    %7542 = vmatpush1.msra.mxu0 0.0
    %7543 = vmatprep.subr.mxu0 0.0
    %7544 = vmatpush1.msra.mxu0 0.0
    %7545 = vmatprep.subr.mxu0 0.0
    %7546 = vmatpush1.msra.mxu0 0.0
    %7547 = vmatprep.subr.mxu0 0.0
    %7548 = vmatpush1.msra.mxu0 0.0
    %7549 = vmatprep.subr.mxu0 0.0
    %7550 = vmatpush1.msra.mxu0 0.0
    %7551 = vmatprep.subr.mxu0 0.0
    %7552 = vmatpush1.msra.mxu0 0.0
    %7553 = vmatprep.subr.mxu0 0.0
    %7554 = vmatpush1.msra.mxu0 0.0
    %7555 = vmatprep.subr.mxu0 0.0
    %7556 = vmatpush1.msra.mxu0 0.0
    %7557 = vmatprep.subr.mxu0 0.0
    %7558 = vmatpush1.msra.mxu0 0.0
    %7559 = vmatprep.subr.mxu0 0.0
    %7560 = vmatpush1.msra.mxu0 0.0
    %7561 = vmatprep.subr.mxu0 0.0
    %7562 = vmatpush1.msra.mxu0 0.0
    %7563 = vmatprep.subr.mxu0 0.0
    %7564 = vmatpush1.msra.mxu0 0.0
    %7565 = vmatprep.subr.mxu0 0.0
    %7566 = vmatpush1.msra.mxu0 0.0
    %7567 = vmatprep.subr.mxu0 0.0
    %7568 = vmatpush1.msra.mxu0 0.0
    %7569 = vmatprep.subr.mxu0 0.0
    %7570 = vmatpush1.msra.mxu0 0.0
    %7571 = vmatprep.subr.mxu0 0.0
    %7572 = vmatpush1.msra.mxu0 0.0
    %7573 = vmatprep.subr.mxu0 0.0
    %7574 = vmatpush1.msra.mxu0 0.0
    %7575 = vmatprep.subr.mxu0 0.0
    %7576 = vmatpush1.msra.mxu0 0.0
    %7577 = vmatprep.mubr.f32.mxu0 0.0
    %7578 = vmatmul.mubr.f32.gmra.mrb[0].mxu0 %v7511
    %v7579 = vpop.f32.mrb[0].mxu0
    %v7580 = vadd.f32 %v7504, %v7579
    %v7581 = vpop.f32.mrb[0].mxu0
    %7582 = vdwg.mxu0
    %v7583 = vadd.f32 %v7580, %v184
    %7584 = vmatprep.subr.mxu0 0.0
    %7585 = vmatpush1.msra.mxu0 %v165
    %7586 = vmatprep.subr.mxu0 0.0
    %7587 = vmatpush1.msra.mxu0 %v166
    %7588 = vmatprep.subr.mxu0 0.0
    %7589 = vmatpush1.msra.mxu0 %v167
    %7590 = vmatprep.subr.mxu0 0.0
    %7591 = vmatpush1.msra.mxu0 %v168
    %7592 = vmatprep.subr.mxu0 0.0
    %7593 = vmatpush1.msra.mxu0 0.0
    %7594 = vmatprep.subr.mxu0 0.0
    %7595 = vmatpush1.msra.mxu0 0.0
    %7596 = vmatprep.subr.mxu0 0.0
    %7597 = vmatpush1.msra.mxu0 0.0
    %7598 = vmatprep.subr.mxu0 0.0
    %7599 = vmatpush1.msra.mxu0 0.0
    %7600 = vmatprep.subr.mxu0 0.0
    %7601 = vmatpush1.msra.mxu0 0.0
    %7602 = vmatprep.subr.mxu0 0.0
    %7603 = vmatpush1.msra.mxu0 0.0
    %7604 = vmatprep.subr.mxu0 0.0
    %7605 = vmatpush1.msra.mxu0 0.0
    %7606 = vmatprep.subr.mxu0 0.0
    %7607 = vmatpush1.msra.mxu0 0.0
    %7608 = vmatprep.subr.mxu0 0.0
    %7609 = vmatpush1.msra.mxu0 0.0
    %7610 = vmatprep.subr.mxu0 0.0
    %7611 = vmatpush1.msra.mxu0 0.0
    %7612 = vmatprep.subr.mxu0 0.0
    %7613 = vmatpush1.msra.mxu0 0.0
    %7614 = vmatprep.subr.mxu0 0.0
    %7615 = vmatpush1.msra.mxu0 0.0
    %7616 = vmatprep.subr.mxu0 0.0
    %7617 = vmatpush1.msra.mxu0 0.0
    %7618 = vmatprep.subr.mxu0 0.0
    %7619 = vmatpush1.msra.mxu0 0.0
    %7620 = vmatprep.subr.mxu0 0.0
    %7621 = vmatpush1.msra.mxu0 0.0
    %7622 = vmatprep.subr.mxu0 0.0
    %7623 = vmatpush1.msra.mxu0 0.0
    %7624 = vmatprep.subr.mxu0 0.0
    %7625 = vmatpush1.msra.mxu0 0.0
    %7626 = vmatprep.subr.mxu0 0.0
    %7627 = vmatpush1.msra.mxu0 0.0
    %7628 = vmatprep.subr.mxu0 0.0
    %7629 = vmatpush1.msra.mxu0 0.0
    %7630 = vmatprep.subr.mxu0 0.0
    %7631 = vmatpush1.msra.mxu0 0.0
    %7632 = vmatprep.subr.mxu0 0.0
    %7633 = vmatpush1.msra.mxu0 0.0
    %7634 = vmatprep.subr.mxu0 0.0
    %7635 = vmatpush1.msra.mxu0 0.0
    %7636 = vmatprep.subr.mxu0 0.0
    %7637 = vmatpush1.msra.mxu0 0.0
    %7638 = vmatprep.subr.mxu0 0.0
    %7639 = vmatpush1.msra.mxu0 0.0
    %7640 = vmatprep.subr.mxu0 0.0
    %7641 = vmatpush1.msra.mxu0 0.0
    %7642 = vmatprep.subr.mxu0 0.0
    %7643 = vmatpush1.msra.mxu0 0.0
    %7644 = vmatprep.subr.mxu0 0.0
    %7645 = vmatpush1.msra.mxu0 0.0
    %7646 = vmatprep.subr.mxu0 0.0
    %7647 = vmatpush1.msra.mxu0 0.0
    %7648 = vmatprep.mubr.f32.mxu0 0.0
    %7649 = vmatmul.mubr.f32.gmra.mrb[0].mxu0 %v6915
    %v7650 = vpop.f32.mrb[0].mxu0
    %v7651 = vadd.f32 0.0, %v7650
    %v7652 = vpop.f32.mrb[0].mxu0
    %7653 = vdwg.mxu0
    %7654 = vmatprep.subr.mxu0 0.0
    %7655 = vmatpush1.msra.mxu0 %v509
    %7656 = vmatprep.subr.mxu0 0.0
    %7657 = vmatpush1.msra.mxu0 0.0
    %7658 = vmatprep.subr.mxu0 0.0
    %7659 = vmatpush1.msra.mxu0 0.0
    %7660 = vmatprep.subr.mxu0 0.0
    %7661 = vmatpush1.msra.mxu0 0.0
    %7662 = vmatprep.subr.mxu0 0.0
    %7663 = vmatpush1.msra.mxu0 0.0
    %7664 = vmatprep.subr.mxu0 0.0
    %7665 = vmatpush1.msra.mxu0 0.0
    %7666 = vmatprep.subr.mxu0 0.0
    %7667 = vmatpush1.msra.mxu0 0.0
    %7668 = vmatprep.subr.mxu0 0.0
    %7669 = vmatpush1.msra.mxu0 0.0
    %7670 = vmatprep.subr.mxu0 0.0
    %7671 = vmatpush1.msra.mxu0 0.0
    %7672 = vmatprep.subr.mxu0 0.0
    %7673 = vmatpush1.msra.mxu0 0.0
    %7674 = vmatprep.subr.mxu0 0.0
    %7675 = vmatpush1.msra.mxu0 0.0
    %7676 = vmatprep.subr.mxu0 0.0
    %7677 = vmatpush1.msra.mxu0 0.0
    %7678 = vmatprep.subr.mxu0 0.0
    %7679 = vmatpush1.msra.mxu0 0.0
    %7680 = vmatprep.subr.mxu0 0.0
    %7681 = vmatpush1.msra.mxu0 0.0
    %7682 = vmatprep.subr.mxu0 0.0
    %7683 = vmatpush1.msra.mxu0 0.0
    %7684 = vmatprep.subr.mxu0 0.0
    %7685 = vmatpush1.msra.mxu0 0.0
    %7686 = vmatprep.subr.mxu0 0.0
    %7687 = vmatpush1.msra.mxu0 0.0
    %7688 = vmatprep.subr.mxu0 0.0
    %7689 = vmatpush1.msra.mxu0 0.0
    %7690 = vmatprep.subr.mxu0 0.0
    %7691 = vmatpush1.msra.mxu0 0.0
    %7692 = vmatprep.subr.mxu0 0.0
    %7693 = vmatpush1.msra.mxu0 0.0
    %7694 = vmatprep.subr.mxu0 0.0
    %7695 = vmatpush1.msra.mxu0 0.0
    %7696 = vmatprep.subr.mxu0 0.0
    %7697 = vmatpush1.msra.mxu0 0.0
    %7698 = vmatprep.subr.mxu0 0.0
    %7699 = vmatpush1.msra.mxu0 0.0
    %7700 = vmatprep.subr.mxu0 0.0
    %7701 = vmatpush1.msra.mxu0 0.0
    %7702 = vmatprep.subr.mxu0 0.0
    %7703 = vmatpush1.msra.mxu0 0.0
    %7704 = vmatprep.subr.mxu0 0.0
    %7705 = vmatpush1.msra.mxu0 0.0
    %7706 = vmatprep.subr.mxu0 0.0
    %7707 = vmatpush1.msra.mxu0 0.0
    %7708 = vmatprep.subr.mxu0 0.0
    %7709 = vmatpush1.msra.mxu0 0.0
    %7710 = vmatprep.subr.mxu0 0.0
    %7711 = vmatpush1.msra.mxu0 0.0
    %7712 = vmatprep.subr.mxu0 0.0
    %7713 = vmatpush1.msra.mxu0 0.0
    %7714 = vmatprep.subr.mxu0 0.0
    %7715 = vmatpush1.msra.mxu0 0.0
    %7716 = vmatprep.subr.mxu0 0.0
    %7717 = vmatpush1.msra.mxu0 0.0
    %7718 = vmatprep.mubr.f32.mxu0 0.0
    %7719 = vmatmul.mubr.f32.gmra.mrb[0].mxu0 %v7511
    %v7720 = vpop.f32.mrb[0].mxu0
    %v7721 = vadd.f32 %v7651, %v7720
    %v7722 = vpop.f32.mrb[0].mxu0
    %7723 = vdwg.mxu0
    %v7724 = vadd.f32 %v7721, %v192
    %7725 = vmatprep.subr.mxu0 0.0
    %7726 = vmatpush1.msra.mxu0 %v170
    %7727 = vmatprep.subr.mxu0 0.0
    %7728 = vmatpush1.msra.mxu0 %v171
    %7729 = vmatprep.subr.mxu0 0.0
    %7730 = vmatpush1.msra.mxu0 %v172
    %7731 = vmatprep.subr.mxu0 0.0
    %7732 = vmatpush1.msra.mxu0 %v173
    %7733 = vmatprep.subr.mxu0 0.0
    %7734 = vmatpush1.msra.mxu0 0.0
    %7735 = vmatprep.subr.mxu0 0.0
    %7736 = vmatpush1.msra.mxu0 0.0
    %7737 = vmatprep.subr.mxu0 0.0
    %7738 = vmatpush1.msra.mxu0 0.0
    %7739 = vmatprep.subr.mxu0 0.0
    %7740 = vmatpush1.msra.mxu0 0.0
    %7741 = vmatprep.subr.mxu0 0.0
    %7742 = vmatpush1.msra.mxu0 0.0
    %7743 = vmatprep.subr.mxu0 0.0
    %7744 = vmatpush1.msra.mxu0 0.0
    %7745 = vmatprep.subr.mxu0 0.0
    %7746 = vmatpush1.msra.mxu0 0.0
    %7747 = vmatprep.subr.mxu0 0.0
    %7748 = vmatpush1.msra.mxu0 0.0
    %7749 = vmatprep.subr.mxu0 0.0
    %7750 = vmatpush1.msra.mxu0 0.0
    %7751 = vmatprep.subr.mxu0 0.0
    %7752 = vmatpush1.msra.mxu0 0.0
    %7753 = vmatprep.subr.mxu0 0.0
    %7754 = vmatpush1.msra.mxu0 0.0
    %7755 = vmatprep.subr.mxu0 0.0
    %7756 = vmatpush1.msra.mxu0 0.0
    %7757 = vmatprep.subr.mxu0 0.0
    %7758 = vmatpush1.msra.mxu0 0.0
    %7759 = vmatprep.subr.mxu0 0.0
    %7760 = vmatpush1.msra.mxu0 0.0
    %7761 = vmatprep.subr.mxu0 0.0
    %7762 = vmatpush1.msra.mxu0 0.0
    %7763 = vmatprep.subr.mxu0 0.0
    %7764 = vmatpush1.msra.mxu0 0.0
    %7765 = vmatprep.subr.mxu0 0.0
    %7766 = vmatpush1.msra.mxu0 0.0
    %7767 = vmatprep.subr.mxu0 0.0
    %7768 = vmatpush1.msra.mxu0 0.0
    %7769 = vmatprep.subr.mxu0 0.0
    %7770 = vmatpush1.msra.mxu0 0.0
    %7771 = vmatprep.subr.mxu0 0.0
    %7772 = vmatpush1.msra.mxu0 0.0
    %7773 = vmatprep.subr.mxu0 0.0
    %7774 = vmatpush1.msra.mxu0 0.0
    %7775 = vmatprep.subr.mxu0 0.0
    %7776 = vmatpush1.msra.mxu0 0.0
    %7777 = vmatprep.subr.mxu0 0.0
    %7778 = vmatpush1.msra.mxu0 0.0
    %7779 = vmatprep.subr.mxu0 0.0
    %7780 = vmatpush1.msra.mxu0 0.0
    %7781 = vmatprep.subr.mxu0 0.0
    %7782 = vmatpush1.msra.mxu0 0.0
    %7783 = vmatprep.subr.mxu0 0.0
    %7784 = vmatpush1.msra.mxu0 0.0
    %7785 = vmatprep.subr.mxu0 0.0
    %7786 = vmatpush1.msra.mxu0 0.0
    %7787 = vmatprep.subr.mxu0 0.0
    %7788 = vmatpush1.msra.mxu0 0.0
    %7789 = vmatprep.mubr.f32.mxu0 0.0
    %7790 = vmatmul.mubr.f32.gmra.mrb[0].mxu0 %v6915
    %v7791 = vpop.f32.mrb[0].mxu0
    %v7792 = vadd.f32 0.0, %v7791
    %v7793 = vpop.f32.mrb[0].mxu0
    %7794 = vdwg.mxu0
    %7795 = vmatprep.subr.mxu0 0.0
    %7796 = vmatpush1.msra.mxu0 %v653
    %7797 = vmatprep.subr.mxu0 0.0
    %7798 = vmatpush1.msra.mxu0 0.0
    %7799 = vmatprep.subr.mxu0 0.0
    %7800 = vmatpush1.msra.mxu0 0.0
    %7801 = vmatprep.subr.mxu0 0.0
    %7802 = vmatpush1.msra.mxu0 0.0
    %7803 = vmatprep.subr.mxu0 0.0
    %7804 = vmatpush1.msra.mxu0 0.0
    %7805 = vmatprep.subr.mxu0 0.0
    %7806 = vmatpush1.msra.mxu0 0.0
    %7807 = vmatprep.subr.mxu0 0.0
    %7808 = vmatpush1.msra.mxu0 0.0
    %7809 = vmatprep.subr.mxu0 0.0
    %7810 = vmatpush1.msra.mxu0 0.0
    %7811 = vmatprep.subr.mxu0 0.0
    %7812 = vmatpush1.msra.mxu0 0.0
    %7813 = vmatprep.subr.mxu0 0.0
    %7814 = vmatpush1.msra.mxu0 0.0
    %7815 = vmatprep.subr.mxu0 0.0
    %7816 = vmatpush1.msra.mxu0 0.0
    %7817 = vmatprep.subr.mxu0 0.0
    %7818 = vmatpush1.msra.mxu0 0.0
    %7819 = vmatprep.subr.mxu0 0.0
    %7820 = vmatpush1.msra.mxu0 0.0
    %7821 = vmatprep.subr.mxu0 0.0
    %7822 = vmatpush1.msra.mxu0 0.0
    %7823 = vmatprep.subr.mxu0 0.0
    %7824 = vmatpush1.msra.mxu0 0.0
    %7825 = vmatprep.subr.mxu0 0.0
    %7826 = vmatpush1.msra.mxu0 0.0
    %7827 = vmatprep.subr.mxu0 0.0
    %7828 = vmatpush1.msra.mxu0 0.0
    %7829 = vmatprep.subr.mxu0 0.0
    %7830 = vmatpush1.msra.mxu0 0.0
    %7831 = vmatprep.subr.mxu0 0.0
    %7832 = vmatpush1.msra.mxu0 0.0
    %7833 = vmatprep.subr.mxu0 0.0
    %7834 = vmatpush1.msra.mxu0 0.0
    %7835 = vmatprep.subr.mxu0 0.0
    %7836 = vmatpush1.msra.mxu0 0.0
    %7837 = vmatprep.subr.mxu0 0.0
    %7838 = vmatpush1.msra.mxu0 0.0
    %7839 = vmatprep.subr.mxu0 0.0
    %7840 = vmatpush1.msra.mxu0 0.0
    %7841 = vmatprep.subr.mxu0 0.0
    %7842 = vmatpush1.msra.mxu0 0.0
    %7843 = vmatprep.subr.mxu0 0.0
    %7844 = vmatpush1.msra.mxu0 0.0
    %7845 = vmatprep.subr.mxu0 0.0
    %7846 = vmatpush1.msra.mxu0 0.0
    %7847 = vmatprep.subr.mxu0 0.0
    %7848 = vmatpush1.msra.mxu0 0.0
    %7849 = vmatprep.subr.mxu0 0.0
    %7850 = vmatpush1.msra.mxu0 0.0
    %7851 = vmatprep.subr.mxu0 0.0
    %7852 = vmatpush1.msra.mxu0 0.0
    %7853 = vmatprep.subr.mxu0 0.0
    %7854 = vmatpush1.msra.mxu0 0.0
    %7855 = vmatprep.subr.mxu0 0.0
    %7856 = vmatpush1.msra.mxu0 0.0
    %7857 = vmatprep.subr.mxu0 0.0
    %7858 = vmatpush1.msra.mxu0 0.0
    %7859 = vmatprep.mubr.f32.mxu0 0.0
    %7860 = vmatmul.mubr.f32.gmra.mrb[0].mxu0 %v7511
    %v7861 = vpop.f32.mrb[0].mxu0
    %v7862 = vadd.f32 %v7792, %v7861
    %v7863 = vpop.f32.mrb[0].mxu0
    %7864 = vdwg.mxu0
    %v7865 = vadd.f32 %v7862, %v200
    %7866 = vmatprep.subr.mxu0 0.0
    %7867 = vmatpush1.msra.mxu0 %v175
    %7868 = vmatprep.subr.mxu0 0.0
    %7869 = vmatpush1.msra.mxu0 %v176
    %7870 = vmatprep.subr.mxu0 0.0
    %7871 = vmatpush1.msra.mxu0 %v177
    %7872 = vmatprep.subr.mxu0 0.0
    %7873 = vmatpush1.msra.mxu0 %v178
    %7874 = vmatprep.subr.mxu0 0.0
    %7875 = vmatpush1.msra.mxu0 0.0
    %7876 = vmatprep.subr.mxu0 0.0
    %7877 = vmatpush1.msra.mxu0 0.0
    %7878 = vmatprep.subr.mxu0 0.0
    %7879 = vmatpush1.msra.mxu0 0.0
    %7880 = vmatprep.subr.mxu0 0.0
    %7881 = vmatpush1.msra.mxu0 0.0
    %7882 = vmatprep.subr.mxu0 0.0
    %7883 = vmatpush1.msra.mxu0 0.0
    %7884 = vmatprep.subr.mxu0 0.0
    %7885 = vmatpush1.msra.mxu0 0.0
    %7886 = vmatprep.subr.mxu0 0.0
    %7887 = vmatpush1.msra.mxu0 0.0
    %7888 = vmatprep.subr.mxu0 0.0
    %7889 = vmatpush1.msra.mxu0 0.0
    %7890 = vmatprep.subr.mxu0 0.0
    %7891 = vmatpush1.msra.mxu0 0.0
    %7892 = vmatprep.subr.mxu0 0.0
    %7893 = vmatpush1.msra.mxu0 0.0
    %7894 = vmatprep.subr.mxu0 0.0
    %7895 = vmatpush1.msra.mxu0 0.0
    %7896 = vmatprep.subr.mxu0 0.0
    %7897 = vmatpush1.msra.mxu0 0.0
    %7898 = vmatprep.subr.mxu0 0.0
    %7899 = vmatpush1.msra.mxu0 0.0
    %7900 = vmatprep.subr.mxu0 0.0
    %7901 = vmatpush1.msra.mxu0 0.0
    %7902 = vmatprep.subr.mxu0 0.0
    %7903 = vmatpush1.msra.mxu0 0.0
    %7904 = vmatprep.subr.mxu0 0.0
    %7905 = vmatpush1.msra.mxu0 0.0
    %7906 = vmatprep.subr.mxu0 0.0
    %7907 = vmatpush1.msra.mxu0 0.0
    %7908 = vmatprep.subr.mxu0 0.0
    %7909 = vmatpush1.msra.mxu0 0.0
    %7910 = vmatprep.subr.mxu0 0.0
    %7911 = vmatpush1.msra.mxu0 0.0
    %7912 = vmatprep.subr.mxu0 0.0
    %7913 = vmatpush1.msra.mxu0 0.0
    %7914 = vmatprep.subr.mxu0 0.0
    %7915 = vmatpush1.msra.mxu0 0.0
    %7916 = vmatprep.subr.mxu0 0.0
    %7917 = vmatpush1.msra.mxu0 0.0
    %7918 = vmatprep.subr.mxu0 0.0
    %7919 = vmatpush1.msra.mxu0 0.0
    %7920 = vmatprep.subr.mxu0 0.0
    %7921 = vmatpush1.msra.mxu0 0.0
    %7922 = vmatprep.subr.mxu0 0.0
    %7923 = vmatpush1.msra.mxu0 0.0
    %7924 = vmatprep.subr.mxu0 0.0
    %7925 = vmatpush1.msra.mxu0 0.0
    %7926 = vmatprep.subr.mxu0 0.0
    %7927 = vmatpush1.msra.mxu0 0.0
    %7928 = vmatprep.subr.mxu0 0.0
    %7929 = vmatpush1.msra.mxu0 0.0
    %7930 = vmatprep.mubr.f32.mxu0 0.0
    %7931 = vmatmul.mubr.f32.gmra.mrb[0].mxu0 %v6915
    %v7932 = vpop.f32.mrb[0].mxu0
    %v7933 = vadd.f32 0.0, %v7932
    %v7934 = vpop.f32.mrb[0].mxu0
    %7935 = vdwg.mxu0
    %7936 = vmatprep.subr.mxu0 0.0
    %7937 = vmatpush1.msra.mxu0 %v797
    %7938 = vmatprep.subr.mxu0 0.0
    %7939 = vmatpush1.msra.mxu0 0.0
    %7940 = vmatprep.subr.mxu0 0.0
    %7941 = vmatpush1.msra.mxu0 0.0
    %7942 = vmatprep.subr.mxu0 0.0
    %7943 = vmatpush1.msra.mxu0 0.0
    %7944 = vmatprep.subr.mxu0 0.0
    %7945 = vmatpush1.msra.mxu0 0.0
    %7946 = vmatprep.subr.mxu0 0.0
    %7947 = vmatpush1.msra.mxu0 0.0
    %7948 = vmatprep.subr.mxu0 0.0
    %7949 = vmatpush1.msra.mxu0 0.0
    %7950 = vmatprep.subr.mxu0 0.0
    %7951 = vmatpush1.msra.mxu0 0.0
    %7952 = vmatprep.subr.mxu0 0.0
    %7953 = vmatpush1.msra.mxu0 0.0
    %7954 = vmatprep.subr.mxu0 0.0
    %7955 = vmatpush1.msra.mxu0 0.0
    %7956 = vmatprep.subr.mxu0 0.0
    %7957 = vmatpush1.msra.mxu0 0.0
    %7958 = vmatprep.subr.mxu0 0.0
    %7959 = vmatpush1.msra.mxu0 0.0
    %7960 = vmatprep.subr.mxu0 0.0
    %7961 = vmatpush1.msra.mxu0 0.0
    %7962 = vmatprep.subr.mxu0 0.0
    %7963 = vmatpush1.msra.mxu0 0.0
    %7964 = vmatprep.subr.mxu0 0.0
    %7965 = vmatpush1.msra.mxu0 0.0
    %7966 = vmatprep.subr.mxu0 0.0
    %7967 = vmatpush1.msra.mxu0 0.0
    %7968 = vmatprep.subr.mxu0 0.0
    %7969 = vmatpush1.msra.mxu0 0.0
    %7970 = vmatprep.subr.mxu0 0.0
    %7971 = vmatpush1.msra.mxu0 0.0
    %7972 = vmatprep.subr.mxu0 0.0
    %7973 = vmatpush1.msra.mxu0 0.0
    %7974 = vmatprep.subr.mxu0 0.0
    %7975 = vmatpush1.msra.mxu0 0.0
    %7976 = vmatprep.subr.mxu0 0.0
    %7977 = vmatpush1.msra.mxu0 0.0
    %7978 = vmatprep.subr.mxu0 0.0
    %7979 = vmatpush1.msra.mxu0 0.0
    %7980 = vmatprep.subr.mxu0 0.0
    %7981 = vmatpush1.msra.mxu0 0.0
    %7982 = vmatprep.subr.mxu0 0.0
    %7983 = vmatpush1.msra.mxu0 0.0
    %7984 = vmatprep.subr.mxu0 0.0
    %7985 = vmatpush1.msra.mxu0 0.0
    %7986 = vmatprep.subr.mxu0 0.0
    %7987 = vmatpush1.msra.mxu0 0.0
    %7988 = vmatprep.subr.mxu0 0.0
    %7989 = vmatpush1.msra.mxu0 0.0
    %7990 = vmatprep.subr.mxu0 0.0
    %7991 = vmatpush1.msra.mxu0 0.0
    %7992 = vmatprep.subr.mxu0 0.0
    %7993 = vmatpush1.msra.mxu0 0.0
    %7994 = vmatprep.subr.mxu0 0.0
    %7995 = vmatpush1.msra.mxu0 0.0
    %7996 = vmatprep.subr.mxu0 0.0
    %7997 = vmatpush1.msra.mxu0 0.0
    %7998 = vmatprep.subr.mxu0 0.0
    %7999 = vmatpush1.msra.mxu0 0.0
    %8000 = vmatprep.mubr.f32.mxu0 0.0
    %8001 = vmatmul.mubr.f32.gmra.mrb[0].mxu0 %v7511
    %v8002 = vpop.f32.mrb[0].mxu0
    %v8003 = vadd.f32 %v7933, %v8002
    %v8004 = vpop.f32.mrb[0].mxu0
    %8005 = vdwg.mxu0
    %v8006 = vadd.f32 %v8003, %v208
    %v8007 = vxor.u32 %v7583, 2147483648
    %v8008 = vmul.f32 %v8007, 1.442695
    %v8009 = vpow.pop %v8008
    %v8010 = vadd.f32 %v8009, 1.0
    %v8011 = vrcp.pop %v8010
    %v8012 = vmul.f32 1.0, %v8011
    %v8013 = vxor.u32 %v7724, 2147483648
    %v8014 = vmul.f32 %v8013, 1.442695
    %v8015 = vpow.pop %v8014
    %v8016 = vadd.f32 %v8015, 1.0
    %v8017 = vrcp.pop %v8016
    %v8018 = vmul.f32 1.0, %v8017
    %v8019 = vtanh.pop %v7865
    %v8020 = vxor.u32 %v8006, 2147483648
    %v8021 = vmul.f32 %v8020, 1.442695
    %v8022 = vpow.pop %v8021
    %v8023 = vadd.f32 %v8022, 1.0
    %v8024 = vrcp.pop %v8023
    %v8025 = vmul.f32 1.0, %v8024
    %v8026 = vmul.f32 %v8018, %v6838
    %v8027 = vmul.f32 %v8012, %v8019
    %v8028 = vadd.f32 %v8026, %v8027
    %v8029 = vtanh.pop %v8028
    %v8030 = vmul.f32 %v8025, %v8029
    %v8032 = vsel %vm281, %v7434, 0
    %8034 = vmatprep.subr.mxu0 0.0
    %8035 = vmatpush1.msra.mxu0 %v229
    %8036 = vmatprep.subr.mxu0 0.0
    %8037 = vmatpush1.msra.mxu0 %v230
    %8038 = vmatprep.subr.mxu0 0.0
    %8039 = vmatpush1.msra.mxu0 %v231
    %8040 = vmatprep.subr.mxu0 0.0
    %8041 = vmatpush1.msra.mxu0 %v232
    %8042 = vmatprep.subr.mxu0 0.0
    %8043 = vmatpush1.msra.mxu0 0.0
    %8044 = vmatprep.subr.mxu0 0.0
    %8045 = vmatpush1.msra.mxu0 0.0
    %8046 = vmatprep.subr.mxu0 0.0
    %8047 = vmatpush1.msra.mxu0 0.0
    %8048 = vmatprep.subr.mxu0 0.0
    %8049 = vmatpush1.msra.mxu0 0.0
    %8050 = vmatprep.subr.mxu0 0.0
    %8051 = vmatpush1.msra.mxu0 0.0
    %8052 = vmatprep.subr.mxu0 0.0
    %8053 = vmatpush1.msra.mxu0 0.0
    %8054 = vmatprep.subr.mxu0 0.0
    %8055 = vmatpush1.msra.mxu0 0.0
    %8056 = vmatprep.subr.mxu0 0.0
    %8057 = vmatpush1.msra.mxu0 0.0
    %8058 = vmatprep.subr.mxu0 0.0
    %8059 = vmatpush1.msra.mxu0 0.0
    %8060 = vmatprep.subr.mxu0 0.0
    %8061 = vmatpush1.msra.mxu0 0.0
    %8062 = vmatprep.subr.mxu0 0.0
    %8063 = vmatpush1.msra.mxu0 0.0
    %8064 = vmatprep.subr.mxu0 0.0
    %8065 = vmatpush1.msra.mxu0 0.0
    %8066 = vmatprep.subr.mxu0 0.0
    %8067 = vmatpush1.msra.mxu0 0.0
    %8068 = vmatprep.subr.mxu0 0.0
    %8069 = vmatpush1.msra.mxu0 0.0
    %8070 = vmatprep.subr.mxu0 0.0
    %8071 = vmatpush1.msra.mxu0 0.0
    %8072 = vmatprep.subr.mxu0 0.0
    %8073 = vmatpush1.msra.mxu0 0.0
    %8074 = vmatprep.subr.mxu0 0.0
    %8075 = vmatpush1.msra.mxu0 0.0
    %8076 = vmatprep.subr.mxu0 0.0
    %8077 = vmatpush1.msra.mxu0 0.0
    %8078 = vmatprep.subr.mxu0 0.0
    %8079 = vmatpush1.msra.mxu0 0.0
    %8080 = vmatprep.subr.mxu0 0.0
    %8081 = vmatpush1.msra.mxu0 0.0
    %8082 = vmatprep.subr.mxu0 0.0
    %8083 = vmatpush1.msra.mxu0 0.0
    %8084 = vmatprep.subr.mxu0 0.0
    %8085 = vmatpush1.msra.mxu0 0.0
    %8086 = vmatprep.subr.mxu0 0.0
    %8087 = vmatpush1.msra.mxu0 0.0
    %8088 = vmatprep.subr.mxu0 0.0
    %8089 = vmatpush1.msra.mxu0 0.0
    %8090 = vmatprep.subr.mxu0 0.0
    %8091 = vmatpush1.msra.mxu0 0.0
    %8092 = vmatprep.subr.mxu0 0.0
    %8093 = vmatpush1.msra.mxu0 0.0
    %8094 = vmatprep.subr.mxu0 0.0
    %8095 = vmatpush1.msra.mxu0 0.0
    %8096 = vmatprep.subr.mxu0 0.0
    %8097 = vmatpush1.msra.mxu0 0.0
    %8098 = vmatprep.mubr.f32.mxu0 0.0
    %8099 = vmatmul.mubr.f32.gmra.mrb[0].mxu0 %v8032
    %v8100 = vpop.f32.mrb[0].mxu0
    %v8101 = vadd.f32 0.0, %v8100
    %v8102 = vpop.f32.mrb[0].mxu0
    %8103 = vdwg.mxu0
    %v8105 = vsel %vm281, %v8030, 0
    %8107 = vmatprep.subr.mxu0 0.0
    %8108 = vmatpush1.msra.mxu0 %v210
    %8109 = vmatprep.subr.mxu0 0.0
    %8110 = vmatpush1.msra.mxu0 %v211
    %8111 = vmatprep.subr.mxu0 0.0
    %8112 = vmatpush1.msra.mxu0 %v212
    %8113 = vmatprep.subr.mxu0 0.0
    %8114 = vmatpush1.msra.mxu0 %v213
    %8115 = vmatprep.subr.mxu0 0.0
    %8116 = vmatpush1.msra.mxu0 0.0
    %8117 = vmatprep.subr.mxu0 0.0
    %8118 = vmatpush1.msra.mxu0 0.0
    %8119 = vmatprep.subr.mxu0 0.0
    %8120 = vmatpush1.msra.mxu0 0.0
    %8121 = vmatprep.subr.mxu0 0.0
    %8122 = vmatpush1.msra.mxu0 0.0
    %8123 = vmatprep.subr.mxu0 0.0
    %8124 = vmatpush1.msra.mxu0 0.0
    %8125 = vmatprep.subr.mxu0 0.0
    %8126 = vmatpush1.msra.mxu0 0.0
    %8127 = vmatprep.subr.mxu0 0.0
    %8128 = vmatpush1.msra.mxu0 0.0
    %8129 = vmatprep.subr.mxu0 0.0
    %8130 = vmatpush1.msra.mxu0 0.0
    %8131 = vmatprep.subr.mxu0 0.0
    %8132 = vmatpush1.msra.mxu0 0.0
    %8133 = vmatprep.subr.mxu0 0.0
    %8134 = vmatpush1.msra.mxu0 0.0
    %8135 = vmatprep.subr.mxu0 0.0
    %8136 = vmatpush1.msra.mxu0 0.0
    %8137 = vmatprep.subr.mxu0 0.0
    %8138 = vmatpush1.msra.mxu0 0.0
    %8139 = vmatprep.subr.mxu0 0.0
    %8140 = vmatpush1.msra.mxu0 0.0
    %8141 = vmatprep.subr.mxu0 0.0
    %8142 = vmatpush1.msra.mxu0 0.0
    %8143 = vmatprep.subr.mxu0 0.0
    %8144 = vmatpush1.msra.mxu0 0.0
    %8145 = vmatprep.subr.mxu0 0.0
    %8146 = vmatpush1.msra.mxu0 0.0
    %8147 = vmatprep.subr.mxu0 0.0
    %8148 = vmatpush1.msra.mxu0 0.0
    %8149 = vmatprep.subr.mxu0 0.0
    %8150 = vmatpush1.msra.mxu0 0.0
    %8151 = vmatprep.subr.mxu0 0.0
    %8152 = vmatpush1.msra.mxu0 0.0
    %8153 = vmatprep.subr.mxu0 0.0
    %8154 = vmatpush1.msra.mxu0 0.0
    %8155 = vmatprep.subr.mxu0 0.0
    %8156 = vmatpush1.msra.mxu0 0.0
    %8157 = vmatprep.subr.mxu0 0.0
    %8158 = vmatpush1.msra.mxu0 0.0
    %8159 = vmatprep.subr.mxu0 0.0
    %8160 = vmatpush1.msra.mxu0 0.0
    %8161 = vmatprep.subr.mxu0 0.0
    %8162 = vmatpush1.msra.mxu0 0.0
    %8163 = vmatprep.subr.mxu0 0.0
    %8164 = vmatpush1.msra.mxu0 0.0
    %8165 = vmatprep.subr.mxu0 0.0
    %8166 = vmatpush1.msra.mxu0 0.0
    %8167 = vmatprep.subr.mxu0 0.0
    %8168 = vmatpush1.msra.mxu0 0.0
    %8169 = vmatprep.subr.mxu0 0.0
    %8170 = vmatpush1.msra.mxu0 0.0
    %8171 = vmatprep.mubr.f32.mxu0 0.0
    %8172 = vmatmul.mubr.f32.gmra.mrb[0].mxu0 %v8105
    %v8173 = vpop.f32.mrb[0].mxu0
    %v8174 = vadd.f32 %v8101, %v8173
    %v8175 = vpop.f32.mrb[0].mxu0
    %8176 = vdwg.mxu0
    %v8177 = vadd.f32 %v8174, %v253
    %8178 = vmatprep.subr.mxu0 0.0
    %8179 = vmatpush1.msra.mxu0 %v234
    %8180 = vmatprep.subr.mxu0 0.0
    %8181 = vmatpush1.msra.mxu0 %v235
    %8182 = vmatprep.subr.mxu0 0.0
    %8183 = vmatpush1.msra.mxu0 %v236
    %8184 = vmatprep.subr.mxu0 0.0
    %8185 = vmatpush1.msra.mxu0 %v237
    %8186 = vmatprep.subr.mxu0 0.0
    %8187 = vmatpush1.msra.mxu0 0.0
    %8188 = vmatprep.subr.mxu0 0.0
    %8189 = vmatpush1.msra.mxu0 0.0
    %8190 = vmatprep.subr.mxu0 0.0
    %8191 = vmatpush1.msra.mxu0 0.0
    %8192 = vmatprep.subr.mxu0 0.0
    %8193 = vmatpush1.msra.mxu0 0.0
    %8194 = vmatprep.subr.mxu0 0.0
    %8195 = vmatpush1.msra.mxu0 0.0
    %8196 = vmatprep.subr.mxu0 0.0
    %8197 = vmatpush1.msra.mxu0 0.0
    %8198 = vmatprep.subr.mxu0 0.0
    %8199 = vmatpush1.msra.mxu0 0.0
    %8200 = vmatprep.subr.mxu0 0.0
    %8201 = vmatpush1.msra.mxu0 0.0
    %8202 = vmatprep.subr.mxu0 0.0
    %8203 = vmatpush1.msra.mxu0 0.0
    %8204 = vmatprep.subr.mxu0 0.0
    %8205 = vmatpush1.msra.mxu0 0.0
    %8206 = vmatprep.subr.mxu0 0.0
    %8207 = vmatpush1.msra.mxu0 0.0
    %8208 = vmatprep.subr.mxu0 0.0
    %8209 = vmatpush1.msra.mxu0 0.0
    %8210 = vmatprep.subr.mxu0 0.0
    %8211 = vmatpush1.msra.mxu0 0.0
    %8212 = vmatprep.subr.mxu0 0.0
    %8213 = vmatpush1.msra.mxu0 0.0
    %8214 = vmatprep.subr.mxu0 0.0
    %8215 = vmatpush1.msra.mxu0 0.0
    %8216 = vmatprep.subr.mxu0 0.0
    %8217 = vmatpush1.msra.mxu0 0.0
    %8218 = vmatprep.subr.mxu0 0.0
    %8219 = vmatpush1.msra.mxu0 0.0
    %8220 = vmatprep.subr.mxu0 0.0
    %8221 = vmatpush1.msra.mxu0 0.0
    %8222 = vmatprep.subr.mxu0 0.0
    %8223 = vmatpush1.msra.mxu0 0.0
    %8224 = vmatprep.subr.mxu0 0.0
    %8225 = vmatpush1.msra.mxu0 0.0
    %8226 = vmatprep.subr.mxu0 0.0
    %8227 = vmatpush1.msra.mxu0 0.0
    %8228 = vmatprep.subr.mxu0 0.0
    %8229 = vmatpush1.msra.mxu0 0.0
    %8230 = vmatprep.subr.mxu0 0.0
    %8231 = vmatpush1.msra.mxu0 0.0
    %8232 = vmatprep.subr.mxu0 0.0
    %8233 = vmatpush1.msra.mxu0 0.0
    %8234 = vmatprep.subr.mxu0 0.0
    %8235 = vmatpush1.msra.mxu0 0.0
    %8236 = vmatprep.subr.mxu0 0.0
    %8237 = vmatpush1.msra.mxu0 0.0
    %8238 = vmatprep.subr.mxu0 0.0
    %8239 = vmatpush1.msra.mxu0 0.0
    %8240 = vmatprep.subr.mxu0 0.0
    %8241 = vmatpush1.msra.mxu0 0.0
    %8242 = vmatprep.mubr.f32.mxu0 0.0
    %8243 = vmatmul.mubr.f32.gmra.mrb[0].mxu0 %v8032
    %v8244 = vpop.f32.mrb[0].mxu0
    %v8245 = vadd.f32 0.0, %v8244
    %v8246 = vpop.f32.mrb[0].mxu0
    %8247 = vdwg.mxu0
    %8248 = vmatprep.subr.mxu0 0.0
    %8249 = vmatpush1.msra.mxu0 %v215
    %8250 = vmatprep.subr.mxu0 0.0
    %8251 = vmatpush1.msra.mxu0 %v216
    %8252 = vmatprep.subr.mxu0 0.0
    %8253 = vmatpush1.msra.mxu0 %v217
    %8254 = vmatprep.subr.mxu0 0.0
    %8255 = vmatpush1.msra.mxu0 %v218
    %8256 = vmatprep.subr.mxu0 0.0
    %8257 = vmatpush1.msra.mxu0 0.0
    %8258 = vmatprep.subr.mxu0 0.0
    %8259 = vmatpush1.msra.mxu0 0.0
    %8260 = vmatprep.subr.mxu0 0.0
    %8261 = vmatpush1.msra.mxu0 0.0
    %8262 = vmatprep.subr.mxu0 0.0
    %8263 = vmatpush1.msra.mxu0 0.0
    %8264 = vmatprep.subr.mxu0 0.0
    %8265 = vmatpush1.msra.mxu0 0.0
    %8266 = vmatprep.subr.mxu0 0.0
    %8267 = vmatpush1.msra.mxu0 0.0
    %8268 = vmatprep.subr.mxu0 0.0
    %8269 = vmatpush1.msra.mxu0 0.0
    %8270 = vmatprep.subr.mxu0 0.0
    %8271 = vmatpush1.msra.mxu0 0.0
    %8272 = vmatprep.subr.mxu0 0.0
    %8273 = vmatpush1.msra.mxu0 0.0
    %8274 = vmatprep.subr.mxu0 0.0
    %8275 = vmatpush1.msra.mxu0 0.0
    %8276 = vmatprep.subr.mxu0 0.0
    %8277 = vmatpush1.msra.mxu0 0.0
    %8278 = vmatprep.subr.mxu0 0.0
    %8279 = vmatpush1.msra.mxu0 0.0
    %8280 = vmatprep.subr.mxu0 0.0
    %8281 = vmatpush1.msra.mxu0 0.0
    %8282 = vmatprep.subr.mxu0 0.0
    %8283 = vmatpush1.msra.mxu0 0.0
    %8284 = vmatprep.subr.mxu0 0.0
    %8285 = vmatpush1.msra.mxu0 0.0
    %8286 = vmatprep.subr.mxu0 0.0
    %8287 = vmatpush1.msra.mxu0 0.0
    %8288 = vmatprep.subr.mxu0 0.0
    %8289 = vmatpush1.msra.mxu0 0.0
    %8290 = vmatprep.subr.mxu0 0.0
    %8291 = vmatpush1.msra.mxu0 0.0
    %8292 = vmatprep.subr.mxu0 0.0
    %8293 = vmatpush1.msra.mxu0 0.0
    %8294 = vmatprep.subr.mxu0 0.0
    %8295 = vmatpush1.msra.mxu0 0.0
    %8296 = vmatprep.subr.mxu0 0.0
    %8297 = vmatpush1.msra.mxu0 0.0
    %8298 = vmatprep.subr.mxu0 0.0
    %8299 = vmatpush1.msra.mxu0 0.0
    %8300 = vmatprep.subr.mxu0 0.0
    %8301 = vmatpush1.msra.mxu0 0.0
    %8302 = vmatprep.subr.mxu0 0.0
    %8303 = vmatpush1.msra.mxu0 0.0
    %8304 = vmatprep.subr.mxu0 0.0
    %8305 = vmatpush1.msra.mxu0 0.0
    %8306 = vmatprep.subr.mxu0 0.0
    %8307 = vmatpush1.msra.mxu0 0.0
    %8308 = vmatprep.subr.mxu0 0.0
    %8309 = vmatpush1.msra.mxu0 0.0
    %8310 = vmatprep.subr.mxu0 0.0
    %8311 = vmatpush1.msra.mxu0 0.0
    %8312 = vmatprep.mubr.f32.mxu0 0.0
    %8313 = vmatmul.mubr.f32.gmra.mrb[0].mxu0 %v8105
    %v8314 = vpop.f32.mrb[0].mxu0
    %v8315 = vadd.f32 %v8245, %v8314
    %v8316 = vpop.f32.mrb[0].mxu0
    %8317 = vdwg.mxu0
    %v8318 = vadd.f32 %v8315, %v261
    %8319 = vmatprep.subr.mxu0 0.0
    %8320 = vmatpush1.msra.mxu0 %v239
    %8321 = vmatprep.subr.mxu0 0.0
    %8322 = vmatpush1.msra.mxu0 %v240
    %8323 = vmatprep.subr.mxu0 0.0
    %8324 = vmatpush1.msra.mxu0 %v241
    %8325 = vmatprep.subr.mxu0 0.0
    %8326 = vmatpush1.msra.mxu0 %v242
    %8327 = vmatprep.subr.mxu0 0.0
    %8328 = vmatpush1.msra.mxu0 0.0
    %8329 = vmatprep.subr.mxu0 0.0
    %8330 = vmatpush1.msra.mxu0 0.0
    %8331 = vmatprep.subr.mxu0 0.0
    %8332 = vmatpush1.msra.mxu0 0.0
    %8333 = vmatprep.subr.mxu0 0.0
    %8334 = vmatpush1.msra.mxu0 0.0
    %8335 = vmatprep.subr.mxu0 0.0
    %8336 = vmatpush1.msra.mxu0 0.0
    %8337 = vmatprep.subr.mxu0 0.0
    %8338 = vmatpush1.msra.mxu0 0.0
    %8339 = vmatprep.subr.mxu0 0.0
    %8340 = vmatpush1.msra.mxu0 0.0
    %8341 = vmatprep.subr.mxu0 0.0
    %8342 = vmatpush1.msra.mxu0 0.0
    %8343 = vmatprep.subr.mxu0 0.0
    %8344 = vmatpush1.msra.mxu0 0.0
    %8345 = vmatprep.subr.mxu0 0.0
    %8346 = vmatpush1.msra.mxu0 0.0
    %8347 = vmatprep.subr.mxu0 0.0
    %8348 = vmatpush1.msra.mxu0 0.0
    %8349 = vmatprep.subr.mxu0 0.0
    %8350 = vmatpush1.msra.mxu0 0.0
    %8351 = vmatprep.subr.mxu0 0.0
    %8352 = vmatpush1.msra.mxu0 0.0
    %8353 = vmatprep.subr.mxu0 0.0
    %8354 = vmatpush1.msra.mxu0 0.0
    %8355 = vmatprep.subr.mxu0 0.0
    %8356 = vmatpush1.msra.mxu0 0.0
    %8357 = vmatprep.subr.mxu0 0.0
    %8358 = vmatpush1.msra.mxu0 0.0
    %8359 = vmatprep.subr.mxu0 0.0
    %8360 = vmatpush1.msra.mxu0 0.0
    %8361 = vmatprep.subr.mxu0 0.0
    %8362 = vmatpush1.msra.mxu0 0.0
    %8363 = vmatprep.subr.mxu0 0.0
    %8364 = vmatpush1.msra.mxu0 0.0
    %8365 = vmatprep.subr.mxu0 0.0
    %8366 = vmatpush1.msra.mxu0 0.0
    %8367 = vmatprep.subr.mxu0 0.0
    %8368 = vmatpush1.msra.mxu0 0.0
    %8369 = vmatprep.subr.mxu0 0.0
    %8370 = vmatpush1.msra.mxu0 0.0
    %8371 = vmatprep.subr.mxu0 0.0
    %8372 = vmatpush1.msra.mxu0 0.0
    %8373 = vmatprep.subr.mxu0 0.0
    %8374 = vmatpush1.msra.mxu0 0.0
    %8375 = vmatprep.subr.mxu0 0.0
    %8376 = vmatpush1.msra.mxu0 0.0
    %8377 = vmatprep.subr.mxu0 0.0
    %8378 = vmatpush1.msra.mxu0 0.0
    %8379 = vmatprep.subr.mxu0 0.0
    %8380 = vmatpush1.msra.mxu0 0.0
    %8381 = vmatprep.subr.mxu0 0.0
    %8382 = vmatpush1.msra.mxu0 0.0
    %8383 = vmatprep.mubr.f32.mxu0 0.0
    %8384 = vmatmul.mubr.f32.gmra.mrb[0].mxu0 %v8032
    %v8385 = vpop.f32.mrb[0].mxu0
    %v8386 = vadd.f32 0.0, %v8385
    %v8387 = vpop.f32.mrb[0].mxu0
    %8388 = vdwg.mxu0
    %8389 = vmatprep.subr.mxu0 0.0
    %8390 = vmatpush1.msra.mxu0 %v220
    %8391 = vmatprep.subr.mxu0 0.0
    %8392 = vmatpush1.msra.mxu0 %v221
    %8393 = vmatprep.subr.mxu0 0.0
    %8394 = vmatpush1.msra.mxu0 %v222
    %8395 = vmatprep.subr.mxu0 0.0
    %8396 = vmatpush1.msra.mxu0 %v223
    %8397 = vmatprep.subr.mxu0 0.0
    %8398 = vmatpush1.msra.mxu0 0.0
    %8399 = vmatprep.subr.mxu0 0.0
    %8400 = vmatpush1.msra.mxu0 0.0
    %8401 = vmatprep.subr.mxu0 0.0
    %8402 = vmatpush1.msra.mxu0 0.0
    %8403 = vmatprep.subr.mxu0 0.0
    %8404 = vmatpush1.msra.mxu0 0.0
    %8405 = vmatprep.subr.mxu0 0.0
    %8406 = vmatpush1.msra.mxu0 0.0
    %8407 = vmatprep.subr.mxu0 0.0
    %8408 = vmatpush1.msra.mxu0 0.0
    %8409 = vmatprep.subr.mxu0 0.0
    %8410 = vmatpush1.msra.mxu0 0.0
    %8411 = vmatprep.subr.mxu0 0.0
    %8412 = vmatpush1.msra.mxu0 0.0
    %8413 = vmatprep.subr.mxu0 0.0
    %8414 = vmatpush1.msra.mxu0 0.0
    %8415 = vmatprep.subr.mxu0 0.0
    %8416 = vmatpush1.msra.mxu0 0.0
    %8417 = vmatprep.subr.mxu0 0.0
    %8418 = vmatpush1.msra.mxu0 0.0
    %8419 = vmatprep.subr.mxu0 0.0
    %8420 = vmatpush1.msra.mxu0 0.0
    %8421 = vmatprep.subr.mxu0 0.0
    %8422 = vmatpush1.msra.mxu0 0.0
    %8423 = vmatprep.subr.mxu0 0.0
    %8424 = vmatpush1.msra.mxu0 0.0
    %8425 = vmatprep.subr.mxu0 0.0
    %8426 = vmatpush1.msra.mxu0 0.0
    %8427 = vmatprep.subr.mxu0 0.0
    %8428 = vmatpush1.msra.mxu0 0.0
    %8429 = vmatprep.subr.mxu0 0.0
    %8430 = vmatpush1.msra.mxu0 0.0
    %8431 = vmatprep.subr.mxu0 0.0
    %8432 = vmatpush1.msra.mxu0 0.0
    %8433 = vmatprep.subr.mxu0 0.0
    %8434 = vmatpush1.msra.mxu0 0.0
    %8435 = vmatprep.subr.mxu0 0.0
    %8436 = vmatpush1.msra.mxu0 0.0
    %8437 = vmatprep.subr.mxu0 0.0
    %8438 = vmatpush1.msra.mxu0 0.0
    %8439 = vmatprep.subr.mxu0 0.0
    %8440 = vmatpush1.msra.mxu0 0.0
    %8441 = vmatprep.subr.mxu0 0.0
    %8442 = vmatpush1.msra.mxu0 0.0
    %8443 = vmatprep.subr.mxu0 0.0
    %8444 = vmatpush1.msra.mxu0 0.0
    %8445 = vmatprep.subr.mxu0 0.0
    %8446 = vmatpush1.msra.mxu0 0.0
    %8447 = vmatprep.subr.mxu0 0.0
    %8448 = vmatpush1.msra.mxu0 0.0
    %8449 = vmatprep.subr.mxu0 0.0
    %8450 = vmatpush1.msra.mxu0 0.0
    %8451 = vmatprep.subr.mxu0 0.0
    %8452 = vmatpush1.msra.mxu0 0.0
    %8453 = vmatprep.mubr.f32.mxu0 0.0
    %8454 = vmatmul.mubr.f32.gmra.mrb[0].mxu0 %v8105
    %v8455 = vpop.f32.mrb[0].mxu0
    %v8456 = vadd.f32 %v8386, %v8455
    %v8457 = vpop.f32.mrb[0].mxu0
    %8458 = vdwg.mxu0
    %v8459 = vadd.f32 %v8456, %v269
    %8460 = vmatprep.subr.mxu0 0.0
    %8461 = vmatpush1.msra.mxu0 %v244
    %8462 = vmatprep.subr.mxu0 0.0
    %8463 = vmatpush1.msra.mxu0 %v245
    %8464 = vmatprep.subr.mxu0 0.0
    %8465 = vmatpush1.msra.mxu0 %v246
    %8466 = vmatprep.subr.mxu0 0.0
    %8467 = vmatpush1.msra.mxu0 %v247
    %8468 = vmatprep.subr.mxu0 0.0
    %8469 = vmatpush1.msra.mxu0 0.0
    %8470 = vmatprep.subr.mxu0 0.0
    %8471 = vmatpush1.msra.mxu0 0.0
    %8472 = vmatprep.subr.mxu0 0.0
    %8473 = vmatpush1.msra.mxu0 0.0
    %8474 = vmatprep.subr.mxu0 0.0
    %8475 = vmatpush1.msra.mxu0 0.0
    %8476 = vmatprep.subr.mxu0 0.0
    %8477 = vmatpush1.msra.mxu0 0.0
    %8478 = vmatprep.subr.mxu0 0.0
    %8479 = vmatpush1.msra.mxu0 0.0
    %8480 = vmatprep.subr.mxu0 0.0
    %8481 = vmatpush1.msra.mxu0 0.0
    %8482 = vmatprep.subr.mxu0 0.0
    %8483 = vmatpush1.msra.mxu0 0.0
    %8484 = vmatprep.subr.mxu0 0.0
    %8485 = vmatpush1.msra.mxu0 0.0
    %8486 = vmatprep.subr.mxu0 0.0
    %8487 = vmatpush1.msra.mxu0 0.0
    %8488 = vmatprep.subr.mxu0 0.0
    %8489 = vmatpush1.msra.mxu0 0.0
    %8490 = vmatprep.subr.mxu0 0.0
    %8491 = vmatpush1.msra.mxu0 0.0
    %8492 = vmatprep.subr.mxu0 0.0
    %8493 = vmatpush1.msra.mxu0 0.0
    %8494 = vmatprep.subr.mxu0 0.0
    %8495 = vmatpush1.msra.mxu0 0.0
    %8496 = vmatprep.subr.mxu0 0.0
    %8497 = vmatpush1.msra.mxu0 0.0
    %8498 = vmatprep.subr.mxu0 0.0
    %8499 = vmatpush1.msra.mxu0 0.0
    %8500 = vmatprep.subr.mxu0 0.0
    %8501 = vmatpush1.msra.mxu0 0.0
    %8502 = vmatprep.subr.mxu0 0.0
    %8503 = vmatpush1.msra.mxu0 0.0
    %8504 = vmatprep.subr.mxu0 0.0
    %8505 = vmatpush1.msra.mxu0 0.0
    %8506 = vmatprep.subr.mxu0 0.0
    %8507 = vmatpush1.msra.mxu0 0.0
    %8508 = vmatprep.subr.mxu0 0.0
    %8509 = vmatpush1.msra.mxu0 0.0
    %8510 = vmatprep.subr.mxu0 0.0
    %8511 = vmatpush1.msra.mxu0 0.0
    %8512 = vmatprep.subr.mxu0 0.0
    %8513 = vmatpush1.msra.mxu0 0.0
    %8514 = vmatprep.subr.mxu0 0.0
    %8515 = vmatpush1.msra.mxu0 0.0
    %8516 = vmatprep.subr.mxu0 0.0
    %8517 = vmatpush1.msra.mxu0 0.0
    %8518 = vmatprep.subr.mxu0 0.0
    %8519 = vmatpush1.msra.mxu0 0.0
    %8520 = vmatprep.subr.mxu0 0.0
    %8521 = vmatpush1.msra.mxu0 0.0
    %8522 = vmatprep.subr.mxu0 0.0
    %8523 = vmatpush1.msra.mxu0 0.0
    %8524 = vmatprep.mubr.f32.mxu0 0.0
    %8525 = vmatmul.mubr.f32.gmra.mrb[0].mxu0 %v8032
    %v8526 = vpop.f32.mrb[0].mxu0
    %v8527 = vadd.f32 0.0, %v8526
    %v8528 = vpop.f32.mrb[0].mxu0
    %8529 = vdwg.mxu0
    %8530 = vmatprep.subr.mxu0 0.0
    %8531 = vmatpush1.msra.mxu0 %v225
    %8532 = vmatprep.subr.mxu0 0.0
    %8533 = vmatpush1.msra.mxu0 %v226
    %8534 = vmatprep.subr.mxu0 0.0
    %8535 = vmatpush1.msra.mxu0 %v227
    %8536 = vmatprep.subr.mxu0 0.0
    %8537 = vmatpush1.msra.mxu0 %v228
    %8538 = vmatprep.subr.mxu0 0.0
    %8539 = vmatpush1.msra.mxu0 0.0
    %8540 = vmatprep.subr.mxu0 0.0
    %8541 = vmatpush1.msra.mxu0 0.0
    %8542 = vmatprep.subr.mxu0 0.0
    %8543 = vmatpush1.msra.mxu0 0.0
    %8544 = vmatprep.subr.mxu0 0.0
    %8545 = vmatpush1.msra.mxu0 0.0
    %8546 = vmatprep.subr.mxu0 0.0
    %8547 = vmatpush1.msra.mxu0 0.0
    %8548 = vmatprep.subr.mxu0 0.0
    %8549 = vmatpush1.msra.mxu0 0.0
    %8550 = vmatprep.subr.mxu0 0.0
    %8551 = vmatpush1.msra.mxu0 0.0
    %8552 = vmatprep.subr.mxu0 0.0
    %8553 = vmatpush1.msra.mxu0 0.0
    %8554 = vmatprep.subr.mxu0 0.0
    %8555 = vmatpush1.msra.mxu0 0.0
    %8556 = vmatprep.subr.mxu0 0.0
    %8557 = vmatpush1.msra.mxu0 0.0
    %8558 = vmatprep.subr.mxu0 0.0
    %8559 = vmatpush1.msra.mxu0 0.0
    %8560 = vmatprep.subr.mxu0 0.0
    %8561 = vmatpush1.msra.mxu0 0.0
    %8562 = vmatprep.subr.mxu0 0.0
    %8563 = vmatpush1.msra.mxu0 0.0
    %8564 = vmatprep.subr.mxu0 0.0
    %8565 = vmatpush1.msra.mxu0 0.0
    %8566 = vmatprep.subr.mxu0 0.0
    %8567 = vmatpush1.msra.mxu0 0.0
    %8568 = vmatprep.subr.mxu0 0.0
    %8569 = vmatpush1.msra.mxu0 0.0
    %8570 = vmatprep.subr.mxu0 0.0
    %8571 = vmatpush1.msra.mxu0 0.0
    %8572 = vmatprep.subr.mxu0 0.0
    %8573 = vmatpush1.msra.mxu0 0.0
    %8574 = vmatprep.subr.mxu0 0.0
    %8575 = vmatpush1.msra.mxu0 0.0
    %8576 = vmatprep.subr.mxu0 0.0
    %8577 = vmatpush1.msra.mxu0 0.0
    %8578 = vmatprep.subr.mxu0 0.0
    %8579 = vmatpush1.msra.mxu0 0.0
    %8580 = vmatprep.subr.mxu0 0.0
    %8581 = vmatpush1.msra.mxu0 0.0
    %8582 = vmatprep.subr.mxu0 0.0
    %8583 = vmatpush1.msra.mxu0 0.0
    %8584 = vmatprep.subr.mxu0 0.0
    %8585 = vmatpush1.msra.mxu0 0.0
    %8586 = vmatprep.subr.mxu0 0.0
    %8587 = vmatpush1.msra.mxu0 0.0
    %8588 = vmatprep.subr.mxu0 0.0
    %8589 = vmatpush1.msra.mxu0 0.0
    %8590 = vmatprep.subr.mxu0 0.0
    %8591 = vmatpush1.msra.mxu0 0.0
    %8592 = vmatprep.subr.mxu0 0.0
    %8593 = vmatpush1.msra.mxu0 0.0
    %8594 = vmatprep.mubr.f32.mxu0 0.0
    %8595 = vmatmul.mubr.f32.gmra.mrb[0].mxu0 %v8105
    %v8596 = vpop.f32.mrb[0].mxu0
    %v8597 = vadd.f32 %v8527, %v8596
    %v8598 = vpop.f32.mrb[0].mxu0
    %8599 = vdwg.mxu0
    %v8600 = vadd.f32 %v8597, %v277
    %v8601 = vxor.u32 %v8177, 2147483648
    %v8602 = vmul.f32 %v8601, 1.442695
    %v8603 = vpow.pop %v8602
    %v8604 = vadd.f32 %v8603, 1.0
    %v8605 = vrcp.pop %v8604
    %v8606 = vmul.f32 1.0, %v8605
    %v8607 = vxor.u32 %v8318, 2147483648
    %v8608 = vmul.f32 %v8607, 1.442695
    %v8609 = vpow.pop %v8608
    %v8610 = vadd.f32 %v8609, 1.0
    %v8611 = vrcp.pop %v8610
    %v8612 = vmul.f32 1.0, %v8611
    %v8613 = vtanh.pop %v8459
    %v8614 = vxor.u32 %v8600, 2147483648
    %v8615 = vmul.f32 %v8614, 1.442695
    %v8616 = vpow.pop %v8615
    %v8617 = vadd.f32 %v8616, 1.0
    %v8618 = vrcp.pop %v8617
    %v8619 = vmul.f32 1.0, %v8618
    %v8620 = vmul.f32 %v8612, %v7432
    %v8621 = vmul.f32 %v8606, %v8613
    %v8622 = vadd.f32 %v8620, %v8621
    %v8623 = vtanh.pop %v8622
    %v8624 = vmul.f32 %v8619, %v8623
    %v8625 = vld [vmem:[%s0 + $0x7] sm:$0x1]
    %v8626 = vld [vmem:[%s0 + $0xf] sm:$0x1]
    %8627 = vmatprep.subr.mxu0 0.0
    %8628 = vmatpush1.msra.mxu0 %v160
    %8629 = vmatprep.subr.mxu0 0.0
    %8630 = vmatpush1.msra.mxu0 %v161
    %8631 = vmatprep.subr.mxu0 0.0
    %8632 = vmatpush1.msra.mxu0 %v162
    %8633 = vmatprep.subr.mxu0 0.0
    %8634 = vmatpush1.msra.mxu0 %v163
    %8635 = vmatprep.subr.mxu0 0.0
    %8636 = vmatpush1.msra.mxu0 0.0
    %8637 = vmatprep.subr.mxu0 0.0
    %8638 = vmatpush1.msra.mxu0 0.0
    %8639 = vmatprep.subr.mxu0 0.0
    %8640 = vmatpush1.msra.mxu0 0.0
    %8641 = vmatprep.subr.mxu0 0.0
    %8642 = vmatpush1.msra.mxu0 0.0
    %8643 = vmatprep.subr.mxu0 0.0
    %8644 = vmatpush1.msra.mxu0 0.0
    %8645 = vmatprep.subr.mxu0 0.0
    %8646 = vmatpush1.msra.mxu0 0.0
    %8647 = vmatprep.subr.mxu0 0.0
    %8648 = vmatpush1.msra.mxu0 0.0
    %8649 = vmatprep.subr.mxu0 0.0
    %8650 = vmatpush1.msra.mxu0 0.0
    %8651 = vmatprep.subr.mxu0 0.0
    %8652 = vmatpush1.msra.mxu0 0.0
    %8653 = vmatprep.subr.mxu0 0.0
    %8654 = vmatpush1.msra.mxu0 0.0
    %8655 = vmatprep.subr.mxu0 0.0
    %8656 = vmatpush1.msra.mxu0 0.0
    %8657 = vmatprep.subr.mxu0 0.0
    %8658 = vmatpush1.msra.mxu0 0.0
    %8659 = vmatprep.subr.mxu0 0.0
    %8660 = vmatpush1.msra.mxu0 0.0
    %8661 = vmatprep.subr.mxu0 0.0
    %8662 = vmatpush1.msra.mxu0 0.0
    %8663 = vmatprep.subr.mxu0 0.0
    %8664 = vmatpush1.msra.mxu0 0.0
    %8665 = vmatprep.subr.mxu0 0.0
    %8666 = vmatpush1.msra.mxu0 0.0
    %8667 = vmatprep.subr.mxu0 0.0
    %8668 = vmatpush1.msra.mxu0 0.0
    %8669 = vmatprep.subr.mxu0 0.0
    %8670 = vmatpush1.msra.mxu0 0.0
    %8671 = vmatprep.subr.mxu0 0.0
    %8672 = vmatpush1.msra.mxu0 0.0
    %8673 = vmatprep.subr.mxu0 0.0
    %8674 = vmatpush1.msra.mxu0 0.0
    %8675 = vmatprep.subr.mxu0 0.0
    %8676 = vmatpush1.msra.mxu0 0.0
    %8677 = vmatprep.subr.mxu0 0.0
    %8678 = vmatpush1.msra.mxu0 0.0
    %8679 = vmatprep.subr.mxu0 0.0
    %8680 = vmatpush1.msra.mxu0 0.0
    %8681 = vmatprep.subr.mxu0 0.0
    %8682 = vmatpush1.msra.mxu0 0.0
    %8683 = vmatprep.subr.mxu0 0.0
    %8684 = vmatpush1.msra.mxu0 0.0
    %8685 = vmatprep.subr.mxu0 0.0
    %8686 = vmatpush1.msra.mxu0 0.0
    %8687 = vmatprep.subr.mxu0 0.0
    %8688 = vmatpush1.msra.mxu0 0.0
    %8689 = vmatprep.subr.mxu0 0.0
    %8690 = vmatpush1.msra.mxu0 0.0
    %8691 = vmatprep.mubr.f32.mxu0 0.0
    %8692 = vmatmul.mubr.f32.gmra.mrb[0].mxu0 %v8105
    %v8693 = vpop.f32.mrb[0].mxu0
    %v8694 = vadd.f32 0.0, %v8693
    %v8695 = vpop.f32.mrb[0].mxu0
    %8696 = vdwg.mxu0
    %v8699 = vrot.slane %v8626, 7
    %v8700 = vsel %vm358, %v8699, %v8625
    %v8701 = vsel %vm360, %v8700, 0
    %8703 = vmatprep.subr.mxu0 0.0
    %8704 = vmatpush1.msra.mxu0 %v365
    %8705 = vmatprep.subr.mxu0 0.0
    %8706 = vmatpush1.msra.mxu0 0.0
    %8707 = vmatprep.subr.mxu0 0.0
    %8708 = vmatpush1.msra.mxu0 0.0
    %8709 = vmatprep.subr.mxu0 0.0
    %8710 = vmatpush1.msra.mxu0 0.0
    %8711 = vmatprep.subr.mxu0 0.0
    %8712 = vmatpush1.msra.mxu0 0.0
    %8713 = vmatprep.subr.mxu0 0.0
    %8714 = vmatpush1.msra.mxu0 0.0
    %8715 = vmatprep.subr.mxu0 0.0
    %8716 = vmatpush1.msra.mxu0 0.0
    %8717 = vmatprep.subr.mxu0 0.0
    %8718 = vmatpush1.msra.mxu0 0.0
    %8719 = vmatprep.subr.mxu0 0.0
    %8720 = vmatpush1.msra.mxu0 0.0
    %8721 = vmatprep.subr.mxu0 0.0
    %8722 = vmatpush1.msra.mxu0 0.0
    %8723 = vmatprep.subr.mxu0 0.0
    %8724 = vmatpush1.msra.mxu0 0.0
    %8725 = vmatprep.subr.mxu0 0.0
    %8726 = vmatpush1.msra.mxu0 0.0
    %8727 = vmatprep.subr.mxu0 0.0
    %8728 = vmatpush1.msra.mxu0 0.0
    %8729 = vmatprep.subr.mxu0 0.0
    %8730 = vmatpush1.msra.mxu0 0.0
    %8731 = vmatprep.subr.mxu0 0.0
    %8732 = vmatpush1.msra.mxu0 0.0
    %8733 = vmatprep.subr.mxu0 0.0
    %8734 = vmatpush1.msra.mxu0 0.0
    %8735 = vmatprep.subr.mxu0 0.0
    %8736 = vmatpush1.msra.mxu0 0.0
    %8737 = vmatprep.subr.mxu0 0.0
    %8738 = vmatpush1.msra.mxu0 0.0
    %8739 = vmatprep.subr.mxu0 0.0
    %8740 = vmatpush1.msra.mxu0 0.0
    %8741 = vmatprep.subr.mxu0 0.0
    %8742 = vmatpush1.msra.mxu0 0.0
    %8743 = vmatprep.subr.mxu0 0.0
    %8744 = vmatpush1.msra.mxu0 0.0
    %8745 = vmatprep.subr.mxu0 0.0
    %8746 = vmatpush1.msra.mxu0 0.0
    %8747 = vmatprep.subr.mxu0 0.0
    %8748 = vmatpush1.msra.mxu0 0.0
    %8749 = vmatprep.subr.mxu0 0.0
    %8750 = vmatpush1.msra.mxu0 0.0
    %8751 = vmatprep.subr.mxu0 0.0
    %8752 = vmatpush1.msra.mxu0 0.0
    %8753 = vmatprep.subr.mxu0 0.0
    %8754 = vmatpush1.msra.mxu0 0.0
    %8755 = vmatprep.subr.mxu0 0.0
    %8756 = vmatpush1.msra.mxu0 0.0
    %8757 = vmatprep.subr.mxu0 0.0
    %8758 = vmatpush1.msra.mxu0 0.0
    %8759 = vmatprep.subr.mxu0 0.0
    %8760 = vmatpush1.msra.mxu0 0.0
    %8761 = vmatprep.subr.mxu0 0.0
    %8762 = vmatpush1.msra.mxu0 0.0
    %8763 = vmatprep.subr.mxu0 0.0
    %8764 = vmatpush1.msra.mxu0 0.0
    %8765 = vmatprep.subr.mxu0 0.0
    %8766 = vmatpush1.msra.mxu0 0.0
    %8767 = vmatprep.mubr.f32.mxu0 0.0
    %8768 = vmatmul.mubr.f32.gmra.mrb[0].mxu0 %v8701
    %v8769 = vpop.f32.mrb[0].mxu0
    %v8770 = vadd.f32 %v8694, %v8769
    %v8771 = vpop.f32.mrb[0].mxu0
    %8772 = vdwg.mxu0
    %v8773 = vadd.f32 %v8770, %v184
    %8774 = vmatprep.subr.mxu0 0.0
    %8775 = vmatpush1.msra.mxu0 %v165
    %8776 = vmatprep.subr.mxu0 0.0
    %8777 = vmatpush1.msra.mxu0 %v166
    %8778 = vmatprep.subr.mxu0 0.0
    %8779 = vmatpush1.msra.mxu0 %v167
    %8780 = vmatprep.subr.mxu0 0.0
    %8781 = vmatpush1.msra.mxu0 %v168
    %8782 = vmatprep.subr.mxu0 0.0
    %8783 = vmatpush1.msra.mxu0 0.0
    %8784 = vmatprep.subr.mxu0 0.0
    %8785 = vmatpush1.msra.mxu0 0.0
    %8786 = vmatprep.subr.mxu0 0.0
    %8787 = vmatpush1.msra.mxu0 0.0
    %8788 = vmatprep.subr.mxu0 0.0
    %8789 = vmatpush1.msra.mxu0 0.0
    %8790 = vmatprep.subr.mxu0 0.0
    %8791 = vmatpush1.msra.mxu0 0.0
    %8792 = vmatprep.subr.mxu0 0.0
    %8793 = vmatpush1.msra.mxu0 0.0
    %8794 = vmatprep.subr.mxu0 0.0
    %8795 = vmatpush1.msra.mxu0 0.0
    %8796 = vmatprep.subr.mxu0 0.0
    %8797 = vmatpush1.msra.mxu0 0.0
    %8798 = vmatprep.subr.mxu0 0.0
    %8799 = vmatpush1.msra.mxu0 0.0
    %8800 = vmatprep.subr.mxu0 0.0
    %8801 = vmatpush1.msra.mxu0 0.0
    %8802 = vmatprep.subr.mxu0 0.0
    %8803 = vmatpush1.msra.mxu0 0.0
    %8804 = vmatprep.subr.mxu0 0.0
    %8805 = vmatpush1.msra.mxu0 0.0
    %8806 = vmatprep.subr.mxu0 0.0
    %8807 = vmatpush1.msra.mxu0 0.0
    %8808 = vmatprep.subr.mxu0 0.0
    %8809 = vmatpush1.msra.mxu0 0.0
    %8810 = vmatprep.subr.mxu0 0.0
    %8811 = vmatpush1.msra.mxu0 0.0
    %8812 = vmatprep.subr.mxu0 0.0
    %8813 = vmatpush1.msra.mxu0 0.0
    %8814 = vmatprep.subr.mxu0 0.0
    %8815 = vmatpush1.msra.mxu0 0.0
    %8816 = vmatprep.subr.mxu0 0.0
    %8817 = vmatpush1.msra.mxu0 0.0
    %8818 = vmatprep.subr.mxu0 0.0
    %8819 = vmatpush1.msra.mxu0 0.0
    %8820 = vmatprep.subr.mxu0 0.0
    %8821 = vmatpush1.msra.mxu0 0.0
    %8822 = vmatprep.subr.mxu0 0.0
    %8823 = vmatpush1.msra.mxu0 0.0
    %8824 = vmatprep.subr.mxu0 0.0
    %8825 = vmatpush1.msra.mxu0 0.0
    %8826 = vmatprep.subr.mxu0 0.0
    %8827 = vmatpush1.msra.mxu0 0.0
    %8828 = vmatprep.subr.mxu0 0.0
    %8829 = vmatpush1.msra.mxu0 0.0
    %8830 = vmatprep.subr.mxu0 0.0
    %8831 = vmatpush1.msra.mxu0 0.0
    %8832 = vmatprep.subr.mxu0 0.0
    %8833 = vmatpush1.msra.mxu0 0.0
    %8834 = vmatprep.subr.mxu0 0.0
    %8835 = vmatpush1.msra.mxu0 0.0
    %8836 = vmatprep.subr.mxu0 0.0
    %8837 = vmatpush1.msra.mxu0 0.0
    %8838 = vmatprep.mubr.f32.mxu0 0.0
    %8839 = vmatmul.mubr.f32.gmra.mrb[0].mxu0 %v8105
    %v8840 = vpop.f32.mrb[0].mxu0
    %v8841 = vadd.f32 0.0, %v8840
    %v8842 = vpop.f32.mrb[0].mxu0
    %8843 = vdwg.mxu0
    %8844 = vmatprep.subr.mxu0 0.0
    %8845 = vmatpush1.msra.mxu0 %v509
    %8846 = vmatprep.subr.mxu0 0.0
    %8847 = vmatpush1.msra.mxu0 0.0
    %8848 = vmatprep.subr.mxu0 0.0
    %8849 = vmatpush1.msra.mxu0 0.0
    %8850 = vmatprep.subr.mxu0 0.0
    %8851 = vmatpush1.msra.mxu0 0.0
    %8852 = vmatprep.subr.mxu0 0.0
    %8853 = vmatpush1.msra.mxu0 0.0
    %8854 = vmatprep.subr.mxu0 0.0
    %8855 = vmatpush1.msra.mxu0 0.0
    %8856 = vmatprep.subr.mxu0 0.0
    %8857 = vmatpush1.msra.mxu0 0.0
    %8858 = vmatprep.subr.mxu0 0.0
    %8859 = vmatpush1.msra.mxu0 0.0
    %8860 = vmatprep.subr.mxu0 0.0
    %8861 = vmatpush1.msra.mxu0 0.0
    %8862 = vmatprep.subr.mxu0 0.0
    %8863 = vmatpush1.msra.mxu0 0.0
    %8864 = vmatprep.subr.mxu0 0.0
    %8865 = vmatpush1.msra.mxu0 0.0
    %8866 = vmatprep.subr.mxu0 0.0
    %8867 = vmatpush1.msra.mxu0 0.0
    %8868 = vmatprep.subr.mxu0 0.0
    %8869 = vmatpush1.msra.mxu0 0.0
    %8870 = vmatprep.subr.mxu0 0.0
    %8871 = vmatpush1.msra.mxu0 0.0
    %8872 = vmatprep.subr.mxu0 0.0
    %8873 = vmatpush1.msra.mxu0 0.0
    %8874 = vmatprep.subr.mxu0 0.0
    %8875 = vmatpush1.msra.mxu0 0.0
    %8876 = vmatprep.subr.mxu0 0.0
    %8877 = vmatpush1.msra.mxu0 0.0
    %8878 = vmatprep.subr.mxu0 0.0
    %8879 = vmatpush1.msra.mxu0 0.0
    %8880 = vmatprep.subr.mxu0 0.0
    %8881 = vmatpush1.msra.mxu0 0.0
    %8882 = vmatprep.subr.mxu0 0.0
    %8883 = vmatpush1.msra.mxu0 0.0
    %8884 = vmatprep.subr.mxu0 0.0
    %8885 = vmatpush1.msra.mxu0 0.0
    %8886 = vmatprep.subr.mxu0 0.0
    %8887 = vmatpush1.msra.mxu0 0.0
    %8888 = vmatprep.subr.mxu0 0.0
    %8889 = vmatpush1.msra.mxu0 0.0
    %8890 = vmatprep.subr.mxu0 0.0
    %8891 = vmatpush1.msra.mxu0 0.0
    %8892 = vmatprep.subr.mxu0 0.0
    %8893 = vmatpush1.msra.mxu0 0.0
    %8894 = vmatprep.subr.mxu0 0.0
    %8895 = vmatpush1.msra.mxu0 0.0
    %8896 = vmatprep.subr.mxu0 0.0
    %8897 = vmatpush1.msra.mxu0 0.0
    %8898 = vmatprep.subr.mxu0 0.0
    %8899 = vmatpush1.msra.mxu0 0.0
    %8900 = vmatprep.subr.mxu0 0.0
    %8901 = vmatpush1.msra.mxu0 0.0
    %8902 = vmatprep.subr.mxu0 0.0
    %8903 = vmatpush1.msra.mxu0 0.0
    %8904 = vmatprep.subr.mxu0 0.0
    %8905 = vmatpush1.msra.mxu0 0.0
    %8906 = vmatprep.subr.mxu0 0.0
    %8907 = vmatpush1.msra.mxu0 0.0
    %8908 = vmatprep.mubr.f32.mxu0 0.0
    %8909 = vmatmul.mubr.f32.gmra.mrb[0].mxu0 %v8701
    %v8910 = vpop.f32.mrb[0].mxu0
    %v8911 = vadd.f32 %v8841, %v8910
    %v8912 = vpop.f32.mrb[0].mxu0
    %8913 = vdwg.mxu0
    %v8914 = vadd.f32 %v8911, %v192
    %8915 = vmatprep.subr.mxu0 0.0
    %8916 = vmatpush1.msra.mxu0 %v170
    %8917 = vmatprep.subr.mxu0 0.0
    %8918 = vmatpush1.msra.mxu0 %v171
    %8919 = vmatprep.subr.mxu0 0.0
    %8920 = vmatpush1.msra.mxu0 %v172
    %8921 = vmatprep.subr.mxu0 0.0
    %8922 = vmatpush1.msra.mxu0 %v173
    %8923 = vmatprep.subr.mxu0 0.0
    %8924 = vmatpush1.msra.mxu0 0.0
    %8925 = vmatprep.subr.mxu0 0.0
    %8926 = vmatpush1.msra.mxu0 0.0
    %8927 = vmatprep.subr.mxu0 0.0
    %8928 = vmatpush1.msra.mxu0 0.0
    %8929 = vmatprep.subr.mxu0 0.0
    %8930 = vmatpush1.msra.mxu0 0.0
    %8931 = vmatprep.subr.mxu0 0.0
    %8932 = vmatpush1.msra.mxu0 0.0
    %8933 = vmatprep.subr.mxu0 0.0
    %8934 = vmatpush1.msra.mxu0 0.0
    %8935 = vmatprep.subr.mxu0 0.0
    %8936 = vmatpush1.msra.mxu0 0.0
    %8937 = vmatprep.subr.mxu0 0.0
    %8938 = vmatpush1.msra.mxu0 0.0
    %8939 = vmatprep.subr.mxu0 0.0
    %8940 = vmatpush1.msra.mxu0 0.0
    %8941 = vmatprep.subr.mxu0 0.0
    %8942 = vmatpush1.msra.mxu0 0.0
    %8943 = vmatprep.subr.mxu0 0.0
    %8944 = vmatpush1.msra.mxu0 0.0
    %8945 = vmatprep.subr.mxu0 0.0
    %8946 = vmatpush1.msra.mxu0 0.0
    %8947 = vmatprep.subr.mxu0 0.0
    %8948 = vmatpush1.msra.mxu0 0.0
    %8949 = vmatprep.subr.mxu0 0.0
    %8950 = vmatpush1.msra.mxu0 0.0
    %8951 = vmatprep.subr.mxu0 0.0
    %8952 = vmatpush1.msra.mxu0 0.0
    %8953 = vmatprep.subr.mxu0 0.0
    %8954 = vmatpush1.msra.mxu0 0.0
    %8955 = vmatprep.subr.mxu0 0.0
    %8956 = vmatpush1.msra.mxu0 0.0
    %8957 = vmatprep.subr.mxu0 0.0
    %8958 = vmatpush1.msra.mxu0 0.0
    %8959 = vmatprep.subr.mxu0 0.0
    %8960 = vmatpush1.msra.mxu0 0.0
    %8961 = vmatprep.subr.mxu0 0.0
    %8962 = vmatpush1.msra.mxu0 0.0
    %8963 = vmatprep.subr.mxu0 0.0
    %8964 = vmatpush1.msra.mxu0 0.0
    %8965 = vmatprep.subr.mxu0 0.0
    %8966 = vmatpush1.msra.mxu0 0.0
    %8967 = vmatprep.subr.mxu0 0.0
    %8968 = vmatpush1.msra.mxu0 0.0
    %8969 = vmatprep.subr.mxu0 0.0
    %8970 = vmatpush1.msra.mxu0 0.0
    %8971 = vmatprep.subr.mxu0 0.0
    %8972 = vmatpush1.msra.mxu0 0.0
    %8973 = vmatprep.subr.mxu0 0.0
    %8974 = vmatpush1.msra.mxu0 0.0
    %8975 = vmatprep.subr.mxu0 0.0
    %8976 = vmatpush1.msra.mxu0 0.0
    %8977 = vmatprep.subr.mxu0 0.0
    %8978 = vmatpush1.msra.mxu0 0.0
    %8979 = vmatprep.mubr.f32.mxu0 0.0
    %8980 = vmatmul.mubr.f32.gmra.mrb[0].mxu0 %v8105
    %v8981 = vpop.f32.mrb[0].mxu0
    %v8982 = vadd.f32 0.0, %v8981
    %v8983 = vpop.f32.mrb[0].mxu0
    %8984 = vdwg.mxu0
    %8985 = vmatprep.subr.mxu0 0.0
    %8986 = vmatpush1.msra.mxu0 %v653
    %8987 = vmatprep.subr.mxu0 0.0
    %8988 = vmatpush1.msra.mxu0 0.0
    %8989 = vmatprep.subr.mxu0 0.0
    %8990 = vmatpush1.msra.mxu0 0.0
    %8991 = vmatprep.subr.mxu0 0.0
    %8992 = vmatpush1.msra.mxu0 0.0
    %8993 = vmatprep.subr.mxu0 0.0
    %8994 = vmatpush1.msra.mxu0 0.0
    %8995 = vmatprep.subr.mxu0 0.0
    %8996 = vmatpush1.msra.mxu0 0.0
    %8997 = vmatprep.subr.mxu0 0.0
    %8998 = vmatpush1.msra.mxu0 0.0
    %8999 = vmatprep.subr.mxu0 0.0
    %9000 = vmatpush1.msra.mxu0 0.0
    %9001 = vmatprep.subr.mxu0 0.0
    %9002 = vmatpush1.msra.mxu0 0.0
    %9003 = vmatprep.subr.mxu0 0.0
    %9004 = vmatpush1.msra.mxu0 0.0
    %9005 = vmatprep.subr.mxu0 0.0
    %9006 = vmatpush1.msra.mxu0 0.0
    %9007 = vmatprep.subr.mxu0 0.0
    %9008 = vmatpush1.msra.mxu0 0.0
    %9009 = vmatprep.subr.mxu0 0.0
    %9010 = vmatpush1.msra.mxu0 0.0
    %9011 = vmatprep.subr.mxu0 0.0
    %9012 = vmatpush1.msra.mxu0 0.0
    %9013 = vmatprep.subr.mxu0 0.0
    %9014 = vmatpush1.msra.mxu0 0.0
    %9015 = vmatprep.subr.mxu0 0.0
    %9016 = vmatpush1.msra.mxu0 0.0
    %9017 = vmatprep.subr.mxu0 0.0
    %9018 = vmatpush1.msra.mxu0 0.0
    %9019 = vmatprep.subr.mxu0 0.0
    %9020 = vmatpush1.msra.mxu0 0.0
    %9021 = vmatprep.subr.mxu0 0.0
    %9022 = vmatpush1.msra.mxu0 0.0
    %9023 = vmatprep.subr.mxu0 0.0
    %9024 = vmatpush1.msra.mxu0 0.0
    %9025 = vmatprep.subr.mxu0 0.0
    %9026 = vmatpush1.msra.mxu0 0.0
    %9027 = vmatprep.subr.mxu0 0.0
    %9028 = vmatpush1.msra.mxu0 0.0
    %9029 = vmatprep.subr.mxu0 0.0
    %9030 = vmatpush1.msra.mxu0 0.0
    %9031 = vmatprep.subr.mxu0 0.0
    %9032 = vmatpush1.msra.mxu0 0.0
    %9033 = vmatprep.subr.mxu0 0.0
    %9034 = vmatpush1.msra.mxu0 0.0
    %9035 = vmatprep.subr.mxu0 0.0
    %9036 = vmatpush1.msra.mxu0 0.0
    %9037 = vmatprep.subr.mxu0 0.0
    %9038 = vmatpush1.msra.mxu0 0.0
    %9039 = vmatprep.subr.mxu0 0.0
    %9040 = vmatpush1.msra.mxu0 0.0
    %9041 = vmatprep.subr.mxu0 0.0
    %9042 = vmatpush1.msra.mxu0 0.0
    %9043 = vmatprep.subr.mxu0 0.0
    %9044 = vmatpush1.msra.mxu0 0.0
    %9045 = vmatprep.subr.mxu0 0.0
    %9046 = vmatpush1.msra.mxu0 0.0
    %9047 = vmatprep.subr.mxu0 0.0
    %9048 = vmatpush1.msra.mxu0 0.0
    %9049 = vmatprep.mubr.f32.mxu0 0.0
    %9050 = vmatmul.mubr.f32.gmra.mrb[0].mxu0 %v8701
    %v9051 = vpop.f32.mrb[0].mxu0
    %v9052 = vadd.f32 %v8982, %v9051
    %v9053 = vpop.f32.mrb[0].mxu0
    %9054 = vdwg.mxu0
    %v9055 = vadd.f32 %v9052, %v200
    %9056 = vmatprep.subr.mxu0 0.0
    %9057 = vmatpush1.msra.mxu0 %v175
    %9058 = vmatprep.subr.mxu0 0.0
    %9059 = vmatpush1.msra.mxu0 %v176
    %9060 = vmatprep.subr.mxu0 0.0
    %9061 = vmatpush1.msra.mxu0 %v177
    %9062 = vmatprep.subr.mxu0 0.0
    %9063 = vmatpush1.msra.mxu0 %v178
    %9064 = vmatprep.subr.mxu0 0.0
    %9065 = vmatpush1.msra.mxu0 0.0
    %9066 = vmatprep.subr.mxu0 0.0
    %9067 = vmatpush1.msra.mxu0 0.0
    %9068 = vmatprep.subr.mxu0 0.0
    %9069 = vmatpush1.msra.mxu0 0.0
    %9070 = vmatprep.subr.mxu0 0.0
    %9071 = vmatpush1.msra.mxu0 0.0
    %9072 = vmatprep.subr.mxu0 0.0
    %9073 = vmatpush1.msra.mxu0 0.0
    %9074 = vmatprep.subr.mxu0 0.0
    %9075 = vmatpush1.msra.mxu0 0.0
    %9076 = vmatprep.subr.mxu0 0.0
    %9077 = vmatpush1.msra.mxu0 0.0
    %9078 = vmatprep.subr.mxu0 0.0
    %9079 = vmatpush1.msra.mxu0 0.0
    %9080 = vmatprep.subr.mxu0 0.0
    %9081 = vmatpush1.msra.mxu0 0.0
    %9082 = vmatprep.subr.mxu0 0.0
    %9083 = vmatpush1.msra.mxu0 0.0
    %9084 = vmatprep.subr.mxu0 0.0
    %9085 = vmatpush1.msra.mxu0 0.0
    %9086 = vmatprep.subr.mxu0 0.0
    %9087 = vmatpush1.msra.mxu0 0.0
    %9088 = vmatprep.subr.mxu0 0.0
    %9089 = vmatpush1.msra.mxu0 0.0
    %9090 = vmatprep.subr.mxu0 0.0
    %9091 = vmatpush1.msra.mxu0 0.0
    %9092 = vmatprep.subr.mxu0 0.0
    %9093 = vmatpush1.msra.mxu0 0.0
    %9094 = vmatprep.subr.mxu0 0.0
    %9095 = vmatpush1.msra.mxu0 0.0
    %9096 = vmatprep.subr.mxu0 0.0
    %9097 = vmatpush1.msra.mxu0 0.0
    %9098 = vmatprep.subr.mxu0 0.0
    %9099 = vmatpush1.msra.mxu0 0.0
    %9100 = vmatprep.subr.mxu0 0.0
    %9101 = vmatpush1.msra.mxu0 0.0
    %9102 = vmatprep.subr.mxu0 0.0
    %9103 = vmatpush1.msra.mxu0 0.0
    %9104 = vmatprep.subr.mxu0 0.0
    %9105 = vmatpush1.msra.mxu0 0.0
    %9106 = vmatprep.subr.mxu0 0.0
    %9107 = vmatpush1.msra.mxu0 0.0
    %9108 = vmatprep.subr.mxu0 0.0
    %9109 = vmatpush1.msra.mxu0 0.0
    %9110 = vmatprep.subr.mxu0 0.0
    %9111 = vmatpush1.msra.mxu0 0.0
    %9112 = vmatprep.subr.mxu0 0.0
    %9113 = vmatpush1.msra.mxu0 0.0
    %9114 = vmatprep.subr.mxu0 0.0
    %9115 = vmatpush1.msra.mxu0 0.0
    %9116 = vmatprep.subr.mxu0 0.0
    %9117 = vmatpush1.msra.mxu0 0.0
    %9118 = vmatprep.subr.mxu0 0.0
    %9119 = vmatpush1.msra.mxu0 0.0
    %9120 = vmatprep.mubr.f32.mxu0 0.0
    %9121 = vmatmul.mubr.f32.gmra.mrb[0].mxu0 %v8105
    %v9122 = vpop.f32.mrb[0].mxu0
    %v9123 = vadd.f32 0.0, %v9122
    %v9124 = vpop.f32.mrb[0].mxu0
    %9125 = vdwg.mxu0
    %9126 = vmatprep.subr.mxu0 0.0
    %9127 = vmatpush1.msra.mxu0 %v797
    %9128 = vmatprep.subr.mxu0 0.0
    %9129 = vmatpush1.msra.mxu0 0.0
    %9130 = vmatprep.subr.mxu0 0.0
    %9131 = vmatpush1.msra.mxu0 0.0
    %9132 = vmatprep.subr.mxu0 0.0
    %9133 = vmatpush1.msra.mxu0 0.0
    %9134 = vmatprep.subr.mxu0 0.0
    %9135 = vmatpush1.msra.mxu0 0.0
    %9136 = vmatprep.subr.mxu0 0.0
    %9137 = vmatpush1.msra.mxu0 0.0
    %9138 = vmatprep.subr.mxu0 0.0
    %9139 = vmatpush1.msra.mxu0 0.0
    %9140 = vmatprep.subr.mxu0 0.0
    %9141 = vmatpush1.msra.mxu0 0.0
    %9142 = vmatprep.subr.mxu0 0.0
    %9143 = vmatpush1.msra.mxu0 0.0
    %9144 = vmatprep.subr.mxu0 0.0
    %9145 = vmatpush1.msra.mxu0 0.0
    %9146 = vmatprep.subr.mxu0 0.0
    %9147 = vmatpush1.msra.mxu0 0.0
    %9148 = vmatprep.subr.mxu0 0.0
    %9149 = vmatpush1.msra.mxu0 0.0
    %9150 = vmatprep.subr.mxu0 0.0
    %9151 = vmatpush1.msra.mxu0 0.0
    %9152 = vmatprep.subr.mxu0 0.0
    %9153 = vmatpush1.msra.mxu0 0.0
    %9154 = vmatprep.subr.mxu0 0.0
    %9155 = vmatpush1.msra.mxu0 0.0
    %9156 = vmatprep.subr.mxu0 0.0
    %9157 = vmatpush1.msra.mxu0 0.0
    %9158 = vmatprep.subr.mxu0 0.0
    %9159 = vmatpush1.msra.mxu0 0.0
    %9160 = vmatprep.subr.mxu0 0.0
    %9161 = vmatpush1.msra.mxu0 0.0
    %9162 = vmatprep.subr.mxu0 0.0
    %9163 = vmatpush1.msra.mxu0 0.0
    %9164 = vmatprep.subr.mxu0 0.0
    %9165 = vmatpush1.msra.mxu0 0.0
    %9166 = vmatprep.subr.mxu0 0.0
    %9167 = vmatpush1.msra.mxu0 0.0
    %9168 = vmatprep.subr.mxu0 0.0
    %9169 = vmatpush1.msra.mxu0 0.0
    %9170 = vmatprep.subr.mxu0 0.0
    %9171 = vmatpush1.msra.mxu0 0.0
    %9172 = vmatprep.subr.mxu0 0.0
    %9173 = vmatpush1.msra.mxu0 0.0
    %9174 = vmatprep.subr.mxu0 0.0
    %9175 = vmatpush1.msra.mxu0 0.0
    %9176 = vmatprep.subr.mxu0 0.0
    %9177 = vmatpush1.msra.mxu0 0.0
    %9178 = vmatprep.subr.mxu0 0.0
    %9179 = vmatpush1.msra.mxu0 0.0
    %9180 = vmatprep.subr.mxu0 0.0
    %9181 = vmatpush1.msra.mxu0 0.0
    %9182 = vmatprep.subr.mxu0 0.0
    %9183 = vmatpush1.msra.mxu0 0.0
    %9184 = vmatprep.subr.mxu0 0.0
    %9185 = vmatpush1.msra.mxu0 0.0
    %9186 = vmatprep.subr.mxu0 0.0
    %9187 = vmatpush1.msra.mxu0 0.0
    %9188 = vmatprep.subr.mxu0 0.0
    %9189 = vmatpush1.msra.mxu0 0.0
    %9190 = vmatprep.mubr.f32.mxu0 0.0
    %9191 = vmatmul.mubr.f32.gmra.mrb[0].mxu0 %v8701
    %v9192 = vpop.f32.mrb[0].mxu0
    %v9193 = vadd.f32 %v9123, %v9192
    %v9194 = vpop.f32.mrb[0].mxu0
    %9195 = vdwg.mxu0
    %v9196 = vadd.f32 %v9193, %v208
    %v9197 = vxor.u32 %v8773, 2147483648
    %v9198 = vmul.f32 %v9197, 1.442695
    %v9199 = vpow.pop %v9198
    %v9200 = vadd.f32 %v9199, 1.0
    %v9201 = vrcp.pop %v9200
    %v9202 = vmul.f32 1.0, %v9201
    %v9203 = vxor.u32 %v8914, 2147483648
    %v9204 = vmul.f32 %v9203, 1.442695
    %v9205 = vpow.pop %v9204
    %v9206 = vadd.f32 %v9205, 1.0
    %v9207 = vrcp.pop %v9206
    %v9208 = vmul.f32 1.0, %v9207
    %v9209 = vtanh.pop %v9055
    %v9210 = vxor.u32 %v9196, 2147483648
    %v9211 = vmul.f32 %v9210, 1.442695
    %v9212 = vpow.pop %v9211
    %v9213 = vadd.f32 %v9212, 1.0
    %v9214 = vrcp.pop %v9213
    %v9215 = vmul.f32 1.0, %v9214
    %v9216 = vmul.f32 %v9208, %v8028
    %v9217 = vmul.f32 %v9202, %v9209
    %v9218 = vadd.f32 %v9216, %v9217
    %v9219 = vtanh.pop %v9218
    %v9220 = vmul.f32 %v9215, %v9219
    %v9222 = vsel %vm281, %v8624, 0
    %9224 = vmatprep.subr.mxu0 0.0
    %9225 = vmatpush1.msra.mxu0 %v229
    %9226 = vmatprep.subr.mxu0 0.0
    %9227 = vmatpush1.msra.mxu0 %v230
    %9228 = vmatprep.subr.mxu0 0.0
    %9229 = vmatpush1.msra.mxu0 %v231
    %9230 = vmatprep.subr.mxu0 0.0
    %9231 = vmatpush1.msra.mxu0 %v232
    %9232 = vmatprep.subr.mxu0 0.0
    %9233 = vmatpush1.msra.mxu0 0.0
    %9234 = vmatprep.subr.mxu0 0.0
    %9235 = vmatpush1.msra.mxu0 0.0
    %9236 = vmatprep.subr.mxu0 0.0
    %9237 = vmatpush1.msra.mxu0 0.0
    %9238 = vmatprep.subr.mxu0 0.0
    %9239 = vmatpush1.msra.mxu0 0.0
    %9240 = vmatprep.subr.mxu0 0.0
    %9241 = vmatpush1.msra.mxu0 0.0
    %9242 = vmatprep.subr.mxu0 0.0
    %9243 = vmatpush1.msra.mxu0 0.0
    %9244 = vmatprep.subr.mxu0 0.0
    %9245 = vmatpush1.msra.mxu0 0.0
    %9246 = vmatprep.subr.mxu0 0.0
    %9247 = vmatpush1.msra.mxu0 0.0
    %9248 = vmatprep.subr.mxu0 0.0
    %9249 = vmatpush1.msra.mxu0 0.0
    %9250 = vmatprep.subr.mxu0 0.0
    %9251 = vmatpush1.msra.mxu0 0.0
    %9252 = vmatprep.subr.mxu0 0.0
    %9253 = vmatpush1.msra.mxu0 0.0
    %9254 = vmatprep.subr.mxu0 0.0
    %9255 = vmatpush1.msra.mxu0 0.0
    %9256 = vmatprep.subr.mxu0 0.0
    %9257 = vmatpush1.msra.mxu0 0.0
    %9258 = vmatprep.subr.mxu0 0.0
    %9259 = vmatpush1.msra.mxu0 0.0
    %9260 = vmatprep.subr.mxu0 0.0
    %9261 = vmatpush1.msra.mxu0 0.0
    %9262 = vmatprep.subr.mxu0 0.0
    %9263 = vmatpush1.msra.mxu0 0.0
    %9264 = vmatprep.subr.mxu0 0.0
    %9265 = vmatpush1.msra.mxu0 0.0
    %9266 = vmatprep.subr.mxu0 0.0
    %9267 = vmatpush1.msra.mxu0 0.0
    %9268 = vmatprep.subr.mxu0 0.0
    %9269 = vmatpush1.msra.mxu0 0.0
    %9270 = vmatprep.subr.mxu0 0.0
    %9271 = vmatpush1.msra.mxu0 0.0
    %9272 = vmatprep.subr.mxu0 0.0
    %9273 = vmatpush1.msra.mxu0 0.0
    %9274 = vmatprep.subr.mxu0 0.0
    %9275 = vmatpush1.msra.mxu0 0.0
    %9276 = vmatprep.subr.mxu0 0.0
    %9277 = vmatpush1.msra.mxu0 0.0
    %9278 = vmatprep.subr.mxu0 0.0
    %9279 = vmatpush1.msra.mxu0 0.0
    %9280 = vmatprep.subr.mxu0 0.0
    %9281 = vmatpush1.msra.mxu0 0.0
    %9282 = vmatprep.subr.mxu0 0.0
    %9283 = vmatpush1.msra.mxu0 0.0
    %9284 = vmatprep.subr.mxu0 0.0
    %9285 = vmatpush1.msra.mxu0 0.0
    %9286 = vmatprep.subr.mxu0 0.0
    %9287 = vmatpush1.msra.mxu0 0.0
    %9288 = vmatprep.mubr.f32.mxu0 0.0
    %9289 = vmatmul.mubr.f32.gmra.mrb[0].mxu0 %v9222
    %v9290 = vpop.f32.mrb[0].mxu0
    %v9291 = vadd.f32 0.0, %v9290
    %v9292 = vpop.f32.mrb[0].mxu0
    %9293 = vdwg.mxu0
    %v9295 = vsel %vm281, %v9220, 0
    %9297 = vmatprep.subr.mxu0 0.0
    %9298 = vmatpush1.msra.mxu0 %v210
    %9299 = vmatprep.subr.mxu0 0.0
    %9300 = vmatpush1.msra.mxu0 %v211
    %9301 = vmatprep.subr.mxu0 0.0
    %9302 = vmatpush1.msra.mxu0 %v212
    %9303 = vmatprep.subr.mxu0 0.0
    %9304 = vmatpush1.msra.mxu0 %v213
    %9305 = vmatprep.subr.mxu0 0.0
    %9306 = vmatpush1.msra.mxu0 0.0
    %9307 = vmatprep.subr.mxu0 0.0
    %9308 = vmatpush1.msra.mxu0 0.0
    %9309 = vmatprep.subr.mxu0 0.0
    %9310 = vmatpush1.msra.mxu0 0.0
    %9311 = vmatprep.subr.mxu0 0.0
    %9312 = vmatpush1.msra.mxu0 0.0
    %9313 = vmatprep.subr.mxu0 0.0
    %9314 = vmatpush1.msra.mxu0 0.0
    %9315 = vmatprep.subr.mxu0 0.0
    %9316 = vmatpush1.msra.mxu0 0.0
    %9317 = vmatprep.subr.mxu0 0.0
    %9318 = vmatpush1.msra.mxu0 0.0
    %9319 = vmatprep.subr.mxu0 0.0
    %9320 = vmatpush1.msra.mxu0 0.0
    %9321 = vmatprep.subr.mxu0 0.0
    %9322 = vmatpush1.msra.mxu0 0.0
    %9323 = vmatprep.subr.mxu0 0.0
    %9324 = vmatpush1.msra.mxu0 0.0
    %9325 = vmatprep.subr.mxu0 0.0
    %9326 = vmatpush1.msra.mxu0 0.0
    %9327 = vmatprep.subr.mxu0 0.0
    %9328 = vmatpush1.msra.mxu0 0.0
    %9329 = vmatprep.subr.mxu0 0.0
    %9330 = vmatpush1.msra.mxu0 0.0
    %9331 = vmatprep.subr.mxu0 0.0
    %9332 = vmatpush1.msra.mxu0 0.0
    %9333 = vmatprep.subr.mxu0 0.0
    %9334 = vmatpush1.msra.mxu0 0.0
    %9335 = vmatprep.subr.mxu0 0.0
    %9336 = vmatpush1.msra.mxu0 0.0
    %9337 = vmatprep.subr.mxu0 0.0
    %9338 = vmatpush1.msra.mxu0 0.0
    %9339 = vmatprep.subr.mxu0 0.0
    %9340 = vmatpush1.msra.mxu0 0.0
    %9341 = vmatprep.subr.mxu0 0.0
    %9342 = vmatpush1.msra.mxu0 0.0
    %9343 = vmatprep.subr.mxu0 0.0
    %9344 = vmatpush1.msra.mxu0 0.0
    %9345 = vmatprep.subr.mxu0 0.0
    %9346 = vmatpush1.msra.mxu0 0.0
    %9347 = vmatprep.subr.mxu0 0.0
    %9348 = vmatpush1.msra.mxu0 0.0
    %9349 = vmatprep.subr.mxu0 0.0
    %9350 = vmatpush1.msra.mxu0 0.0
    %9351 = vmatprep.subr.mxu0 0.0
    %9352 = vmatpush1.msra.mxu0 0.0
    %9353 = vmatprep.subr.mxu0 0.0
    %9354 = vmatpush1.msra.mxu0 0.0
    %9355 = vmatprep.subr.mxu0 0.0
    %9356 = vmatpush1.msra.mxu0 0.0
    %9357 = vmatprep.subr.mxu0 0.0
    %9358 = vmatpush1.msra.mxu0 0.0
    %9359 = vmatprep.subr.mxu0 0.0
    %9360 = vmatpush1.msra.mxu0 0.0
    %9361 = vmatprep.mubr.f32.mxu0 0.0
    %9362 = vmatmul.mubr.f32.gmra.mrb[0].mxu0 %v9295
    %v9363 = vpop.f32.mrb[0].mxu0
    %v9364 = vadd.f32 %v9291, %v9363
    %v9365 = vpop.f32.mrb[0].mxu0
    %9366 = vdwg.mxu0
    %v9367 = vadd.f32 %v9364, %v253
    %9368 = vmatprep.subr.mxu0 0.0
    %9369 = vmatpush1.msra.mxu0 %v234
    %9370 = vmatprep.subr.mxu0 0.0
    %9371 = vmatpush1.msra.mxu0 %v235
    %9372 = vmatprep.subr.mxu0 0.0
    %9373 = vmatpush1.msra.mxu0 %v236
    %9374 = vmatprep.subr.mxu0 0.0
    %9375 = vmatpush1.msra.mxu0 %v237
    %9376 = vmatprep.subr.mxu0 0.0
    %9377 = vmatpush1.msra.mxu0 0.0
    %9378 = vmatprep.subr.mxu0 0.0
    %9379 = vmatpush1.msra.mxu0 0.0
    %9380 = vmatprep.subr.mxu0 0.0
    %9381 = vmatpush1.msra.mxu0 0.0
    %9382 = vmatprep.subr.mxu0 0.0
    %9383 = vmatpush1.msra.mxu0 0.0
    %9384 = vmatprep.subr.mxu0 0.0
    %9385 = vmatpush1.msra.mxu0 0.0
    %9386 = vmatprep.subr.mxu0 0.0
    %9387 = vmatpush1.msra.mxu0 0.0
    %9388 = vmatprep.subr.mxu0 0.0
    %9389 = vmatpush1.msra.mxu0 0.0
    %9390 = vmatprep.subr.mxu0 0.0
    %9391 = vmatpush1.msra.mxu0 0.0
    %9392 = vmatprep.subr.mxu0 0.0
    %9393 = vmatpush1.msra.mxu0 0.0
    %9394 = vmatprep.subr.mxu0 0.0
    %9395 = vmatpush1.msra.mxu0 0.0
    %9396 = vmatprep.subr.mxu0 0.0
    %9397 = vmatpush1.msra.mxu0 0.0
    %9398 = vmatprep.subr.mxu0 0.0
    %9399 = vmatpush1.msra.mxu0 0.0
    %9400 = vmatprep.subr.mxu0 0.0
    %9401 = vmatpush1.msra.mxu0 0.0
    %9402 = vmatprep.subr.mxu0 0.0
    %9403 = vmatpush1.msra.mxu0 0.0
    %9404 = vmatprep.subr.mxu0 0.0
    %9405 = vmatpush1.msra.mxu0 0.0
    %9406 = vmatprep.subr.mxu0 0.0
    %9407 = vmatpush1.msra.mxu0 0.0
    %9408 = vmatprep.subr.mxu0 0.0
    %9409 = vmatpush1.msra.mxu0 0.0
    %9410 = vmatprep.subr.mxu0 0.0
    %9411 = vmatpush1.msra.mxu0 0.0
    %9412 = vmatprep.subr.mxu0 0.0
    %9413 = vmatpush1.msra.mxu0 0.0
    %9414 = vmatprep.subr.mxu0 0.0
    %9415 = vmatpush1.msra.mxu0 0.0
    %9416 = vmatprep.subr.mxu0 0.0
    %9417 = vmatpush1.msra.mxu0 0.0
    %9418 = vmatprep.subr.mxu0 0.0
    %9419 = vmatpush1.msra.mxu0 0.0
    %9420 = vmatprep.subr.mxu0 0.0
    %9421 = vmatpush1.msra.mxu0 0.0
    %9422 = vmatprep.subr.mxu0 0.0
    %9423 = vmatpush1.msra.mxu0 0.0
    %9424 = vmatprep.subr.mxu0 0.0
    %9425 = vmatpush1.msra.mxu0 0.0
    %9426 = vmatprep.subr.mxu0 0.0
    %9427 = vmatpush1.msra.mxu0 0.0
    %9428 = vmatprep.subr.mxu0 0.0
    %9429 = vmatpush1.msra.mxu0 0.0
    %9430 = vmatprep.subr.mxu0 0.0
    %9431 = vmatpush1.msra.mxu0 0.0
    %9432 = vmatprep.mubr.f32.mxu0 0.0
    %9433 = vmatmul.mubr.f32.gmra.mrb[0].mxu0 %v9222
    %v9434 = vpop.f32.mrb[0].mxu0
    %v9435 = vadd.f32 0.0, %v9434
    %v9436 = vpop.f32.mrb[0].mxu0
    %9437 = vdwg.mxu0
    %9438 = vmatprep.subr.mxu0 0.0
    %9439 = vmatpush1.msra.mxu0 %v215
    %9440 = vmatprep.subr.mxu0 0.0
    %9441 = vmatpush1.msra.mxu0 %v216
    %9442 = vmatprep.subr.mxu0 0.0
    %9443 = vmatpush1.msra.mxu0 %v217
    %9444 = vmatprep.subr.mxu0 0.0
    %9445 = vmatpush1.msra.mxu0 %v218
    %9446 = vmatprep.subr.mxu0 0.0
    %9447 = vmatpush1.msra.mxu0 0.0
    %9448 = vmatprep.subr.mxu0 0.0
    %9449 = vmatpush1.msra.mxu0 0.0
    %9450 = vmatprep.subr.mxu0 0.0
    %9451 = vmatpush1.msra.mxu0 0.0
    %9452 = vmatprep.subr.mxu0 0.0
    %9453 = vmatpush1.msra.mxu0 0.0
    %9454 = vmatprep.subr.mxu0 0.0
    %9455 = vmatpush1.msra.mxu0 0.0
    %9456 = vmatprep.subr.mxu0 0.0
    %9457 = vmatpush1.msra.mxu0 0.0
    %9458 = vmatprep.subr.mxu0 0.0
    %9459 = vmatpush1.msra.mxu0 0.0
    %9460 = vmatprep.subr.mxu0 0.0
    %9461 = vmatpush1.msra.mxu0 0.0
    %9462 = vmatprep.subr.mxu0 0.0
    %9463 = vmatpush1.msra.mxu0 0.0
    %9464 = vmatprep.subr.mxu0 0.0
    %9465 = vmatpush1.msra.mxu0 0.0
    %9466 = vmatprep.subr.mxu0 0.0
    %9467 = vmatpush1.msra.mxu0 0.0
    %9468 = vmatprep.subr.mxu0 0.0
    %9469 = vmatpush1.msra.mxu0 0.0
    %9470 = vmatprep.subr.mxu0 0.0
    %9471 = vmatpush1.msra.mxu0 0.0
    %9472 = vmatprep.subr.mxu0 0.0
    %9473 = vmatpush1.msra.mxu0 0.0
    %9474 = vmatprep.subr.mxu0 0.0
    %9475 = vmatpush1.msra.mxu0 0.0
    %9476 = vmatprep.subr.mxu0 0.0
    %9477 = vmatpush1.msra.mxu0 0.0
    %9478 = vmatprep.subr.mxu0 0.0
    %9479 = vmatpush1.msra.mxu0 0.0
    %9480 = vmatprep.subr.mxu0 0.0
    %9481 = vmatpush1.msra.mxu0 0.0
    %9482 = vmatprep.subr.mxu0 0.0
    %9483 = vmatpush1.msra.mxu0 0.0
    %9484 = vmatprep.subr.mxu0 0.0
    %9485 = vmatpush1.msra.mxu0 0.0
    %9486 = vmatprep.subr.mxu0 0.0
    %9487 = vmatpush1.msra.mxu0 0.0
    %9488 = vmatprep.subr.mxu0 0.0
    %9489 = vmatpush1.msra.mxu0 0.0
    %9490 = vmatprep.subr.mxu0 0.0
    %9491 = vmatpush1.msra.mxu0 0.0
    %9492 = vmatprep.subr.mxu0 0.0
    %9493 = vmatpush1.msra.mxu0 0.0
    %9494 = vmatprep.subr.mxu0 0.0
    %9495 = vmatpush1.msra.mxu0 0.0
    %9496 = vmatprep.subr.mxu0 0.0
    %9497 = vmatpush1.msra.mxu0 0.0
    %9498 = vmatprep.subr.mxu0 0.0
    %9499 = vmatpush1.msra.mxu0 0.0
    %9500 = vmatprep.subr.mxu0 0.0
    %9501 = vmatpush1.msra.mxu0 0.0
    %9502 = vmatprep.mubr.f32.mxu0 0.0
    %9503 = vmatmul.mubr.f32.gmra.mrb[0].mxu0 %v9295
    %v9504 = vpop.f32.mrb[0].mxu0
    %v9505 = vadd.f32 %v9435, %v9504
    %v9506 = vpop.f32.mrb[0].mxu0
    %9507 = vdwg.mxu0
    %v9508 = vadd.f32 %v9505, %v261
    %9509 = vmatprep.subr.mxu0 0.0
    %9510 = vmatpush1.msra.mxu0 %v239
    %9511 = vmatprep.subr.mxu0 0.0
    %9512 = vmatpush1.msra.mxu0 %v240
    %9513 = vmatprep.subr.mxu0 0.0
    %9514 = vmatpush1.msra.mxu0 %v241
    %9515 = vmatprep.subr.mxu0 0.0
    %9516 = vmatpush1.msra.mxu0 %v242
    %9517 = vmatprep.subr.mxu0 0.0
    %9518 = vmatpush1.msra.mxu0 0.0
    %9519 = vmatprep.subr.mxu0 0.0
    %9520 = vmatpush1.msra.mxu0 0.0
    %9521 = vmatprep.subr.mxu0 0.0
    %9522 = vmatpush1.msra.mxu0 0.0
    %9523 = vmatprep.subr.mxu0 0.0
    %9524 = vmatpush1.msra.mxu0 0.0
    %9525 = vmatprep.subr.mxu0 0.0
    %9526 = vmatpush1.msra.mxu0 0.0
    %9527 = vmatprep.subr.mxu0 0.0
    %9528 = vmatpush1.msra.mxu0 0.0
    %9529 = vmatprep.subr.mxu0 0.0
    %9530 = vmatpush1.msra.mxu0 0.0
    %9531 = vmatprep.subr.mxu0 0.0
    %9532 = vmatpush1.msra.mxu0 0.0
    %9533 = vmatprep.subr.mxu0 0.0
    %9534 = vmatpush1.msra.mxu0 0.0
    %9535 = vmatprep.subr.mxu0 0.0
    %9536 = vmatpush1.msra.mxu0 0.0
    %9537 = vmatprep.subr.mxu0 0.0
    %9538 = vmatpush1.msra.mxu0 0.0
    %9539 = vmatprep.subr.mxu0 0.0
    %9540 = vmatpush1.msra.mxu0 0.0
    %9541 = vmatprep.subr.mxu0 0.0
    %9542 = vmatpush1.msra.mxu0 0.0
    %9543 = vmatprep.subr.mxu0 0.0
    %9544 = vmatpush1.msra.mxu0 0.0
    %9545 = vmatprep.subr.mxu0 0.0
    %9546 = vmatpush1.msra.mxu0 0.0
    %9547 = vmatprep.subr.mxu0 0.0
    %9548 = vmatpush1.msra.mxu0 0.0
    %9549 = vmatprep.subr.mxu0 0.0
    %9550 = vmatpush1.msra.mxu0 0.0
    %9551 = vmatprep.subr.mxu0 0.0
    %9552 = vmatpush1.msra.mxu0 0.0
    %9553 = vmatprep.subr.mxu0 0.0
    %9554 = vmatpush1.msra.mxu0 0.0
    %9555 = vmatprep.subr.mxu0 0.0
    %9556 = vmatpush1.msra.mxu0 0.0
    %9557 = vmatprep.subr.mxu0 0.0
    %9558 = vmatpush1.msra.mxu0 0.0
    %9559 = vmatprep.subr.mxu0 0.0
    %9560 = vmatpush1.msra.mxu0 0.0
    %9561 = vmatprep.subr.mxu0 0.0
    %9562 = vmatpush1.msra.mxu0 0.0
    %9563 = vmatprep.subr.mxu0 0.0
    %9564 = vmatpush1.msra.mxu0 0.0
    %9565 = vmatprep.subr.mxu0 0.0
    %9566 = vmatpush1.msra.mxu0 0.0
    %9567 = vmatprep.subr.mxu0 0.0
    %9568 = vmatpush1.msra.mxu0 0.0
    %9569 = vmatprep.subr.mxu0 0.0
    %9570 = vmatpush1.msra.mxu0 0.0
    %9571 = vmatprep.subr.mxu0 0.0
    %9572 = vmatpush1.msra.mxu0 0.0
    %9573 = vmatprep.mubr.f32.mxu0 0.0
    %9574 = vmatmul.mubr.f32.gmra.mrb[0].mxu0 %v9222
    %v9575 = vpop.f32.mrb[0].mxu0
    %v9576 = vadd.f32 0.0, %v9575
    %v9577 = vpop.f32.mrb[0].mxu0
    %9578 = vdwg.mxu0
    %9579 = vmatprep.subr.mxu0 0.0
    %9580 = vmatpush1.msra.mxu0 %v220
    %9581 = vmatprep.subr.mxu0 0.0
    %9582 = vmatpush1.msra.mxu0 %v221
    %9583 = vmatprep.subr.mxu0 0.0
    %9584 = vmatpush1.msra.mxu0 %v222
    %9585 = vmatprep.subr.mxu0 0.0
    %9586 = vmatpush1.msra.mxu0 %v223
    %9587 = vmatprep.subr.mxu0 0.0
    %9588 = vmatpush1.msra.mxu0 0.0
    %9589 = vmatprep.subr.mxu0 0.0
    %9590 = vmatpush1.msra.mxu0 0.0
    %9591 = vmatprep.subr.mxu0 0.0
    %9592 = vmatpush1.msra.mxu0 0.0
    %9593 = vmatprep.subr.mxu0 0.0
    %9594 = vmatpush1.msra.mxu0 0.0
    %9595 = vmatprep.subr.mxu0 0.0
    %9596 = vmatpush1.msra.mxu0 0.0
    %9597 = vmatprep.subr.mxu0 0.0
    %9598 = vmatpush1.msra.mxu0 0.0
    %9599 = vmatprep.subr.mxu0 0.0
    %9600 = vmatpush1.msra.mxu0 0.0
    %9601 = vmatprep.subr.mxu0 0.0
    %9602 = vmatpush1.msra.mxu0 0.0
    %9603 = vmatprep.subr.mxu0 0.0
    %9604 = vmatpush1.msra.mxu0 0.0
    %9605 = vmatprep.subr.mxu0 0.0
    %9606 = vmatpush1.msra.mxu0 0.0
    %9607 = vmatprep.subr.mxu0 0.0
    %9608 = vmatpush1.msra.mxu0 0.0
    %9609 = vmatprep.subr.mxu0 0.0
    %9610 = vmatpush1.msra.mxu0 0.0
    %9611 = vmatprep.subr.mxu0 0.0
    %9612 = vmatpush1.msra.mxu0 0.0
    %9613 = vmatprep.subr.mxu0 0.0
    %9614 = vmatpush1.msra.mxu0 0.0
    %9615 = vmatprep.subr.mxu0 0.0
    %9616 = vmatpush1.msra.mxu0 0.0
    %9617 = vmatprep.subr.mxu0 0.0
    %9618 = vmatpush1.msra.mxu0 0.0
    %9619 = vmatprep.subr.mxu0 0.0
    %9620 = vmatpush1.msra.mxu0 0.0
    %9621 = vmatprep.subr.mxu0 0.0
    %9622 = vmatpush1.msra.mxu0 0.0
    %9623 = vmatprep.subr.mxu0 0.0
    %9624 = vmatpush1.msra.mxu0 0.0
    %9625 = vmatprep.subr.mxu0 0.0
    %9626 = vmatpush1.msra.mxu0 0.0
    %9627 = vmatprep.subr.mxu0 0.0
    %9628 = vmatpush1.msra.mxu0 0.0
    %9629 = vmatprep.subr.mxu0 0.0
    %9630 = vmatpush1.msra.mxu0 0.0
    %9631 = vmatprep.subr.mxu0 0.0
    %9632 = vmatpush1.msra.mxu0 0.0
    %9633 = vmatprep.subr.mxu0 0.0
    %9634 = vmatpush1.msra.mxu0 0.0
    %9635 = vmatprep.subr.mxu0 0.0
    %9636 = vmatpush1.msra.mxu0 0.0
    %9637 = vmatprep.subr.mxu0 0.0
    %9638 = vmatpush1.msra.mxu0 0.0
    %9639 = vmatprep.subr.mxu0 0.0
    %9640 = vmatpush1.msra.mxu0 0.0
    %9641 = vmatprep.subr.mxu0 0.0
    %9642 = vmatpush1.msra.mxu0 0.0
    %9643 = vmatprep.mubr.f32.mxu0 0.0
    %9644 = vmatmul.mubr.f32.gmra.mrb[0].mxu0 %v9295
    %v9645 = vpop.f32.mrb[0].mxu0
    %v9646 = vadd.f32 %v9576, %v9645
    %v9647 = vpop.f32.mrb[0].mxu0
    %9648 = vdwg.mxu0
    %v9649 = vadd.f32 %v9646, %v269
    %9650 = vmatprep.subr.mxu0 0.0
    %9651 = vmatpush1.msra.mxu0 %v244
    %9652 = vmatprep.subr.mxu0 0.0
    %9653 = vmatpush1.msra.mxu0 %v245
    %9654 = vmatprep.subr.mxu0 0.0
    %9655 = vmatpush1.msra.mxu0 %v246
    %9656 = vmatprep.subr.mxu0 0.0
    %9657 = vmatpush1.msra.mxu0 %v247
    %9658 = vmatprep.subr.mxu0 0.0
    %9659 = vmatpush1.msra.mxu0 0.0
    %9660 = vmatprep.subr.mxu0 0.0
    %9661 = vmatpush1.msra.mxu0 0.0
    %9662 = vmatprep.subr.mxu0 0.0
    %9663 = vmatpush1.msra.mxu0 0.0
    %9664 = vmatprep.subr.mxu0 0.0
    %9665 = vmatpush1.msra.mxu0 0.0
    %9666 = vmatprep.subr.mxu0 0.0
    %9667 = vmatpush1.msra.mxu0 0.0
    %9668 = vmatprep.subr.mxu0 0.0
    %9669 = vmatpush1.msra.mxu0 0.0
    %9670 = vmatprep.subr.mxu0 0.0
    %9671 = vmatpush1.msra.mxu0 0.0
    %9672 = vmatprep.subr.mxu0 0.0
    %9673 = vmatpush1.msra.mxu0 0.0
    %9674 = vmatprep.subr.mxu0 0.0
    %9675 = vmatpush1.msra.mxu0 0.0
    %9676 = vmatprep.subr.mxu0 0.0
    %9677 = vmatpush1.msra.mxu0 0.0
    %9678 = vmatprep.subr.mxu0 0.0
    %9679 = vmatpush1.msra.mxu0 0.0
    %9680 = vmatprep.subr.mxu0 0.0
    %9681 = vmatpush1.msra.mxu0 0.0
    %9682 = vmatprep.subr.mxu0 0.0
    %9683 = vmatpush1.msra.mxu0 0.0
    %9684 = vmatprep.subr.mxu0 0.0
    %9685 = vmatpush1.msra.mxu0 0.0
    %9686 = vmatprep.subr.mxu0 0.0
    %9687 = vmatpush1.msra.mxu0 0.0
    %9688 = vmatprep.subr.mxu0 0.0
    %9689 = vmatpush1.msra.mxu0 0.0
    %9690 = vmatprep.subr.mxu0 0.0
    %9691 = vmatpush1.msra.mxu0 0.0
    %9692 = vmatprep.subr.mxu0 0.0
    %9693 = vmatpush1.msra.mxu0 0.0
    %9694 = vmatprep.subr.mxu0 0.0
    %9695 = vmatpush1.msra.mxu0 0.0
    %9696 = vmatprep.subr.mxu0 0.0
    %9697 = vmatpush1.msra.mxu0 0.0
    %9698 = vmatprep.subr.mxu0 0.0
    %9699 = vmatpush1.msra.mxu0 0.0
    %9700 = vmatprep.subr.mxu0 0.0
    %9701 = vmatpush1.msra.mxu0 0.0
    %9702 = vmatprep.subr.mxu0 0.0
    %9703 = vmatpush1.msra.mxu0 0.0
    %9704 = vmatprep.subr.mxu0 0.0
    %9705 = vmatpush1.msra.mxu0 0.0
    %9706 = vmatprep.subr.mxu0 0.0
    %9707 = vmatpush1.msra.mxu0 0.0
    %9708 = vmatprep.subr.mxu0 0.0
    %9709 = vmatpush1.msra.mxu0 0.0
    %9710 = vmatprep.subr.mxu0 0.0
    %9711 = vmatpush1.msra.mxu0 0.0
    %9712 = vmatprep.subr.mxu0 0.0
    %9713 = vmatpush1.msra.mxu0 0.0
    %9714 = vmatprep.mubr.f32.mxu0 0.0
    %9715 = vmatmul.mubr.f32.gmra.mrb[0].mxu0 %v9222
    %v9716 = vpop.f32.mrb[0].mxu0
    %v9717 = vadd.f32 0.0, %v9716
    %v9718 = vpop.f32.mrb[0].mxu0
    %9719 = vdwg.mxu0
    %9720 = vmatprep.subr.mxu0 0.0
    %9721 = vmatpush1.msra.mxu0 %v225
    %9722 = vmatprep.subr.mxu0 0.0
    %9723 = vmatpush1.msra.mxu0 %v226
    %9724 = vmatprep.subr.mxu0 0.0
    %9725 = vmatpush1.msra.mxu0 %v227
    %9726 = vmatprep.subr.mxu0 0.0
    %9727 = vmatpush1.msra.mxu0 %v228
    %9728 = vmatprep.subr.mxu0 0.0
    %9729 = vmatpush1.msra.mxu0 0.0
    %9730 = vmatprep.subr.mxu0 0.0
    %9731 = vmatpush1.msra.mxu0 0.0
    %9732 = vmatprep.subr.mxu0 0.0
    %9733 = vmatpush1.msra.mxu0 0.0
    %9734 = vmatprep.subr.mxu0 0.0
    %9735 = vmatpush1.msra.mxu0 0.0
    %9736 = vmatprep.subr.mxu0 0.0
    %9737 = vmatpush1.msra.mxu0 0.0
    %9738 = vmatprep.subr.mxu0 0.0
    %9739 = vmatpush1.msra.mxu0 0.0
    %9740 = vmatprep.subr.mxu0 0.0
    %9741 = vmatpush1.msra.mxu0 0.0
    %9742 = vmatprep.subr.mxu0 0.0
    %9743 = vmatpush1.msra.mxu0 0.0
    %9744 = vmatprep.subr.mxu0 0.0
    %9745 = vmatpush1.msra.mxu0 0.0
    %9746 = vmatprep.subr.mxu0 0.0
    %9747 = vmatpush1.msra.mxu0 0.0
    %9748 = vmatprep.subr.mxu0 0.0
    %9749 = vmatpush1.msra.mxu0 0.0
    %9750 = vmatprep.subr.mxu0 0.0
    %9751 = vmatpush1.msra.mxu0 0.0
    %9752 = vmatprep.subr.mxu0 0.0
    %9753 = vmatpush1.msra.mxu0 0.0
    %9754 = vmatprep.subr.mxu0 0.0
    %9755 = vmatpush1.msra.mxu0 0.0
    %9756 = vmatprep.subr.mxu0 0.0
    %9757 = vmatpush1.msra.mxu0 0.0
    %9758 = vmatprep.subr.mxu0 0.0
    %9759 = vmatpush1.msra.mxu0 0.0
    %9760 = vmatprep.subr.mxu0 0.0
    %9761 = vmatpush1.msra.mxu0 0.0
    %9762 = vmatprep.subr.mxu0 0.0
    %9763 = vmatpush1.msra.mxu0 0.0
    %9764 = vmatprep.subr.mxu0 0.0
    %9765 = vmatpush1.msra.mxu0 0.0
    %9766 = vmatprep.subr.mxu0 0.0
    %9767 = vmatpush1.msra.mxu0 0.0
    %9768 = vmatprep.subr.mxu0 0.0
    %9769 = vmatpush1.msra.mxu0 0.0
    %9770 = vmatprep.subr.mxu0 0.0
    %9771 = vmatpush1.msra.mxu0 0.0
    %9772 = vmatprep.subr.mxu0 0.0
    %9773 = vmatpush1.msra.mxu0 0.0
    %9774 = vmatprep.subr.mxu0 0.0
    %9775 = vmatpush1.msra.mxu0 0.0
    %9776 = vmatprep.subr.mxu0 0.0
    %9777 = vmatpush1.msra.mxu0 0.0
    %9778 = vmatprep.subr.mxu0 0.0
    %9779 = vmatpush1.msra.mxu0 0.0
    %9780 = vmatprep.subr.mxu0 0.0
    %9781 = vmatpush1.msra.mxu0 0.0
    %9782 = vmatprep.subr.mxu0 0.0
    %9783 = vmatpush1.msra.mxu0 0.0
    %9784 = vmatprep.mubr.f32.mxu0 0.0
    %9785 = vmatmul.mubr.f32.gmra.mrb[0].mxu0 %v9295
    %v9786 = vpop.f32.mrb[0].mxu0
    %v9787 = vadd.f32 %v9717, %v9786
    %v9788 = vpop.f32.mrb[0].mxu0
    %9789 = vdwg.mxu0
    %v9790 = vadd.f32 %v9787, %v277
    %v9791 = vxor.u32 %v9367, 2147483648
    %v9792 = vmul.f32 %v9791, 1.442695
    %v9793 = vpow.pop %v9792
    %v9794 = vadd.f32 %v9793, 1.0
    %v9795 = vrcp.pop %v9794
    %v9796 = vmul.f32 1.0, %v9795
    %v9797 = vxor.u32 %v9508, 2147483648
    %v9798 = vmul.f32 %v9797, 1.442695
    %v9799 = vpow.pop %v9798
    %v9800 = vadd.f32 %v9799, 1.0
    %v9801 = vrcp.pop %v9800
    %v9802 = vmul.f32 1.0, %v9801
    %v9803 = vtanh.pop %v9649
    %v9804 = vxor.u32 %v9790, 2147483648
    %v9805 = vmul.f32 %v9804, 1.442695
    %v9806 = vpow.pop %v9805
    %v9807 = vadd.f32 %v9806, 1.0
    %v9808 = vrcp.pop %v9807
    %v9809 = vmul.f32 1.0, %v9808
    %v9810 = vmul.f32 %v9802, %v8622
    %v9811 = vmul.f32 %v9796, %v9803
    %v9812 = vadd.f32 %v9810, %v9811
    %v9813 = vtanh.pop %v9812
    %v9814 = vmul.f32 %v9809, %v9813
    %v9815 = vld [vmem:[%s9] sm:$0x1]
    %v9816 = vld [vmem:[#allocation10] sm:$0xff]
    %v9817 = vld [vmem:[#allocation10 + $0x8] sm:$0xff]
    %v9818 = vld [vmem:[#allocation10 + $0x10] sm:$0xff]
    %v9819 = vld [vmem:[#allocation10 + $0x18] sm:$0xff]
    %9820 = vmatprep.subr.mxu0 0.0
    %9821 = vmatpush1.msra.mxu0 %v9816
    %9822 = vmatprep.subr.mxu0 0.0
    %9823 = vmatpush1.msra.mxu0 %v9817
    %9824 = vmatprep.subr.mxu0 0.0
    %9825 = vmatpush1.msra.mxu0 %v9818
    %9826 = vmatprep.subr.mxu0 0.0
    %9827 = vmatpush1.msra.mxu0 %v9819
    %9828 = vmatprep.subr.mxu0 0.0
    %9829 = vmatpush1.msra.mxu0 0.0
    %9830 = vmatprep.subr.mxu0 0.0
    %9831 = vmatpush1.msra.mxu0 0.0
    %9832 = vmatprep.subr.mxu0 0.0
    %9833 = vmatpush1.msra.mxu0 0.0
    %9834 = vmatprep.subr.mxu0 0.0
    %9835 = vmatpush1.msra.mxu0 0.0
    %9836 = vmatprep.subr.mxu0 0.0
    %9837 = vmatpush1.msra.mxu0 0.0
    %9838 = vmatprep.subr.mxu0 0.0
    %9839 = vmatpush1.msra.mxu0 0.0
    %9840 = vmatprep.subr.mxu0 0.0
    %9841 = vmatpush1.msra.mxu0 0.0
    %9842 = vmatprep.subr.mxu0 0.0
    %9843 = vmatpush1.msra.mxu0 0.0
    %9844 = vmatprep.subr.mxu0 0.0
    %9845 = vmatpush1.msra.mxu0 0.0
    %9846 = vmatprep.subr.mxu0 0.0
    %9847 = vmatpush1.msra.mxu0 0.0
    %9848 = vmatprep.subr.mxu0 0.0
    %9849 = vmatpush1.msra.mxu0 0.0
    %9850 = vmatprep.subr.mxu0 0.0
    %9851 = vmatpush1.msra.mxu0 0.0
    %9852 = vmatprep.subr.mxu0 0.0
    %9853 = vmatpush1.msra.mxu0 0.0
    %9854 = vmatprep.subr.mxu0 0.0
    %9855 = vmatpush1.msra.mxu0 0.0
    %9856 = vmatprep.subr.mxu0 0.0
    %9857 = vmatpush1.msra.mxu0 0.0
    %9858 = vmatprep.subr.mxu0 0.0
    %9859 = vmatpush1.msra.mxu0 0.0
    %9860 = vmatprep.subr.mxu0 0.0
    %9861 = vmatpush1.msra.mxu0 0.0
    %9862 = vmatprep.subr.mxu0 0.0
    %9863 = vmatpush1.msra.mxu0 0.0
    %9864 = vmatprep.subr.mxu0 0.0
    %9865 = vmatpush1.msra.mxu0 0.0
    %9866 = vmatprep.subr.mxu0 0.0
    %9867 = vmatpush1.msra.mxu0 0.0
    %9868 = vmatprep.subr.mxu0 0.0
    %9869 = vmatpush1.msra.mxu0 0.0
    %9870 = vmatprep.subr.mxu0 0.0
    %9871 = vmatpush1.msra.mxu0 0.0
    %9872 = vmatprep.subr.mxu0 0.0
    %9873 = vmatpush1.msra.mxu0 0.0
    %9874 = vmatprep.subr.mxu0 0.0
    %9875 = vmatpush1.msra.mxu0 0.0
    %9876 = vmatprep.subr.mxu0 0.0
    %9877 = vmatpush1.msra.mxu0 0.0
    %9878 = vmatprep.subr.mxu0 0.0
    %9879 = vmatpush1.msra.mxu0 0.0
    %9880 = vmatprep.subr.mxu0 0.0
    %9881 = vmatpush1.msra.mxu0 0.0
    %9882 = vmatprep.subr.mxu0 0.0
    %9883 = vmatpush1.msra.mxu0 0.0
    %9884 = vmatprep.mubr.f32.mxu0 0.0
    %9885 = vmatmul.mubr.f32.gmra.mrb[0].mxu0 %v9295
    %v9886 = vpop.f32.mrb[0].mxu0
    %v9887 = vadd.f32 0.0, %v9886
    %v9888 = vpop.f32.mrb[0].mxu0
    %9889 = vdwg.mxu0
    %v9891 = vlaneseq
    %v9892 = vshrl.u32 %v9891, 7
    %v9893 = vsub.s32 0, %v9892
    %v9894 = vrot.slane %v9815, %v9893
    %v9896 = vadd.f32 %v9894, %v9887
    %v9897 = vld [vmem:[#allocation11] sm:$0xff]
    %v9898 = vld [vmem:[#allocation11 + $0x8] sm:$0xff]
    %v9899 = vld [vmem:[#allocation11 + $0x10] sm:$0xff]
    %v9900 = vld [vmem:[#allocation11 + $0x18] sm:$0xff]
    %v9902 = vsel %vm281, %v9814, 0
    %9904 = vmatprep.subr.mxu0 0.0
    %9905 = vmatpush1.msra.mxu0 %v9897
    %9906 = vmatprep.subr.mxu0 0.0
    %9907 = vmatpush1.msra.mxu0 %v9898
    %9908 = vmatprep.subr.mxu0 0.0
    %9909 = vmatpush1.msra.mxu0 %v9899
    %9910 = vmatprep.subr.mxu0 0.0
    %9911 = vmatpush1.msra.mxu0 %v9900
    %9912 = vmatprep.subr.mxu0 0.0
    %9913 = vmatpush1.msra.mxu0 0.0
    %9914 = vmatprep.subr.mxu0 0.0
    %9915 = vmatpush1.msra.mxu0 0.0
    %9916 = vmatprep.subr.mxu0 0.0
    %9917 = vmatpush1.msra.mxu0 0.0
    %9918 = vmatprep.subr.mxu0 0.0
    %9919 = vmatpush1.msra.mxu0 0.0
    %9920 = vmatprep.subr.mxu0 0.0
    %9921 = vmatpush1.msra.mxu0 0.0
    %9922 = vmatprep.subr.mxu0 0.0
    %9923 = vmatpush1.msra.mxu0 0.0
    %9924 = vmatprep.subr.mxu0 0.0
    %9925 = vmatpush1.msra.mxu0 0.0
    %9926 = vmatprep.subr.mxu0 0.0
    %9927 = vmatpush1.msra.mxu0 0.0
    %9928 = vmatprep.subr.mxu0 0.0
    %9929 = vmatpush1.msra.mxu0 0.0
    %9930 = vmatprep.subr.mxu0 0.0
    %9931 = vmatpush1.msra.mxu0 0.0
    %9932 = vmatprep.subr.mxu0 0.0
    %9933 = vmatpush1.msra.mxu0 0.0
    %9934 = vmatprep.subr.mxu0 0.0
    %9935 = vmatpush1.msra.mxu0 0.0
    %9936 = vmatprep.subr.mxu0 0.0
    %9937 = vmatpush1.msra.mxu0 0.0
    %9938 = vmatprep.subr.mxu0 0.0
    %9939 = vmatpush1.msra.mxu0 0.0
    %9940 = vmatprep.subr.mxu0 0.0
    %9941 = vmatpush1.msra.mxu0 0.0
    %9942 = vmatprep.subr.mxu0 0.0
    %9943 = vmatpush1.msra.mxu0 0.0
    %9944 = vmatprep.subr.mxu0 0.0
    %9945 = vmatpush1.msra.mxu0 0.0
    %9946 = vmatprep.subr.mxu0 0.0
    %9947 = vmatpush1.msra.mxu0 0.0
    %9948 = vmatprep.subr.mxu0 0.0
    %9949 = vmatpush1.msra.mxu0 0.0
    %9950 = vmatprep.subr.mxu0 0.0
    %9951 = vmatpush1.msra.mxu0 0.0
    %9952 = vmatprep.subr.mxu0 0.0
    %9953 = vmatpush1.msra.mxu0 0.0
    %9954 = vmatprep.subr.mxu0 0.0
    %9955 = vmatpush1.msra.mxu0 0.0
    %9956 = vmatprep.subr.mxu0 0.0
    %9957 = vmatpush1.msra.mxu0 0.0
    %9958 = vmatprep.subr.mxu0 0.0
    %9959 = vmatpush1.msra.mxu0 0.0
    %9960 = vmatprep.subr.mxu0 0.0
    %9961 = vmatpush1.msra.mxu0 0.0
    %9962 = vmatprep.subr.mxu0 0.0
    %9963 = vmatpush1.msra.mxu0 0.0
    %9964 = vmatprep.subr.mxu0 0.0
    %9965 = vmatpush1.msra.mxu0 0.0
    %9966 = vmatprep.subr.mxu0 0.0
    %9967 = vmatpush1.msra.mxu0 0.0
    %9968 = vmatprep.mubr.f32.mxu0 0.0
    %9969 = vmatmul.mubr.f32.gmra.mrb[0].mxu0 %v9902
    %v9970 = vpop.f32.mrb[0].mxu0
    %v9971 = vadd.f32 0.0, %v9970
    %v9972 = vpop.f32.mrb[0].mxu0
    %9973 = vdwg.mxu0
    %v9974 = vadd.f32 %v9896, %v9971
    %v9975 = vmax.f32 %v9974, 0.0
    %v9976 = vld [vmem:[%s10] sm:$0xff]
    %v9977 = vld [vmem:[%s10 + $0x8] sm:$0xff]
    %v9978 = vld [vmem:[%s10 + $0x10] sm:$0xff]
    %v9979 = vld [vmem:[%s10 + $0x18] sm:$0xff]
    %v9980 = vld [vmem:[%s10 + $0x20] sm:$0xff]
    %v9981 = vld [vmem:[%s10 + $0x28] sm:$0xff]
    %v9982 = vld [vmem:[%s10 + $0x30] sm:$0xff]
    %v9983 = vld [vmem:[%s10 + $0x38] sm:$0xff]
    %v9984 = vld [vmem:[%s10 + $0x40] sm:$0xff]
    %v9985 = vld [vmem:[%s10 + $0x48] sm:$0xff]
    %v9986 = vld [vmem:[%s10 + $0x50] sm:$0xff]
    %v9987 = vld [vmem:[%s10 + $0x58] sm:$0xff]
    %v9988 = vld [vmem:[%s10 + $0x60] sm:$0xff]
    %v9989 = vld [vmem:[%s10 + $0x68] sm:$0xff]
    %v9990 = vld [vmem:[%s10 + $0x70] sm:$0xff]
    %v9991 = vld [vmem:[%s10 + $0x78] sm:$0xff]
    %v9992 = vld [vmem:[#allocation13] sm:$0x1]
    %v9994 = vlaneseq
    %v9995 = vshrl.u32 %v9994, 7
    %v9996 = vsub.s32 0, %v9995
    %v9997 = vrot.slane %v9992, %v9996
    %9999 = vmatprep.subr.mxu0 0.0
    %10000 = vmatpush1.msra.mxu0 %v9976
    %10001 = vmatprep.subr.mxu0 0.0
    %10002 = vmatpush1.msra.mxu0 %v9977
    %10003 = vmatprep.subr.mxu0 0.0
    %10004 = vmatpush1.msra.mxu0 %v9978
    %10005 = vmatprep.subr.mxu0 0.0
    %10006 = vmatpush1.msra.mxu0 %v9979
    %10007 = vmatprep.subr.mxu0 0.0
    %10008 = vmatpush1.msra.mxu0 %v9980
    %10009 = vmatprep.subr.mxu0 0.0
    %10010 = vmatpush1.msra.mxu0 %v9981
    %10011 = vmatprep.subr.mxu0 0.0
    %10012 = vmatpush1.msra.mxu0 %v9982
    %10013 = vmatprep.subr.mxu0 0.0
    %10014 = vmatpush1.msra.mxu0 %v9983
    %10015 = vmatprep.subr.mxu0 0.0
    %10016 = vmatpush1.msra.mxu0 %v9984
    %10017 = vmatprep.subr.mxu0 0.0
    %10018 = vmatpush1.msra.mxu0 %v9985
    %10019 = vmatprep.subr.mxu0 0.0
    %10020 = vmatpush1.msra.mxu0 %v9986
    %10021 = vmatprep.subr.mxu0 0.0
    %10022 = vmatpush1.msra.mxu0 %v9987
    %10023 = vmatprep.subr.mxu0 0.0
    %10024 = vmatpush1.msra.mxu0 %v9988
    %10025 = vmatprep.subr.mxu0 0.0
    %10026 = vmatpush1.msra.mxu0 %v9989
    %10027 = vmatprep.subr.mxu0 0.0
    %10028 = vmatpush1.msra.mxu0 %v9990
    %10029 = vmatprep.subr.mxu0 0.0
    %10030 = vmatpush1.msra.mxu0 %v9991
    %10031 = vmatprep.subr.mxu0 0.0
    %10032 = vmatpush1.msra.mxu0 0.0
    %10033 = vmatprep.subr.mxu0 0.0
    %10034 = vmatpush1.msra.mxu0 0.0
    %10035 = vmatprep.subr.mxu0 0.0
    %10036 = vmatpush1.msra.mxu0 0.0
    %10037 = vmatprep.subr.mxu0 0.0
    %10038 = vmatpush1.msra.mxu0 0.0
    %10039 = vmatprep.subr.mxu0 0.0
    %10040 = vmatpush1.msra.mxu0 0.0
    %10041 = vmatprep.subr.mxu0 0.0
    %10042 = vmatpush1.msra.mxu0 0.0
    %10043 = vmatprep.subr.mxu0 0.0
    %10044 = vmatpush1.msra.mxu0 0.0
    %10045 = vmatprep.subr.mxu0 0.0
    %10046 = vmatpush1.msra.mxu0 0.0
    %10047 = vmatprep.subr.mxu0 0.0
    %10048 = vmatpush1.msra.mxu0 0.0
    %10049 = vmatprep.subr.mxu0 0.0
    %10050 = vmatpush1.msra.mxu0 0.0
    %10051 = vmatprep.subr.mxu0 0.0
    %10052 = vmatpush1.msra.mxu0 0.0
    %10053 = vmatprep.subr.mxu0 0.0
    %10054 = vmatpush1.msra.mxu0 0.0
    %10055 = vmatprep.subr.mxu0 0.0
    %10056 = vmatpush1.msra.mxu0 0.0
    %10057 = vmatprep.subr.mxu0 0.0
    %10058 = vmatpush1.msra.mxu0 0.0
    %10059 = vmatprep.subr.mxu0 0.0
    %10060 = vmatpush1.msra.mxu0 0.0
    %10061 = vmatprep.subr.mxu0 0.0
    %10062 = vmatpush1.msra.mxu0 0.0
    %10063 = vmatprep.mubr.f32.mxu0 0.0
    %10064 = vmatmul.mubr.f32.gmra.mrb[0].mxu0 %v9975
    %v10065 = vpop.f32.mrb[0].mxu0
    %v10066 = vadd.f32 %v9997, %v10065
    %v10067 = vpop.f32.mrb[0].mxu0
    %10068 = vdwg.mxu0
    %v10069 = vmax.f32 %v10066, 0.0
    %v10070 = vld [vmem:[%s12] sm:$0xff]
    %v10071 = vld [vmem:[%s12 + $0x8] sm:$0xff]
    %v10072 = vld [vmem:[%s12 + $0x10] sm:$0xff]
    %v10073 = vld [vmem:[%s12 + $0x18] sm:$0xff]
    %v10074 = vld [vmem:[%s12 + $0x20] sm:$0xff]
    %v10075 = vld [vmem:[%s12 + $0x28] sm:$0xff]
    %v10076 = vld [vmem:[%s12 + $0x30] sm:$0xff]
    %v10077 = vld [vmem:[%s12 + $0x38] sm:$0xff]
    %v10078 = vld [vmem:[#allocation14] sm:$0x1]
    %v10080 = vlaneseq
    %v10081 = vshrl.u32 %v10080, 7
    %v10082 = vsub.s32 0, %v10081
    %v10083 = vrot.slane %v10078, %v10082
    %vm10085 = vcmask 523264
    %v10087 = vsel %vm10085, %v10069, 0
    %10089 = vmatprep.subr.mxu0 0.0
    %10090 = vmatpush1.msra.mxu0 %v10070
    %10091 = vmatprep.subr.mxu0 0.0
    %10092 = vmatpush1.msra.mxu0 %v10071
    %10093 = vmatprep.subr.mxu0 0.0
    %10094 = vmatpush1.msra.mxu0 %v10072
    %10095 = vmatprep.subr.mxu0 0.0
    %10096 = vmatpush1.msra.mxu0 %v10073
    %10097 = vmatprep.subr.mxu0 0.0
    %10098 = vmatpush1.msra.mxu0 %v10074
    %10099 = vmatprep.subr.mxu0 0.0
    %10100 = vmatpush1.msra.mxu0 %v10075
    %10101 = vmatprep.subr.mxu0 0.0
    %10102 = vmatpush1.msra.mxu0 %v10076
    %10103 = vmatprep.subr.mxu0 0.0
    %10104 = vmatpush1.msra.mxu0 %v10077
    %10105 = vmatprep.subr.mxu0 0.0
    %10106 = vmatpush1.msra.mxu0 0.0
    %10107 = vmatprep.subr.mxu0 0.0
    %10108 = vmatpush1.msra.mxu0 0.0
    %10109 = vmatprep.subr.mxu0 0.0
    %10110 = vmatpush1.msra.mxu0 0.0
    %10111 = vmatprep.subr.mxu0 0.0
    %10112 = vmatpush1.msra.mxu0 0.0
    %10113 = vmatprep.subr.mxu0 0.0
    %10114 = vmatpush1.msra.mxu0 0.0
    %10115 = vmatprep.subr.mxu0 0.0
    %10116 = vmatpush1.msra.mxu0 0.0
    %10117 = vmatprep.subr.mxu0 0.0
    %10118 = vmatpush1.msra.mxu0 0.0
    %10119 = vmatprep.subr.mxu0 0.0
    %10120 = vmatpush1.msra.mxu0 0.0
    %10121 = vmatprep.subr.mxu0 0.0
    %10122 = vmatpush1.msra.mxu0 0.0
    %10123 = vmatprep.subr.mxu0 0.0
    %10124 = vmatpush1.msra.mxu0 0.0
    %10125 = vmatprep.subr.mxu0 0.0
    %10126 = vmatpush1.msra.mxu0 0.0
    %10127 = vmatprep.subr.mxu0 0.0
    %10128 = vmatpush1.msra.mxu0 0.0
    %10129 = vmatprep.subr.mxu0 0.0
    %10130 = vmatpush1.msra.mxu0 0.0
    %10131 = vmatprep.subr.mxu0 0.0
    %10132 = vmatpush1.msra.mxu0 0.0
    %10133 = vmatprep.subr.mxu0 0.0
    %10134 = vmatpush1.msra.mxu0 0.0
    %10135 = vmatprep.subr.mxu0 0.0
    %10136 = vmatpush1.msra.mxu0 0.0
    %10137 = vmatprep.subr.mxu0 0.0
    %10138 = vmatpush1.msra.mxu0 0.0
    %10139 = vmatprep.subr.mxu0 0.0
    %10140 = vmatpush1.msra.mxu0 0.0
    %10141 = vmatprep.subr.mxu0 0.0
    %10142 = vmatpush1.msra.mxu0 0.0
    %10143 = vmatprep.subr.mxu0 0.0
    %10144 = vmatpush1.msra.mxu0 0.0
    %10145 = vmatprep.subr.mxu0 0.0
    %10146 = vmatpush1.msra.mxu0 0.0
    %10147 = vmatprep.subr.mxu0 0.0
    %10148 = vmatpush1.msra.mxu0 0.0
    %10149 = vmatprep.subr.mxu0 0.0
    %10150 = vmatpush1.msra.mxu0 0.0
    %10151 = vmatprep.subr.mxu0 0.0
    %10152 = vmatpush1.msra.mxu0 0.0
    %10153 = vmatprep.mubr.f32.mxu0 0.0
    %10154 = vmatmul.mubr.f32.gmra.mrb[0].mxu0 %v10087
    %v10155 = vpop.f32.mrb[0].mxu0
    %v10156 = vadd.f32 %v10083, %v10155
    %v10157 = vpop.f32.mrb[0].mxu0
    %10158 = vdwg.mxu0
    %vm10159 = vcmask 107520
    %10160 = vst.msk [vmem:[#allocation16] sm:$0x3] %vm10159, %v10156
    // Predicated region
    $region90: #{deep_lstm_forward.1} parent=1 // pred_check
      _
    $region91: #{deep_lstm_forward.1} parent=1 // pred_check_branch
      %10162 = sbr.rel (0) target = $region93
    $region92: #{deep_lstm_forward.1} parent=1 // pred_region
      %s10164 = ssub.s32 32, 32
      %10165 = vsyncadd [#allocation4], %s10164
      %s10167 = sshll.u32 [#allocation16], 4
      %s10168 = int_to_ptr.vmem [resolvable:$true] %s10167
      %10170 = dma.vmem_to_hbm [thread:$0]  %s10168, 32, %s14, [#allocation4]
    $region93: #{deep_lstm_forward.1} parent=1 // pred_fallthru
      _
    // Predicated region
    $region94: #{deep_lstm_forward.1} parent=1 // pred_check
      _
    $region95: #{deep_lstm_forward.1} parent=1 // pred_check_branch
      %10172 = sbr.rel (0) target = $region97
    $region96: #{deep_lstm_forward.1} parent=1 // pred_region
      %10173 = dma.done [#allocation4], 32
    $region97: #{deep_lstm_forward.1} parent=1 // pred_fallthru
      _
    %10174 = vsyncpa [#allocation3], 1
    %10175 = vsyncpa [#allocation6], 1
    %10176 = vsyncpa [#allocation9], 1
    %10177 = vsyncpa [#allocation12], 1
    %10178 = vsyncpa [#allocation15], 1
    %10179 = vsyncpa [#allocation4], 1

</llo_original>
